<compile_context>
chip_gen: v7x
topology: tpu7x:2x2x1
jax: 0.10.0
libtpu: 0.0.40
codegen_flags: <defaults>
</compile_context>

<pallas_src>
import jax
import jax.numpy as jnp
from jax.experimental import pallas as pl
from jax.experimental.pallas import tpu as pltpu

LANE = 128


def basic_block_kernel(x_ref, w1_ref, s1_ref, b1_ref, w2_ref, s2_ref, b2_ref,
                       out_ref, xpad_s, midpad_s, acc_s):
    # x_ref    : (1, H, W, Cp)  f32   one image, channels zero-padded to Cp
    # w1_ref   : (9, Cp, Cp)    bf16  conv1 taps, tap index = kh*3 + kw
    # s1_ref/b1_ref : (1, Cp)   f32   folded BN1 scale / bias
    # w2_ref   : (9, Cp, Cp)    bf16  conv2 taps
    # s2_ref/b2_ref : (1, Cp)   f32   folded BN2 scale / bias
    # out_ref  : (1, H, W, Cp)  f32
    # xpad_s   : (H+2, W+2, Cp) f32   spatially padded input (scratch)
    # midpad_s : (H+2, W+2, Cp) f32   spatially padded relu(bn1(conv1)) (scratch)
    # acc_s    : (H*W, Cp)      f32   matmul accumulator (scratch)
    _, H, W, Cp = out_ref.shape

    # Zero only the 1-pixel halo ring of the padded scratches; the interior is
    # fully overwritten below.  Done every step (with a "parallel" batch axis
    # each core has its own scratch, so "first iteration only" is unsafe).
    zrow = jnp.zeros((1, W + 2, Cp), xpad_s.dtype)
    zcol = jnp.zeros((H + 2, 1, Cp), xpad_s.dtype)
    xpad_s[0:1, :, :] = zrow
    xpad_s[H + 1:H + 2, :, :] = zrow
    xpad_s[:, 0:1, :] = zcol
    xpad_s[:, W + 1:W + 2, :] = zcol
    midpad_s[0:1, :, :] = zrow
    midpad_s[H + 1:H + 2, :, :] = zrow
    midpad_s[:, 0:1, :] = zcol
    midpad_s[:, W + 1:W + 2, :] = zcol

    x = x_ref[0]                                   # (H, W, Cp) f32
    xpad_s[1:H + 1, 1:W + 1, :] = x

    # ---- conv1: 3x3 stride 1 as 9 bf16 MXU matmuls, f32 accumulation ----
    acc_s[...] = jnp.zeros_like(acc_s)
    for kh in range(3):
        for kw in range(3):
            patch = xpad_s[kh:kh + H, kw:kw + W, :].reshape(H * W, Cp)
            acc_s[...] += jnp.dot(patch.astype(jnp.bfloat16),
                                  w1_ref[kh * 3 + kw],
                                  preferred_element_type=jnp.float32)

    # ---- bn1 + relu (f32 epilogue), stage padded intermediate for conv2 ----
    mid = jnp.maximum(acc_s[...] * s1_ref[...] + b1_ref[...], 0.0)
    midpad_s[1:H + 1, 1:W + 1, :] = mid.reshape(H, W, Cp)

    # ---- conv2: 3x3 stride 1 ----
    acc_s[...] = jnp.zeros_like(acc_s)
    for kh in range(3):
        for kw in range(3):
            patch = midpad_s[kh:kh + H, kw:kw + W, :].reshape(H * W, Cp)
            acc_s[...] += jnp.dot(patch.astype(jnp.bfloat16),
                                  w2_ref[kh * 3 + kw],
                                  preferred_element_type=jnp.float32)

    # ---- bn2 + residual add + relu (residual straight from the input block) ----
    out = acc_s[...] * s2_ref[...] + b2_ref[...]
    out = out + x.reshape(H * W, Cp)
    out_ref[0] = jnp.maximum(out, 0.0).reshape(H, W, Cp).astype(out_ref.dtype)


def basic_block_forward(x_nchw, params):
    """x_nchw: (N, Cin, H, W) float32.  Returns (N, C, H, W), matching PyTorch."""
    w1, g1, be1, m1, v1, w2, g2, be2, m2, v2 = params
    eps = 1e-5

    N, Cin, H, W = x_nchw.shape
    C = w1.shape[0]
    assert Cin == C, "stride=1 BasicBlock w/o downsample requires inplanes == planes"
    Cp = ((C + LANE - 1) // LANE) * LANE           # channels padded to lane width

    # Fold BN (inference mode) into per-channel scale / bias.
    s1 = g1 / jnp.sqrt(v1 + eps)
    b1 = be1 - m1 * s1
    s2 = g2 / jnp.sqrt(v2 + eps)
    b2 = be2 - m2 * s2

    def pad_last(a, to):
        return jnp.pad(a, [(0, 0)] * (a.ndim - 1) + [(0, to - a.shape[-1])])

    # NCHW -> NHWC + channel zero-pad (layout glue; spatial pad happens in-kernel).
    x = pad_last(jnp.transpose(x_nchw, (0, 2, 3, 1)), Cp)       # (N, H, W, Cp) f32

    def prep_w(w):
        # PyTorch (Cout, Cin, 3, 3) -> (9, Cp, Cp) bf16, tap index = kh*3 + kw
        wk = jnp.transpose(w, (2, 3, 1, 0))                     # (3, 3, Cin, Cout)
        wk = jnp.pad(wk, ((0, 0), (0, 0),
                          (0, Cp - wk.shape[2]), (0, Cp - wk.shape[3])))
        return wk.reshape(9, Cp, Cp).astype(jnp.bfloat16)

    w1_k, w2_k = prep_w(w1), prep_w(w2)
    s1p = pad_last(s1, Cp).reshape(1, Cp).astype(jnp.float32)
    b1p = pad_last(b1, Cp).reshape(1, Cp).astype(jnp.float32)
    s2p = pad_last(s2, Cp).reshape(1, Cp).astype(jnp.float32)
    b2p = pad_last(b2, Cp).reshape(1, Cp).astype(jnp.float32)

    img_spec = pl.BlockSpec((1, H, W, Cp), lambda n: (n, 0, 0, 0))
    w_spec = pl.BlockSpec((9, Cp, Cp), lambda n: (0, 0, 0))     # resident across grid
    v_spec = pl.BlockSpec((1, Cp), lambda n: (0, 0))            # resident across grid

    out_nhwc = pl.pallas_call(
        basic_block_kernel,
        out_shape=jax.ShapeDtypeStruct((N, H, W, Cp), jnp.float32),
        grid=(N,),
        in_specs=[img_spec, w_spec, v_spec, v_spec, w_spec, v_spec, v_spec],
        out_specs=img_spec,
        scratch_shapes=[
            pltpu.VMEM((H + 2, W + 2, Cp), jnp.float32),   # padded input
            pltpu.VMEM((H + 2, W + 2, Cp), jnp.float32),   # padded intermediate
            pltpu.VMEM((H * W, Cp), jnp.float32),          # conv accumulator
        ],
        compiler_params=pltpu.CompilerParams(
            dimension_semantics=("parallel",),
        ),
    )(x, w1_k, s1p, b1p, w2_k, s2p, b2p)

    # Drop channel padding, back to NCHW to match the PyTorch module.
    return jnp.transpose(out_nhwc[..., :C], (0, 3, 1, 2))


def _reference(x_nchw, params):
    """Pure-JAX f32 reference (inference-mode BN), NCHW."""
    w1, g1, be1, m1, v1, w2, g2, be2, m2, v2 = params
    eps = 1e-5

    def conv3x3(x, w):
        return jax.lax.conv_general_dilated(
            x, w, window_strides=(1, 1), padding=((1, 1), (1, 1)),
            dimension_numbers=('NCHW', 'OIHW', 'NCHW'))

    def bn(x, g, b, m, v):
        return (x - m[None, :, None, None]) / jnp.sqrt(v[None, :, None, None] + eps) \
            * g[None, :, None, None] + b[None, :, None, None]

    out = jax.nn.relu(bn(conv3x3(x_nchw, w1), g1, be1, m1, v1))
    out = bn(conv3x3(out, w2), g2, be2, m2, v2)
    return jax.nn.relu(out + x_nchw)


if __name__ == "__main__":
    N, C, H, W = 2, 4, 16, 16          # inplanes = planes = 4, stride = 1
    key = jax.random.PRNGKey(0)
    ks = jax.random.split(key, 11)

    x = jax.random.normal(ks[0], (N, C, H, W), jnp.float32)

    w1 = jax.random.normal(ks[1], (C, C, 3, 3), jnp.float32) * 0.1
    g1 = jax.random.normal(ks[2], (C,), jnp.float32) * 0.1 + 1.0
    be1 = jax.random.normal(ks[3], (C,), jnp.float32) * 0.1
    m1 = jax.random.normal(ks[4], (C,), jnp.float32) * 0.1
    v1 = jnp.abs(jax.random.normal(ks[5], (C,), jnp.float32)) + 0.5

    w2 = jax.random.normal(ks[6], (C, C, 3, 3), jnp.float32) * 0.1
    g2 = jax.random.normal(ks[7], (C,), jnp.float32) * 0.1 + 1.0
    be2 = jax.random.normal(ks[8], (C,), jnp.float32) * 0.1
    m2 = jax.random.normal(ks[9], (C,), jnp.float32) * 0.1
    v2 = jnp.abs(jax.random.normal(ks[10], (C,), jnp.float32)) + 0.5

    params = (w1, g1, be1, m1, v1, w2, g2, be2, m2, v2)

    out = jax.block_until_ready(basic_block_forward(x, params))
    ref = jax.block_until_ready(_reference(x, params))

    assert out.shape == (N, C, H, W)
    # bf16 MXU inputs (f32 accumulation) -> relaxed tolerance vs. the f32 reference.
    max_err = jnp.max(jnp.abs(out - ref))
    assert jnp.allclose(out, ref, atol=5e-2, rtol=5e-2), f"max err {max_err}"
    print("KERNEL_OK")
</pallas_src>

<mosaic_0001>
module attributes {stable_mosaic.version = 11 : i64} {
  func.func @basic_block_kernel(%arg0: i32, %arg1: memref<1x16x16x128xf32, #tpu.memory_space<vmem>>, %arg2: memref<9x128x128xbf16, #tpu.memory_space<vmem>>, %arg3: memref<1x128xf32, #tpu.memory_space<vmem>>, %arg4: memref<1x128xf32, #tpu.memory_space<vmem>>, %arg5: memref<9x128x128xbf16, #tpu.memory_space<vmem>>, %arg6: memref<1x128xf32, #tpu.memory_space<vmem>>, %arg7: memref<1x128xf32, #tpu.memory_space<vmem>>, %arg8: memref<1x16x16x128xf32, #tpu.memory_space<vmem>>, %arg9: memref<18x18x128xf32, #tpu.memory_space<vmem>>, %arg10: memref<18x18x128xf32, #tpu.memory_space<vmem>>, %arg11: memref<256x128xf32, #tpu.memory_space<vmem>>) attributes {dimension_semantics = [#tpu.dimension_semantics<parallel>], iteration_bounds = array<i64: 2>, scalar_prefetch = 0 : i64, scratch_operands = 3 : i64, tpu.core_type = #tpu.core_type<tc>, window_params = [{transform_indices = @transform_0, window_bounds = array<i64: 1, 16, 16, 128>}, {pipeline_mode = #tpu.pipeline_mode<synchronous>, transform_indices = @transform_1, window_bounds = array<i64: 9, 128, 128>}, {pipeline_mode = #tpu.pipeline_mode<synchronous>, transform_indices = @transform_2, window_bounds = array<i64: 1, 128>}, {pipeline_mode = #tpu.pipeline_mode<synchronous>, transform_indices = @transform_3, window_bounds = array<i64: 1, 128>}, {pipeline_mode = #tpu.pipeline_mode<synchronous>, transform_indices = @transform_4, window_bounds = array<i64: 9, 128, 128>}, {pipeline_mode = #tpu.pipeline_mode<synchronous>, transform_indices = @transform_5, window_bounds = array<i64: 1, 128>}, {pipeline_mode = #tpu.pipeline_mode<synchronous>, transform_indices = @transform_6, window_bounds = array<i64: 1, 128>}, {transform_indices = @transform_7, window_bounds = array<i64: 1, 16, 16, 128>}]} {
    %cst = arith.constant 0.000000e+00 : f32
    %0 = vector.broadcast %cst : f32 to vector<1x18x128xf32>
    %cst_0 = arith.constant 0.000000e+00 : f32
    %1 = vector.broadcast %cst_0 : f32 to vector<18x1x128xf32>
    %c0 = arith.constant 0 : index
    %c0_1 = arith.constant 0 : index
    %c0_2 = arith.constant 0 : index
    %2 = vector.load %arg9[%c0, %c0_1, %c0_2] : memref<18x18x128xf32, #tpu.memory_space<vmem>>, vector<1x18x128xf32>
    tpu.vector_store %arg9[%c0, %c0_1, %c0_2], %0 {strides = array<i32>} : memref<18x18x128xf32, #tpu.memory_space<vmem>>, vector<1x18x128xf32>,
    %c17 = arith.constant 17 : index
    %c0_3 = arith.constant 0 : index
    %c0_4 = arith.constant 0 : index
    %3 = vector.load %arg9[%c17, %c0_3, %c0_4] : memref<18x18x128xf32, #tpu.memory_space<vmem>>, vector<1x18x128xf32>
    tpu.vector_store %arg9[%c17, %c0_3, %c0_4], %0 {strides = array<i32>} : memref<18x18x128xf32, #tpu.memory_space<vmem>>, vector<1x18x128xf32>,
    %c0_5 = arith.constant 0 : index
    %c0_6 = arith.constant 0 : index
    %c0_7 = arith.constant 0 : index
    %4 = vector.load %arg9[%c0_5, %c0_6, %c0_7] : memref<18x18x128xf32, #tpu.memory_space<vmem>>, vector<18x1x128xf32>
    tpu.vector_store %arg9[%c0_5, %c0_6, %c0_7], %1 {strides = array<i32>} : memref<18x18x128xf32, #tpu.memory_space<vmem>>, vector<18x1x128xf32>,
    %c0_8 = arith.constant 0 : index
    %c17_9 = arith.constant 17 : index
    %c0_10 = arith.constant 0 : index
    %5 = vector.load %arg9[%c0_8, %c17_9, %c0_10] : memref<18x18x128xf32, #tpu.memory_space<vmem>>, vector<18x1x128xf32>
    tpu.vector_store %arg9[%c0_8, %c17_9, %c0_10], %1 {strides = array<i32>} : memref<18x18x128xf32, #tpu.memory_space<vmem>>, vector<18x1x128xf32>,
    %c0_11 = arith.constant 0 : index
    %c0_12 = arith.constant 0 : index
    %c0_13 = arith.constant 0 : index
    %6 = vector.load %arg10[%c0_11, %c0_12, %c0_13] : memref<18x18x128xf32, #tpu.memory_space<vmem>>, vector<1x18x128xf32>
    tpu.vector_store %arg10[%c0_11, %c0_12, %c0_13], %0 {strides = array<i32>} : memref<18x18x128xf32, #tpu.memory_space<vmem>>, vector<1x18x128xf32>,
    %c17_14 = arith.constant 17 : index
    %c0_15 = arith.constant 0 : index
    %c0_16 = arith.constant 0 : index
    %7 = vector.load %arg10[%c17_14, %c0_15, %c0_16] : memref<18x18x128xf32, #tpu.memory_space<vmem>>, vector<1x18x128xf32>
    tpu.vector_store %arg10[%c17_14, %c0_15, %c0_16], %0 {strides = array<i32>} : memref<18x18x128xf32, #tpu.memory_space<vmem>>, vector<1x18x128xf32>,
    %c0_17 = arith.constant 0 : index
    %c0_18 = arith.constant 0 : index
    %c0_19 = arith.constant 0 : index
    %8 = vector.load %arg10[%c0_17, %c0_18, %c0_19] : memref<18x18x128xf32, #tpu.memory_space<vmem>>, vector<18x1x128xf32>
    tpu.vector_store %arg10[%c0_17, %c0_18, %c0_19], %1 {strides = array<i32>} : memref<18x18x128xf32, #tpu.memory_space<vmem>>, vector<18x1x128xf32>,
    %c0_20 = arith.constant 0 : index
    %c17_21 = arith.constant 17 : index
    %c0_22 = arith.constant 0 : index
    %9 = vector.load %arg10[%c0_20, %c17_21, %c0_22] : memref<18x18x128xf32, #tpu.memory_space<vmem>>, vector<18x1x128xf32>
    tpu.vector_store %arg10[%c0_20, %c17_21, %c0_22], %1 {strides = array<i32>} : memref<18x18x128xf32, #tpu.memory_space<vmem>>, vector<18x1x128xf32>,
    %c0_23 = arith.constant 0 : index
    %c0_24 = arith.constant 0 : index
    %c0_25 = arith.constant 0 : index
    %c0_26 = arith.constant 0 : index
    %10 = vector.load %arg1[%c0_23, %c0_24, %c0_25, %c0_26] : memref<1x16x16x128xf32, #tpu.memory_space<vmem>>, vector<1x16x16x128xf32>
    %11 = vector.shape_cast %10 : vector<1x16x16x128xf32> to vector<16x16x128xf32>
    %c1 = arith.constant 1 : index
    %c1_27 = arith.constant 1 : index
    %c0_28 = arith.constant 0 : index
    %12 = vector.load %arg9[%c1, %c1_27, %c0_28] : memref<18x18x128xf32, #tpu.memory_space<vmem>>, vector<16x16x128xf32>
    tpu.vector_store %arg9[%c1, %c1_27, %c0_28], %11 {strides = array<i32>} : memref<18x18x128xf32, #tpu.memory_space<vmem>>, vector<16x16x128xf32>,
    %cst_29 = arith.constant 0.000000e+00 : f32
    %13 = vector.broadcast %cst_29 : f32 to vector<256x128xf32>
    %c0_30 = arith.constant 0 : index
    %c0_31 = arith.constant 0 : index
    %14 = vector.load %arg11[%c0_30, %c0_31] : memref<256x128xf32, #tpu.memory_space<vmem>>, vector<256x128xf32>
    tpu.vector_store %arg11[%c0_30, %c0_31], %13 {strides = array<i32>} : memref<256x128xf32, #tpu.memory_space<vmem>>, vector<256x128xf32>,
    %c0_32 = arith.constant 0 : index
    %c0_33 = arith.constant 0 : index
    %c0_34 = arith.constant 0 : index
    %15 = vector.load %arg9[%c0_32, %c0_33, %c0_34] : memref<18x18x128xf32, #tpu.memory_space<vmem>>, vector<16x16x128xf32>
    %16 = vector.shape_cast %15 : vector<16x16x128xf32> to vector<256x128xf32>
    %c0_35 = arith.constant 0 : index
    %c0_36 = arith.constant 0 : index
    %17 = vector.load %arg11[%c0_35, %c0_36] : memref<256x128xf32, #tpu.memory_space<vmem>>, vector<256x128xf32>
    %18 = arith.truncf %16 : vector<256x128xf32> to vector<256x128xbf16>
    %c0_37 = arith.constant 0 : index
    %c0_38 = arith.constant 0 : index
    %c0_39 = arith.constant 0 : index
    %19 = vector.load %arg2[%c0_37, %c0_38, %c0_39] : memref<9x128x128xbf16, #tpu.memory_space<vmem>>, vector<1x128x128xbf16>
    %20 = vector.shape_cast %19 : vector<1x128x128xbf16> to vector<128x128xbf16>
    %cst_40 = arith.constant dense<0.000000e+00> : vector<256x128xf32>
    %21 = tpu.matmul %18, %20, %cst_40 {dimension_numbers = #tpu.dot_dimension_numbers<[1], [0], [0], [1], [0, 0, 1, 1], [], []>} : vector<256x128xbf16>, vector<128x128xbf16>, vector<256x128xf32> -> vector<256x128xf32>
    %22 = arith.addf %17, %21 : vector<256x128xf32>
    %c0_41 = arith.constant 0 : index
    %c0_42 = arith.constant 0 : index
    %23 = vector.load %arg11[%c0_41, %c0_42] : memref<256x128xf32, #tpu.memory_space<vmem>>, vector<256x128xf32>
    tpu.vector_store %arg11[%c0_41, %c0_42], %22 {strides = array<i32>} : memref<256x128xf32, #tpu.memory_space<vmem>>, vector<256x128xf32>,
    %c0_43 = arith.constant 0 : index
    %c1_44 = arith.constant 1 : index
    %c0_45 = arith.constant 0 : index
    %24 = vector.load %arg9[%c0_43, %c1_44, %c0_45] : memref<18x18x128xf32, #tpu.memory_space<vmem>>, vector<16x16x128xf32>
    %25 = vector.shape_cast %24 : vector<16x16x128xf32> to vector<256x128xf32>
    %c0_46 = arith.constant 0 : index
    %c0_47 = arith.constant 0 : index
    %26 = vector.load %arg11[%c0_46, %c0_47] : memref<256x128xf32, #tpu.memory_space<vmem>>, vector<256x128xf32>
    %27 = arith.truncf %25 : vector<256x128xf32> to vector<256x128xbf16>
    %c1_48 = arith.constant 1 : index
    %c0_49 = arith.constant 0 : index
    %c0_50 = arith.constant 0 : index
    %28 = vector.load %arg2[%c1_48, %c0_49, %c0_50] : memref<9x128x128xbf16, #tpu.memory_space<vmem>>, vector<1x128x128xbf16>
    %29 = vector.shape_cast %28 : vector<1x128x128xbf16> to vector<128x128xbf16>
    %cst_51 = arith.constant dense<0.000000e+00> : vector<256x128xf32>
    %30 = tpu.matmul %27, %29, %cst_51 {dimension_numbers = #tpu.dot_dimension_numbers<[1], [0], [0], [1], [0, 0, 1, 1], [], []>} : vector<256x128xbf16>, vector<128x128xbf16>, vector<256x128xf32> -> vector<256x128xf32>
    %31 = arith.addf %26, %30 : vector<256x128xf32>
    %c0_52 = arith.constant 0 : index
    %c0_53 = arith.constant 0 : index
    %32 = vector.load %arg11[%c0_52, %c0_53] : memref<256x128xf32, #tpu.memory_space<vmem>>, vector<256x128xf32>
    tpu.vector_store %arg11[%c0_52, %c0_53], %31 {strides = array<i32>} : memref<256x128xf32, #tpu.memory_space<vmem>>, vector<256x128xf32>,
    %c0_54 = arith.constant 0 : index
    %c2 = arith.constant 2 : index
    %c0_55 = arith.constant 0 : index
    %33 = vector.load %arg9[%c0_54, %c2, %c0_55] : memref<18x18x128xf32, #tpu.memory_space<vmem>>, vector<16x16x128xf32>
    %34 = vector.shape_cast %33 : vector<16x16x128xf32> to vector<256x128xf32>
    %c0_56 = arith.constant 0 : index
    %c0_57 = arith.constant 0 : index
    %35 = vector.load %arg11[%c0_56, %c0_57] : memref<256x128xf32, #tpu.memory_space<vmem>>, vector<256x128xf32>
    %36 = arith.truncf %34 : vector<256x128xf32> to vector<256x128xbf16>
    %c2_58 = arith.constant 2 : index
    %c0_59 = arith.constant 0 : index
    %c0_60 = arith.constant 0 : index
    %37 = vector.load %arg2[%c2_58, %c0_59, %c0_60] : memref<9x128x128xbf16, #tpu.memory_space<vmem>>, vector<1x128x128xbf16>
    %38 = vector.shape_cast %37 : vector<1x128x128xbf16> to vector<128x128xbf16>
    %cst_61 = arith.constant dense<0.000000e+00> : vector<256x128xf32>
    %39 = tpu.matmul %36, %38, %cst_61 {dimension_numbers = #tpu.dot_dimension_numbers<[1], [0], [0], [1], [0, 0, 1, 1], [], []>} : vector<256x128xbf16>, vector<128x128xbf16>, vector<256x128xf32> -> vector<256x128xf32>
    %40 = arith.addf %35, %39 : vector<256x128xf32>
    %c0_62 = arith.constant 0 : index
    %c0_63 = arith.constant 0 : index
    %41 = vector.load %arg11[%c0_62, %c0_63] : memref<256x128xf32, #tpu.memory_space<vmem>>, vector<256x128xf32>
    tpu.vector_store %arg11[%c0_62, %c0_63], %40 {strides = array<i32>} : memref<256x128xf32, #tpu.memory_space<vmem>>, vector<256x128xf32>,
    %c1_64 = arith.constant 1 : index
    %c0_65 = arith.constant 0 : index
    %c0_66 = arith.constant 0 : index
    %42 = vector.load %arg9[%c1_64, %c0_65, %c0_66] : memref<18x18x128xf32, #tpu.memory_space<vmem>>, vector<16x16x128xf32>
    %43 = vector.shape_cast %42 : vector<16x16x128xf32> to vector<256x128xf32>
    %c0_67 = arith.constant 0 : index
    %c0_68 = arith.constant 0 : index
    %44 = vector.load %arg11[%c0_67, %c0_68] : memref<256x128xf32, #tpu.memory_space<vmem>>, vector<256x128xf32>
    %45 = arith.truncf %43 : vector<256x128xf32> to vector<256x128xbf16>
    %c3 = arith.constant 3 : index
    %c0_69 = arith.constant 0 : index
    %c0_70 = arith.constant 0 : index
    %46 = vector.load %arg2[%c3, %c0_69, %c0_70] : memref<9x128x128xbf16, #tpu.memory_space<vmem>>, vector<1x128x128xbf16>
    %47 = vector.shape_cast %46 : vector<1x128x128xbf16> to vector<128x128xbf16>
    %cst_71 = arith.constant dense<0.000000e+00> : vector<256x128xf32>
    %48 = tpu.matmul %45, %47, %cst_71 {dimension_numbers = #tpu.dot_dimension_numbers<[1], [0], [0], [1], [0, 0, 1, 1], [], []>} : vector<256x128xbf16>, vector<128x128xbf16>, vector<256x128xf32> -> vector<256x128xf32>
    %49 = arith.addf %44, %48 : vector<256x128xf32>
    %c0_72 = arith.constant 0 : index
    %c0_73 = arith.constant 0 : index
    %50 = vector.load %arg11[%c0_72, %c0_73] : memref<256x128xf32, #tpu.memory_space<vmem>>, vector<256x128xf32>
    tpu.vector_store %arg11[%c0_72, %c0_73], %49 {strides = array<i32>} : memref<256x128xf32, #tpu.memory_space<vmem>>, vector<256x128xf32>,
    %c1_74 = arith.constant 1 : index
    %c1_75 = arith.constant 1 : index
    %c0_76 = arith.constant 0 : index
    %51 = vector.load %arg9[%c1_74, %c1_75, %c0_76] : memref<18x18x128xf32, #tpu.memory_space<vmem>>, vector<16x16x128xf32>
    %52 = vector.shape_cast %51 : vector<16x16x128xf32> to vector<256x128xf32>
    %c0_77 = arith.constant 0 : index
    %c0_78 = arith.constant 0 : index
    %53 = vector.load %arg11[%c0_77, %c0_78] : memref<256x128xf32, #tpu.memory_space<vmem>>, vector<256x128xf32>
    %54 = arith.truncf %52 : vector<256x128xf32> to vector<256x128xbf16>
    %c4 = arith.constant 4 : index
    %c0_79 = arith.constant 0 : index
    %c0_80 = arith.constant 0 : index
    %55 = vector.load %arg2[%c4, %c0_79, %c0_80] : memref<9x128x128xbf16, #tpu.memory_space<vmem>>, vector<1x128x128xbf16>
    %56 = vector.shape_cast %55 : vector<1x128x128xbf16> to vector<128x128xbf16>
    %cst_81 = arith.constant dense<0.000000e+00> : vector<256x128xf32>
    %57 = tpu.matmul %54, %56, %cst_81 {dimension_numbers = #tpu.dot_dimension_numbers<[1], [0], [0], [1], [0, 0, 1, 1], [], []>} : vector<256x128xbf16>, vector<128x128xbf16>, vector<256x128xf32> -> vector<256x128xf32>
    %58 = arith.addf %53, %57 : vector<256x128xf32>
    %c0_82 = arith.constant 0 : index
    %c0_83 = arith.constant 0 : index
    %59 = vector.load %arg11[%c0_82, %c0_83] : memref<256x128xf32, #tpu.memory_space<vmem>>, vector<256x128xf32>
    tpu.vector_store %arg11[%c0_82, %c0_83], %58 {strides = array<i32>} : memref<256x128xf32, #tpu.memory_space<vmem>>, vector<256x128xf32>,
    %c1_84 = arith.constant 1 : index
    %c2_85 = arith.constant 2 : index
    %c0_86 = arith.constant 0 : index
    %60 = vector.load %arg9[%c1_84, %c2_85, %c0_86] : memref<18x18x128xf32, #tpu.memory_space<vmem>>, vector<16x16x128xf32>
    %61 = vector.shape_cast %60 : vector<16x16x128xf32> to vector<256x128xf32>
    %c0_87 = arith.constant 0 : index
    %c0_88 = arith.constant 0 : index
    %62 = vector.load %arg11[%c0_87, %c0_88] : memref<256x128xf32, #tpu.memory_space<vmem>>, vector<256x128xf32>
    %63 = arith.truncf %61 : vector<256x128xf32> to vector<256x128xbf16>
    %c5 = arith.constant 5 : index
    %c0_89 = arith.constant 0 : index
    %c0_90 = arith.constant 0 : index
    %64 = vector.load %arg2[%c5, %c0_89, %c0_90] : memref<9x128x128xbf16, #tpu.memory_space<vmem>>, vector<1x128x128xbf16>
    %65 = vector.shape_cast %64 : vector<1x128x128xbf16> to vector<128x128xbf16>
    %cst_91 = arith.constant dense<0.000000e+00> : vector<256x128xf32>
    %66 = tpu.matmul %63, %65, %cst_91 {dimension_numbers = #tpu.dot_dimension_numbers<[1], [0], [0], [1], [0, 0, 1, 1], [], []>} : vector<256x128xbf16>, vector<128x128xbf16>, vector<256x128xf32> -> vector<256x128xf32>
    %67 = arith.addf %62, %66 : vector<256x128xf32>
    %c0_92 = arith.constant 0 : index
    %c0_93 = arith.constant 0 : index
    %68 = vector.load %arg11[%c0_92, %c0_93] : memref<256x128xf32, #tpu.memory_space<vmem>>, vector<256x128xf32>
    tpu.vector_store %arg11[%c0_92, %c0_93], %67 {strides = array<i32>} : memref<256x128xf32, #tpu.memory_space<vmem>>, vector<256x128xf32>,
    %c2_94 = arith.constant 2 : index
    %c0_95 = arith.constant 0 : index
    %c0_96 = arith.constant 0 : index
    %69 = vector.load %arg9[%c2_94, %c0_95, %c0_96] : memref<18x18x128xf32, #tpu.memory_space<vmem>>, vector<16x16x128xf32>
    %70 = vector.shape_cast %69 : vector<16x16x128xf32> to vector<256x128xf32>
    %c0_97 = arith.constant 0 : index
    %c0_98 = arith.constant 0 : index
    %71 = vector.load %arg11[%c0_97, %c0_98] : memref<256x128xf32, #tpu.memory_space<vmem>>, vector<256x128xf32>
    %72 = arith.truncf %70 : vector<256x128xf32> to vector<256x128xbf16>
    %c6 = arith.constant 6 : index
    %c0_99 = arith.constant 0 : index
    %c0_100 = arith.constant 0 : index
    %73 = vector.load %arg2[%c6, %c0_99, %c0_100] : memref<9x128x128xbf16, #tpu.memory_space<vmem>>, vector<1x128x128xbf16>
    %74 = vector.shape_cast %73 : vector<1x128x128xbf16> to vector<128x128xbf16>
    %cst_101 = arith.constant dense<0.000000e+00> : vector<256x128xf32>
    %75 = tpu.matmul %72, %74, %cst_101 {dimension_numbers = #tpu.dot_dimension_numbers<[1], [0], [0], [1], [0, 0, 1, 1], [], []>} : vector<256x128xbf16>, vector<128x128xbf16>, vector<256x128xf32> -> vector<256x128xf32>
    %76 = arith.addf %71, %75 : vector<256x128xf32>
    %c0_102 = arith.constant 0 : index
    %c0_103 = arith.constant 0 : index
    %77 = vector.load %arg11[%c0_102, %c0_103] : memref<256x128xf32, #tpu.memory_space<vmem>>, vector<256x128xf32>
    tpu.vector_store %arg11[%c0_102, %c0_103], %76 {strides = array<i32>} : memref<256x128xf32, #tpu.memory_space<vmem>>, vector<256x128xf32>,
    %c2_104 = arith.constant 2 : index
    %c1_105 = arith.constant 1 : index
    %c0_106 = arith.constant 0 : index
    %78 = vector.load %arg9[%c2_104, %c1_105, %c0_106] : memref<18x18x128xf32, #tpu.memory_space<vmem>>, vector<16x16x128xf32>
    %79 = vector.shape_cast %78 : vector<16x16x128xf32> to vector<256x128xf32>
    %c0_107 = arith.constant 0 : index
    %c0_108 = arith.constant 0 : index
    %80 = vector.load %arg11[%c0_107, %c0_108] : memref<256x128xf32, #tpu.memory_space<vmem>>, vector<256x128xf32>
    %81 = arith.truncf %79 : vector<256x128xf32> to vector<256x128xbf16>
    %c7 = arith.constant 7 : index
    %c0_109 = arith.constant 0 : index
    %c0_110 = arith.constant 0 : index
    %82 = vector.load %arg2[%c7, %c0_109, %c0_110] : memref<9x128x128xbf16, #tpu.memory_space<vmem>>, vector<1x128x128xbf16>
    %83 = vector.shape_cast %82 : vector<1x128x128xbf16> to vector<128x128xbf16>
    %cst_111 = arith.constant dense<0.000000e+00> : vector<256x128xf32>
    %84 = tpu.matmul %81, %83, %cst_111 {dimension_numbers = #tpu.dot_dimension_numbers<[1], [0], [0], [1], [0, 0, 1, 1], [], []>} : vector<256x128xbf16>, vector<128x128xbf16>, vector<256x128xf32> -> vector<256x128xf32>
    %85 = arith.addf %80, %84 : vector<256x128xf32>
    %c0_112 = arith.constant 0 : index
    %c0_113 = arith.constant 0 : index
    %86 = vector.load %arg11[%c0_112, %c0_113] : memref<256x128xf32, #tpu.memory_space<vmem>>, vector<256x128xf32>
    tpu.vector_store %arg11[%c0_112, %c0_113], %85 {strides = array<i32>} : memref<256x128xf32, #tpu.memory_space<vmem>>, vector<256x128xf32>,
    %c2_114 = arith.constant 2 : index
    %c2_115 = arith.constant 2 : index
    %c0_116 = arith.constant 0 : index
    %87 = vector.load %arg9[%c2_114, %c2_115, %c0_116] : memref<18x18x128xf32, #tpu.memory_space<vmem>>, vector<16x16x128xf32>
    %88 = vector.shape_cast %87 : vector<16x16x128xf32> to vector<256x128xf32>
    %c0_117 = arith.constant 0 : index
    %c0_118 = arith.constant 0 : index
    %89 = vector.load %arg11[%c0_117, %c0_118] : memref<256x128xf32, #tpu.memory_space<vmem>>, vector<256x128xf32>
    %90 = arith.truncf %88 : vector<256x128xf32> to vector<256x128xbf16>
    %c8 = arith.constant 8 : index
    %c0_119 = arith.constant 0 : index
    %c0_120 = arith.constant 0 : index
    %91 = vector.load %arg2[%c8, %c0_119, %c0_120] : memref<9x128x128xbf16, #tpu.memory_space<vmem>>, vector<1x128x128xbf16>
    %92 = vector.shape_cast %91 : vector<1x128x128xbf16> to vector<128x128xbf16>
    %cst_121 = arith.constant dense<0.000000e+00> : vector<256x128xf32>
    %93 = tpu.matmul %90, %92, %cst_121 {dimension_numbers = #tpu.dot_dimension_numbers<[1], [0], [0], [1], [0, 0, 1, 1], [], []>} : vector<256x128xbf16>, vector<128x128xbf16>, vector<256x128xf32> -> vector<256x128xf32>
    %94 = arith.addf %89, %93 : vector<256x128xf32>
    %c0_122 = arith.constant 0 : index
    %c0_123 = arith.constant 0 : index
    %95 = vector.load %arg11[%c0_122, %c0_123] : memref<256x128xf32, #tpu.memory_space<vmem>>, vector<256x128xf32>
    tpu.vector_store %arg11[%c0_122, %c0_123], %94 {strides = array<i32>} : memref<256x128xf32, #tpu.memory_space<vmem>>, vector<256x128xf32>,
    %c0_124 = arith.constant 0 : index
    %c0_125 = arith.constant 0 : index
    %96 = vector.load %arg11[%c0_124, %c0_125] : memref<256x128xf32, #tpu.memory_space<vmem>>, vector<256x128xf32>
    %c0_126 = arith.constant 0 : index
    %c0_127 = arith.constant 0 : index
    %97 = vector.load %arg3[%c0_126, %c0_127] : memref<1x128xf32, #tpu.memory_space<vmem>>, vector<1x128xf32>
    %98 = vector.broadcast %97 : vector<1x128xf32> to vector<256x128xf32>
    %99 = arith.mulf %96, %98 : vector<256x128xf32>
    %c0_128 = arith.constant 0 : index
    %c0_129 = arith.constant 0 : index
    %100 = vector.load %arg4[%c0_128, %c0_129] : memref<1x128xf32, #tpu.memory_space<vmem>>, vector<1x128xf32>
    %101 = vector.broadcast %100 : vector<1x128xf32> to vector<256x128xf32>
    %102 = arith.addf %99, %101 : vector<256x128xf32>
    %cst_130 = arith.constant 0.000000e+00 : f32
    %103 = vector.broadcast %cst_130 : f32 to vector<256x128xf32>
    %104 = arith.maximumf %102, %103 : vector<256x128xf32>
    %105 = vector.shape_cast %104 : vector<256x128xf32> to vector<16x16x128xf32>
    %c1_131 = arith.constant 1 : index
    %c1_132 = arith.constant 1 : index
    %c0_133 = arith.constant 0 : index
    %106 = vector.load %arg10[%c1_131, %c1_132, %c0_133] : memref<18x18x128xf32, #tpu.memory_space<vmem>>, vector<16x16x128xf32>
    tpu.vector_store %arg10[%c1_131, %c1_132, %c0_133], %105 {strides = array<i32>} : memref<18x18x128xf32, #tpu.memory_space<vmem>>, vector<16x16x128xf32>,
    %cst_134 = arith.constant 0.000000e+00 : f32
    %107 = vector.broadcast %cst_134 : f32 to vector<256x128xf32>
    %c0_135 = arith.constant 0 : index
    %c0_136 = arith.constant 0 : index
    %108 = vector.load %arg11[%c0_135, %c0_136] : memref<256x128xf32, #tpu.memory_space<vmem>>, vector<256x128xf32>
    tpu.vector_store %arg11[%c0_135, %c0_136], %107 {strides = array<i32>} : memref<256x128xf32, #tpu.memory_space<vmem>>, vector<256x128xf32>,
    %c0_137 = arith.constant 0 : index
    %c0_138 = arith.constant 0 : index
    %c0_139 = arith.constant 0 : index
    %109 = vector.load %arg10[%c0_137, %c0_138, %c0_139] : memref<18x18x128xf32, #tpu.memory_space<vmem>>, vector<16x16x128xf32>
    %110 = vector.shape_cast %109 : vector<16x16x128xf32> to vector<256x128xf32>
    %c0_140 = arith.constant 0 : index
    %c0_141 = arith.constant 0 : index
    %111 = vector.load %arg11[%c0_140, %c0_141] : memref<256x128xf32, #tpu.memory_space<vmem>>, vector<256x128xf32>
    %112 = arith.truncf %110 : vector<256x128xf32> to vector<256x128xbf16>
    %c0_142 = arith.constant 0 : index
    %c0_143 = arith.constant 0 : index
    %c0_144 = arith.constant 0 : index
    %113 = vector.load %arg5[%c0_142, %c0_143, %c0_144] : memref<9x128x128xbf16, #tpu.memory_space<vmem>>, vector<1x128x128xbf16>
    %114 = vector.shape_cast %113 : vector<1x128x128xbf16> to vector<128x128xbf16>
    %cst_145 = arith.constant dense<0.000000e+00> : vector<256x128xf32>
    %115 = tpu.matmul %112, %114, %cst_145 {dimension_numbers = #tpu.dot_dimension_numbers<[1], [0], [0], [1], [0, 0, 1, 1], [], []>} : vector<256x128xbf16>, vector<128x128xbf16>, vector<256x128xf32> -> vector<256x128xf32>
    %116 = arith.addf %111, %115 : vector<256x128xf32>
    %c0_146 = arith.constant 0 : index
    %c0_147 = arith.constant 0 : index
    %117 = vector.load %arg11[%c0_146, %c0_147] : memref<256x128xf32, #tpu.memory_space<vmem>>, vector<256x128xf32>
    tpu.vector_store %arg11[%c0_146, %c0_147], %116 {strides = array<i32>} : memref<256x128xf32, #tpu.memory_space<vmem>>, vector<256x128xf32>,
    %c0_148 = arith.constant 0 : index
    %c1_149 = arith.constant 1 : index
    %c0_150 = arith.constant 0 : index
    %118 = vector.load %arg10[%c0_148, %c1_149, %c0_150] : memref<18x18x128xf32, #tpu.memory_space<vmem>>, vector<16x16x128xf32>
    %119 = vector.shape_cast %118 : vector<16x16x128xf32> to vector<256x128xf32>
    %c0_151 = arith.constant 0 : index
    %c0_152 = arith.constant 0 : index
    %120 = vector.load %arg11[%c0_151, %c0_152] : memref<256x128xf32, #tpu.memory_space<vmem>>, vector<256x128xf32>
    %121 = arith.truncf %119 : vector<256x128xf32> to vector<256x128xbf16>
    %c1_153 = arith.constant 1 : index
    %c0_154 = arith.constant 0 : index
    %c0_155 = arith.constant 0 : index
    %122 = vector.load %arg5[%c1_153, %c0_154, %c0_155] : memref<9x128x128xbf16, #tpu.memory_space<vmem>>, vector<1x128x128xbf16>
    %123 = vector.shape_cast %122 : vector<1x128x128xbf16> to vector<128x128xbf16>
    %cst_156 = arith.constant dense<0.000000e+00> : vector<256x128xf32>
    %124 = tpu.matmul %121, %123, %cst_156 {dimension_numbers = #tpu.dot_dimension_numbers<[1], [0], [0], [1], [0, 0, 1, 1], [], []>} : vector<256x128xbf16>, vector<128x128xbf16>, vector<256x128xf32> -> vector<256x128xf32>
    %125 = arith.addf %120, %124 : vector<256x128xf32>
    %c0_157 = arith.constant 0 : index
    %c0_158 = arith.constant 0 : index
    %126 = vector.load %arg11[%c0_157, %c0_158] : memref<256x128xf32, #tpu.memory_space<vmem>>, vector<256x128xf32>
    tpu.vector_store %arg11[%c0_157, %c0_158], %125 {strides = array<i32>} : memref<256x128xf32, #tpu.memory_space<vmem>>, vector<256x128xf32>,
    %c0_159 = arith.constant 0 : index
    %c2_160 = arith.constant 2 : index
    %c0_161 = arith.constant 0 : index
    %127 = vector.load %arg10[%c0_159, %c2_160, %c0_161] : memref<18x18x128xf32, #tpu.memory_space<vmem>>, vector<16x16x128xf32>
    %128 = vector.shape_cast %127 : vector<16x16x128xf32> to vector<256x128xf32>
    %c0_162 = arith.constant 0 : index
    %c0_163 = arith.constant 0 : index
    %129 = vector.load %arg11[%c0_162, %c0_163] : memref<256x128xf32, #tpu.memory_space<vmem>>, vector<256x128xf32>
    %130 = arith.truncf %128 : vector<256x128xf32> to vector<256x128xbf16>
    %c2_164 = arith.constant 2 : index
    %c0_165 = arith.constant 0 : index
    %c0_166 = arith.constant 0 : index
    %131 = vector.load %arg5[%c2_164, %c0_165, %c0_166] : memref<9x128x128xbf16, #tpu.memory_space<vmem>>, vector<1x128x128xbf16>
    %132 = vector.shape_cast %131 : vector<1x128x128xbf16> to vector<128x128xbf16>
    %cst_167 = arith.constant dense<0.000000e+00> : vector<256x128xf32>
    %133 = tpu.matmul %130, %132, %cst_167 {dimension_numbers = #tpu.dot_dimension_numbers<[1], [0], [0], [1], [0, 0, 1, 1], [], []>} : vector<256x128xbf16>, vector<128x128xbf16>, vector<256x128xf32> -> vector<256x128xf32>
    %134 = arith.addf %129, %133 : vector<256x128xf32>
    %c0_168 = arith.constant 0 : index
    %c0_169 = arith.constant 0 : index
    %135 = vector.load %arg11[%c0_168, %c0_169] : memref<256x128xf32, #tpu.memory_space<vmem>>, vector<256x128xf32>
    tpu.vector_store %arg11[%c0_168, %c0_169], %134 {strides = array<i32>} : memref<256x128xf32, #tpu.memory_space<vmem>>, vector<256x128xf32>,
    %c1_170 = arith.constant 1 : index
    %c0_171 = arith.constant 0 : index
    %c0_172 = arith.constant 0 : index
    %136 = vector.load %arg10[%c1_170, %c0_171, %c0_172] : memref<18x18x128xf32, #tpu.memory_space<vmem>>, vector<16x16x128xf32>
    %137 = vector.shape_cast %136 : vector<16x16x128xf32> to vector<256x128xf32>
    %c0_173 = arith.constant 0 : index
    %c0_174 = arith.constant 0 : index
    %138 = vector.load %arg11[%c0_173, %c0_174] : memref<256x128xf32, #tpu.memory_space<vmem>>, vector<256x128xf32>
    %139 = arith.truncf %137 : vector<256x128xf32> to vector<256x128xbf16>
    %c3_175 = arith.constant 3 : index
    %c0_176 = arith.constant 0 : index
    %c0_177 = arith.constant 0 : index
    %140 = vector.load %arg5[%c3_175, %c0_176, %c0_177] : memref<9x128x128xbf16, #tpu.memory_space<vmem>>, vector<1x128x128xbf16>
    %141 = vector.shape_cast %140 : vector<1x128x128xbf16> to vector<128x128xbf16>
    %cst_178 = arith.constant dense<0.000000e+00> : vector<256x128xf32>
    %142 = tpu.matmul %139, %141, %cst_178 {dimension_numbers = #tpu.dot_dimension_numbers<[1], [0], [0], [1], [0, 0, 1, 1], [], []>} : vector<256x128xbf16>, vector<128x128xbf16>, vector<256x128xf32> -> vector<256x128xf32>
    %143 = arith.addf %138, %142 : vector<256x128xf32>
    %c0_179 = arith.constant 0 : index
    %c0_180 = arith.constant 0 : index
    %144 = vector.load %arg11[%c0_179, %c0_180] : memref<256x128xf32, #tpu.memory_space<vmem>>, vector<256x128xf32>
    tpu.vector_store %arg11[%c0_179, %c0_180], %143 {strides = array<i32>} : memref<256x128xf32, #tpu.memory_space<vmem>>, vector<256x128xf32>,
    %c1_181 = arith.constant 1 : index
    %c1_182 = arith.constant 1 : index
    %c0_183 = arith.constant 0 : index
    %145 = vector.load %arg10[%c1_181, %c1_182, %c0_183] : memref<18x18x128xf32, #tpu.memory_space<vmem>>, vector<16x16x128xf32>
    %146 = vector.shape_cast %145 : vector<16x16x128xf32> to vector<256x128xf32>
    %c0_184 = arith.constant 0 : index
    %c0_185 = arith.constant 0 : index
    %147 = vector.load %arg11[%c0_184, %c0_185] : memref<256x128xf32, #tpu.memory_space<vmem>>, vector<256x128xf32>
    %148 = arith.truncf %146 : vector<256x128xf32> to vector<256x128xbf16>
    %c4_186 = arith.constant 4 : index
    %c0_187 = arith.constant 0 : index
    %c0_188 = arith.constant 0 : index
    %149 = vector.load %arg5[%c4_186, %c0_187, %c0_188] : memref<9x128x128xbf16, #tpu.memory_space<vmem>>, vector<1x128x128xbf16>
    %150 = vector.shape_cast %149 : vector<1x128x128xbf16> to vector<128x128xbf16>
    %cst_189 = arith.constant dense<0.000000e+00> : vector<256x128xf32>
    %151 = tpu.matmul %148, %150, %cst_189 {dimension_numbers = #tpu.dot_dimension_numbers<[1], [0], [0], [1], [0, 0, 1, 1], [], []>} : vector<256x128xbf16>, vector<128x128xbf16>, vector<256x128xf32> -> vector<256x128xf32>
    %152 = arith.addf %147, %151 : vector<256x128xf32>
    %c0_190 = arith.constant 0 : index
    %c0_191 = arith.constant 0 : index
    %153 = vector.load %arg11[%c0_190, %c0_191] : memref<256x128xf32, #tpu.memory_space<vmem>>, vector<256x128xf32>
    tpu.vector_store %arg11[%c0_190, %c0_191], %152 {strides = array<i32>} : memref<256x128xf32, #tpu.memory_space<vmem>>, vector<256x128xf32>,
    %c1_192 = arith.constant 1 : index
    %c2_193 = arith.constant 2 : index
    %c0_194 = arith.constant 0 : index
    %154 = vector.load %arg10[%c1_192, %c2_193, %c0_194] : memref<18x18x128xf32, #tpu.memory_space<vmem>>, vector<16x16x128xf32>
    %155 = vector.shape_cast %154 : vector<16x16x128xf32> to vector<256x128xf32>
    %c0_195 = arith.constant 0 : index
    %c0_196 = arith.constant 0 : index
    %156 = vector.load %arg11[%c0_195, %c0_196] : memref<256x128xf32, #tpu.memory_space<vmem>>, vector<256x128xf32>
    %157 = arith.truncf %155 : vector<256x128xf32> to vector<256x128xbf16>
    %c5_197 = arith.constant 5 : index
    %c0_198 = arith.constant 0 : index
    %c0_199 = arith.constant 0 : index
    %158 = vector.load %arg5[%c5_197, %c0_198, %c0_199] : memref<9x128x128xbf16, #tpu.memory_space<vmem>>, vector<1x128x128xbf16>
    %159 = vector.shape_cast %158 : vector<1x128x128xbf16> to vector<128x128xbf16>
    %cst_200 = arith.constant dense<0.000000e+00> : vector<256x128xf32>
    %160 = tpu.matmul %157, %159, %cst_200 {dimension_numbers = #tpu.dot_dimension_numbers<[1], [0], [0], [1], [0, 0, 1, 1], [], []>} : vector<256x128xbf16>, vector<128x128xbf16>, vector<256x128xf32> -> vector<256x128xf32>
    %161 = arith.addf %156, %160 : vector<256x128xf32>
    %c0_201 = arith.constant 0 : index
    %c0_202 = arith.constant 0 : index
    %162 = vector.load %arg11[%c0_201, %c0_202] : memref<256x128xf32, #tpu.memory_space<vmem>>, vector<256x128xf32>
    tpu.vector_store %arg11[%c0_201, %c0_202], %161 {strides = array<i32>} : memref<256x128xf32, #tpu.memory_space<vmem>>, vector<256x128xf32>,
    %c2_203 = arith.constant 2 : index
    %c0_204 = arith.constant 0 : index
    %c0_205 = arith.constant 0 : index
    %163 = vector.load %arg10[%c2_203, %c0_204, %c0_205] : memref<18x18x128xf32, #tpu.memory_space<vmem>>, vector<16x16x128xf32>
    %164 = vector.shape_cast %163 : vector<16x16x128xf32> to vector<256x128xf32>
    %c0_206 = arith.constant 0 : index
    %c0_207 = arith.constant 0 : index
    %165 = vector.load %arg11[%c0_206, %c0_207] : memref<256x128xf32, #tpu.memory_space<vmem>>, vector<256x128xf32>
    %166 = arith.truncf %164 : vector<256x128xf32> to vector<256x128xbf16>
    %c6_208 = arith.constant 6 : index
    %c0_209 = arith.constant 0 : index
    %c0_210 = arith.constant 0 : index
    %167 = vector.load %arg5[%c6_208, %c0_209, %c0_210] : memref<9x128x128xbf16, #tpu.memory_space<vmem>>, vector<1x128x128xbf16>
    %168 = vector.shape_cast %167 : vector<1x128x128xbf16> to vector<128x128xbf16>
    %cst_211 = arith.constant dense<0.000000e+00> : vector<256x128xf32>
    %169 = tpu.matmul %166, %168, %cst_211 {dimension_numbers = #tpu.dot_dimension_numbers<[1], [0], [0], [1], [0, 0, 1, 1], [], []>} : vector<256x128xbf16>, vector<128x128xbf16>, vector<256x128xf32> -> vector<256x128xf32>
    %170 = arith.addf %165, %169 : vector<256x128xf32>
    %c0_212 = arith.constant 0 : index
    %c0_213 = arith.constant 0 : index
    %171 = vector.load %arg11[%c0_212, %c0_213] : memref<256x128xf32, #tpu.memory_space<vmem>>, vector<256x128xf32>
    tpu.vector_store %arg11[%c0_212, %c0_213], %170 {strides = array<i32>} : memref<256x128xf32, #tpu.memory_space<vmem>>, vector<256x128xf32>,
    %c2_214 = arith.constant 2 : index
    %c1_215 = arith.constant 1 : index
    %c0_216 = arith.constant 0 : index
    %172 = vector.load %arg10[%c2_214, %c1_215, %c0_216] : memref<18x18x128xf32, #tpu.memory_space<vmem>>, vector<16x16x128xf32>
    %173 = vector.shape_cast %172 : vector<16x16x128xf32> to vector<256x128xf32>
    %c0_217 = arith.constant 0 : index
    %c0_218 = arith.constant 0 : index
    %174 = vector.load %arg11[%c0_217, %c0_218] : memref<256x128xf32, #tpu.memory_space<vmem>>, vector<256x128xf32>
    %175 = arith.truncf %173 : vector<256x128xf32> to vector<256x128xbf16>
    %c7_219 = arith.constant 7 : index
    %c0_220 = arith.constant 0 : index
    %c0_221 = arith.constant 0 : index
    %176 = vector.load %arg5[%c7_219, %c0_220, %c0_221] : memref<9x128x128xbf16, #tpu.memory_space<vmem>>, vector<1x128x128xbf16>
    %177 = vector.shape_cast %176 : vector<1x128x128xbf16> to vector<128x128xbf16>
    %cst_222 = arith.constant dense<0.000000e+00> : vector<256x128xf32>
    %178 = tpu.matmul %175, %177, %cst_222 {dimension_numbers = #tpu.dot_dimension_numbers<[1], [0], [0], [1], [0, 0, 1, 1], [], []>} : vector<256x128xbf16>, vector<128x128xbf16>, vector<256x128xf32> -> vector<256x128xf32>
    %179 = arith.addf %174, %178 : vector<256x128xf32>
    %c0_223 = arith.constant 0 : index
    %c0_224 = arith.constant 0 : index
    %180 = vector.load %arg11[%c0_223, %c0_224] : memref<256x128xf32, #tpu.memory_space<vmem>>, vector<256x128xf32>
    tpu.vector_store %arg11[%c0_223, %c0_224], %179 {strides = array<i32>} : memref<256x128xf32, #tpu.memory_space<vmem>>, vector<256x128xf32>,
    %c2_225 = arith.constant 2 : index
    %c2_226 = arith.constant 2 : index
    %c0_227 = arith.constant 0 : index
    %181 = vector.load %arg10[%c2_225, %c2_226, %c0_227] : memref<18x18x128xf32, #tpu.memory_space<vmem>>, vector<16x16x128xf32>
    %182 = vector.shape_cast %181 : vector<16x16x128xf32> to vector<256x128xf32>
    %c0_228 = arith.constant 0 : index
    %c0_229 = arith.constant 0 : index
    %183 = vector.load %arg11[%c0_228, %c0_229] : memref<256x128xf32, #tpu.memory_space<vmem>>, vector<256x128xf32>
    %184 = arith.truncf %182 : vector<256x128xf32> to vector<256x128xbf16>
    %c8_230 = arith.constant 8 : index
    %c0_231 = arith.constant 0 : index
    %c0_232 = arith.constant 0 : index
    %185 = vector.load %arg5[%c8_230, %c0_231, %c0_232] : memref<9x128x128xbf16, #tpu.memory_space<vmem>>, vector<1x128x128xbf16>
    %186 = vector.shape_cast %185 : vector<1x128x128xbf16> to vector<128x128xbf16>
    %cst_233 = arith.constant dense<0.000000e+00> : vector<256x128xf32>
    %187 = tpu.matmul %184, %186, %cst_233 {dimension_numbers = #tpu.dot_dimension_numbers<[1], [0], [0], [1], [0, 0, 1, 1], [], []>} : vector<256x128xbf16>, vector<128x128xbf16>, vector<256x128xf32> -> vector<256x128xf32>
    %188 = arith.addf %183, %187 : vector<256x128xf32>
    %c0_234 = arith.constant 0 : index
    %c0_235 = arith.constant 0 : index
    %189 = vector.load %arg11[%c0_234, %c0_235] : memref<256x128xf32, #tpu.memory_space<vmem>>, vector<256x128xf32>
    tpu.vector_store %arg11[%c0_234, %c0_235], %188 {strides = array<i32>} : memref<256x128xf32, #tpu.memory_space<vmem>>, vector<256x128xf32>,
    %c0_236 = arith.constant 0 : index
    %c0_237 = arith.constant 0 : index
    %190 = vector.load %arg11[%c0_236, %c0_237] : memref<256x128xf32, #tpu.memory_space<vmem>>, vector<256x128xf32>
    %c0_238 = arith.constant 0 : index
    %c0_239 = arith.constant 0 : index
    %191 = vector.load %arg6[%c0_238, %c0_239] : memref<1x128xf32, #tpu.memory_space<vmem>>, vector<1x128xf32>
    %192 = vector.broadcast %191 : vector<1x128xf32> to vector<256x128xf32>
    %193 = arith.mulf %190, %192 : vector<256x128xf32>
    %c0_240 = arith.constant 0 : index
    %c0_241 = arith.constant 0 : index
    %194 = vector.load %arg7[%c0_240, %c0_241] : memref<1x128xf32, #tpu.memory_space<vmem>>, vector<1x128xf32>
    %195 = vector.broadcast %194 : vector<1x128xf32> to vector<256x128xf32>
    %196 = arith.addf %193, %195 : vector<256x128xf32>
    %197 = vector.shape_cast %11 : vector<16x16x128xf32> to vector<256x128xf32>
    %198 = arith.addf %196, %197 : vector<256x128xf32>
    %cst_242 = arith.constant 0.000000e+00 : f32
    %199 = vector.broadcast %cst_242 : f32 to vector<256x128xf32>
    %200 = arith.maximumf %198, %199 : vector<256x128xf32>
    %201 = vector.shape_cast %200 : vector<256x128xf32> to vector<16x16x128xf32>
    %c0_243 = arith.constant 0 : index
    %c0_244 = arith.constant 0 : index
    %c0_245 = arith.constant 0 : index
    %c0_246 = arith.constant 0 : index
    %202 = vector.load %arg8[%c0_243, %c0_244, %c0_245, %c0_246] : memref<1x16x16x128xf32, #tpu.memory_space<vmem>>, vector<1x16x16x128xf32>
    %203 = vector.shape_cast %202 : vector<1x16x16x128xf32> to vector<16x16x128xf32>
    %204 = vector.shape_cast %201 : vector<16x16x128xf32> to vector<1x16x16x128xf32>
    tpu.vector_store %arg8[%c0_243, %c0_244, %c0_245, %c0_246], %204 {strides = array<i32>} : memref<1x16x16x128xf32, #tpu.memory_space<vmem>>, vector<1x16x16x128xf32>,
    return
  }
  func.func @transform_0(%arg0: i32) -> (i32, i32, i32, i32) {
    %c0_i32 = arith.constant 0 : i32
    %c0_i32_0 = arith.constant 0 : i32
    %c0_i32_1 = arith.constant 0 : i32
    %c0_i32_2 = arith.constant 0 : i32
    return %arg0, %c0_i32, %c0_i32_0, %c0_i32_1 : i32, i32, i32, i32
  }
  func.func @transform_1(%arg0: i32) -> (i32, i32, i32) {
    %c0_i32 = arith.constant 0 : i32
    %c0_i32_0 = arith.constant 0 : i32
    %c0_i32_1 = arith.constant 0 : i32
    %c0_i32_2 = arith.constant 0 : i32
    return %c0_i32, %c0_i32_0, %c0_i32_1 : i32, i32, i32
  }
  func.func @transform_2(%arg0: i32) -> (i32, i32) {
    %c0_i32 = arith.constant 0 : i32
    %c0_i32_0 = arith.constant 0 : i32
    %c0_i32_1 = arith.constant 0 : i32
    return %c0_i32, %c0_i32_0 : i32, i32
  }
  func.func @transform_3(%arg0: i32) -> (i32, i32) {
    %c0_i32 = arith.constant 0 : i32
    %c0_i32_0 = arith.constant 0 : i32
    %c0_i32_1 = arith.constant 0 : i32
    return %c0_i32, %c0_i32_0 : i32, i32
  }
  func.func @transform_4(%arg0: i32) -> (i32, i32, i32) {
    %c0_i32 = arith.constant 0 : i32
    %c0_i32_0 = arith.constant 0 : i32
    %c0_i32_1 = arith.constant 0 : i32
    %c0_i32_2 = arith.constant 0 : i32
    return %c0_i32, %c0_i32_0, %c0_i32_1 : i32, i32, i32
  }
  func.func @transform_5(%arg0: i32) -> (i32, i32) {
    %c0_i32 = arith.constant 0 : i32
    %c0_i32_0 = arith.constant 0 : i32
    %c0_i32_1 = arith.constant 0 : i32
    return %c0_i32, %c0_i32_0 : i32, i32
  }
  func.func @transform_6(%arg0: i32) -> (i32, i32) {
    %c0_i32 = arith.constant 0 : i32
    %c0_i32_0 = arith.constant 0 : i32
    %c0_i32_1 = arith.constant 0 : i32
    return %c0_i32, %c0_i32_0 : i32, i32
  }
  func.func @transform_7(%arg0: i32) -> (i32, i32, i32, i32) {
    %c0_i32 = arith.constant 0 : i32
    %c0_i32_0 = arith.constant 0 : i32
    %c0_i32_1 = arith.constant 0 : i32
    %c0_i32_2 = arith.constant 0 : i32
    return %arg0, %c0_i32, %c0_i32_0, %c0_i32_1 : i32, i32, i32, i32
  }
}

</mosaic_0001>

<llo_original>
// kernel: tpu_custom_call.1
$region0: #{tpu_custom_call.1}
  #allocation0 [shape = 'u32[]', space=smem, size = 0x4, offset = 0x4, fixed_abs, tag = 'smem constant byte address 0x4 - core index']
  #allocation1 [shape = 'u32[144,128]{1,0:T(1,128)}', space=vmem, size = 0x12000, scoped, tag = 'internal scratch']
  #allocation2 [shape = 'f32[18,18,128]{2,1,0:T(8,128)}', space=vmem, size = 0x36000, scoped, tag = 'scratch operand']
  #allocation3 [shape = 'f32[18,18,128]{2,1,0:T(8,128)}', space=vmem, size = 0x36000, scoped, tag = 'scratch operand']
  #allocation4 [shape = 'f32[256,128]{1,0:T(8,128)}', space=vmem, size = 0x20000, scoped, tag = 'scratch operand']
  %s0 = inlined_call_operand.hbm [shape: f32[2,16,16,128], index: 0, kind: input, shape index: {}]
  %s1 = inlined_call_operand.hbm [shape: bf16[9,128,128], index: 1, kind: input, shape index: {}]
  %s2 = inlined_call_operand.vmem [shape: f32[1,128], index: 2, kind: input, shape index: {}]
  %s3 = inlined_call_operand.vmem [shape: f32[1,128], index: 3, kind: input, shape index: {}]
  %s4 = inlined_call_operand.hbm [shape: bf16[9,128,128], index: 4, kind: input, shape index: {}]
  %s5 = inlined_call_operand.vmem [shape: f32[1,128], index: 5, kind: input, shape index: {}]
  %s6 = inlined_call_operand.vmem [shape: f32[1,128], index: 6, kind: input, shape index: {}]
  %s7 = inlined_call_operand.hbm [shape: f32[2,16,16,128], index: 7, kind: output, shape index: {}]
  %s8 = sld [smem:[#allocation0]]
  $region73: #{tpu_custom_call.1} parent=0
    _
  %s10 = ssub.s32 1, %s8
  %s11 = scalar_select 0, %s10, %s8
  $region1: #{tpu_custom_call.1} parent=0
    #allocation5 [shape = 'u8[262144]{0}', space=vmem, size = 0x40000, scoped, tag = 'input window, operand 0']
    #allocation6 [shape = 's32[2]{0}', space=sflag, size = 0x8, scoped, tag = 'scoped memory for tpu_custom_call.1']
    #allocation7 [shape = 's32[2]{0}', space=sflag, size = 0x8, scoped, tag = 'scoped memory for tpu_custom_call.1']
    #allocation8 [shape = 'u8[294912]{0}', space=vmem, size = 0x48000, scoped, tag = 'input window, operand 1, single buffered']
    #allocation9 [shape = 's32[1]{0}', space=sflag, size = 0x4, scoped, tag = 'scoped memory for tpu_custom_call.1']
    #allocation10 [shape = 'u8[294912]{0}', space=vmem, size = 0x48000, scoped, tag = 'input window, operand 4, single buffered']
    #allocation11 [shape = 'u8[262144]{0}', space=vmem, size = 0x40000, scoped, tag = 'output window, operand 0']
    %12 = vsyncpa [#allocation6], 0
    %s13 = scalar_lea.sflag [#allocation6], 1
    %14 = vsyncpa %s13, 0
    %15 = vsyncpa [#allocation9], 0
    %16 = vsyncpa [#allocation7], 0
    %s17 = scalar_lea.sflag [#allocation7], 1
    %18 = vsyncpa %s17, 0
    loop: start=0, step=1, limit=4
    $region2: #{tpu_custom_call.1} parent=1 // loop_pre_header
      _
    $region3: #{tpu_custom_call.1} parent=1 // loop_header
      %s20 = sphi 0, %s24
      %p21 = scmp.ge.s32.totalorder %s20, 4
      %s30 = sphi 0, %s32
      %s33 = sphi 0, %s30
      %s34 = sphi 0, %s33
      %s50 = sphi 0, %s34
      %s54 = sphi 0, %s54
      %s56 = sphi 0, %s54
      %s57 = sphi 0, %s56
      %s71 = sphi 0, %s57
      %s75 = sphi 0, %s75
      %s77 = sphi 0, %s75
      %s78 = sphi 0, %s77
      %s92 = sphi 0, %s78
      %s96 = sphi 0, %s96
      %s98 = sphi 0, %s96
      %s99 = sphi 0, %s98
      %s113 = sphi 0, %s99
      %s117 = sphi 0, %s117
      %s119 = sphi 0, %s117
      %s120 = sphi 0, %s119
      %s134 = sphi 0, %s120
      %s138 = sphi 0, %s138
      %s140 = sphi 0, %s138
      %s141 = sphi 0, %s140
      %s155 = sphi 0, %s141
      %s159 = sphi 0, %s159
      %s161 = sphi 0, %s159
      %s162 = sphi 0, %s161
      %s176 = sphi 0, %s162
      %s182 = sphi 0, %s184
      %s185 = sphi 0, %s182
      %s186 = sphi 0, %s185
      %s202 = sphi 0, %s186
    $region4: #{tpu_custom_call.1} parent=1 // loop_header_branch
      %23 = sbr.rel (%p21) target = $region8
    $region5: #{tpu_custom_call.1} parent=1 // loop_body
      %s25 = ssub.s32 %s20, 1
      %s26 = ssub.s32 %s20, 2
      %s27 = sadd.s32 %s20, 1
      %s28 = ssub.s32 %s20, %s27
      %p29 = scmp.eq.s32.totalorder %s28, 0
      %s31 = sadd.s32 %s30, 1
      %s32 = scalar_select %p29, %s30, %s31
      %p35 = pneg %p29
      %p36 = scmp.eq.s32.totalorder %s20, 1
      %p37 = por %p35, %p36
      %p38 = scmp.ne.s32.totalorder %s30, %s33
      %p39 = scmp.eq.s32.totalorder %s20, 0
      %p40 = por %p38, %p39
      %p41 = scmp.ne.s32.totalorder %s30, %s33
      %p42 = scmp.eq.s32.totalorder %s25, 1
      %p43 = por %p41, %p42
      %p44 = scmp.ne.s32.totalorder %s33, %s34
      %p45 = scmp.eq.s32.totalorder %s25, 0
      %p46 = por %p44, %p45
      %p47 = scmp.ne.s32.totalorder %s33, %s34
      %p48 = scmp.eq.s32.totalorder %s26, 1
      %p49 = por %p47, %p48
      %p51 = scmp.ne.s32.totalorder %s34, %s50
      %p52 = scmp.eq.s32.totalorder %s26, 0
      %p53 = por %p51, %p52
      %s55 = sadd.s32 %s54, 1
      %p58 = scmp.eq.s32.totalorder %s20, 1
      %p59 = scmp.ne.s32.totalorder %s54, %s56
      %p60 = scmp.eq.s32.totalorder %s20, 0
      %p61 = por %p59, %p60
      %p62 = scmp.ne.s32.totalorder %s54, %s56
      %p63 = scmp.eq.s32.totalorder %s25, 1
      %p64 = por %p62, %p63
      %p65 = scmp.ne.s32.totalorder %s56, %s57
      %p66 = scmp.eq.s32.totalorder %s25, 0
      %p67 = por %p65, %p66
      %p68 = scmp.ne.s32.totalorder %s56, %s57
      %p69 = scmp.eq.s32.totalorder %s26, 1
      %p70 = por %p68, %p69
      %p72 = scmp.ne.s32.totalorder %s57, %s71
      %p73 = scmp.eq.s32.totalorder %s26, 0
      %p74 = por %p72, %p73
      %s76 = sadd.s32 %s75, 1
      %p79 = scmp.eq.s32.totalorder %s20, 1
      %p80 = scmp.ne.s32.totalorder %s75, %s77
      %p81 = scmp.eq.s32.totalorder %s20, 0
      %p82 = por %p80, %p81
      %p83 = scmp.ne.s32.totalorder %s75, %s77
      %p84 = scmp.eq.s32.totalorder %s25, 1
      %p85 = por %p83, %p84
      %p86 = scmp.ne.s32.totalorder %s77, %s78
      %p87 = scmp.eq.s32.totalorder %s25, 0
      %p88 = por %p86, %p87
      %p89 = scmp.ne.s32.totalorder %s77, %s78
      %p90 = scmp.eq.s32.totalorder %s26, 1
      %p91 = por %p89, %p90
      %p93 = scmp.ne.s32.totalorder %s78, %s92
      %p94 = scmp.eq.s32.totalorder %s26, 0
      %p95 = por %p93, %p94
      %s97 = sadd.s32 %s96, 1
      %p100 = scmp.eq.s32.totalorder %s20, 1
      %p101 = scmp.ne.s32.totalorder %s96, %s98
      %p102 = scmp.eq.s32.totalorder %s20, 0
      %p103 = por %p101, %p102
      %p104 = scmp.ne.s32.totalorder %s96, %s98
      %p105 = scmp.eq.s32.totalorder %s25, 1
      %p106 = por %p104, %p105
      %p107 = scmp.ne.s32.totalorder %s98, %s99
      %p108 = scmp.eq.s32.totalorder %s25, 0
      %p109 = por %p107, %p108
      %p110 = scmp.ne.s32.totalorder %s98, %s99
      %p111 = scmp.eq.s32.totalorder %s26, 1
      %p112 = por %p110, %p111
      %p114 = scmp.ne.s32.totalorder %s99, %s113
      %p115 = scmp.eq.s32.totalorder %s26, 0
      %p116 = por %p114, %p115
      %s118 = sadd.s32 %s117, 1
      %p121 = scmp.eq.s32.totalorder %s20, 1
      %p122 = scmp.ne.s32.totalorder %s117, %s119
      %p123 = scmp.eq.s32.totalorder %s20, 0
      %p124 = por %p122, %p123
      %p125 = scmp.ne.s32.totalorder %s117, %s119
      %p126 = scmp.eq.s32.totalorder %s25, 1
      %p127 = por %p125, %p126
      %p128 = scmp.ne.s32.totalorder %s119, %s120
      %p129 = scmp.eq.s32.totalorder %s25, 0
      %p130 = por %p128, %p129
      %p131 = scmp.ne.s32.totalorder %s119, %s120
      %p132 = scmp.eq.s32.totalorder %s26, 1
      %p133 = por %p131, %p132
      %p135 = scmp.ne.s32.totalorder %s120, %s134
      %p136 = scmp.eq.s32.totalorder %s26, 0
      %p137 = por %p135, %p136
      %s139 = sadd.s32 %s138, 1
      %p142 = scmp.eq.s32.totalorder %s20, 1
      %p143 = scmp.ne.s32.totalorder %s138, %s140
      %p144 = scmp.eq.s32.totalorder %s20, 0
      %p145 = por %p143, %p144
      %p146 = scmp.ne.s32.totalorder %s138, %s140
      %p147 = scmp.eq.s32.totalorder %s25, 1
      %p148 = por %p146, %p147
      %p149 = scmp.ne.s32.totalorder %s140, %s141
      %p150 = scmp.eq.s32.totalorder %s25, 0
      %p151 = por %p149, %p150
      %p152 = scmp.ne.s32.totalorder %s140, %s141
      %p153 = scmp.eq.s32.totalorder %s26, 1
      %p154 = por %p152, %p153
      %p156 = scmp.ne.s32.totalorder %s141, %s155
      %p157 = scmp.eq.s32.totalorder %s26, 0
      %p158 = por %p156, %p157
      %s160 = sadd.s32 %s159, 1
      %p163 = scmp.eq.s32.totalorder %s20, 1
      %p164 = scmp.ne.s32.totalorder %s159, %s161
      %p165 = scmp.eq.s32.totalorder %s20, 0
      %p166 = por %p164, %p165
      %p167 = scmp.ne.s32.totalorder %s159, %s161
      %p168 = scmp.eq.s32.totalorder %s25, 1
      %p169 = por %p167, %p168
      %p170 = scmp.ne.s32.totalorder %s161, %s162
      %p171 = scmp.eq.s32.totalorder %s25, 0
      %p172 = por %p170, %p171
      %p173 = scmp.ne.s32.totalorder %s161, %s162
      %p174 = scmp.eq.s32.totalorder %s26, 1
      %p175 = por %p173, %p174
      %p177 = scmp.ne.s32.totalorder %s162, %s176
      %p178 = scmp.eq.s32.totalorder %s26, 0
      %p179 = por %p177, %p178
      %s180 = ssub.s32 %s20, %s27
      %p181 = scmp.eq.s32.totalorder %s180, 0
      %s183 = sadd.s32 %s182, 1
      %s184 = scalar_select %p181, %s182, %s183
      %p187 = pneg %p181
      %p188 = scmp.eq.s32.totalorder %s20, 1
      %p189 = por %p187, %p188
      %p190 = scmp.ne.s32.totalorder %s182, %s185
      %p191 = scmp.eq.s32.totalorder %s20, 0
      %p192 = por %p190, %p191
      %p193 = scmp.ne.s32.totalorder %s182, %s185
      %p194 = scmp.eq.s32.totalorder %s25, 1
      %p195 = por %p193, %p194
      %p196 = scmp.ne.s32.totalorder %s185, %s186
      %p197 = scmp.eq.s32.totalorder %s25, 0
      %p198 = por %p196, %p197
      %p199 = scmp.ne.s32.totalorder %s185, %s186
      %p200 = scmp.eq.s32.totalorder %s26, 1
      %p201 = por %p199, %p200
      %p203 = scmp.ne.s32.totalorder %s186, %s202
      %p204 = scmp.eq.s32.totalorder %s26, 0
      %p205 = por %p203, %p204
      %p206 = scmp.le.s32.totalorder 1, %s20
      %p207 = scmp.lt.s32.totalorder %s20, 3
      %p208 = pnand %p206, %p207
      %p209 = pneg %p208
      // Predicated region
      $region9: #{tpu_custom_call.1} parent=5 // pred_check
        _
      $region10: #{tpu_custom_call.1} parent=5 // pred_check_branch
        %211 = sbr.rel (%p208) target = $region12
      $region11: #{tpu_custom_call.1} parent=5 // pred_region
        %s212 = ssub.s32 %s20, 1
        // Predicated region
        $region13: #{tpu_custom_call.1} parent=11 // pred_check
          %p213 = pneg %p67
        $region14: #{tpu_custom_call.1} parent=11 // pred_check_branch
          %215 = sbr.rel (%p213) target = $region16
        $region15: #{tpu_custom_call.1} parent=11 // pred_region
          %s217 = ssub.s32 9216, 9216
          %218 = vsyncadd [#allocation9], %s217
          %s219 = sshll.u32 [#allocation8], 4
          %s220 = int_to_ptr.vmem [resolvable:$true] %s219
          %225 = dma.hbm_to_vmem [thread:$0]  %s1, 9216, %s220, [#allocation9], 64, 64, 4
        $region16: #{tpu_custom_call.1} parent=11 // pred_fallthru
          _
        // Predicated region
        $region17: #{tpu_custom_call.1} parent=11 // pred_check
          %p226 = pneg %p88
        $region18: #{tpu_custom_call.1} parent=11 // pred_check_branch
          %228 = sbr.rel (%p226) target = $region20
        $region19: #{tpu_custom_call.1} parent=11 // pred_region
          _
        $region20: #{tpu_custom_call.1} parent=11 // pred_fallthru
          _
        // Predicated region
        $region21: #{tpu_custom_call.1} parent=11 // pred_check
          %p229 = pneg %p109
        $region22: #{tpu_custom_call.1} parent=11 // pred_check_branch
          %231 = sbr.rel (%p229) target = $region24
        $region23: #{tpu_custom_call.1} parent=11 // pred_region
          _
        $region24: #{tpu_custom_call.1} parent=11 // pred_fallthru
          _
        // Predicated region
        $region25: #{tpu_custom_call.1} parent=11 // pred_check
          %p232 = pneg %p130
        $region26: #{tpu_custom_call.1} parent=11 // pred_check_branch
          %234 = sbr.rel (%p232) target = $region28
        $region27: #{tpu_custom_call.1} parent=11 // pred_region
          %s236 = ssub.s32 9216, 9216
          %237 = vsyncadd [#allocation9], %s236
          %s238 = sshll.u32 [#allocation10], 4
          %s239 = int_to_ptr.vmem [resolvable:$true] %s238
          %244 = dma.hbm_to_vmem [thread:$0]  %s4, 9216, %s239, [#allocation9], 64, 64, 4
        $region28: #{tpu_custom_call.1} parent=11 // pred_fallthru
          _
        // Predicated region
        $region29: #{tpu_custom_call.1} parent=11 // pred_check
          %p245 = pneg %p151
        $region30: #{tpu_custom_call.1} parent=11 // pred_check_branch
          %247 = sbr.rel (%p245) target = $region32
        $region31: #{tpu_custom_call.1} parent=11 // pred_region
          _
        $region32: #{tpu_custom_call.1} parent=11 // pred_fallthru
          _
        // Predicated region
        $region33: #{tpu_custom_call.1} parent=11 // pred_check
          %p248 = pneg %p172
        $region34: #{tpu_custom_call.1} parent=11 // pred_check_branch
          %250 = sbr.rel (%p248) target = $region36
        $region35: #{tpu_custom_call.1} parent=11 // pred_region
          _
        $region36: #{tpu_custom_call.1} parent=11 // pred_fallthru
          _
      $region12: #{tpu_custom_call.1} parent=5 // pred_fallthru
        _
      %p251 = scmp.lt.s32.totalorder %s20, 2
      // Predicated region
      $region37: #{tpu_custom_call.1} parent=5 // pred_check
        %p252 = pneg %p251
      $region38: #{tpu_custom_call.1} parent=5 // pred_check_branch
        %254 = sbr.rel (%p252) target = $region40
      $region39: #{tpu_custom_call.1} parent=5 // pred_region
        // Predicated region
        $region41: #{tpu_custom_call.1} parent=39 // pred_check
          %p255 = pneg %p40
        $region42: #{tpu_custom_call.1} parent=39 // pred_check_branch
          %257 = sbr.rel (%p255) target = $region44
        $region43: #{tpu_custom_call.1} parent=39 // pred_region
          %s258 = sand.u32 %s30, 1
          %s259 = scalar_lea.sflag [#allocation6], %s258
          %s260 = sand.u32 %s30, 1
          %s261 = smul.addr %s260, 256
          %s262 = scalar_lea.vmem [#allocation5], %s261
          %s264 = ssub.s32 4096, 4096
          %265 = vsyncadd %s259, %s264
          %s266 = smul.addr %s20, 32
          %s267 = smul.addr %s266, 128
          %s268 = scalar_lea.hbm %s0, %s267
          %s269 = sshll.u32 %s262, 4
          %s270 = int_to_ptr.vmem [resolvable:$true] %s269
          %275 = dma.hbm_to_vmem [thread:$0]  %s268, 4096, %s270, %s259, 128, 128, 8
        $region44: #{tpu_custom_call.1} parent=39 // pred_fallthru
          _
      $region40: #{tpu_custom_call.1} parent=5 // pred_fallthru
        _
      %p276 = scmp.le.s32.totalorder 1, %s20
      %p277 = scmp.lt.s32.totalorder %s20, 3
      %p278 = pnand %p276, %p277
      %p279 = pneg %p278
      // Predicated region
      $region45: #{tpu_custom_call.1} parent=5 // pred_check
        _
      $region46: #{tpu_custom_call.1} parent=5 // pred_check_branch
        %281 = sbr.rel (%p278) target = $region48
      $region47: #{tpu_custom_call.1} parent=5 // pred_region
        %s282 = ssub.s32 %s20, 1
        %s283 = sand.u32 %s33, 1
        %s284 = scalar_lea.sflag [#allocation6], %s283
        %s285 = sand.u32 %s33, 1
        %s286 = smul.addr %s285, 256
        %s287 = scalar_lea.vmem [#allocation5], %s286
        // Predicated region
        $region49: #{tpu_custom_call.1} parent=47 // pred_check
          %p288 = pneg %p46
        $region50: #{tpu_custom_call.1} parent=47 // pred_check_branch
          %290 = sbr.rel (%p288) target = $region52
        $region51: #{tpu_custom_call.1} parent=47 // pred_region
          %291 = dma.done %s284, 4096
        $region52: #{tpu_custom_call.1} parent=47 // pred_fallthru
          _
        // Predicated region
        $region53: #{tpu_custom_call.1} parent=47 // pred_check
          %p292 = pneg %p67
        $region54: #{tpu_custom_call.1} parent=47 // pred_check_branch
          %294 = sbr.rel (%p292) target = $region56
        $region55: #{tpu_custom_call.1} parent=47 // pred_region
          %295 = dma.done [#allocation9], 9216
        $region56: #{tpu_custom_call.1} parent=47 // pred_fallthru
          _
        // Predicated region
        $region57: #{tpu_custom_call.1} parent=47 // pred_check
          %p296 = pneg %p130
        $region58: #{tpu_custom_call.1} parent=47 // pred_check_branch
          %298 = sbr.rel (%p296) target = $region60
        $region59: #{tpu_custom_call.1} parent=47 // pred_region
          %299 = dma.done [#allocation9], 9216
        $region60: #{tpu_custom_call.1} parent=47 // pred_fallthru
          _
        %s300 = sand.u32 %s33, 1
        %s301 = scalar_lea.sflag [#allocation6], %s300
        %s302 = sand.u32 %s33, 1
        %s303 = smul.addr %s302, 256
        %s304 = scalar_lea.vmem [#allocation5], %s303
        %p305 = pneg %p46
        %p306 = pneg %p43
        %p307 = pneg %p67
        %p308 = pneg %p64
        %p309 = pneg %p88
        %p310 = pneg %p85
        %p311 = pneg %p109
        %p312 = pneg %p106
        %p313 = pneg %p130
        %p314 = pneg %p127
        %p315 = pneg %p151
        %p316 = pneg %p148
        %p317 = pneg %p172
        %p318 = pneg %p169
        %p319 = pneg %p198
        %p320 = pneg %p195
        %s321 = sand.u32 %s185, 1
        %s322 = scalar_lea.sflag [#allocation7], %s321
        %s323 = sand.u32 %s185, 1
        %s324 = smul.addr %s323, 256
        %s325 = scalar_lea.vmem [#allocation11], %s324
        %327 = vst [vmem:[#allocation2] sm:$0xff] 0.0
        %328 = vst [vmem:[#allocation2 + $0x8] sm:$0xff] 0.0
        %329 = vst [vmem:[#allocation2 + $0x10] sm:$0x3] 0.0
        %s330 = scalar_lea.vmem [#allocation2], 408
        %331 = vst [vmem:[%s330] sm:$0xff] 0.0
        %332 = vst [vmem:[%s330 + $0x8] sm:$0xff] 0.0
        %333 = vst [vmem:[%s330 + $0x10] sm:$0x3] 0.0
        %334 = vst [vmem:[#allocation2] sm:$0x1] 0.0
        %335 = vst [vmem:[#allocation2 + $0x18] sm:$0x1] 0.0
        %336 = vst [vmem:[#allocation2 + $0x30] sm:$0x1] 0.0
        %337 = vst [vmem:[#allocation2 + $0x48] sm:$0x1] 0.0
        %338 = vst [vmem:[#allocation2 + $0x60] sm:$0x1] 0.0
        %339 = vst [vmem:[#allocation2 + $0x78] sm:$0x1] 0.0
        %340 = vst [vmem:[#allocation2 + $0x90] sm:$0x1] 0.0
        %341 = vst [vmem:[#allocation2 + $0xa8] sm:$0x1] 0.0
        %342 = vst [vmem:[#allocation2 + $0xc0] sm:$0x1] 0.0
        %343 = vst [vmem:[#allocation2 + $0xd8] sm:$0x1] 0.0
        %344 = vst [vmem:[#allocation2 + $0xf0] sm:$0x1] 0.0
        %345 = vst [vmem:[#allocation2 + $0x108] sm:$0x1] 0.0
        %346 = vst [vmem:[#allocation2 + $0x120] sm:$0x1] 0.0
        %347 = vst [vmem:[#allocation2 + $0x138] sm:$0x1] 0.0
        %348 = vst [vmem:[#allocation2 + $0x150] sm:$0x1] 0.0
        %349 = vst [vmem:[#allocation2 + $0x168] sm:$0x1] 0.0
        %350 = vst [vmem:[#allocation2 + $0x180] sm:$0x1] 0.0
        %351 = vst [vmem:[#allocation2 + $0x198] sm:$0x1] 0.0
        %352 = vst [vmem:[#allocation2 + $0x11] sm:$0x1] 0.0
        %353 = vst [vmem:[#allocation2 + $0x29] sm:$0x1] 0.0
        %354 = vst [vmem:[#allocation2 + $0x41] sm:$0x1] 0.0
        %355 = vst [vmem:[#allocation2 + $0x59] sm:$0x1] 0.0
        %356 = vst [vmem:[#allocation2 + $0x71] sm:$0x1] 0.0
        %357 = vst [vmem:[#allocation2 + $0x89] sm:$0x1] 0.0
        %358 = vst [vmem:[#allocation2 + $0xa1] sm:$0x1] 0.0
        %359 = vst [vmem:[#allocation2 + $0xb9] sm:$0x1] 0.0
        %360 = vst [vmem:[#allocation2 + $0xd1] sm:$0x1] 0.0
        %361 = vst [vmem:[#allocation2 + $0xe9] sm:$0x1] 0.0
        %362 = vst [vmem:[#allocation2 + $0x101] sm:$0x1] 0.0
        %363 = vst [vmem:[#allocation2 + $0x119] sm:$0x1] 0.0
        %364 = vst [vmem:[#allocation2 + $0x131] sm:$0x1] 0.0
        %365 = vst [vmem:[#allocation2 + $0x149] sm:$0x1] 0.0
        %366 = vst [vmem:[#allocation2 + $0x161] sm:$0x1] 0.0
        %367 = vst [vmem:[#allocation2 + $0x179] sm:$0x1] 0.0
        %368 = vst [vmem:[#allocation2 + $0x191] sm:$0x1] 0.0
        %369 = vst [vmem:[#allocation2 + $0x1a9] sm:$0x1] 0.0
        %370 = vst [vmem:[#allocation3] sm:$0xff] 0.0
        %371 = vst [vmem:[#allocation3 + $0x8] sm:$0xff] 0.0
        %372 = vst [vmem:[#allocation3 + $0x10] sm:$0x3] 0.0
        %s373 = scalar_lea.vmem [#allocation3], 408
        %374 = vst [vmem:[%s373] sm:$0xff] 0.0
        %375 = vst [vmem:[%s373 + $0x8] sm:$0xff] 0.0
        %376 = vst [vmem:[%s373 + $0x10] sm:$0x3] 0.0
        %377 = vst [vmem:[#allocation3] sm:$0x1] 0.0
        %378 = vst [vmem:[#allocation3 + $0x18] sm:$0x1] 0.0
        %379 = vst [vmem:[#allocation3 + $0x30] sm:$0x1] 0.0
        %380 = vst [vmem:[#allocation3 + $0x48] sm:$0x1] 0.0
        %381 = vst [vmem:[#allocation3 + $0x60] sm:$0x1] 0.0
        %382 = vst [vmem:[#allocation3 + $0x78] sm:$0x1] 0.0
        %383 = vst [vmem:[#allocation3 + $0x90] sm:$0x1] 0.0
        %384 = vst [vmem:[#allocation3 + $0xa8] sm:$0x1] 0.0
        %385 = vst [vmem:[#allocation3 + $0xc0] sm:$0x1] 0.0
        %386 = vst [vmem:[#allocation3 + $0xd8] sm:$0x1] 0.0
        %387 = vst [vmem:[#allocation3 + $0xf0] sm:$0x1] 0.0
        %388 = vst [vmem:[#allocation3 + $0x108] sm:$0x1] 0.0
        %389 = vst [vmem:[#allocation3 + $0x120] sm:$0x1] 0.0
        %390 = vst [vmem:[#allocation3 + $0x138] sm:$0x1] 0.0
        %391 = vst [vmem:[#allocation3 + $0x150] sm:$0x1] 0.0
        %392 = vst [vmem:[#allocation3 + $0x168] sm:$0x1] 0.0
        %393 = vst [vmem:[#allocation3 + $0x180] sm:$0x1] 0.0
        %394 = vst [vmem:[#allocation3 + $0x198] sm:$0x1] 0.0
        %395 = vst [vmem:[#allocation3 + $0x11] sm:$0x1] 0.0
        %396 = vst [vmem:[#allocation3 + $0x29] sm:$0x1] 0.0
        %397 = vst [vmem:[#allocation3 + $0x41] sm:$0x1] 0.0
        %398 = vst [vmem:[#allocation3 + $0x59] sm:$0x1] 0.0
        %399 = vst [vmem:[#allocation3 + $0x71] sm:$0x1] 0.0
        %400 = vst [vmem:[#allocation3 + $0x89] sm:$0x1] 0.0
        %401 = vst [vmem:[#allocation3 + $0xa1] sm:$0x1] 0.0
        %402 = vst [vmem:[#allocation3 + $0xb9] sm:$0x1] 0.0
        %403 = vst [vmem:[#allocation3 + $0xd1] sm:$0x1] 0.0
        %404 = vst [vmem:[#allocation3 + $0xe9] sm:$0x1] 0.0
        %405 = vst [vmem:[#allocation3 + $0x101] sm:$0x1] 0.0
        %406 = vst [vmem:[#allocation3 + $0x119] sm:$0x1] 0.0
        %407 = vst [vmem:[#allocation3 + $0x131] sm:$0x1] 0.0
        %408 = vst [vmem:[#allocation3 + $0x149] sm:$0x1] 0.0
        %409 = vst [vmem:[#allocation3 + $0x161] sm:$0x1] 0.0
        %410 = vst [vmem:[#allocation3 + $0x179] sm:$0x1] 0.0
        %411 = vst [vmem:[#allocation3 + $0x191] sm:$0x1] 0.0
        %412 = vst [vmem:[#allocation3 + $0x1a9] sm:$0x1] 0.0
        %v413 = vld [vmem:[%s287] sm:$0xff]
        %v414 = vld [vmem:[%s287 + $0x8] sm:$0xff]
        %v415 = vld [vmem:[%s287 + $0x10] sm:$0xff]
        %v416 = vld [vmem:[%s287 + $0x18] sm:$0xff]
        %v417 = vld [vmem:[%s287 + $0x20] sm:$0xff]
        %v418 = vld [vmem:[%s287 + $0x28] sm:$0xff]
        %v419 = vld [vmem:[%s287 + $0x30] sm:$0xff]
        %v420 = vld [vmem:[%s287 + $0x38] sm:$0xff]
        %v421 = vld [vmem:[%s287 + $0x40] sm:$0xff]
        %v422 = vld [vmem:[%s287 + $0x48] sm:$0xff]
        %v423 = vld [vmem:[%s287 + $0x50] sm:$0xff]
        %v424 = vld [vmem:[%s287 + $0x58] sm:$0xff]
        %v425 = vld [vmem:[%s287 + $0x60] sm:$0xff]
        %v426 = vld [vmem:[%s287 + $0x68] sm:$0xff]
        %v427 = vld [vmem:[%s287 + $0x70] sm:$0xff]
        %v428 = vld [vmem:[%s287 + $0x78] sm:$0xff]
        %v429 = vld [vmem:[%s287 + $0x80] sm:$0xff]
        %v430 = vld [vmem:[%s287 + $0x88] sm:$0xff]
        %v431 = vld [vmem:[%s287 + $0x90] sm:$0xff]
        %v432 = vld [vmem:[%s287 + $0x98] sm:$0xff]
        %v433 = vld [vmem:[%s287 + $0xa0] sm:$0xff]
        %v434 = vld [vmem:[%s287 + $0xa8] sm:$0xff]
        %v435 = vld [vmem:[%s287 + $0xb0] sm:$0xff]
        %v436 = vld [vmem:[%s287 + $0xb8] sm:$0xff]
        %v437 = vld [vmem:[%s287 + $0xc0] sm:$0xff]
        %v438 = vld [vmem:[%s287 + $0xc8] sm:$0xff]
        %v439 = vld [vmem:[%s287 + $0xd0] sm:$0xff]
        %v440 = vld [vmem:[%s287 + $0xd8] sm:$0xff]
        %v441 = vld [vmem:[%s287 + $0xe0] sm:$0xff]
        %v442 = vld [vmem:[%s287 + $0xe8] sm:$0xff]
        %v443 = vld [vmem:[%s287 + $0xf0] sm:$0xff]
        %v444 = vld [vmem:[%s287 + $0xf8] sm:$0xff]
        %s445 = scalar_lea.vmem [#allocation2], 24
        %446 = vst [vmem:[%s445 + $0x1] sm:$0xff] %v413
        %447 = vst [vmem:[%s445 + $0x9] sm:$0xff] %v414
        %448 = vst [vmem:[%s445 + $0x19] sm:$0xff] %v415
        %449 = vst [vmem:[%s445 + $0x21] sm:$0xff] %v416
        %450 = vst [vmem:[%s445 + $0x31] sm:$0xff] %v417
        %451 = vst [vmem:[%s445 + $0x39] sm:$0xff] %v418
        %452 = vst [vmem:[%s445 + $0x49] sm:$0xff] %v419
        %453 = vst [vmem:[%s445 + $0x51] sm:$0xff] %v420
        %454 = vst [vmem:[%s445 + $0x61] sm:$0xff] %v421
        %455 = vst [vmem:[%s445 + $0x69] sm:$0xff] %v422
        %456 = vst [vmem:[%s445 + $0x79] sm:$0xff] %v423
        %457 = vst [vmem:[%s445 + $0x81] sm:$0xff] %v424
        %458 = vst [vmem:[%s445 + $0x91] sm:$0xff] %v425
        %459 = vst [vmem:[%s445 + $0x99] sm:$0xff] %v426
        %460 = vst [vmem:[%s445 + $0xa9] sm:$0xff] %v427
        %461 = vst [vmem:[%s445 + $0xb1] sm:$0xff] %v428
        %462 = vst [vmem:[%s445 + $0xc1] sm:$0xff] %v429
        %463 = vst [vmem:[%s445 + $0xc9] sm:$0xff] %v430
        %464 = vst [vmem:[%s445 + $0xd9] sm:$0xff] %v431
        %465 = vst [vmem:[%s445 + $0xe1] sm:$0xff] %v432
        %466 = vst [vmem:[%s445 + $0xf1] sm:$0xff] %v433
        %467 = vst [vmem:[%s445 + $0xf9] sm:$0xff] %v434
        %468 = vst [vmem:[%s445 + $0x109] sm:$0xff] %v435
        %469 = vst [vmem:[%s445 + $0x111] sm:$0xff] %v436
        %470 = vst [vmem:[%s445 + $0x121] sm:$0xff] %v437
        %471 = vst [vmem:[%s445 + $0x129] sm:$0xff] %v438
        %472 = vst [vmem:[%s445 + $0x139] sm:$0xff] %v439
        %473 = vst [vmem:[%s445 + $0x141] sm:$0xff] %v440
        %474 = vst [vmem:[%s445 + $0x151] sm:$0xff] %v441
        %475 = vst [vmem:[%s445 + $0x159] sm:$0xff] %v442
        %476 = vst [vmem:[%s445 + $0x169] sm:$0xff] %v443
        %477 = vst [vmem:[%s445 + $0x171] sm:$0xff] %v444
        %478 = vst [vmem:[#allocation4] sm:$0xff] 0.0
        %479 = vst [vmem:[#allocation4 + $0x8] sm:$0xff] 0.0
        %480 = vst [vmem:[#allocation4 + $0x10] sm:$0xff] 0.0
        %481 = vst [vmem:[#allocation4 + $0x18] sm:$0xff] 0.0
        %482 = vst [vmem:[#allocation4 + $0x20] sm:$0xff] 0.0
        %483 = vst [vmem:[#allocation4 + $0x28] sm:$0xff] 0.0
        %484 = vst [vmem:[#allocation4 + $0x30] sm:$0xff] 0.0
        %485 = vst [vmem:[#allocation4 + $0x38] sm:$0xff] 0.0
        %486 = vst [vmem:[#allocation4 + $0x40] sm:$0xff] 0.0
        %487 = vst [vmem:[#allocation4 + $0x48] sm:$0xff] 0.0
        %488 = vst [vmem:[#allocation4 + $0x50] sm:$0xff] 0.0
        %489 = vst [vmem:[#allocation4 + $0x58] sm:$0xff] 0.0
        %490 = vst [vmem:[#allocation4 + $0x60] sm:$0xff] 0.0
        %491 = vst [vmem:[#allocation4 + $0x68] sm:$0xff] 0.0
        %492 = vst [vmem:[#allocation4 + $0x70] sm:$0xff] 0.0
        %493 = vst [vmem:[#allocation4 + $0x78] sm:$0xff] 0.0
        %494 = vst [vmem:[#allocation4 + $0x80] sm:$0xff] 0.0
        %495 = vst [vmem:[#allocation4 + $0x88] sm:$0xff] 0.0
        %496 = vst [vmem:[#allocation4 + $0x90] sm:$0xff] 0.0
        %497 = vst [vmem:[#allocation4 + $0x98] sm:$0xff] 0.0
        %498 = vst [vmem:[#allocation4 + $0xa0] sm:$0xff] 0.0
        %499 = vst [vmem:[#allocation4 + $0xa8] sm:$0xff] 0.0
        %500 = vst [vmem:[#allocation4 + $0xb0] sm:$0xff] 0.0
        %501 = vst [vmem:[#allocation4 + $0xb8] sm:$0xff] 0.0
        %502 = vst [vmem:[#allocation4 + $0xc0] sm:$0xff] 0.0
        %503 = vst [vmem:[#allocation4 + $0xc8] sm:$0xff] 0.0
        %504 = vst [vmem:[#allocation4 + $0xd0] sm:$0xff] 0.0
        %505 = vst [vmem:[#allocation4 + $0xd8] sm:$0xff] 0.0
        %506 = vst [vmem:[#allocation4 + $0xe0] sm:$0xff] 0.0
        %507 = vst [vmem:[#allocation4 + $0xe8] sm:$0xff] 0.0
        %508 = vst [vmem:[#allocation4 + $0xf0] sm:$0xff] 0.0
        %509 = vst [vmem:[#allocation4 + $0xf8] sm:$0xff] 0.0
        %v510 = vld [vmem:[#allocation2] sm:$0xff]
        %v511 = vld [vmem:[#allocation2 + $0x8] sm:$0xff]
        %v512 = vld [vmem:[#allocation2 + $0x18] sm:$0xff]
        %v513 = vld [vmem:[#allocation2 + $0x20] sm:$0xff]
        %v514 = vld [vmem:[#allocation2 + $0x30] sm:$0xff]
        %v515 = vld [vmem:[#allocation2 + $0x38] sm:$0xff]
        %v516 = vld [vmem:[#allocation2 + $0x48] sm:$0xff]
        %v517 = vld [vmem:[#allocation2 + $0x50] sm:$0xff]
        %v518 = vld [vmem:[#allocation2 + $0x60] sm:$0xff]
        %v519 = vld [vmem:[#allocation2 + $0x68] sm:$0xff]
        %v520 = vld [vmem:[#allocation2 + $0x78] sm:$0xff]
        %v521 = vld [vmem:[#allocation2 + $0x80] sm:$0xff]
        %v522 = vld [vmem:[#allocation2 + $0x90] sm:$0xff]
        %v523 = vld [vmem:[#allocation2 + $0x98] sm:$0xff]
        %v524 = vld [vmem:[#allocation2 + $0xa8] sm:$0xff]
        %v525 = vld [vmem:[#allocation2 + $0xb0] sm:$0xff]
        %v526 = vld [vmem:[#allocation2 + $0xc0] sm:$0xff]
        %v527 = vld [vmem:[#allocation2 + $0xc8] sm:$0xff]
        %v528 = vld [vmem:[#allocation2 + $0xd8] sm:$0xff]
        %v529 = vld [vmem:[#allocation2 + $0xe0] sm:$0xff]
        %v530 = vld [vmem:[#allocation2 + $0xf0] sm:$0xff]
        %v531 = vld [vmem:[#allocation2 + $0xf8] sm:$0xff]
        %v532 = vld [vmem:[#allocation2 + $0x108] sm:$0xff]
        %v533 = vld [vmem:[#allocation2 + $0x110] sm:$0xff]
        %v534 = vld [vmem:[#allocation2 + $0x120] sm:$0xff]
        %v535 = vld [vmem:[#allocation2 + $0x128] sm:$0xff]
        %v536 = vld [vmem:[#allocation2 + $0x138] sm:$0xff]
        %v537 = vld [vmem:[#allocation2 + $0x140] sm:$0xff]
        %v538 = vld [vmem:[#allocation2 + $0x150] sm:$0xff]
        %v539 = vld [vmem:[#allocation2 + $0x158] sm:$0xff]
        %v540 = vld [vmem:[#allocation2 + $0x168] sm:$0xff]
        %v541 = vld [vmem:[#allocation2 + $0x170] sm:$0xff]
        %v542 = vld [vmem:[#allocation4] sm:$0xff]
        %v543 = vld [vmem:[#allocation4 + $0x8] sm:$0xff]
        %v544 = vld [vmem:[#allocation4 + $0x10] sm:$0xff]
        %v545 = vld [vmem:[#allocation4 + $0x18] sm:$0xff]
        %v546 = vld [vmem:[#allocation4 + $0x20] sm:$0xff]
        %v547 = vld [vmem:[#allocation4 + $0x28] sm:$0xff]
        %v548 = vld [vmem:[#allocation4 + $0x30] sm:$0xff]
        %v549 = vld [vmem:[#allocation4 + $0x38] sm:$0xff]
        %v550 = vld [vmem:[#allocation4 + $0x40] sm:$0xff]
        %v551 = vld [vmem:[#allocation4 + $0x48] sm:$0xff]
        %v552 = vld [vmem:[#allocation4 + $0x50] sm:$0xff]
        %v553 = vld [vmem:[#allocation4 + $0x58] sm:$0xff]
        %v554 = vld [vmem:[#allocation4 + $0x60] sm:$0xff]
        %v555 = vld [vmem:[#allocation4 + $0x68] sm:$0xff]
        %v556 = vld [vmem:[#allocation4 + $0x70] sm:$0xff]
        %v557 = vld [vmem:[#allocation4 + $0x78] sm:$0xff]
        %v558 = vld [vmem:[#allocation4 + $0x80] sm:$0xff]
        %v559 = vld [vmem:[#allocation4 + $0x88] sm:$0xff]
        %v560 = vld [vmem:[#allocation4 + $0x90] sm:$0xff]
        %v561 = vld [vmem:[#allocation4 + $0x98] sm:$0xff]
        %v562 = vld [vmem:[#allocation4 + $0xa0] sm:$0xff]
        %v563 = vld [vmem:[#allocation4 + $0xa8] sm:$0xff]
        %v564 = vld [vmem:[#allocation4 + $0xb0] sm:$0xff]
        %v565 = vld [vmem:[#allocation4 + $0xb8] sm:$0xff]
        %v566 = vld [vmem:[#allocation4 + $0xc0] sm:$0xff]
        %v567 = vld [vmem:[#allocation4 + $0xc8] sm:$0xff]
        %v568 = vld [vmem:[#allocation4 + $0xd0] sm:$0xff]
        %v569 = vld [vmem:[#allocation4 + $0xd8] sm:$0xff]
        %v570 = vld [vmem:[#allocation4 + $0xe0] sm:$0xff]
        %v571 = vld [vmem:[#allocation4 + $0xe8] sm:$0xff]
        %v572 = vld [vmem:[#allocation4 + $0xf0] sm:$0xff]
        %v573 = vld [vmem:[#allocation4 + $0xf8] sm:$0xff]
        %v574 = vpack.c.bf16 %v511, %v510
        %v575 = vpack.c.bf16 %v513, %v512
        %v576 = vpack.c.bf16 %v515, %v514
        %v577 = vpack.c.bf16 %v517, %v516
        %v578 = vpack.c.bf16 %v519, %v518
        %v579 = vpack.c.bf16 %v521, %v520
        %v580 = vpack.c.bf16 %v523, %v522
        %v581 = vpack.c.bf16 %v525, %v524
        %v582 = vpack.c.bf16 %v527, %v526
        %v583 = vpack.c.bf16 %v529, %v528
        %v584 = vpack.c.bf16 %v531, %v530
        %v585 = vpack.c.bf16 %v533, %v532
        %v586 = vpack.c.bf16 %v535, %v534
        %v587 = vpack.c.bf16 %v537, %v536
        %v588 = vpack.c.bf16 %v539, %v538
        %v589 = vpack.c.bf16 %v541, %v540
        %v590 = vld [vmem:[#allocation8] sm:$0xf]
        %v591 = vld [vmem:[#allocation8 + $0x4] sm:$0xf]
        %v592 = vld [vmem:[#allocation8 + $0x8] sm:$0xf]
        %v593 = vld [vmem:[#allocation8 + $0xc] sm:$0xf]
        %v594 = vld [vmem:[#allocation8 + $0x10] sm:$0xf]
        %v595 = vld [vmem:[#allocation8 + $0x14] sm:$0xf]
        %v596 = vld [vmem:[#allocation8 + $0x18] sm:$0xf]
        %v597 = vld [vmem:[#allocation8 + $0x1c] sm:$0xf]
        %v598 = vld [vmem:[#allocation8 + $0x20] sm:$0xf]
        %v599 = vld [vmem:[#allocation8 + $0x24] sm:$0xf]
        %v600 = vld [vmem:[#allocation8 + $0x28] sm:$0xf]
        %v601 = vld [vmem:[#allocation8 + $0x2c] sm:$0xf]
        %v602 = vld [vmem:[#allocation8 + $0x30] sm:$0xf]
        %v603 = vld [vmem:[#allocation8 + $0x34] sm:$0xf]
        %v604 = vld [vmem:[#allocation8 + $0x38] sm:$0xf]
        %v605 = vld [vmem:[#allocation8 + $0x3c] sm:$0xf]
        %v622 = vunpack.c.l.b16 %v590
        %v623 = vunpack.c.l.b16 %v591
        %v624 = vunpack.c.l.b16 %v592
        %v625 = vunpack.c.l.b16 %v593
        %v626 = vunpack.c.l.b16 %v594
        %v627 = vunpack.c.l.b16 %v595
        %v628 = vunpack.c.l.b16 %v596
        %v629 = vunpack.c.l.b16 %v597
        %v630 = vunpack.c.l.b16 %v598
        %v631 = vunpack.c.l.b16 %v599
        %v632 = vunpack.c.l.b16 %v600
        %v633 = vunpack.c.l.b16 %v601
        %v634 = vunpack.c.l.b16 %v602
        %v635 = vunpack.c.l.b16 %v603
        %v636 = vunpack.c.l.b16 %v604
        %v637 = vunpack.c.l.b16 %v605
        %v638 = vpack.c.b16 %v623, %v622
        %v639 = vpack.c.b16 %v625, %v624
        %v640 = vpack.c.b16 %v627, %v626
        %v641 = vpack.c.b16 %v629, %v628
        %v642 = vpack.c.b16 %v631, %v630
        %v643 = vpack.c.b16 %v633, %v632
        %v644 = vpack.c.b16 %v635, %v634
        %v645 = vpack.c.b16 %v637, %v636
        %654 = vmatprep.subr.bf16.mxu0 0
        %655 = vmatpush1.bf16.msra.mxu0 %v638
        %656 = vmatprep.subr.bf16.mxu0 0
        %657 = vmatpush1.bf16.msra.mxu0 %v639
        %658 = vmatprep.subr.bf16.mxu0 0
        %659 = vmatpush1.bf16.msra.mxu0 %v640
        %660 = vmatprep.subr.bf16.mxu0 0
        %661 = vmatpush1.bf16.msra.mxu0 %v641
        %662 = vmatprep.subr.bf16.mxu0 0
        %663 = vmatpush1.bf16.msra.mxu0 %v642
        %664 = vmatprep.subr.bf16.mxu0 0
        %665 = vmatpush1.bf16.msra.mxu0 %v643
        %666 = vmatprep.subr.bf16.mxu0 0
        %667 = vmatpush1.bf16.msra.mxu0 %v644
        %668 = vmatprep.subr.bf16.mxu0 0
        %669 = vmatpush1.bf16.msra.mxu0 %v645
        %670 = vmatprep.subr.bf16.mxu0 0
        %671 = vmatpush1.bf16.msra.mxu0 0
        %672 = vmatprep.subr.bf16.mxu0 0
        %673 = vmatpush1.bf16.msra.mxu0 0
        %674 = vmatprep.subr.bf16.mxu0 0
        %675 = vmatpush1.bf16.msra.mxu0 0
        %676 = vmatprep.subr.bf16.mxu0 0
        %677 = vmatpush1.bf16.msra.mxu0 0
        %678 = vmatprep.subr.bf16.mxu0 0
        %679 = vmatpush1.bf16.msra.mxu0 0
        %680 = vmatprep.subr.bf16.mxu0 0
        %681 = vmatpush1.bf16.msra.mxu0 0
        %682 = vmatprep.subr.bf16.mxu0 0
        %683 = vmatpush1.bf16.msra.mxu0 0
        %684 = vmatprep.subr.bf16.mxu0 0
        %685 = vmatpush1.bf16.msra.mxu0 0
        %686 = vmatprep.mubr.bf16.mxu0 0
        %687 = vmatmul.mubr.bf16.gmra.mrb[0].mxu0 %v574
        %v688 = vpop.f32.mrb[0].mxu0
        %v689 = vadd.f32 0.0, %v688
        %v690 = vpop.f32.mrb[0].mxu0
        %v691 = vpop.f32.mrb[0].mxu0
        %v692 = vadd.f32 0.0, %v691
        %v693 = vpop.f32.mrb[0].mxu0
        %694 = vmatprep.mubr.bf16.mxu0 0
        %695 = vmatmul.mubr.bf16.gmra.mrb[0].mxu0 %v575
        %v696 = vpop.f32.mrb[0].mxu0
        %v697 = vadd.f32 0.0, %v696
        %v698 = vpop.f32.mrb[0].mxu0
        %v699 = vpop.f32.mrb[0].mxu0
        %v700 = vadd.f32 0.0, %v699
        %v701 = vpop.f32.mrb[0].mxu0
        %702 = vmatprep.mubr.bf16.mxu0 0
        %703 = vmatmul.mubr.bf16.gmra.mrb[0].mxu0 %v576
        %v704 = vpop.f32.mrb[0].mxu0
        %v705 = vadd.f32 0.0, %v704
        %v706 = vpop.f32.mrb[0].mxu0
        %v707 = vpop.f32.mrb[0].mxu0
        %v708 = vadd.f32 0.0, %v707
        %v709 = vpop.f32.mrb[0].mxu0
        %710 = vmatprep.mubr.bf16.mxu0 0
        %711 = vmatmul.mubr.bf16.gmra.mrb[0].mxu0 %v577
        %v712 = vpop.f32.mrb[0].mxu0
        %v713 = vadd.f32 0.0, %v712
        %v714 = vpop.f32.mrb[0].mxu0
        %v715 = vpop.f32.mrb[0].mxu0
        %v716 = vadd.f32 0.0, %v715
        %v717 = vpop.f32.mrb[0].mxu0
        %718 = vmatprep.mubr.bf16.mxu0 0
        %719 = vmatmul.mubr.bf16.gmra.mrb[0].mxu0 %v578
        %v720 = vpop.f32.mrb[0].mxu0
        %v721 = vadd.f32 0.0, %v720
        %v722 = vpop.f32.mrb[0].mxu0
        %v723 = vpop.f32.mrb[0].mxu0
        %v724 = vadd.f32 0.0, %v723
        %v725 = vpop.f32.mrb[0].mxu0
        %726 = vmatprep.mubr.bf16.mxu0 0
        %727 = vmatmul.mubr.bf16.gmra.mrb[0].mxu0 %v579
        %v728 = vpop.f32.mrb[0].mxu0
        %v729 = vadd.f32 0.0, %v728
        %v730 = vpop.f32.mrb[0].mxu0
        %v731 = vpop.f32.mrb[0].mxu0
        %v732 = vadd.f32 0.0, %v731
        %v733 = vpop.f32.mrb[0].mxu0
        %734 = vmatprep.mubr.bf16.mxu0 0
        %735 = vmatmul.mubr.bf16.gmra.mrb[0].mxu0 %v580
        %v736 = vpop.f32.mrb[0].mxu0
        %v737 = vadd.f32 0.0, %v736
        %v738 = vpop.f32.mrb[0].mxu0
        %v739 = vpop.f32.mrb[0].mxu0
        %v740 = vadd.f32 0.0, %v739
        %v741 = vpop.f32.mrb[0].mxu0
        %742 = vmatprep.mubr.bf16.mxu0 0
        %743 = vmatmul.mubr.bf16.gmra.mrb[0].mxu0 %v581
        %v744 = vpop.f32.mrb[0].mxu0
        %v745 = vadd.f32 0.0, %v744
        %v746 = vpop.f32.mrb[0].mxu0
        %v747 = vpop.f32.mrb[0].mxu0
        %v748 = vadd.f32 0.0, %v747
        %v749 = vpop.f32.mrb[0].mxu0
        %750 = vmatprep.mubr.bf16.mxu0 0
        %751 = vmatmul.mubr.bf16.gmra.mrb[0].mxu0 %v582
        %v752 = vpop.f32.mrb[0].mxu0
        %v753 = vadd.f32 0.0, %v752
        %v754 = vpop.f32.mrb[0].mxu0
        %v755 = vpop.f32.mrb[0].mxu0
        %v756 = vadd.f32 0.0, %v755
        %v757 = vpop.f32.mrb[0].mxu0
        %758 = vmatprep.mubr.bf16.mxu0 0
        %759 = vmatmul.mubr.bf16.gmra.mrb[0].mxu0 %v583
        %v760 = vpop.f32.mrb[0].mxu0
        %v761 = vadd.f32 0.0, %v760
        %v762 = vpop.f32.mrb[0].mxu0
        %v763 = vpop.f32.mrb[0].mxu0
        %v764 = vadd.f32 0.0, %v763
        %v765 = vpop.f32.mrb[0].mxu0
        %766 = vmatprep.mubr.bf16.mxu0 0
        %767 = vmatmul.mubr.bf16.gmra.mrb[0].mxu0 %v584
        %v768 = vpop.f32.mrb[0].mxu0
        %v769 = vadd.f32 0.0, %v768
        %v770 = vpop.f32.mrb[0].mxu0
        %v771 = vpop.f32.mrb[0].mxu0
        %v772 = vadd.f32 0.0, %v771
        %v773 = vpop.f32.mrb[0].mxu0
        %774 = vmatprep.mubr.bf16.mxu0 0
        %775 = vmatmul.mubr.bf16.gmra.mrb[0].mxu0 %v585
        %v776 = vpop.f32.mrb[0].mxu0
        %v777 = vadd.f32 0.0, %v776
        %v778 = vpop.f32.mrb[0].mxu0
        %v779 = vpop.f32.mrb[0].mxu0
        %v780 = vadd.f32 0.0, %v779
        %v781 = vpop.f32.mrb[0].mxu0
        %782 = vmatprep.mubr.bf16.mxu0 0
        %783 = vmatmul.mubr.bf16.gmra.mrb[0].mxu0 %v586
        %v784 = vpop.f32.mrb[0].mxu0
        %v785 = vadd.f32 0.0, %v784
        %v786 = vpop.f32.mrb[0].mxu0
        %v787 = vpop.f32.mrb[0].mxu0
        %v788 = vadd.f32 0.0, %v787
        %v789 = vpop.f32.mrb[0].mxu0
        %790 = vmatprep.mubr.bf16.mxu0 0
        %791 = vmatmul.mubr.bf16.gmra.mrb[0].mxu0 %v587
        %v792 = vpop.f32.mrb[0].mxu0
        %v793 = vadd.f32 0.0, %v792
        %v794 = vpop.f32.mrb[0].mxu0
        %v795 = vpop.f32.mrb[0].mxu0
        %v796 = vadd.f32 0.0, %v795
        %v797 = vpop.f32.mrb[0].mxu0
        %798 = vmatprep.mubr.bf16.mxu0 0
        %799 = vmatmul.mubr.bf16.gmra.mrb[0].mxu0 %v588
        %v800 = vpop.f32.mrb[0].mxu0
        %v801 = vadd.f32 0.0, %v800
        %v802 = vpop.f32.mrb[0].mxu0
        %v803 = vpop.f32.mrb[0].mxu0
        %v804 = vadd.f32 0.0, %v803
        %v805 = vpop.f32.mrb[0].mxu0
        %806 = vmatprep.mubr.bf16.mxu0 0
        %807 = vmatmul.mubr.bf16.gmra.mrb[0].mxu0 %v589
        %v808 = vpop.f32.mrb[0].mxu0
        %v809 = vadd.f32 0.0, %v808
        %v810 = vpop.f32.mrb[0].mxu0
        %v811 = vpop.f32.mrb[0].mxu0
        %v812 = vadd.f32 0.0, %v811
        %v813 = vpop.f32.mrb[0].mxu0
        %814 = vdwg.mxu0
        %v815 = vadd.f32 %v542, %v689
        %v816 = vadd.f32 %v543, %v692
        %v817 = vadd.f32 %v544, %v697
        %v818 = vadd.f32 %v545, %v700
        %v819 = vadd.f32 %v546, %v705
        %v820 = vadd.f32 %v547, %v708
        %v821 = vadd.f32 %v548, %v713
        %v822 = vadd.f32 %v549, %v716
        %v823 = vadd.f32 %v550, %v721
        %v824 = vadd.f32 %v551, %v724
        %v825 = vadd.f32 %v552, %v729
        %v826 = vadd.f32 %v553, %v732
        %v827 = vadd.f32 %v554, %v737
        %v828 = vadd.f32 %v555, %v740
        %v829 = vadd.f32 %v556, %v745
        %v830 = vadd.f32 %v557, %v748
        %v831 = vadd.f32 %v558, %v753
        %v832 = vadd.f32 %v559, %v756
        %v833 = vadd.f32 %v560, %v761
        %v834 = vadd.f32 %v561, %v764
        %v835 = vadd.f32 %v562, %v769
        %v836 = vadd.f32 %v563, %v772
        %v837 = vadd.f32 %v564, %v777
        %v838 = vadd.f32 %v565, %v780
        %v839 = vadd.f32 %v566, %v785
        %v840 = vadd.f32 %v567, %v788
        %v841 = vadd.f32 %v568, %v793
        %v842 = vadd.f32 %v569, %v796
        %v843 = vadd.f32 %v570, %v801
        %v844 = vadd.f32 %v571, %v804
        %v845 = vadd.f32 %v572, %v809
        %v846 = vadd.f32 %v573, %v812
        %847 = vst [vmem:[#allocation4] sm:$0xff] %v815
        %848 = vst [vmem:[#allocation4 + $0x8] sm:$0xff] %v816
        %849 = vst [vmem:[#allocation4 + $0x10] sm:$0xff] %v817
        %850 = vst [vmem:[#allocation4 + $0x18] sm:$0xff] %v818
        %851 = vst [vmem:[#allocation4 + $0x20] sm:$0xff] %v819
        %852 = vst [vmem:[#allocation4 + $0x28] sm:$0xff] %v820
        %853 = vst [vmem:[#allocation4 + $0x30] sm:$0xff] %v821
        %854 = vst [vmem:[#allocation4 + $0x38] sm:$0xff] %v822
        %855 = vst [vmem:[#allocation4 + $0x40] sm:$0xff] %v823
        %856 = vst [vmem:[#allocation4 + $0x48] sm:$0xff] %v824
        %857 = vst [vmem:[#allocation4 + $0x50] sm:$0xff] %v825
        %858 = vst [vmem:[#allocation4 + $0x58] sm:$0xff] %v826
        %859 = vst [vmem:[#allocation4 + $0x60] sm:$0xff] %v827
        %860 = vst [vmem:[#allocation4 + $0x68] sm:$0xff] %v828
        %861 = vst [vmem:[#allocation4 + $0x70] sm:$0xff] %v829
        %862 = vst [vmem:[#allocation4 + $0x78] sm:$0xff] %v830
        %863 = vst [vmem:[#allocation4 + $0x80] sm:$0xff] %v831
        %864 = vst [vmem:[#allocation4 + $0x88] sm:$0xff] %v832
        %865 = vst [vmem:[#allocation4 + $0x90] sm:$0xff] %v833
        %866 = vst [vmem:[#allocation4 + $0x98] sm:$0xff] %v834
        %867 = vst [vmem:[#allocation4 + $0xa0] sm:$0xff] %v835
        %868 = vst [vmem:[#allocation4 + $0xa8] sm:$0xff] %v836
        %869 = vst [vmem:[#allocation4 + $0xb0] sm:$0xff] %v837
        %870 = vst [vmem:[#allocation4 + $0xb8] sm:$0xff] %v838
        %871 = vst [vmem:[#allocation4 + $0xc0] sm:$0xff] %v839
        %872 = vst [vmem:[#allocation4 + $0xc8] sm:$0xff] %v840
        %873 = vst [vmem:[#allocation4 + $0xd0] sm:$0xff] %v841
        %874 = vst [vmem:[#allocation4 + $0xd8] sm:$0xff] %v842
        %875 = vst [vmem:[#allocation4 + $0xe0] sm:$0xff] %v843
        %876 = vst [vmem:[#allocation4 + $0xe8] sm:$0xff] %v844
        %877 = vst [vmem:[#allocation4 + $0xf0] sm:$0xff] %v845
        %878 = vst [vmem:[#allocation4 + $0xf8] sm:$0xff] %v846
        %v879 = vld [vmem:[#allocation2 + $0x1] sm:$0xff]
        %v880 = vld [vmem:[#allocation2 + $0x9] sm:$0xff]
        %v881 = vld [vmem:[#allocation2 + $0x19] sm:$0xff]
        %v882 = vld [vmem:[#allocation2 + $0x21] sm:$0xff]
        %v883 = vld [vmem:[#allocation2 + $0x31] sm:$0xff]
        %v884 = vld [vmem:[#allocation2 + $0x39] sm:$0xff]
        %v885 = vld [vmem:[#allocation2 + $0x49] sm:$0xff]
        %v886 = vld [vmem:[#allocation2 + $0x51] sm:$0xff]
        %v887 = vld [vmem:[#allocation2 + $0x61] sm:$0xff]
        %v888 = vld [vmem:[#allocation2 + $0x69] sm:$0xff]
        %v889 = vld [vmem:[#allocation2 + $0x79] sm:$0xff]
        %v890 = vld [vmem:[#allocation2 + $0x81] sm:$0xff]
        %v891 = vld [vmem:[#allocation2 + $0x91] sm:$0xff]
        %v892 = vld [vmem:[#allocation2 + $0x99] sm:$0xff]
        %v893 = vld [vmem:[#allocation2 + $0xa9] sm:$0xff]
        %v894 = vld [vmem:[#allocation2 + $0xb1] sm:$0xff]
        %v895 = vld [vmem:[#allocation2 + $0xc1] sm:$0xff]
        %v896 = vld [vmem:[#allocation2 + $0xc9] sm:$0xff]
        %v897 = vld [vmem:[#allocation2 + $0xd9] sm:$0xff]
        %v898 = vld [vmem:[#allocation2 + $0xe1] sm:$0xff]
        %v899 = vld [vmem:[#allocation2 + $0xf1] sm:$0xff]
        %v900 = vld [vmem:[#allocation2 + $0xf9] sm:$0xff]
        %v901 = vld [vmem:[#allocation2 + $0x109] sm:$0xff]
        %v902 = vld [vmem:[#allocation2 + $0x111] sm:$0xff]
        %v903 = vld [vmem:[#allocation2 + $0x121] sm:$0xff]
        %v904 = vld [vmem:[#allocation2 + $0x129] sm:$0xff]
        %v905 = vld [vmem:[#allocation2 + $0x139] sm:$0xff]
        %v906 = vld [vmem:[#allocation2 + $0x141] sm:$0xff]
        %v907 = vld [vmem:[#allocation2 + $0x151] sm:$0xff]
        %v908 = vld [vmem:[#allocation2 + $0x159] sm:$0xff]
        %v909 = vld [vmem:[#allocation2 + $0x169] sm:$0xff]
        %v910 = vld [vmem:[#allocation2 + $0x171] sm:$0xff]
        %v911 = vld [vmem:[#allocation4] sm:$0xff]
        %v912 = vld [vmem:[#allocation4 + $0x8] sm:$0xff]
        %v913 = vld [vmem:[#allocation4 + $0x10] sm:$0xff]
        %v914 = vld [vmem:[#allocation4 + $0x18] sm:$0xff]
        %v915 = vld [vmem:[#allocation4 + $0x20] sm:$0xff]
        %v916 = vld [vmem:[#allocation4 + $0x28] sm:$0xff]
        %v917 = vld [vmem:[#allocation4 + $0x30] sm:$0xff]
        %v918 = vld [vmem:[#allocation4 + $0x38] sm:$0xff]
        %v919 = vld [vmem:[#allocation4 + $0x40] sm:$0xff]
        %v920 = vld [vmem:[#allocation4 + $0x48] sm:$0xff]
        %v921 = vld [vmem:[#allocation4 + $0x50] sm:$0xff]
        %v922 = vld [vmem:[#allocation4 + $0x58] sm:$0xff]
        %v923 = vld [vmem:[#allocation4 + $0x60] sm:$0xff]
        %v924 = vld [vmem:[#allocation4 + $0x68] sm:$0xff]
        %v925 = vld [vmem:[#allocation4 + $0x70] sm:$0xff]
        %v926 = vld [vmem:[#allocation4 + $0x78] sm:$0xff]
        %v927 = vld [vmem:[#allocation4 + $0x80] sm:$0xff]
        %v928 = vld [vmem:[#allocation4 + $0x88] sm:$0xff]
        %v929 = vld [vmem:[#allocation4 + $0x90] sm:$0xff]
        %v930 = vld [vmem:[#allocation4 + $0x98] sm:$0xff]
        %v931 = vld [vmem:[#allocation4 + $0xa0] sm:$0xff]
        %v932 = vld [vmem:[#allocation4 + $0xa8] sm:$0xff]
        %v933 = vld [vmem:[#allocation4 + $0xb0] sm:$0xff]
        %v934 = vld [vmem:[#allocation4 + $0xb8] sm:$0xff]
        %v935 = vld [vmem:[#allocation4 + $0xc0] sm:$0xff]
        %v936 = vld [vmem:[#allocation4 + $0xc8] sm:$0xff]
        %v937 = vld [vmem:[#allocation4 + $0xd0] sm:$0xff]
        %v938 = vld [vmem:[#allocation4 + $0xd8] sm:$0xff]
        %v939 = vld [vmem:[#allocation4 + $0xe0] sm:$0xff]
        %v940 = vld [vmem:[#allocation4 + $0xe8] sm:$0xff]
        %v941 = vld [vmem:[#allocation4 + $0xf0] sm:$0xff]
        %v942 = vld [vmem:[#allocation4 + $0xf8] sm:$0xff]
        %v943 = vpack.c.bf16 %v880, %v879
        %v944 = vpack.c.bf16 %v882, %v881
        %v945 = vpack.c.bf16 %v884, %v883
        %v946 = vpack.c.bf16 %v886, %v885
        %v947 = vpack.c.bf16 %v888, %v887
        %v948 = vpack.c.bf16 %v890, %v889
        %v949 = vpack.c.bf16 %v892, %v891
        %v950 = vpack.c.bf16 %v894, %v893
        %v951 = vpack.c.bf16 %v896, %v895
        %v952 = vpack.c.bf16 %v898, %v897
        %v953 = vpack.c.bf16 %v900, %v899
        %v954 = vpack.c.bf16 %v902, %v901
        %v955 = vpack.c.bf16 %v904, %v903
        %v956 = vpack.c.bf16 %v906, %v905
        %v957 = vpack.c.bf16 %v908, %v907
        %v958 = vpack.c.bf16 %v910, %v909
        %s959 = scalar_lea.vmem [#allocation8], 64
        %v960 = vld [vmem:[%s959] sm:$0xf]
        %v961 = vld [vmem:[%s959 + $0x4] sm:$0xf]
        %v962 = vld [vmem:[%s959 + $0x8] sm:$0xf]
        %v963 = vld [vmem:[%s959 + $0xc] sm:$0xf]
        %v964 = vld [vmem:[%s959 + $0x10] sm:$0xf]
        %v965 = vld [vmem:[%s959 + $0x14] sm:$0xf]
        %v966 = vld [vmem:[%s959 + $0x18] sm:$0xf]
        %v967 = vld [vmem:[%s959 + $0x1c] sm:$0xf]
        %v968 = vld [vmem:[%s959 + $0x20] sm:$0xf]
        %v969 = vld [vmem:[%s959 + $0x24] sm:$0xf]
        %v970 = vld [vmem:[%s959 + $0x28] sm:$0xf]
        %v971 = vld [vmem:[%s959 + $0x2c] sm:$0xf]
        %v972 = vld [vmem:[%s959 + $0x30] sm:$0xf]
        %v973 = vld [vmem:[%s959 + $0x34] sm:$0xf]
        %v974 = vld [vmem:[%s959 + $0x38] sm:$0xf]
        %v975 = vld [vmem:[%s959 + $0x3c] sm:$0xf]
        %v992 = vunpack.c.l.b16 %v960
        %v993 = vunpack.c.l.b16 %v961
        %v994 = vunpack.c.l.b16 %v962
        %v995 = vunpack.c.l.b16 %v963
        %v996 = vunpack.c.l.b16 %v964
        %v997 = vunpack.c.l.b16 %v965
        %v998 = vunpack.c.l.b16 %v966
        %v999 = vunpack.c.l.b16 %v967
        %v1000 = vunpack.c.l.b16 %v968
        %v1001 = vunpack.c.l.b16 %v969
        %v1002 = vunpack.c.l.b16 %v970
        %v1003 = vunpack.c.l.b16 %v971
        %v1004 = vunpack.c.l.b16 %v972
        %v1005 = vunpack.c.l.b16 %v973
        %v1006 = vunpack.c.l.b16 %v974
        %v1007 = vunpack.c.l.b16 %v975
        %v1008 = vpack.c.b16 %v993, %v992
        %v1009 = vpack.c.b16 %v995, %v994
        %v1010 = vpack.c.b16 %v997, %v996
        %v1011 = vpack.c.b16 %v999, %v998
        %v1012 = vpack.c.b16 %v1001, %v1000
        %v1013 = vpack.c.b16 %v1003, %v1002
        %v1014 = vpack.c.b16 %v1005, %v1004
        %v1015 = vpack.c.b16 %v1007, %v1006
        %1024 = vmatprep.subr.bf16.mxu0 0
        %1025 = vmatpush1.bf16.msra.mxu0 %v1008
        %1026 = vmatprep.subr.bf16.mxu0 0
        %1027 = vmatpush1.bf16.msra.mxu0 %v1009
        %1028 = vmatprep.subr.bf16.mxu0 0
        %1029 = vmatpush1.bf16.msra.mxu0 %v1010
        %1030 = vmatprep.subr.bf16.mxu0 0
        %1031 = vmatpush1.bf16.msra.mxu0 %v1011
        %1032 = vmatprep.subr.bf16.mxu0 0
        %1033 = vmatpush1.bf16.msra.mxu0 %v1012
        %1034 = vmatprep.subr.bf16.mxu0 0
        %1035 = vmatpush1.bf16.msra.mxu0 %v1013
        %1036 = vmatprep.subr.bf16.mxu0 0
        %1037 = vmatpush1.bf16.msra.mxu0 %v1014
        %1038 = vmatprep.subr.bf16.mxu0 0
        %1039 = vmatpush1.bf16.msra.mxu0 %v1015
        %1040 = vmatprep.subr.bf16.mxu0 0
        %1041 = vmatpush1.bf16.msra.mxu0 0
        %1042 = vmatprep.subr.bf16.mxu0 0
        %1043 = vmatpush1.bf16.msra.mxu0 0
        %1044 = vmatprep.subr.bf16.mxu0 0
        %1045 = vmatpush1.bf16.msra.mxu0 0
        %1046 = vmatprep.subr.bf16.mxu0 0
        %1047 = vmatpush1.bf16.msra.mxu0 0
        %1048 = vmatprep.subr.bf16.mxu0 0
        %1049 = vmatpush1.bf16.msra.mxu0 0
        %1050 = vmatprep.subr.bf16.mxu0 0
        %1051 = vmatpush1.bf16.msra.mxu0 0
        %1052 = vmatprep.subr.bf16.mxu0 0
        %1053 = vmatpush1.bf16.msra.mxu0 0
        %1054 = vmatprep.subr.bf16.mxu0 0
        %1055 = vmatpush1.bf16.msra.mxu0 0
        %1056 = vmatprep.mubr.bf16.mxu0 0
        %1057 = vmatmul.mubr.bf16.gmra.mrb[0].mxu0 %v943
        %v1058 = vpop.f32.mrb[0].mxu0
        %v1059 = vadd.f32 0.0, %v1058
        %v1060 = vpop.f32.mrb[0].mxu0
        %v1061 = vpop.f32.mrb[0].mxu0
        %v1062 = vadd.f32 0.0, %v1061
        %v1063 = vpop.f32.mrb[0].mxu0
        %1064 = vmatprep.mubr.bf16.mxu0 0
        %1065 = vmatmul.mubr.bf16.gmra.mrb[0].mxu0 %v944
        %v1066 = vpop.f32.mrb[0].mxu0
        %v1067 = vadd.f32 0.0, %v1066
        %v1068 = vpop.f32.mrb[0].mxu0
        %v1069 = vpop.f32.mrb[0].mxu0
        %v1070 = vadd.f32 0.0, %v1069
        %v1071 = vpop.f32.mrb[0].mxu0
        %1072 = vmatprep.mubr.bf16.mxu0 0
        %1073 = vmatmul.mubr.bf16.gmra.mrb[0].mxu0 %v945
        %v1074 = vpop.f32.mrb[0].mxu0
        %v1075 = vadd.f32 0.0, %v1074
        %v1076 = vpop.f32.mrb[0].mxu0
        %v1077 = vpop.f32.mrb[0].mxu0
        %v1078 = vadd.f32 0.0, %v1077
        %v1079 = vpop.f32.mrb[0].mxu0
        %1080 = vmatprep.mubr.bf16.mxu0 0
        %1081 = vmatmul.mubr.bf16.gmra.mrb[0].mxu0 %v946
        %v1082 = vpop.f32.mrb[0].mxu0
        %v1083 = vadd.f32 0.0, %v1082
        %v1084 = vpop.f32.mrb[0].mxu0
        %v1085 = vpop.f32.mrb[0].mxu0
        %v1086 = vadd.f32 0.0, %v1085
        %v1087 = vpop.f32.mrb[0].mxu0
        %1088 = vmatprep.mubr.bf16.mxu0 0
        %1089 = vmatmul.mubr.bf16.gmra.mrb[0].mxu0 %v947
        %v1090 = vpop.f32.mrb[0].mxu0
        %v1091 = vadd.f32 0.0, %v1090
        %v1092 = vpop.f32.mrb[0].mxu0
        %v1093 = vpop.f32.mrb[0].mxu0
        %v1094 = vadd.f32 0.0, %v1093
        %v1095 = vpop.f32.mrb[0].mxu0
        %1096 = vmatprep.mubr.bf16.mxu0 0
        %1097 = vmatmul.mubr.bf16.gmra.mrb[0].mxu0 %v948
        %v1098 = vpop.f32.mrb[0].mxu0
        %v1099 = vadd.f32 0.0, %v1098
        %v1100 = vpop.f32.mrb[0].mxu0
        %v1101 = vpop.f32.mrb[0].mxu0
        %v1102 = vadd.f32 0.0, %v1101
        %v1103 = vpop.f32.mrb[0].mxu0
        %1104 = vmatprep.mubr.bf16.mxu0 0
        %1105 = vmatmul.mubr.bf16.gmra.mrb[0].mxu0 %v949
        %v1106 = vpop.f32.mrb[0].mxu0
        %v1107 = vadd.f32 0.0, %v1106
        %v1108 = vpop.f32.mrb[0].mxu0
        %v1109 = vpop.f32.mrb[0].mxu0
        %v1110 = vadd.f32 0.0, %v1109
        %v1111 = vpop.f32.mrb[0].mxu0
        %1112 = vmatprep.mubr.bf16.mxu0 0
        %1113 = vmatmul.mubr.bf16.gmra.mrb[0].mxu0 %v950
        %v1114 = vpop.f32.mrb[0].mxu0
        %v1115 = vadd.f32 0.0, %v1114
        %v1116 = vpop.f32.mrb[0].mxu0
        %v1117 = vpop.f32.mrb[0].mxu0
        %v1118 = vadd.f32 0.0, %v1117
        %v1119 = vpop.f32.mrb[0].mxu0
        %1120 = vmatprep.mubr.bf16.mxu0 0
        %1121 = vmatmul.mubr.bf16.gmra.mrb[0].mxu0 %v951
        %v1122 = vpop.f32.mrb[0].mxu0
        %v1123 = vadd.f32 0.0, %v1122
        %v1124 = vpop.f32.mrb[0].mxu0
        %v1125 = vpop.f32.mrb[0].mxu0
        %v1126 = vadd.f32 0.0, %v1125
        %v1127 = vpop.f32.mrb[0].mxu0
        %1128 = vmatprep.mubr.bf16.mxu0 0
        %1129 = vmatmul.mubr.bf16.gmra.mrb[0].mxu0 %v952
        %v1130 = vpop.f32.mrb[0].mxu0
        %v1131 = vadd.f32 0.0, %v1130
        %v1132 = vpop.f32.mrb[0].mxu0
        %v1133 = vpop.f32.mrb[0].mxu0
        %v1134 = vadd.f32 0.0, %v1133
        %v1135 = vpop.f32.mrb[0].mxu0
        %1136 = vmatprep.mubr.bf16.mxu0 0
        %1137 = vmatmul.mubr.bf16.gmra.mrb[0].mxu0 %v953
        %v1138 = vpop.f32.mrb[0].mxu0
        %v1139 = vadd.f32 0.0, %v1138
        %v1140 = vpop.f32.mrb[0].mxu0
        %v1141 = vpop.f32.mrb[0].mxu0
        %v1142 = vadd.f32 0.0, %v1141
        %v1143 = vpop.f32.mrb[0].mxu0
        %1144 = vmatprep.mubr.bf16.mxu0 0
        %1145 = vmatmul.mubr.bf16.gmra.mrb[0].mxu0 %v954
        %v1146 = vpop.f32.mrb[0].mxu0
        %v1147 = vadd.f32 0.0, %v1146
        %v1148 = vpop.f32.mrb[0].mxu0
        %v1149 = vpop.f32.mrb[0].mxu0
        %v1150 = vadd.f32 0.0, %v1149
        %v1151 = vpop.f32.mrb[0].mxu0
        %1152 = vmatprep.mubr.bf16.mxu0 0
        %1153 = vmatmul.mubr.bf16.gmra.mrb[0].mxu0 %v955
        %v1154 = vpop.f32.mrb[0].mxu0
        %v1155 = vadd.f32 0.0, %v1154
        %v1156 = vpop.f32.mrb[0].mxu0
        %v1157 = vpop.f32.mrb[0].mxu0
        %v1158 = vadd.f32 0.0, %v1157
        %v1159 = vpop.f32.mrb[0].mxu0
        %1160 = vmatprep.mubr.bf16.mxu0 0
        %1161 = vmatmul.mubr.bf16.gmra.mrb[0].mxu0 %v956
        %v1162 = vpop.f32.mrb[0].mxu0
        %v1163 = vadd.f32 0.0, %v1162
        %v1164 = vpop.f32.mrb[0].mxu0
        %v1165 = vpop.f32.mrb[0].mxu0
        %v1166 = vadd.f32 0.0, %v1165
        %v1167 = vpop.f32.mrb[0].mxu0
        %1168 = vmatprep.mubr.bf16.mxu0 0
        %1169 = vmatmul.mubr.bf16.gmra.mrb[0].mxu0 %v957
        %v1170 = vpop.f32.mrb[0].mxu0
        %v1171 = vadd.f32 0.0, %v1170
        %v1172 = vpop.f32.mrb[0].mxu0
        %v1173 = vpop.f32.mrb[0].mxu0
        %v1174 = vadd.f32 0.0, %v1173
        %v1175 = vpop.f32.mrb[0].mxu0
        %1176 = vmatprep.mubr.bf16.mxu0 0
        %1177 = vmatmul.mubr.bf16.gmra.mrb[0].mxu0 %v958
        %v1178 = vpop.f32.mrb[0].mxu0
        %v1179 = vadd.f32 0.0, %v1178
        %v1180 = vpop.f32.mrb[0].mxu0
        %v1181 = vpop.f32.mrb[0].mxu0
        %v1182 = vadd.f32 0.0, %v1181
        %v1183 = vpop.f32.mrb[0].mxu0
        %1184 = vdwg.mxu0
        %v1185 = vadd.f32 %v911, %v1059
        %v1186 = vadd.f32 %v912, %v1062
        %v1187 = vadd.f32 %v913, %v1067
        %v1188 = vadd.f32 %v914, %v1070
        %v1189 = vadd.f32 %v915, %v1075
        %v1190 = vadd.f32 %v916, %v1078
        %v1191 = vadd.f32 %v917, %v1083
        %v1192 = vadd.f32 %v918, %v1086
        %v1193 = vadd.f32 %v919, %v1091
        %v1194 = vadd.f32 %v920, %v1094
        %v1195 = vadd.f32 %v921, %v1099
        %v1196 = vadd.f32 %v922, %v1102
        %v1197 = vadd.f32 %v923, %v1107
        %v1198 = vadd.f32 %v924, %v1110
        %v1199 = vadd.f32 %v925, %v1115
        %v1200 = vadd.f32 %v926, %v1118
        %v1201 = vadd.f32 %v927, %v1123
        %v1202 = vadd.f32 %v928, %v1126
        %v1203 = vadd.f32 %v929, %v1131
        %v1204 = vadd.f32 %v930, %v1134
        %v1205 = vadd.f32 %v931, %v1139
        %v1206 = vadd.f32 %v932, %v1142
        %v1207 = vadd.f32 %v933, %v1147
        %v1208 = vadd.f32 %v934, %v1150
        %v1209 = vadd.f32 %v935, %v1155
        %v1210 = vadd.f32 %v936, %v1158
        %v1211 = vadd.f32 %v937, %v1163
        %v1212 = vadd.f32 %v938, %v1166
        %v1213 = vadd.f32 %v939, %v1171
        %v1214 = vadd.f32 %v940, %v1174
        %v1215 = vadd.f32 %v941, %v1179
        %v1216 = vadd.f32 %v942, %v1182
        %1217 = vst [vmem:[#allocation4] sm:$0xff] %v1185
        %1218 = vst [vmem:[#allocation4 + $0x8] sm:$0xff] %v1186
        %1219 = vst [vmem:[#allocation4 + $0x10] sm:$0xff] %v1187
        %1220 = vst [vmem:[#allocation4 + $0x18] sm:$0xff] %v1188
        %1221 = vst [vmem:[#allocation4 + $0x20] sm:$0xff] %v1189
        %1222 = vst [vmem:[#allocation4 + $0x28] sm:$0xff] %v1190
        %1223 = vst [vmem:[#allocation4 + $0x30] sm:$0xff] %v1191
        %1224 = vst [vmem:[#allocation4 + $0x38] sm:$0xff] %v1192
        %1225 = vst [vmem:[#allocation4 + $0x40] sm:$0xff] %v1193
        %1226 = vst [vmem:[#allocation4 + $0x48] sm:$0xff] %v1194
        %1227 = vst [vmem:[#allocation4 + $0x50] sm:$0xff] %v1195
        %1228 = vst [vmem:[#allocation4 + $0x58] sm:$0xff] %v1196
        %1229 = vst [vmem:[#allocation4 + $0x60] sm:$0xff] %v1197
        %1230 = vst [vmem:[#allocation4 + $0x68] sm:$0xff] %v1198
        %1231 = vst [vmem:[#allocation4 + $0x70] sm:$0xff] %v1199
        %1232 = vst [vmem:[#allocation4 + $0x78] sm:$0xff] %v1200
        %1233 = vst [vmem:[#allocation4 + $0x80] sm:$0xff] %v1201
        %1234 = vst [vmem:[#allocation4 + $0x88] sm:$0xff] %v1202
        %1235 = vst [vmem:[#allocation4 + $0x90] sm:$0xff] %v1203
        %1236 = vst [vmem:[#allocation4 + $0x98] sm:$0xff] %v1204
        %1237 = vst [vmem:[#allocation4 + $0xa0] sm:$0xff] %v1205
        %1238 = vst [vmem:[#allocation4 + $0xa8] sm:$0xff] %v1206
        %1239 = vst [vmem:[#allocation4 + $0xb0] sm:$0xff] %v1207
        %1240 = vst [vmem:[#allocation4 + $0xb8] sm:$0xff] %v1208
        %1241 = vst [vmem:[#allocation4 + $0xc0] sm:$0xff] %v1209
        %1242 = vst [vmem:[#allocation4 + $0xc8] sm:$0xff] %v1210
        %1243 = vst [vmem:[#allocation4 + $0xd0] sm:$0xff] %v1211
        %1244 = vst [vmem:[#allocation4 + $0xd8] sm:$0xff] %v1212
        %1245 = vst [vmem:[#allocation4 + $0xe0] sm:$0xff] %v1213
        %1246 = vst [vmem:[#allocation4 + $0xe8] sm:$0xff] %v1214
        %1247 = vst [vmem:[#allocation4 + $0xf0] sm:$0xff] %v1215
        %1248 = vst [vmem:[#allocation4 + $0xf8] sm:$0xff] %v1216
        %v1249 = vld [vmem:[#allocation2 + $0x2] sm:$0xff]
        %v1250 = vld [vmem:[#allocation2 + $0xa] sm:$0xff]
        %v1251 = vld [vmem:[#allocation2 + $0x1a] sm:$0xff]
        %v1252 = vld [vmem:[#allocation2 + $0x22] sm:$0xff]
        %v1253 = vld [vmem:[#allocation2 + $0x32] sm:$0xff]
        %v1254 = vld [vmem:[#allocation2 + $0x3a] sm:$0xff]
        %v1255 = vld [vmem:[#allocation2 + $0x4a] sm:$0xff]
        %v1256 = vld [vmem:[#allocation2 + $0x52] sm:$0xff]
        %v1257 = vld [vmem:[#allocation2 + $0x62] sm:$0xff]
        %v1258 = vld [vmem:[#allocation2 + $0x6a] sm:$0xff]
        %v1259 = vld [vmem:[#allocation2 + $0x7a] sm:$0xff]
        %v1260 = vld [vmem:[#allocation2 + $0x82] sm:$0xff]
        %v1261 = vld [vmem:[#allocation2 + $0x92] sm:$0xff]
        %v1262 = vld [vmem:[#allocation2 + $0x9a] sm:$0xff]
        %v1263 = vld [vmem:[#allocation2 + $0xaa] sm:$0xff]
        %v1264 = vld [vmem:[#allocation2 + $0xb2] sm:$0xff]
        %v1265 = vld [vmem:[#allocation2 + $0xc2] sm:$0xff]
        %v1266 = vld [vmem:[#allocation2 + $0xca] sm:$0xff]
        %v1267 = vld [vmem:[#allocation2 + $0xda] sm:$0xff]
        %v1268 = vld [vmem:[#allocation2 + $0xe2] sm:$0xff]
        %v1269 = vld [vmem:[#allocation2 + $0xf2] sm:$0xff]
        %v1270 = vld [vmem:[#allocation2 + $0xfa] sm:$0xff]
        %v1271 = vld [vmem:[#allocation2 + $0x10a] sm:$0xff]
        %v1272 = vld [vmem:[#allocation2 + $0x112] sm:$0xff]
        %v1273 = vld [vmem:[#allocation2 + $0x122] sm:$0xff]
        %v1274 = vld [vmem:[#allocation2 + $0x12a] sm:$0xff]
        %v1275 = vld [vmem:[#allocation2 + $0x13a] sm:$0xff]
        %v1276 = vld [vmem:[#allocation2 + $0x142] sm:$0xff]
        %v1277 = vld [vmem:[#allocation2 + $0x152] sm:$0xff]
        %v1278 = vld [vmem:[#allocation2 + $0x15a] sm:$0xff]
        %v1279 = vld [vmem:[#allocation2 + $0x16a] sm:$0xff]
        %v1280 = vld [vmem:[#allocation2 + $0x172] sm:$0xff]
        %v1281 = vld [vmem:[#allocation4] sm:$0xff]
        %v1282 = vld [vmem:[#allocation4 + $0x8] sm:$0xff]
        %v1283 = vld [vmem:[#allocation4 + $0x10] sm:$0xff]
        %v1284 = vld [vmem:[#allocation4 + $0x18] sm:$0xff]
        %v1285 = vld [vmem:[#allocation4 + $0x20] sm:$0xff]
        %v1286 = vld [vmem:[#allocation4 + $0x28] sm:$0xff]
        %v1287 = vld [vmem:[#allocation4 + $0x30] sm:$0xff]
        %v1288 = vld [vmem:[#allocation4 + $0x38] sm:$0xff]
        %v1289 = vld [vmem:[#allocation4 + $0x40] sm:$0xff]
        %v1290 = vld [vmem:[#allocation4 + $0x48] sm:$0xff]
        %v1291 = vld [vmem:[#allocation4 + $0x50] sm:$0xff]
        %v1292 = vld [vmem:[#allocation4 + $0x58] sm:$0xff]
        %v1293 = vld [vmem:[#allocation4 + $0x60] sm:$0xff]
        %v1294 = vld [vmem:[#allocation4 + $0x68] sm:$0xff]
        %v1295 = vld [vmem:[#allocation4 + $0x70] sm:$0xff]
        %v1296 = vld [vmem:[#allocation4 + $0x78] sm:$0xff]
        %v1297 = vld [vmem:[#allocation4 + $0x80] sm:$0xff]
        %v1298 = vld [vmem:[#allocation4 + $0x88] sm:$0xff]
        %v1299 = vld [vmem:[#allocation4 + $0x90] sm:$0xff]
        %v1300 = vld [vmem:[#allocation4 + $0x98] sm:$0xff]
        %v1301 = vld [vmem:[#allocation4 + $0xa0] sm:$0xff]
        %v1302 = vld [vmem:[#allocation4 + $0xa8] sm:$0xff]
        %v1303 = vld [vmem:[#allocation4 + $0xb0] sm:$0xff]
        %v1304 = vld [vmem:[#allocation4 + $0xb8] sm:$0xff]
        %v1305 = vld [vmem:[#allocation4 + $0xc0] sm:$0xff]
        %v1306 = vld [vmem:[#allocation4 + $0xc8] sm:$0xff]
        %v1307 = vld [vmem:[#allocation4 + $0xd0] sm:$0xff]
        %v1308 = vld [vmem:[#allocation4 + $0xd8] sm:$0xff]
        %v1309 = vld [vmem:[#allocation4 + $0xe0] sm:$0xff]
        %v1310 = vld [vmem:[#allocation4 + $0xe8] sm:$0xff]
        %v1311 = vld [vmem:[#allocation4 + $0xf0] sm:$0xff]
        %v1312 = vld [vmem:[#allocation4 + $0xf8] sm:$0xff]
        %v1313 = vpack.c.bf16 %v1250, %v1249
        %v1314 = vpack.c.bf16 %v1252, %v1251
        %v1315 = vpack.c.bf16 %v1254, %v1253
        %v1316 = vpack.c.bf16 %v1256, %v1255
        %v1317 = vpack.c.bf16 %v1258, %v1257
        %v1318 = vpack.c.bf16 %v1260, %v1259
        %v1319 = vpack.c.bf16 %v1262, %v1261
        %v1320 = vpack.c.bf16 %v1264, %v1263
        %v1321 = vpack.c.bf16 %v1266, %v1265
        %v1322 = vpack.c.bf16 %v1268, %v1267
        %v1323 = vpack.c.bf16 %v1270, %v1269
        %v1324 = vpack.c.bf16 %v1272, %v1271
        %v1325 = vpack.c.bf16 %v1274, %v1273
        %v1326 = vpack.c.bf16 %v1276, %v1275
        %v1327 = vpack.c.bf16 %v1278, %v1277
        %v1328 = vpack.c.bf16 %v1280, %v1279
        %s1329 = scalar_lea.vmem [#allocation8], 128
        %v1330 = vld [vmem:[%s1329] sm:$0xf]
        %v1331 = vld [vmem:[%s1329 + $0x4] sm:$0xf]
        %v1332 = vld [vmem:[%s1329 + $0x8] sm:$0xf]
        %v1333 = vld [vmem:[%s1329 + $0xc] sm:$0xf]
        %v1334 = vld [vmem:[%s1329 + $0x10] sm:$0xf]
        %v1335 = vld [vmem:[%s1329 + $0x14] sm:$0xf]
        %v1336 = vld [vmem:[%s1329 + $0x18] sm:$0xf]
        %v1337 = vld [vmem:[%s1329 + $0x1c] sm:$0xf]
        %v1338 = vld [vmem:[%s1329 + $0x20] sm:$0xf]
        %v1339 = vld [vmem:[%s1329 + $0x24] sm:$0xf]
        %v1340 = vld [vmem:[%s1329 + $0x28] sm:$0xf]
        %v1341 = vld [vmem:[%s1329 + $0x2c] sm:$0xf]
        %v1342 = vld [vmem:[%s1329 + $0x30] sm:$0xf]
        %v1343 = vld [vmem:[%s1329 + $0x34] sm:$0xf]
        %v1344 = vld [vmem:[%s1329 + $0x38] sm:$0xf]
        %v1345 = vld [vmem:[%s1329 + $0x3c] sm:$0xf]
        %v1362 = vunpack.c.l.b16 %v1330
        %v1363 = vunpack.c.l.b16 %v1331
        %v1364 = vunpack.c.l.b16 %v1332
        %v1365 = vunpack.c.l.b16 %v1333
        %v1366 = vunpack.c.l.b16 %v1334
        %v1367 = vunpack.c.l.b16 %v1335
        %v1368 = vunpack.c.l.b16 %v1336
        %v1369 = vunpack.c.l.b16 %v1337
        %v1370 = vunpack.c.l.b16 %v1338
        %v1371 = vunpack.c.l.b16 %v1339
        %v1372 = vunpack.c.l.b16 %v1340
        %v1373 = vunpack.c.l.b16 %v1341
        %v1374 = vunpack.c.l.b16 %v1342
        %v1375 = vunpack.c.l.b16 %v1343
        %v1376 = vunpack.c.l.b16 %v1344
        %v1377 = vunpack.c.l.b16 %v1345
        %v1378 = vpack.c.b16 %v1363, %v1362
        %v1379 = vpack.c.b16 %v1365, %v1364
        %v1380 = vpack.c.b16 %v1367, %v1366
        %v1381 = vpack.c.b16 %v1369, %v1368
        %v1382 = vpack.c.b16 %v1371, %v1370
        %v1383 = vpack.c.b16 %v1373, %v1372
        %v1384 = vpack.c.b16 %v1375, %v1374
        %v1385 = vpack.c.b16 %v1377, %v1376
        %1394 = vmatprep.subr.bf16.mxu0 0
        %1395 = vmatpush1.bf16.msra.mxu0 %v1378
        %1396 = vmatprep.subr.bf16.mxu0 0
        %1397 = vmatpush1.bf16.msra.mxu0 %v1379
        %1398 = vmatprep.subr.bf16.mxu0 0
        %1399 = vmatpush1.bf16.msra.mxu0 %v1380
        %1400 = vmatprep.subr.bf16.mxu0 0
        %1401 = vmatpush1.bf16.msra.mxu0 %v1381
        %1402 = vmatprep.subr.bf16.mxu0 0
        %1403 = vmatpush1.bf16.msra.mxu0 %v1382
        %1404 = vmatprep.subr.bf16.mxu0 0
        %1405 = vmatpush1.bf16.msra.mxu0 %v1383
        %1406 = vmatprep.subr.bf16.mxu0 0
        %1407 = vmatpush1.bf16.msra.mxu0 %v1384
        %1408 = vmatprep.subr.bf16.mxu0 0
        %1409 = vmatpush1.bf16.msra.mxu0 %v1385
        %1410 = vmatprep.subr.bf16.mxu0 0
        %1411 = vmatpush1.bf16.msra.mxu0 0
        %1412 = vmatprep.subr.bf16.mxu0 0
        %1413 = vmatpush1.bf16.msra.mxu0 0
        %1414 = vmatprep.subr.bf16.mxu0 0
        %1415 = vmatpush1.bf16.msra.mxu0 0
        %1416 = vmatprep.subr.bf16.mxu0 0
        %1417 = vmatpush1.bf16.msra.mxu0 0
        %1418 = vmatprep.subr.bf16.mxu0 0
        %1419 = vmatpush1.bf16.msra.mxu0 0
        %1420 = vmatprep.subr.bf16.mxu0 0
        %1421 = vmatpush1.bf16.msra.mxu0 0
        %1422 = vmatprep.subr.bf16.mxu0 0
        %1423 = vmatpush1.bf16.msra.mxu0 0
        %1424 = vmatprep.subr.bf16.mxu0 0
        %1425 = vmatpush1.bf16.msra.mxu0 0
        %1426 = vmatprep.mubr.bf16.mxu0 0
        %1427 = vmatmul.mubr.bf16.gmra.mrb[0].mxu0 %v1313
        %v1428 = vpop.f32.mrb[0].mxu0
        %v1429 = vadd.f32 0.0, %v1428
        %v1430 = vpop.f32.mrb[0].mxu0
        %v1431 = vpop.f32.mrb[0].mxu0
        %v1432 = vadd.f32 0.0, %v1431
        %v1433 = vpop.f32.mrb[0].mxu0
        %1434 = vmatprep.mubr.bf16.mxu0 0
        %1435 = vmatmul.mubr.bf16.gmra.mrb[0].mxu0 %v1314
        %v1436 = vpop.f32.mrb[0].mxu0
        %v1437 = vadd.f32 0.0, %v1436
        %v1438 = vpop.f32.mrb[0].mxu0
        %v1439 = vpop.f32.mrb[0].mxu0
        %v1440 = vadd.f32 0.0, %v1439
        %v1441 = vpop.f32.mrb[0].mxu0
        %1442 = vmatprep.mubr.bf16.mxu0 0
        %1443 = vmatmul.mubr.bf16.gmra.mrb[0].mxu0 %v1315
        %v1444 = vpop.f32.mrb[0].mxu0
        %v1445 = vadd.f32 0.0, %v1444
        %v1446 = vpop.f32.mrb[0].mxu0
        %v1447 = vpop.f32.mrb[0].mxu0
        %v1448 = vadd.f32 0.0, %v1447
        %v1449 = vpop.f32.mrb[0].mxu0
        %1450 = vmatprep.mubr.bf16.mxu0 0
        %1451 = vmatmul.mubr.bf16.gmra.mrb[0].mxu0 %v1316
        %v1452 = vpop.f32.mrb[0].mxu0
        %v1453 = vadd.f32 0.0, %v1452
        %v1454 = vpop.f32.mrb[0].mxu0
        %v1455 = vpop.f32.mrb[0].mxu0
        %v1456 = vadd.f32 0.0, %v1455
        %v1457 = vpop.f32.mrb[0].mxu0
        %1458 = vmatprep.mubr.bf16.mxu0 0
        %1459 = vmatmul.mubr.bf16.gmra.mrb[0].mxu0 %v1317
        %v1460 = vpop.f32.mrb[0].mxu0
        %v1461 = vadd.f32 0.0, %v1460
        %v1462 = vpop.f32.mrb[0].mxu0
        %v1463 = vpop.f32.mrb[0].mxu0
        %v1464 = vadd.f32 0.0, %v1463
        %v1465 = vpop.f32.mrb[0].mxu0
        %1466 = vmatprep.mubr.bf16.mxu0 0
        %1467 = vmatmul.mubr.bf16.gmra.mrb[0].mxu0 %v1318
        %v1468 = vpop.f32.mrb[0].mxu0
        %v1469 = vadd.f32 0.0, %v1468
        %v1470 = vpop.f32.mrb[0].mxu0
        %v1471 = vpop.f32.mrb[0].mxu0
        %v1472 = vadd.f32 0.0, %v1471
        %v1473 = vpop.f32.mrb[0].mxu0
        %1474 = vmatprep.mubr.bf16.mxu0 0
        %1475 = vmatmul.mubr.bf16.gmra.mrb[0].mxu0 %v1319
        %v1476 = vpop.f32.mrb[0].mxu0
        %v1477 = vadd.f32 0.0, %v1476
        %v1478 = vpop.f32.mrb[0].mxu0
        %v1479 = vpop.f32.mrb[0].mxu0
        %v1480 = vadd.f32 0.0, %v1479
        %v1481 = vpop.f32.mrb[0].mxu0
        %1482 = vmatprep.mubr.bf16.mxu0 0
        %1483 = vmatmul.mubr.bf16.gmra.mrb[0].mxu0 %v1320
        %v1484 = vpop.f32.mrb[0].mxu0
        %v1485 = vadd.f32 0.0, %v1484
        %v1486 = vpop.f32.mrb[0].mxu0
        %v1487 = vpop.f32.mrb[0].mxu0
        %v1488 = vadd.f32 0.0, %v1487
        %v1489 = vpop.f32.mrb[0].mxu0
        %1490 = vmatprep.mubr.bf16.mxu0 0
        %1491 = vmatmul.mubr.bf16.gmra.mrb[0].mxu0 %v1321
        %v1492 = vpop.f32.mrb[0].mxu0
        %v1493 = vadd.f32 0.0, %v1492
        %v1494 = vpop.f32.mrb[0].mxu0
        %v1495 = vpop.f32.mrb[0].mxu0
        %v1496 = vadd.f32 0.0, %v1495
        %v1497 = vpop.f32.mrb[0].mxu0
        %1498 = vmatprep.mubr.bf16.mxu0 0
        %1499 = vmatmul.mubr.bf16.gmra.mrb[0].mxu0 %v1322
        %v1500 = vpop.f32.mrb[0].mxu0
        %v1501 = vadd.f32 0.0, %v1500
        %v1502 = vpop.f32.mrb[0].mxu0
        %v1503 = vpop.f32.mrb[0].mxu0
        %v1504 = vadd.f32 0.0, %v1503
        %v1505 = vpop.f32.mrb[0].mxu0
        %1506 = vmatprep.mubr.bf16.mxu0 0
        %1507 = vmatmul.mubr.bf16.gmra.mrb[0].mxu0 %v1323
        %v1508 = vpop.f32.mrb[0].mxu0
        %v1509 = vadd.f32 0.0, %v1508
        %v1510 = vpop.f32.mrb[0].mxu0
        %v1511 = vpop.f32.mrb[0].mxu0
        %v1512 = vadd.f32 0.0, %v1511
        %v1513 = vpop.f32.mrb[0].mxu0
        %1514 = vmatprep.mubr.bf16.mxu0 0
        %1515 = vmatmul.mubr.bf16.gmra.mrb[0].mxu0 %v1324
        %v1516 = vpop.f32.mrb[0].mxu0
        %v1517 = vadd.f32 0.0, %v1516
        %v1518 = vpop.f32.mrb[0].mxu0
        %v1519 = vpop.f32.mrb[0].mxu0
        %v1520 = vadd.f32 0.0, %v1519
        %v1521 = vpop.f32.mrb[0].mxu0
        %1522 = vmatprep.mubr.bf16.mxu0 0
        %1523 = vmatmul.mubr.bf16.gmra.mrb[0].mxu0 %v1325
        %v1524 = vpop.f32.mrb[0].mxu0
        %v1525 = vadd.f32 0.0, %v1524
        %v1526 = vpop.f32.mrb[0].mxu0
        %v1527 = vpop.f32.mrb[0].mxu0
        %v1528 = vadd.f32 0.0, %v1527
        %v1529 = vpop.f32.mrb[0].mxu0
        %1530 = vmatprep.mubr.bf16.mxu0 0
        %1531 = vmatmul.mubr.bf16.gmra.mrb[0].mxu0 %v1326
        %v1532 = vpop.f32.mrb[0].mxu0
        %v1533 = vadd.f32 0.0, %v1532
        %v1534 = vpop.f32.mrb[0].mxu0
        %v1535 = vpop.f32.mrb[0].mxu0
        %v1536 = vadd.f32 0.0, %v1535
        %v1537 = vpop.f32.mrb[0].mxu0
        %1538 = vmatprep.mubr.bf16.mxu0 0
        %1539 = vmatmul.mubr.bf16.gmra.mrb[0].mxu0 %v1327
        %v1540 = vpop.f32.mrb[0].mxu0
        %v1541 = vadd.f32 0.0, %v1540
        %v1542 = vpop.f32.mrb[0].mxu0
        %v1543 = vpop.f32.mrb[0].mxu0
        %v1544 = vadd.f32 0.0, %v1543
        %v1545 = vpop.f32.mrb[0].mxu0
        %1546 = vmatprep.mubr.bf16.mxu0 0
        %1547 = vmatmul.mubr.bf16.gmra.mrb[0].mxu0 %v1328
        %v1548 = vpop.f32.mrb[0].mxu0
        %v1549 = vadd.f32 0.0, %v1548
        %v1550 = vpop.f32.mrb[0].mxu0
        %v1551 = vpop.f32.mrb[0].mxu0
        %v1552 = vadd.f32 0.0, %v1551
        %v1553 = vpop.f32.mrb[0].mxu0
        %1554 = vdwg.mxu0
        %v1555 = vadd.f32 %v1281, %v1429
        %v1556 = vadd.f32 %v1282, %v1432
        %v1557 = vadd.f32 %v1283, %v1437
        %v1558 = vadd.f32 %v1284, %v1440
        %v1559 = vadd.f32 %v1285, %v1445
        %v1560 = vadd.f32 %v1286, %v1448
        %v1561 = vadd.f32 %v1287, %v1453
        %v1562 = vadd.f32 %v1288, %v1456
        %v1563 = vadd.f32 %v1289, %v1461
        %v1564 = vadd.f32 %v1290, %v1464
        %v1565 = vadd.f32 %v1291, %v1469
        %v1566 = vadd.f32 %v1292, %v1472
        %v1567 = vadd.f32 %v1293, %v1477
        %v1568 = vadd.f32 %v1294, %v1480
        %v1569 = vadd.f32 %v1295, %v1485
        %v1570 = vadd.f32 %v1296, %v1488
        %v1571 = vadd.f32 %v1297, %v1493
        %v1572 = vadd.f32 %v1298, %v1496
        %v1573 = vadd.f32 %v1299, %v1501
        %v1574 = vadd.f32 %v1300, %v1504
        %v1575 = vadd.f32 %v1301, %v1509
        %v1576 = vadd.f32 %v1302, %v1512
        %v1577 = vadd.f32 %v1303, %v1517
        %v1578 = vadd.f32 %v1304, %v1520
        %v1579 = vadd.f32 %v1305, %v1525
        %v1580 = vadd.f32 %v1306, %v1528
        %v1581 = vadd.f32 %v1307, %v1533
        %v1582 = vadd.f32 %v1308, %v1536
        %v1583 = vadd.f32 %v1309, %v1541
        %v1584 = vadd.f32 %v1310, %v1544
        %v1585 = vadd.f32 %v1311, %v1549
        %v1586 = vadd.f32 %v1312, %v1552
        %1587 = vst [vmem:[#allocation4] sm:$0xff] %v1555
        %1588 = vst [vmem:[#allocation4 + $0x8] sm:$0xff] %v1556
        %1589 = vst [vmem:[#allocation4 + $0x10] sm:$0xff] %v1557
        %1590 = vst [vmem:[#allocation4 + $0x18] sm:$0xff] %v1558
        %1591 = vst [vmem:[#allocation4 + $0x20] sm:$0xff] %v1559
        %1592 = vst [vmem:[#allocation4 + $0x28] sm:$0xff] %v1560
        %1593 = vst [vmem:[#allocation4 + $0x30] sm:$0xff] %v1561
        %1594 = vst [vmem:[#allocation4 + $0x38] sm:$0xff] %v1562
        %1595 = vst [vmem:[#allocation4 + $0x40] sm:$0xff] %v1563
        %1596 = vst [vmem:[#allocation4 + $0x48] sm:$0xff] %v1564
        %1597 = vst [vmem:[#allocation4 + $0x50] sm:$0xff] %v1565
        %1598 = vst [vmem:[#allocation4 + $0x58] sm:$0xff] %v1566
        %1599 = vst [vmem:[#allocation4 + $0x60] sm:$0xff] %v1567
        %1600 = vst [vmem:[#allocation4 + $0x68] sm:$0xff] %v1568
        %1601 = vst [vmem:[#allocation4 + $0x70] sm:$0xff] %v1569
        %1602 = vst [vmem:[#allocation4 + $0x78] sm:$0xff] %v1570
        %1603 = vst [vmem:[#allocation4 + $0x80] sm:$0xff] %v1571
        %1604 = vst [vmem:[#allocation4 + $0x88] sm:$0xff] %v1572
        %1605 = vst [vmem:[#allocation4 + $0x90] sm:$0xff] %v1573
        %1606 = vst [vmem:[#allocation4 + $0x98] sm:$0xff] %v1574
        %1607 = vst [vmem:[#allocation4 + $0xa0] sm:$0xff] %v1575
        %1608 = vst [vmem:[#allocation4 + $0xa8] sm:$0xff] %v1576
        %1609 = vst [vmem:[#allocation4 + $0xb0] sm:$0xff] %v1577
        %1610 = vst [vmem:[#allocation4 + $0xb8] sm:$0xff] %v1578
        %1611 = vst [vmem:[#allocation4 + $0xc0] sm:$0xff] %v1579
        %1612 = vst [vmem:[#allocation4 + $0xc8] sm:$0xff] %v1580
        %1613 = vst [vmem:[#allocation4 + $0xd0] sm:$0xff] %v1581
        %1614 = vst [vmem:[#allocation4 + $0xd8] sm:$0xff] %v1582
        %1615 = vst [vmem:[#allocation4 + $0xe0] sm:$0xff] %v1583
        %1616 = vst [vmem:[#allocation4 + $0xe8] sm:$0xff] %v1584
        %1617 = vst [vmem:[#allocation4 + $0xf0] sm:$0xff] %v1585
        %1618 = vst [vmem:[#allocation4 + $0xf8] sm:$0xff] %v1586
        %v1619 = vld [vmem:[%s445] sm:$0xff]
        %v1620 = vld [vmem:[%s445 + $0x8] sm:$0xff]
        %v1621 = vld [vmem:[%s445 + $0x18] sm:$0xff]
        %v1622 = vld [vmem:[%s445 + $0x20] sm:$0xff]
        %v1623 = vld [vmem:[%s445 + $0x30] sm:$0xff]
        %v1624 = vld [vmem:[%s445 + $0x38] sm:$0xff]
        %v1625 = vld [vmem:[%s445 + $0x48] sm:$0xff]
        %v1626 = vld [vmem:[%s445 + $0x50] sm:$0xff]
        %v1627 = vld [vmem:[%s445 + $0x60] sm:$0xff]
        %v1628 = vld [vmem:[%s445 + $0x68] sm:$0xff]
        %v1629 = vld [vmem:[%s445 + $0x78] sm:$0xff]
        %v1630 = vld [vmem:[%s445 + $0x80] sm:$0xff]
        %v1631 = vld [vmem:[%s445 + $0x90] sm:$0xff]
        %v1632 = vld [vmem:[%s445 + $0x98] sm:$0xff]
        %v1633 = vld [vmem:[%s445 + $0xa8] sm:$0xff]
        %v1634 = vld [vmem:[%s445 + $0xb0] sm:$0xff]
        %v1635 = vld [vmem:[%s445 + $0xc0] sm:$0xff]
        %v1636 = vld [vmem:[%s445 + $0xc8] sm:$0xff]
        %v1637 = vld [vmem:[%s445 + $0xd8] sm:$0xff]
        %v1638 = vld [vmem:[%s445 + $0xe0] sm:$0xff]
        %v1639 = vld [vmem:[%s445 + $0xf0] sm:$0xff]
        %v1640 = vld [vmem:[%s445 + $0xf8] sm:$0xff]
        %v1641 = vld [vmem:[%s445 + $0x108] sm:$0xff]
        %v1642 = vld [vmem:[%s445 + $0x110] sm:$0xff]
        %v1643 = vld [vmem:[%s445 + $0x120] sm:$0xff]
        %v1644 = vld [vmem:[%s445 + $0x128] sm:$0xff]
        %v1645 = vld [vmem:[%s445 + $0x138] sm:$0xff]
        %v1646 = vld [vmem:[%s445 + $0x140] sm:$0xff]
        %v1647 = vld [vmem:[%s445 + $0x150] sm:$0xff]
        %v1648 = vld [vmem:[%s445 + $0x158] sm:$0xff]
        %v1649 = vld [vmem:[%s445 + $0x168] sm:$0xff]
        %v1650 = vld [vmem:[%s445 + $0x170] sm:$0xff]
        %v1651 = vld [vmem:[#allocation4] sm:$0xff]
        %v1652 = vld [vmem:[#allocation4 + $0x8] sm:$0xff]
        %v1653 = vld [vmem:[#allocation4 + $0x10] sm:$0xff]
        %v1654 = vld [vmem:[#allocation4 + $0x18] sm:$0xff]
        %v1655 = vld [vmem:[#allocation4 + $0x20] sm:$0xff]
        %v1656 = vld [vmem:[#allocation4 + $0x28] sm:$0xff]
        %v1657 = vld [vmem:[#allocation4 + $0x30] sm:$0xff]
        %v1658 = vld [vmem:[#allocation4 + $0x38] sm:$0xff]
        %v1659 = vld [vmem:[#allocation4 + $0x40] sm:$0xff]
        %v1660 = vld [vmem:[#allocation4 + $0x48] sm:$0xff]
        %v1661 = vld [vmem:[#allocation4 + $0x50] sm:$0xff]
        %v1662 = vld [vmem:[#allocation4 + $0x58] sm:$0xff]
        %v1663 = vld [vmem:[#allocation4 + $0x60] sm:$0xff]
        %v1664 = vld [vmem:[#allocation4 + $0x68] sm:$0xff]
        %v1665 = vld [vmem:[#allocation4 + $0x70] sm:$0xff]
        %v1666 = vld [vmem:[#allocation4 + $0x78] sm:$0xff]
        %v1667 = vld [vmem:[#allocation4 + $0x80] sm:$0xff]
        %v1668 = vld [vmem:[#allocation4 + $0x88] sm:$0xff]
        %v1669 = vld [vmem:[#allocation4 + $0x90] sm:$0xff]
        %v1670 = vld [vmem:[#allocation4 + $0x98] sm:$0xff]
        %v1671 = vld [vmem:[#allocation4 + $0xa0] sm:$0xff]
        %v1672 = vld [vmem:[#allocation4 + $0xa8] sm:$0xff]
        %v1673 = vld [vmem:[#allocation4 + $0xb0] sm:$0xff]
        %v1674 = vld [vmem:[#allocation4 + $0xb8] sm:$0xff]
        %v1675 = vld [vmem:[#allocation4 + $0xc0] sm:$0xff]
        %v1676 = vld [vmem:[#allocation4 + $0xc8] sm:$0xff]
        %v1677 = vld [vmem:[#allocation4 + $0xd0] sm:$0xff]
        %v1678 = vld [vmem:[#allocation4 + $0xd8] sm:$0xff]
        %v1679 = vld [vmem:[#allocation4 + $0xe0] sm:$0xff]
        %v1680 = vld [vmem:[#allocation4 + $0xe8] sm:$0xff]
        %v1681 = vld [vmem:[#allocation4 + $0xf0] sm:$0xff]
        %v1682 = vld [vmem:[#allocation4 + $0xf8] sm:$0xff]
        %v1683 = vpack.c.bf16 %v1620, %v1619
        %v1684 = vpack.c.bf16 %v1622, %v1621
        %v1685 = vpack.c.bf16 %v1624, %v1623
        %v1686 = vpack.c.bf16 %v1626, %v1625
        %v1687 = vpack.c.bf16 %v1628, %v1627
        %v1688 = vpack.c.bf16 %v1630, %v1629
        %v1689 = vpack.c.bf16 %v1632, %v1631
        %v1690 = vpack.c.bf16 %v1634, %v1633
        %v1691 = vpack.c.bf16 %v1636, %v1635
        %v1692 = vpack.c.bf16 %v1638, %v1637
        %v1693 = vpack.c.bf16 %v1640, %v1639
        %v1694 = vpack.c.bf16 %v1642, %v1641
        %v1695 = vpack.c.bf16 %v1644, %v1643
        %v1696 = vpack.c.bf16 %v1646, %v1645
        %v1697 = vpack.c.bf16 %v1648, %v1647
        %v1698 = vpack.c.bf16 %v1650, %v1649
        %s1699 = scalar_lea.vmem [#allocation8], 192
        %v1700 = vld [vmem:[%s1699] sm:$0xf]
        %v1701 = vld [vmem:[%s1699 + $0x4] sm:$0xf]
        %v1702 = vld [vmem:[%s1699 + $0x8] sm:$0xf]
        %v1703 = vld [vmem:[%s1699 + $0xc] sm:$0xf]
        %v1704 = vld [vmem:[%s1699 + $0x10] sm:$0xf]
        %v1705 = vld [vmem:[%s1699 + $0x14] sm:$0xf]
        %v1706 = vld [vmem:[%s1699 + $0x18] sm:$0xf]
        %v1707 = vld [vmem:[%s1699 + $0x1c] sm:$0xf]
        %v1708 = vld [vmem:[%s1699 + $0x20] sm:$0xf]
        %v1709 = vld [vmem:[%s1699 + $0x24] sm:$0xf]
        %v1710 = vld [vmem:[%s1699 + $0x28] sm:$0xf]
        %v1711 = vld [vmem:[%s1699 + $0x2c] sm:$0xf]
        %v1712 = vld [vmem:[%s1699 + $0x30] sm:$0xf]
        %v1713 = vld [vmem:[%s1699 + $0x34] sm:$0xf]
        %v1714 = vld [vmem:[%s1699 + $0x38] sm:$0xf]
        %v1715 = vld [vmem:[%s1699 + $0x3c] sm:$0xf]
        %v1732 = vunpack.c.l.b16 %v1700
        %v1733 = vunpack.c.l.b16 %v1701
        %v1734 = vunpack.c.l.b16 %v1702
        %v1735 = vunpack.c.l.b16 %v1703
        %v1736 = vunpack.c.l.b16 %v1704
        %v1737 = vunpack.c.l.b16 %v1705
        %v1738 = vunpack.c.l.b16 %v1706
        %v1739 = vunpack.c.l.b16 %v1707
        %v1740 = vunpack.c.l.b16 %v1708
        %v1741 = vunpack.c.l.b16 %v1709
        %v1742 = vunpack.c.l.b16 %v1710
        %v1743 = vunpack.c.l.b16 %v1711
        %v1744 = vunpack.c.l.b16 %v1712
        %v1745 = vunpack.c.l.b16 %v1713
        %v1746 = vunpack.c.l.b16 %v1714
        %v1747 = vunpack.c.l.b16 %v1715
        %v1748 = vpack.c.b16 %v1733, %v1732
        %v1749 = vpack.c.b16 %v1735, %v1734
        %v1750 = vpack.c.b16 %v1737, %v1736
        %v1751 = vpack.c.b16 %v1739, %v1738
        %v1752 = vpack.c.b16 %v1741, %v1740
        %v1753 = vpack.c.b16 %v1743, %v1742
        %v1754 = vpack.c.b16 %v1745, %v1744
        %v1755 = vpack.c.b16 %v1747, %v1746
        %1764 = vmatprep.subr.bf16.mxu0 0
        %1765 = vmatpush1.bf16.msra.mxu0 %v1748
        %1766 = vmatprep.subr.bf16.mxu0 0
        %1767 = vmatpush1.bf16.msra.mxu0 %v1749
        %1768 = vmatprep.subr.bf16.mxu0 0
        %1769 = vmatpush1.bf16.msra.mxu0 %v1750
        %1770 = vmatprep.subr.bf16.mxu0 0
        %1771 = vmatpush1.bf16.msra.mxu0 %v1751
        %1772 = vmatprep.subr.bf16.mxu0 0
        %1773 = vmatpush1.bf16.msra.mxu0 %v1752
        %1774 = vmatprep.subr.bf16.mxu0 0
        %1775 = vmatpush1.bf16.msra.mxu0 %v1753
        %1776 = vmatprep.subr.bf16.mxu0 0
        %1777 = vmatpush1.bf16.msra.mxu0 %v1754
        %1778 = vmatprep.subr.bf16.mxu0 0
        %1779 = vmatpush1.bf16.msra.mxu0 %v1755
        %1780 = vmatprep.subr.bf16.mxu0 0
        %1781 = vmatpush1.bf16.msra.mxu0 0
        %1782 = vmatprep.subr.bf16.mxu0 0
        %1783 = vmatpush1.bf16.msra.mxu0 0
        %1784 = vmatprep.subr.bf16.mxu0 0
        %1785 = vmatpush1.bf16.msra.mxu0 0
        %1786 = vmatprep.subr.bf16.mxu0 0
        %1787 = vmatpush1.bf16.msra.mxu0 0
        %1788 = vmatprep.subr.bf16.mxu0 0
        %1789 = vmatpush1.bf16.msra.mxu0 0
        %1790 = vmatprep.subr.bf16.mxu0 0
        %1791 = vmatpush1.bf16.msra.mxu0 0
        %1792 = vmatprep.subr.bf16.mxu0 0
        %1793 = vmatpush1.bf16.msra.mxu0 0
        %1794 = vmatprep.subr.bf16.mxu0 0
        %1795 = vmatpush1.bf16.msra.mxu0 0
        %1796 = vmatprep.mubr.bf16.mxu0 0
        %1797 = vmatmul.mubr.bf16.gmra.mrb[0].mxu0 %v1683
        %v1798 = vpop.f32.mrb[0].mxu0
        %v1799 = vadd.f32 0.0, %v1798
        %v1800 = vpop.f32.mrb[0].mxu0
        %v1801 = vpop.f32.mrb[0].mxu0
        %v1802 = vadd.f32 0.0, %v1801
        %v1803 = vpop.f32.mrb[0].mxu0
        %1804 = vmatprep.mubr.bf16.mxu0 0
        %1805 = vmatmul.mubr.bf16.gmra.mrb[0].mxu0 %v1684
        %v1806 = vpop.f32.mrb[0].mxu0
        %v1807 = vadd.f32 0.0, %v1806
        %v1808 = vpop.f32.mrb[0].mxu0
        %v1809 = vpop.f32.mrb[0].mxu0
        %v1810 = vadd.f32 0.0, %v1809
        %v1811 = vpop.f32.mrb[0].mxu0
        %1812 = vmatprep.mubr.bf16.mxu0 0
        %1813 = vmatmul.mubr.bf16.gmra.mrb[0].mxu0 %v1685
        %v1814 = vpop.f32.mrb[0].mxu0
        %v1815 = vadd.f32 0.0, %v1814
        %v1816 = vpop.f32.mrb[0].mxu0
        %v1817 = vpop.f32.mrb[0].mxu0
        %v1818 = vadd.f32 0.0, %v1817
        %v1819 = vpop.f32.mrb[0].mxu0
        %1820 = vmatprep.mubr.bf16.mxu0 0
        %1821 = vmatmul.mubr.bf16.gmra.mrb[0].mxu0 %v1686
        %v1822 = vpop.f32.mrb[0].mxu0
        %v1823 = vadd.f32 0.0, %v1822
        %v1824 = vpop.f32.mrb[0].mxu0
        %v1825 = vpop.f32.mrb[0].mxu0
        %v1826 = vadd.f32 0.0, %v1825
        %v1827 = vpop.f32.mrb[0].mxu0
        %1828 = vmatprep.mubr.bf16.mxu0 0
        %1829 = vmatmul.mubr.bf16.gmra.mrb[0].mxu0 %v1687
        %v1830 = vpop.f32.mrb[0].mxu0
        %v1831 = vadd.f32 0.0, %v1830
        %v1832 = vpop.f32.mrb[0].mxu0
        %v1833 = vpop.f32.mrb[0].mxu0
        %v1834 = vadd.f32 0.0, %v1833
        %v1835 = vpop.f32.mrb[0].mxu0
        %1836 = vmatprep.mubr.bf16.mxu0 0
        %1837 = vmatmul.mubr.bf16.gmra.mrb[0].mxu0 %v1688
        %v1838 = vpop.f32.mrb[0].mxu0
        %v1839 = vadd.f32 0.0, %v1838
        %v1840 = vpop.f32.mrb[0].mxu0
        %v1841 = vpop.f32.mrb[0].mxu0
        %v1842 = vadd.f32 0.0, %v1841
        %v1843 = vpop.f32.mrb[0].mxu0
        %1844 = vmatprep.mubr.bf16.mxu0 0
        %1845 = vmatmul.mubr.bf16.gmra.mrb[0].mxu0 %v1689
        %v1846 = vpop.f32.mrb[0].mxu0
        %v1847 = vadd.f32 0.0, %v1846
        %v1848 = vpop.f32.mrb[0].mxu0
        %v1849 = vpop.f32.mrb[0].mxu0
        %v1850 = vadd.f32 0.0, %v1849
        %v1851 = vpop.f32.mrb[0].mxu0
        %1852 = vmatprep.mubr.bf16.mxu0 0
        %1853 = vmatmul.mubr.bf16.gmra.mrb[0].mxu0 %v1690
        %v1854 = vpop.f32.mrb[0].mxu0
        %v1855 = vadd.f32 0.0, %v1854
        %v1856 = vpop.f32.mrb[0].mxu0
        %v1857 = vpop.f32.mrb[0].mxu0
        %v1858 = vadd.f32 0.0, %v1857
        %v1859 = vpop.f32.mrb[0].mxu0
        %1860 = vmatprep.mubr.bf16.mxu0 0
        %1861 = vmatmul.mubr.bf16.gmra.mrb[0].mxu0 %v1691
        %v1862 = vpop.f32.mrb[0].mxu0
        %v1863 = vadd.f32 0.0, %v1862
        %v1864 = vpop.f32.mrb[0].mxu0
        %v1865 = vpop.f32.mrb[0].mxu0
        %v1866 = vadd.f32 0.0, %v1865
        %v1867 = vpop.f32.mrb[0].mxu0
        %1868 = vmatprep.mubr.bf16.mxu0 0
        %1869 = vmatmul.mubr.bf16.gmra.mrb[0].mxu0 %v1692
        %v1870 = vpop.f32.mrb[0].mxu0
        %v1871 = vadd.f32 0.0, %v1870
        %v1872 = vpop.f32.mrb[0].mxu0
        %v1873 = vpop.f32.mrb[0].mxu0
        %v1874 = vadd.f32 0.0, %v1873
        %v1875 = vpop.f32.mrb[0].mxu0
        %1876 = vmatprep.mubr.bf16.mxu0 0
        %1877 = vmatmul.mubr.bf16.gmra.mrb[0].mxu0 %v1693
        %v1878 = vpop.f32.mrb[0].mxu0
        %v1879 = vadd.f32 0.0, %v1878
        %v1880 = vpop.f32.mrb[0].mxu0
        %v1881 = vpop.f32.mrb[0].mxu0
        %v1882 = vadd.f32 0.0, %v1881
        %v1883 = vpop.f32.mrb[0].mxu0
        %1884 = vmatprep.mubr.bf16.mxu0 0
        %1885 = vmatmul.mubr.bf16.gmra.mrb[0].mxu0 %v1694
        %v1886 = vpop.f32.mrb[0].mxu0
        %v1887 = vadd.f32 0.0, %v1886
        %v1888 = vpop.f32.mrb[0].mxu0
        %v1889 = vpop.f32.mrb[0].mxu0
        %v1890 = vadd.f32 0.0, %v1889
        %v1891 = vpop.f32.mrb[0].mxu0
        %1892 = vmatprep.mubr.bf16.mxu0 0
        %1893 = vmatmul.mubr.bf16.gmra.mrb[0].mxu0 %v1695
        %v1894 = vpop.f32.mrb[0].mxu0
        %v1895 = vadd.f32 0.0, %v1894
        %v1896 = vpop.f32.mrb[0].mxu0
        %v1897 = vpop.f32.mrb[0].mxu0
        %v1898 = vadd.f32 0.0, %v1897
        %v1899 = vpop.f32.mrb[0].mxu0
        %1900 = vmatprep.mubr.bf16.mxu0 0
        %1901 = vmatmul.mubr.bf16.gmra.mrb[0].mxu0 %v1696
        %v1902 = vpop.f32.mrb[0].mxu0
        %v1903 = vadd.f32 0.0, %v1902
        %v1904 = vpop.f32.mrb[0].mxu0
        %v1905 = vpop.f32.mrb[0].mxu0
        %v1906 = vadd.f32 0.0, %v1905
        %v1907 = vpop.f32.mrb[0].mxu0
        %1908 = vmatprep.mubr.bf16.mxu0 0
        %1909 = vmatmul.mubr.bf16.gmra.mrb[0].mxu0 %v1697
        %v1910 = vpop.f32.mrb[0].mxu0
        %v1911 = vadd.f32 0.0, %v1910
        %v1912 = vpop.f32.mrb[0].mxu0
        %v1913 = vpop.f32.mrb[0].mxu0
        %v1914 = vadd.f32 0.0, %v1913
        %v1915 = vpop.f32.mrb[0].mxu0
        %1916 = vmatprep.mubr.bf16.mxu0 0
        %1917 = vmatmul.mubr.bf16.gmra.mrb[0].mxu0 %v1698
        %v1918 = vpop.f32.mrb[0].mxu0
        %v1919 = vadd.f32 0.0, %v1918
        %v1920 = vpop.f32.mrb[0].mxu0
        %v1921 = vpop.f32.mrb[0].mxu0
        %v1922 = vadd.f32 0.0, %v1921
        %v1923 = vpop.f32.mrb[0].mxu0
        %1924 = vdwg.mxu0
        %v1925 = vadd.f32 %v1651, %v1799
        %v1926 = vadd.f32 %v1652, %v1802
        %v1927 = vadd.f32 %v1653, %v1807
        %v1928 = vadd.f32 %v1654, %v1810
        %v1929 = vadd.f32 %v1655, %v1815
        %v1930 = vadd.f32 %v1656, %v1818
        %v1931 = vadd.f32 %v1657, %v1823
        %v1932 = vadd.f32 %v1658, %v1826
        %v1933 = vadd.f32 %v1659, %v1831
        %v1934 = vadd.f32 %v1660, %v1834
        %v1935 = vadd.f32 %v1661, %v1839
        %v1936 = vadd.f32 %v1662, %v1842
        %v1937 = vadd.f32 %v1663, %v1847
        %v1938 = vadd.f32 %v1664, %v1850
        %v1939 = vadd.f32 %v1665, %v1855
        %v1940 = vadd.f32 %v1666, %v1858
        %v1941 = vadd.f32 %v1667, %v1863
        %v1942 = vadd.f32 %v1668, %v1866
        %v1943 = vadd.f32 %v1669, %v1871
        %v1944 = vadd.f32 %v1670, %v1874
        %v1945 = vadd.f32 %v1671, %v1879
        %v1946 = vadd.f32 %v1672, %v1882
        %v1947 = vadd.f32 %v1673, %v1887
        %v1948 = vadd.f32 %v1674, %v1890
        %v1949 = vadd.f32 %v1675, %v1895
        %v1950 = vadd.f32 %v1676, %v1898
        %v1951 = vadd.f32 %v1677, %v1903
        %v1952 = vadd.f32 %v1678, %v1906
        %v1953 = vadd.f32 %v1679, %v1911
        %v1954 = vadd.f32 %v1680, %v1914
        %v1955 = vadd.f32 %v1681, %v1919
        %v1956 = vadd.f32 %v1682, %v1922
        %1957 = vst [vmem:[#allocation4] sm:$0xff] %v1925
        %1958 = vst [vmem:[#allocation4 + $0x8] sm:$0xff] %v1926
        %1959 = vst [vmem:[#allocation4 + $0x10] sm:$0xff] %v1927
        %1960 = vst [vmem:[#allocation4 + $0x18] sm:$0xff] %v1928
        %1961 = vst [vmem:[#allocation4 + $0x20] sm:$0xff] %v1929
        %1962 = vst [vmem:[#allocation4 + $0x28] sm:$0xff] %v1930
        %1963 = vst [vmem:[#allocation4 + $0x30] sm:$0xff] %v1931
        %1964 = vst [vmem:[#allocation4 + $0x38] sm:$0xff] %v1932
        %1965 = vst [vmem:[#allocation4 + $0x40] sm:$0xff] %v1933
        %1966 = vst [vmem:[#allocation4 + $0x48] sm:$0xff] %v1934
        %1967 = vst [vmem:[#allocation4 + $0x50] sm:$0xff] %v1935
        %1968 = vst [vmem:[#allocation4 + $0x58] sm:$0xff] %v1936
        %1969 = vst [vmem:[#allocation4 + $0x60] sm:$0xff] %v1937
        %1970 = vst [vmem:[#allocation4 + $0x68] sm:$0xff] %v1938
        %1971 = vst [vmem:[#allocation4 + $0x70] sm:$0xff] %v1939
        %1972 = vst [vmem:[#allocation4 + $0x78] sm:$0xff] %v1940
        %1973 = vst [vmem:[#allocation4 + $0x80] sm:$0xff] %v1941
        %1974 = vst [vmem:[#allocation4 + $0x88] sm:$0xff] %v1942
        %1975 = vst [vmem:[#allocation4 + $0x90] sm:$0xff] %v1943
        %1976 = vst [vmem:[#allocation4 + $0x98] sm:$0xff] %v1944
        %1977 = vst [vmem:[#allocation4 + $0xa0] sm:$0xff] %v1945
        %1978 = vst [vmem:[#allocation4 + $0xa8] sm:$0xff] %v1946
        %1979 = vst [vmem:[#allocation4 + $0xb0] sm:$0xff] %v1947
        %1980 = vst [vmem:[#allocation4 + $0xb8] sm:$0xff] %v1948
        %1981 = vst [vmem:[#allocation4 + $0xc0] sm:$0xff] %v1949
        %1982 = vst [vmem:[#allocation4 + $0xc8] sm:$0xff] %v1950
        %1983 = vst [vmem:[#allocation4 + $0xd0] sm:$0xff] %v1951
        %1984 = vst [vmem:[#allocation4 + $0xd8] sm:$0xff] %v1952
        %1985 = vst [vmem:[#allocation4 + $0xe0] sm:$0xff] %v1953
        %1986 = vst [vmem:[#allocation4 + $0xe8] sm:$0xff] %v1954
        %1987 = vst [vmem:[#allocation4 + $0xf0] sm:$0xff] %v1955
        %1988 = vst [vmem:[#allocation4 + $0xf8] sm:$0xff] %v1956
        %v1989 = vld [vmem:[%s445 + $0x1] sm:$0xff]
        %v1990 = vld [vmem:[%s445 + $0x9] sm:$0xff]
        %v1991 = vld [vmem:[%s445 + $0x19] sm:$0xff]
        %v1992 = vld [vmem:[%s445 + $0x21] sm:$0xff]
        %v1993 = vld [vmem:[%s445 + $0x31] sm:$0xff]
        %v1994 = vld [vmem:[%s445 + $0x39] sm:$0xff]
        %v1995 = vld [vmem:[%s445 + $0x49] sm:$0xff]
        %v1996 = vld [vmem:[%s445 + $0x51] sm:$0xff]
        %v1997 = vld [vmem:[%s445 + $0x61] sm:$0xff]
        %v1998 = vld [vmem:[%s445 + $0x69] sm:$0xff]
        %v1999 = vld [vmem:[%s445 + $0x79] sm:$0xff]
        %v2000 = vld [vmem:[%s445 + $0x81] sm:$0xff]
        %v2001 = vld [vmem:[%s445 + $0x91] sm:$0xff]
        %v2002 = vld [vmem:[%s445 + $0x99] sm:$0xff]
        %v2003 = vld [vmem:[%s445 + $0xa9] sm:$0xff]
        %v2004 = vld [vmem:[%s445 + $0xb1] sm:$0xff]
        %v2005 = vld [vmem:[%s445 + $0xc1] sm:$0xff]
        %v2006 = vld [vmem:[%s445 + $0xc9] sm:$0xff]
        %v2007 = vld [vmem:[%s445 + $0xd9] sm:$0xff]
        %v2008 = vld [vmem:[%s445 + $0xe1] sm:$0xff]
        %v2009 = vld [vmem:[%s445 + $0xf1] sm:$0xff]
        %v2010 = vld [vmem:[%s445 + $0xf9] sm:$0xff]
        %v2011 = vld [vmem:[%s445 + $0x109] sm:$0xff]
        %v2012 = vld [vmem:[%s445 + $0x111] sm:$0xff]
        %v2013 = vld [vmem:[%s445 + $0x121] sm:$0xff]
        %v2014 = vld [vmem:[%s445 + $0x129] sm:$0xff]
        %v2015 = vld [vmem:[%s445 + $0x139] sm:$0xff]
        %v2016 = vld [vmem:[%s445 + $0x141] sm:$0xff]
        %v2017 = vld [vmem:[%s445 + $0x151] sm:$0xff]
        %v2018 = vld [vmem:[%s445 + $0x159] sm:$0xff]
        %v2019 = vld [vmem:[%s445 + $0x169] sm:$0xff]
        %v2020 = vld [vmem:[%s445 + $0x171] sm:$0xff]
        %v2021 = vld [vmem:[#allocation4] sm:$0xff]
        %v2022 = vld [vmem:[#allocation4 + $0x8] sm:$0xff]
        %v2023 = vld [vmem:[#allocation4 + $0x10] sm:$0xff]
        %v2024 = vld [vmem:[#allocation4 + $0x18] sm:$0xff]
        %v2025 = vld [vmem:[#allocation4 + $0x20] sm:$0xff]
        %v2026 = vld [vmem:[#allocation4 + $0x28] sm:$0xff]
        %v2027 = vld [vmem:[#allocation4 + $0x30] sm:$0xff]
        %v2028 = vld [vmem:[#allocation4 + $0x38] sm:$0xff]
        %v2029 = vld [vmem:[#allocation4 + $0x40] sm:$0xff]
        %v2030 = vld [vmem:[#allocation4 + $0x48] sm:$0xff]
        %v2031 = vld [vmem:[#allocation4 + $0x50] sm:$0xff]
        %v2032 = vld [vmem:[#allocation4 + $0x58] sm:$0xff]
        %v2033 = vld [vmem:[#allocation4 + $0x60] sm:$0xff]
        %v2034 = vld [vmem:[#allocation4 + $0x68] sm:$0xff]
        %v2035 = vld [vmem:[#allocation4 + $0x70] sm:$0xff]
        %v2036 = vld [vmem:[#allocation4 + $0x78] sm:$0xff]
        %v2037 = vld [vmem:[#allocation4 + $0x80] sm:$0xff]
        %v2038 = vld [vmem:[#allocation4 + $0x88] sm:$0xff]
        %v2039 = vld [vmem:[#allocation4 + $0x90] sm:$0xff]
        %v2040 = vld [vmem:[#allocation4 + $0x98] sm:$0xff]
        %v2041 = vld [vmem:[#allocation4 + $0xa0] sm:$0xff]
        %v2042 = vld [vmem:[#allocation4 + $0xa8] sm:$0xff]
        %v2043 = vld [vmem:[#allocation4 + $0xb0] sm:$0xff]
        %v2044 = vld [vmem:[#allocation4 + $0xb8] sm:$0xff]
        %v2045 = vld [vmem:[#allocation4 + $0xc0] sm:$0xff]
        %v2046 = vld [vmem:[#allocation4 + $0xc8] sm:$0xff]
        %v2047 = vld [vmem:[#allocation4 + $0xd0] sm:$0xff]
        %v2048 = vld [vmem:[#allocation4 + $0xd8] sm:$0xff]
        %v2049 = vld [vmem:[#allocation4 + $0xe0] sm:$0xff]
        %v2050 = vld [vmem:[#allocation4 + $0xe8] sm:$0xff]
        %v2051 = vld [vmem:[#allocation4 + $0xf0] sm:$0xff]
        %v2052 = vld [vmem:[#allocation4 + $0xf8] sm:$0xff]
        %v2053 = vpack.c.bf16 %v1990, %v1989
        %v2054 = vpack.c.bf16 %v1992, %v1991
        %v2055 = vpack.c.bf16 %v1994, %v1993
        %v2056 = vpack.c.bf16 %v1996, %v1995
        %v2057 = vpack.c.bf16 %v1998, %v1997
        %v2058 = vpack.c.bf16 %v2000, %v1999
        %v2059 = vpack.c.bf16 %v2002, %v2001
        %v2060 = vpack.c.bf16 %v2004, %v2003
        %v2061 = vpack.c.bf16 %v2006, %v2005
        %v2062 = vpack.c.bf16 %v2008, %v2007
        %v2063 = vpack.c.bf16 %v2010, %v2009
        %v2064 = vpack.c.bf16 %v2012, %v2011
        %v2065 = vpack.c.bf16 %v2014, %v2013
        %v2066 = vpack.c.bf16 %v2016, %v2015
        %v2067 = vpack.c.bf16 %v2018, %v2017
        %v2068 = vpack.c.bf16 %v2020, %v2019
        %s2069 = scalar_lea.vmem [#allocation8], 256
        %v2070 = vld [vmem:[%s2069] sm:$0xf]
        %v2071 = vld [vmem:[%s2069 + $0x4] sm:$0xf]
        %v2072 = vld [vmem:[%s2069 + $0x8] sm:$0xf]
        %v2073 = vld [vmem:[%s2069 + $0xc] sm:$0xf]
        %v2074 = vld [vmem:[%s2069 + $0x10] sm:$0xf]
        %v2075 = vld [vmem:[%s2069 + $0x14] sm:$0xf]
        %v2076 = vld [vmem:[%s2069 + $0x18] sm:$0xf]
        %v2077 = vld [vmem:[%s2069 + $0x1c] sm:$0xf]
        %v2078 = vld [vmem:[%s2069 + $0x20] sm:$0xf]
        %v2079 = vld [vmem:[%s2069 + $0x24] sm:$0xf]
        %v2080 = vld [vmem:[%s2069 + $0x28] sm:$0xf]
        %v2081 = vld [vmem:[%s2069 + $0x2c] sm:$0xf]
        %v2082 = vld [vmem:[%s2069 + $0x30] sm:$0xf]
        %v2083 = vld [vmem:[%s2069 + $0x34] sm:$0xf]
        %v2084 = vld [vmem:[%s2069 + $0x38] sm:$0xf]
        %v2085 = vld [vmem:[%s2069 + $0x3c] sm:$0xf]
        %v2102 = vunpack.c.l.b16 %v2070
        %v2103 = vunpack.c.l.b16 %v2071
        %v2104 = vunpack.c.l.b16 %v2072
        %v2105 = vunpack.c.l.b16 %v2073
        %v2106 = vunpack.c.l.b16 %v2074
        %v2107 = vunpack.c.l.b16 %v2075
        %v2108 = vunpack.c.l.b16 %v2076
        %v2109 = vunpack.c.l.b16 %v2077
        %v2110 = vunpack.c.l.b16 %v2078
        %v2111 = vunpack.c.l.b16 %v2079
        %v2112 = vunpack.c.l.b16 %v2080
        %v2113 = vunpack.c.l.b16 %v2081
        %v2114 = vunpack.c.l.b16 %v2082
        %v2115 = vunpack.c.l.b16 %v2083
        %v2116 = vunpack.c.l.b16 %v2084
        %v2117 = vunpack.c.l.b16 %v2085
        %v2118 = vpack.c.b16 %v2103, %v2102
        %v2119 = vpack.c.b16 %v2105, %v2104
        %v2120 = vpack.c.b16 %v2107, %v2106
        %v2121 = vpack.c.b16 %v2109, %v2108
        %v2122 = vpack.c.b16 %v2111, %v2110
        %v2123 = vpack.c.b16 %v2113, %v2112
        %v2124 = vpack.c.b16 %v2115, %v2114
        %v2125 = vpack.c.b16 %v2117, %v2116
        %2134 = vmatprep.subr.bf16.mxu0 0
        %2135 = vmatpush1.bf16.msra.mxu0 %v2118
        %2136 = vmatprep.subr.bf16.mxu0 0
        %2137 = vmatpush1.bf16.msra.mxu0 %v2119
        %2138 = vmatprep.subr.bf16.mxu0 0
        %2139 = vmatpush1.bf16.msra.mxu0 %v2120
        %2140 = vmatprep.subr.bf16.mxu0 0
        %2141 = vmatpush1.bf16.msra.mxu0 %v2121
        %2142 = vmatprep.subr.bf16.mxu0 0
        %2143 = vmatpush1.bf16.msra.mxu0 %v2122
        %2144 = vmatprep.subr.bf16.mxu0 0
        %2145 = vmatpush1.bf16.msra.mxu0 %v2123
        %2146 = vmatprep.subr.bf16.mxu0 0
        %2147 = vmatpush1.bf16.msra.mxu0 %v2124
        %2148 = vmatprep.subr.bf16.mxu0 0
        %2149 = vmatpush1.bf16.msra.mxu0 %v2125
        %2150 = vmatprep.subr.bf16.mxu0 0
        %2151 = vmatpush1.bf16.msra.mxu0 0
        %2152 = vmatprep.subr.bf16.mxu0 0
        %2153 = vmatpush1.bf16.msra.mxu0 0
        %2154 = vmatprep.subr.bf16.mxu0 0
        %2155 = vmatpush1.bf16.msra.mxu0 0
        %2156 = vmatprep.subr.bf16.mxu0 0
        %2157 = vmatpush1.bf16.msra.mxu0 0
        %2158 = vmatprep.subr.bf16.mxu0 0
        %2159 = vmatpush1.bf16.msra.mxu0 0
        %2160 = vmatprep.subr.bf16.mxu0 0
        %2161 = vmatpush1.bf16.msra.mxu0 0
        %2162 = vmatprep.subr.bf16.mxu0 0
        %2163 = vmatpush1.bf16.msra.mxu0 0
        %2164 = vmatprep.subr.bf16.mxu0 0
        %2165 = vmatpush1.bf16.msra.mxu0 0
        %2166 = vmatprep.mubr.bf16.mxu0 0
        %2167 = vmatmul.mubr.bf16.gmra.mrb[0].mxu0 %v2053
        %v2168 = vpop.f32.mrb[0].mxu0
        %v2169 = vadd.f32 0.0, %v2168
        %v2170 = vpop.f32.mrb[0].mxu0
        %v2171 = vpop.f32.mrb[0].mxu0
        %v2172 = vadd.f32 0.0, %v2171
        %v2173 = vpop.f32.mrb[0].mxu0
        %2174 = vmatprep.mubr.bf16.mxu0 0
        %2175 = vmatmul.mubr.bf16.gmra.mrb[0].mxu0 %v2054
        %v2176 = vpop.f32.mrb[0].mxu0
        %v2177 = vadd.f32 0.0, %v2176
        %v2178 = vpop.f32.mrb[0].mxu0
        %v2179 = vpop.f32.mrb[0].mxu0
        %v2180 = vadd.f32 0.0, %v2179
        %v2181 = vpop.f32.mrb[0].mxu0
        %2182 = vmatprep.mubr.bf16.mxu0 0
        %2183 = vmatmul.mubr.bf16.gmra.mrb[0].mxu0 %v2055
        %v2184 = vpop.f32.mrb[0].mxu0
        %v2185 = vadd.f32 0.0, %v2184
        %v2186 = vpop.f32.mrb[0].mxu0
        %v2187 = vpop.f32.mrb[0].mxu0
        %v2188 = vadd.f32 0.0, %v2187
        %v2189 = vpop.f32.mrb[0].mxu0
        %2190 = vmatprep.mubr.bf16.mxu0 0
        %2191 = vmatmul.mubr.bf16.gmra.mrb[0].mxu0 %v2056
        %v2192 = vpop.f32.mrb[0].mxu0
        %v2193 = vadd.f32 0.0, %v2192
        %v2194 = vpop.f32.mrb[0].mxu0
        %v2195 = vpop.f32.mrb[0].mxu0
        %v2196 = vadd.f32 0.0, %v2195
        %v2197 = vpop.f32.mrb[0].mxu0
        %2198 = vmatprep.mubr.bf16.mxu0 0
        %2199 = vmatmul.mubr.bf16.gmra.mrb[0].mxu0 %v2057
        %v2200 = vpop.f32.mrb[0].mxu0
        %v2201 = vadd.f32 0.0, %v2200
        %v2202 = vpop.f32.mrb[0].mxu0
        %v2203 = vpop.f32.mrb[0].mxu0
        %v2204 = vadd.f32 0.0, %v2203
        %v2205 = vpop.f32.mrb[0].mxu0
        %2206 = vmatprep.mubr.bf16.mxu0 0
        %2207 = vmatmul.mubr.bf16.gmra.mrb[0].mxu0 %v2058
        %v2208 = vpop.f32.mrb[0].mxu0
        %v2209 = vadd.f32 0.0, %v2208
        %v2210 = vpop.f32.mrb[0].mxu0
        %v2211 = vpop.f32.mrb[0].mxu0
        %v2212 = vadd.f32 0.0, %v2211
        %v2213 = vpop.f32.mrb[0].mxu0
        %2214 = vmatprep.mubr.bf16.mxu0 0
        %2215 = vmatmul.mubr.bf16.gmra.mrb[0].mxu0 %v2059
        %v2216 = vpop.f32.mrb[0].mxu0
        %v2217 = vadd.f32 0.0, %v2216
        %v2218 = vpop.f32.mrb[0].mxu0
        %v2219 = vpop.f32.mrb[0].mxu0
        %v2220 = vadd.f32 0.0, %v2219
        %v2221 = vpop.f32.mrb[0].mxu0
        %2222 = vmatprep.mubr.bf16.mxu0 0
        %2223 = vmatmul.mubr.bf16.gmra.mrb[0].mxu0 %v2060
        %v2224 = vpop.f32.mrb[0].mxu0
        %v2225 = vadd.f32 0.0, %v2224
        %v2226 = vpop.f32.mrb[0].mxu0
        %v2227 = vpop.f32.mrb[0].mxu0
        %v2228 = vadd.f32 0.0, %v2227
        %v2229 = vpop.f32.mrb[0].mxu0
        %2230 = vmatprep.mubr.bf16.mxu0 0
        %2231 = vmatmul.mubr.bf16.gmra.mrb[0].mxu0 %v2061
        %v2232 = vpop.f32.mrb[0].mxu0
        %v2233 = vadd.f32 0.0, %v2232
        %v2234 = vpop.f32.mrb[0].mxu0
        %v2235 = vpop.f32.mrb[0].mxu0
        %v2236 = vadd.f32 0.0, %v2235
        %v2237 = vpop.f32.mrb[0].mxu0
        %2238 = vmatprep.mubr.bf16.mxu0 0
        %2239 = vmatmul.mubr.bf16.gmra.mrb[0].mxu0 %v2062
        %v2240 = vpop.f32.mrb[0].mxu0
        %v2241 = vadd.f32 0.0, %v2240
        %v2242 = vpop.f32.mrb[0].mxu0
        %v2243 = vpop.f32.mrb[0].mxu0
        %v2244 = vadd.f32 0.0, %v2243
        %v2245 = vpop.f32.mrb[0].mxu0
        %2246 = vmatprep.mubr.bf16.mxu0 0
        %2247 = vmatmul.mubr.bf16.gmra.mrb[0].mxu0 %v2063
        %v2248 = vpop.f32.mrb[0].mxu0
        %v2249 = vadd.f32 0.0, %v2248
        %v2250 = vpop.f32.mrb[0].mxu0
        %v2251 = vpop.f32.mrb[0].mxu0
        %v2252 = vadd.f32 0.0, %v2251
        %v2253 = vpop.f32.mrb[0].mxu0
        %2254 = vmatprep.mubr.bf16.mxu0 0
        %2255 = vmatmul.mubr.bf16.gmra.mrb[0].mxu0 %v2064
        %v2256 = vpop.f32.mrb[0].mxu0
        %v2257 = vadd.f32 0.0, %v2256
        %v2258 = vpop.f32.mrb[0].mxu0
        %v2259 = vpop.f32.mrb[0].mxu0
        %v2260 = vadd.f32 0.0, %v2259
        %v2261 = vpop.f32.mrb[0].mxu0
        %2262 = vmatprep.mubr.bf16.mxu0 0
        %2263 = vmatmul.mubr.bf16.gmra.mrb[0].mxu0 %v2065
        %v2264 = vpop.f32.mrb[0].mxu0
        %v2265 = vadd.f32 0.0, %v2264
        %v2266 = vpop.f32.mrb[0].mxu0
        %v2267 = vpop.f32.mrb[0].mxu0
        %v2268 = vadd.f32 0.0, %v2267
        %v2269 = vpop.f32.mrb[0].mxu0
        %2270 = vmatprep.mubr.bf16.mxu0 0
        %2271 = vmatmul.mubr.bf16.gmra.mrb[0].mxu0 %v2066
        %v2272 = vpop.f32.mrb[0].mxu0
        %v2273 = vadd.f32 0.0, %v2272
        %v2274 = vpop.f32.mrb[0].mxu0
        %v2275 = vpop.f32.mrb[0].mxu0
        %v2276 = vadd.f32 0.0, %v2275
        %v2277 = vpop.f32.mrb[0].mxu0
        %2278 = vmatprep.mubr.bf16.mxu0 0
        %2279 = vmatmul.mubr.bf16.gmra.mrb[0].mxu0 %v2067
        %v2280 = vpop.f32.mrb[0].mxu0
        %v2281 = vadd.f32 0.0, %v2280
        %v2282 = vpop.f32.mrb[0].mxu0
        %v2283 = vpop.f32.mrb[0].mxu0
        %v2284 = vadd.f32 0.0, %v2283
        %v2285 = vpop.f32.mrb[0].mxu0
        %2286 = vmatprep.mubr.bf16.mxu0 0
        %2287 = vmatmul.mubr.bf16.gmra.mrb[0].mxu0 %v2068
        %v2288 = vpop.f32.mrb[0].mxu0
        %v2289 = vadd.f32 0.0, %v2288
        %v2290 = vpop.f32.mrb[0].mxu0
        %v2291 = vpop.f32.mrb[0].mxu0
        %v2292 = vadd.f32 0.0, %v2291
        %v2293 = vpop.f32.mrb[0].mxu0
        %2294 = vdwg.mxu0
        %v2295 = vadd.f32 %v2021, %v2169
        %v2296 = vadd.f32 %v2022, %v2172
        %v2297 = vadd.f32 %v2023, %v2177
        %v2298 = vadd.f32 %v2024, %v2180
        %v2299 = vadd.f32 %v2025, %v2185
        %v2300 = vadd.f32 %v2026, %v2188
        %v2301 = vadd.f32 %v2027, %v2193
        %v2302 = vadd.f32 %v2028, %v2196
        %v2303 = vadd.f32 %v2029, %v2201
        %v2304 = vadd.f32 %v2030, %v2204
        %v2305 = vadd.f32 %v2031, %v2209
        %v2306 = vadd.f32 %v2032, %v2212
        %v2307 = vadd.f32 %v2033, %v2217
        %v2308 = vadd.f32 %v2034, %v2220
        %v2309 = vadd.f32 %v2035, %v2225
        %v2310 = vadd.f32 %v2036, %v2228
        %v2311 = vadd.f32 %v2037, %v2233
        %v2312 = vadd.f32 %v2038, %v2236
        %v2313 = vadd.f32 %v2039, %v2241
        %v2314 = vadd.f32 %v2040, %v2244
        %v2315 = vadd.f32 %v2041, %v2249
        %v2316 = vadd.f32 %v2042, %v2252
        %v2317 = vadd.f32 %v2043, %v2257
        %v2318 = vadd.f32 %v2044, %v2260
        %v2319 = vadd.f32 %v2045, %v2265
        %v2320 = vadd.f32 %v2046, %v2268
        %v2321 = vadd.f32 %v2047, %v2273
        %v2322 = vadd.f32 %v2048, %v2276
        %v2323 = vadd.f32 %v2049, %v2281
        %v2324 = vadd.f32 %v2050, %v2284
        %v2325 = vadd.f32 %v2051, %v2289
        %v2326 = vadd.f32 %v2052, %v2292
        %2327 = vst [vmem:[#allocation4] sm:$0xff] %v2295
        %2328 = vst [vmem:[#allocation4 + $0x8] sm:$0xff] %v2296
        %2329 = vst [vmem:[#allocation4 + $0x10] sm:$0xff] %v2297
        %2330 = vst [vmem:[#allocation4 + $0x18] sm:$0xff] %v2298
        %2331 = vst [vmem:[#allocation4 + $0x20] sm:$0xff] %v2299
        %2332 = vst [vmem:[#allocation4 + $0x28] sm:$0xff] %v2300
        %2333 = vst [vmem:[#allocation4 + $0x30] sm:$0xff] %v2301
        %2334 = vst [vmem:[#allocation4 + $0x38] sm:$0xff] %v2302
        %2335 = vst [vmem:[#allocation4 + $0x40] sm:$0xff] %v2303
        %2336 = vst [vmem:[#allocation4 + $0x48] sm:$0xff] %v2304
        %2337 = vst [vmem:[#allocation4 + $0x50] sm:$0xff] %v2305
        %2338 = vst [vmem:[#allocation4 + $0x58] sm:$0xff] %v2306
        %2339 = vst [vmem:[#allocation4 + $0x60] sm:$0xff] %v2307
        %2340 = vst [vmem:[#allocation4 + $0x68] sm:$0xff] %v2308
        %2341 = vst [vmem:[#allocation4 + $0x70] sm:$0xff] %v2309
        %2342 = vst [vmem:[#allocation4 + $0x78] sm:$0xff] %v2310
        %2343 = vst [vmem:[#allocation4 + $0x80] sm:$0xff] %v2311
        %2344 = vst [vmem:[#allocation4 + $0x88] sm:$0xff] %v2312
        %2345 = vst [vmem:[#allocation4 + $0x90] sm:$0xff] %v2313
        %2346 = vst [vmem:[#allocation4 + $0x98] sm:$0xff] %v2314
        %2347 = vst [vmem:[#allocation4 + $0xa0] sm:$0xff] %v2315
        %2348 = vst [vmem:[#allocation4 + $0xa8] sm:$0xff] %v2316
        %2349 = vst [vmem:[#allocation4 + $0xb0] sm:$0xff] %v2317
        %2350 = vst [vmem:[#allocation4 + $0xb8] sm:$0xff] %v2318
        %2351 = vst [vmem:[#allocation4 + $0xc0] sm:$0xff] %v2319
        %2352 = vst [vmem:[#allocation4 + $0xc8] sm:$0xff] %v2320
        %2353 = vst [vmem:[#allocation4 + $0xd0] sm:$0xff] %v2321
        %2354 = vst [vmem:[#allocation4 + $0xd8] sm:$0xff] %v2322
        %2355 = vst [vmem:[#allocation4 + $0xe0] sm:$0xff] %v2323
        %2356 = vst [vmem:[#allocation4 + $0xe8] sm:$0xff] %v2324
        %2357 = vst [vmem:[#allocation4 + $0xf0] sm:$0xff] %v2325
        %2358 = vst [vmem:[#allocation4 + $0xf8] sm:$0xff] %v2326
        %v2359 = vld [vmem:[%s445 + $0x2] sm:$0xff]
        %v2360 = vld [vmem:[%s445 + $0xa] sm:$0xff]
        %v2361 = vld [vmem:[%s445 + $0x1a] sm:$0xff]
        %v2362 = vld [vmem:[%s445 + $0x22] sm:$0xff]
        %v2363 = vld [vmem:[%s445 + $0x32] sm:$0xff]
        %v2364 = vld [vmem:[%s445 + $0x3a] sm:$0xff]
        %v2365 = vld [vmem:[%s445 + $0x4a] sm:$0xff]
        %v2366 = vld [vmem:[%s445 + $0x52] sm:$0xff]
        %v2367 = vld [vmem:[%s445 + $0x62] sm:$0xff]
        %v2368 = vld [vmem:[%s445 + $0x6a] sm:$0xff]
        %v2369 = vld [vmem:[%s445 + $0x7a] sm:$0xff]
        %v2370 = vld [vmem:[%s445 + $0x82] sm:$0xff]
        %v2371 = vld [vmem:[%s445 + $0x92] sm:$0xff]
        %v2372 = vld [vmem:[%s445 + $0x9a] sm:$0xff]
        %v2373 = vld [vmem:[%s445 + $0xaa] sm:$0xff]
        %v2374 = vld [vmem:[%s445 + $0xb2] sm:$0xff]
        %v2375 = vld [vmem:[%s445 + $0xc2] sm:$0xff]
        %v2376 = vld [vmem:[%s445 + $0xca] sm:$0xff]
        %v2377 = vld [vmem:[%s445 + $0xda] sm:$0xff]
        %v2378 = vld [vmem:[%s445 + $0xe2] sm:$0xff]
        %v2379 = vld [vmem:[%s445 + $0xf2] sm:$0xff]
        %v2380 = vld [vmem:[%s445 + $0xfa] sm:$0xff]
        %v2381 = vld [vmem:[%s445 + $0x10a] sm:$0xff]
        %v2382 = vld [vmem:[%s445 + $0x112] sm:$0xff]
        %v2383 = vld [vmem:[%s445 + $0x122] sm:$0xff]
        %v2384 = vld [vmem:[%s445 + $0x12a] sm:$0xff]
        %v2385 = vld [vmem:[%s445 + $0x13a] sm:$0xff]
        %v2386 = vld [vmem:[%s445 + $0x142] sm:$0xff]
        %v2387 = vld [vmem:[%s445 + $0x152] sm:$0xff]
        %v2388 = vld [vmem:[%s445 + $0x15a] sm:$0xff]
        %v2389 = vld [vmem:[%s445 + $0x16a] sm:$0xff]
        %v2390 = vld [vmem:[%s445 + $0x172] sm:$0xff]
        %v2391 = vld [vmem:[#allocation4] sm:$0xff]
        %v2392 = vld [vmem:[#allocation4 + $0x8] sm:$0xff]
        %v2393 = vld [vmem:[#allocation4 + $0x10] sm:$0xff]
        %v2394 = vld [vmem:[#allocation4 + $0x18] sm:$0xff]
        %v2395 = vld [vmem:[#allocation4 + $0x20] sm:$0xff]
        %v2396 = vld [vmem:[#allocation4 + $0x28] sm:$0xff]
        %v2397 = vld [vmem:[#allocation4 + $0x30] sm:$0xff]
        %v2398 = vld [vmem:[#allocation4 + $0x38] sm:$0xff]
        %v2399 = vld [vmem:[#allocation4 + $0x40] sm:$0xff]
        %v2400 = vld [vmem:[#allocation4 + $0x48] sm:$0xff]
        %v2401 = vld [vmem:[#allocation4 + $0x50] sm:$0xff]
        %v2402 = vld [vmem:[#allocation4 + $0x58] sm:$0xff]
        %v2403 = vld [vmem:[#allocation4 + $0x60] sm:$0xff]
        %v2404 = vld [vmem:[#allocation4 + $0x68] sm:$0xff]
        %v2405 = vld [vmem:[#allocation4 + $0x70] sm:$0xff]
        %v2406 = vld [vmem:[#allocation4 + $0x78] sm:$0xff]
        %v2407 = vld [vmem:[#allocation4 + $0x80] sm:$0xff]
        %v2408 = vld [vmem:[#allocation4 + $0x88] sm:$0xff]
        %v2409 = vld [vmem:[#allocation4 + $0x90] sm:$0xff]
        %v2410 = vld [vmem:[#allocation4 + $0x98] sm:$0xff]
        %v2411 = vld [vmem:[#allocation4 + $0xa0] sm:$0xff]
        %v2412 = vld [vmem:[#allocation4 + $0xa8] sm:$0xff]
        %v2413 = vld [vmem:[#allocation4 + $0xb0] sm:$0xff]
        %v2414 = vld [vmem:[#allocation4 + $0xb8] sm:$0xff]
        %v2415 = vld [vmem:[#allocation4 + $0xc0] sm:$0xff]
        %v2416 = vld [vmem:[#allocation4 + $0xc8] sm:$0xff]
        %v2417 = vld [vmem:[#allocation4 + $0xd0] sm:$0xff]
        %v2418 = vld [vmem:[#allocation4 + $0xd8] sm:$0xff]
        %v2419 = vld [vmem:[#allocation4 + $0xe0] sm:$0xff]
        %v2420 = vld [vmem:[#allocation4 + $0xe8] sm:$0xff]
        %v2421 = vld [vmem:[#allocation4 + $0xf0] sm:$0xff]
        %v2422 = vld [vmem:[#allocation4 + $0xf8] sm:$0xff]
        %v2423 = vpack.c.bf16 %v2360, %v2359
        %v2424 = vpack.c.bf16 %v2362, %v2361
        %v2425 = vpack.c.bf16 %v2364, %v2363
        %v2426 = vpack.c.bf16 %v2366, %v2365
        %v2427 = vpack.c.bf16 %v2368, %v2367
        %v2428 = vpack.c.bf16 %v2370, %v2369
        %v2429 = vpack.c.bf16 %v2372, %v2371
        %v2430 = vpack.c.bf16 %v2374, %v2373
        %v2431 = vpack.c.bf16 %v2376, %v2375
        %v2432 = vpack.c.bf16 %v2378, %v2377
        %v2433 = vpack.c.bf16 %v2380, %v2379
        %v2434 = vpack.c.bf16 %v2382, %v2381
        %v2435 = vpack.c.bf16 %v2384, %v2383
        %v2436 = vpack.c.bf16 %v2386, %v2385
        %v2437 = vpack.c.bf16 %v2388, %v2387
        %v2438 = vpack.c.bf16 %v2390, %v2389
        %s2439 = scalar_lea.vmem [#allocation8], 320
        %v2440 = vld [vmem:[%s2439] sm:$0xf]
        %v2441 = vld [vmem:[%s2439 + $0x4] sm:$0xf]
        %v2442 = vld [vmem:[%s2439 + $0x8] sm:$0xf]
        %v2443 = vld [vmem:[%s2439 + $0xc] sm:$0xf]
        %v2444 = vld [vmem:[%s2439 + $0x10] sm:$0xf]
        %v2445 = vld [vmem:[%s2439 + $0x14] sm:$0xf]
        %v2446 = vld [vmem:[%s2439 + $0x18] sm:$0xf]
        %v2447 = vld [vmem:[%s2439 + $0x1c] sm:$0xf]
        %v2448 = vld [vmem:[%s2439 + $0x20] sm:$0xf]
        %v2449 = vld [vmem:[%s2439 + $0x24] sm:$0xf]
        %v2450 = vld [vmem:[%s2439 + $0x28] sm:$0xf]
        %v2451 = vld [vmem:[%s2439 + $0x2c] sm:$0xf]
        %v2452 = vld [vmem:[%s2439 + $0x30] sm:$0xf]
        %v2453 = vld [vmem:[%s2439 + $0x34] sm:$0xf]
        %v2454 = vld [vmem:[%s2439 + $0x38] sm:$0xf]
        %v2455 = vld [vmem:[%s2439 + $0x3c] sm:$0xf]
        %v2472 = vunpack.c.l.b16 %v2440
        %v2473 = vunpack.c.l.b16 %v2441
        %v2474 = vunpack.c.l.b16 %v2442
        %v2475 = vunpack.c.l.b16 %v2443
        %v2476 = vunpack.c.l.b16 %v2444
        %v2477 = vunpack.c.l.b16 %v2445
        %v2478 = vunpack.c.l.b16 %v2446
        %v2479 = vunpack.c.l.b16 %v2447
        %v2480 = vunpack.c.l.b16 %v2448
        %v2481 = vunpack.c.l.b16 %v2449
        %v2482 = vunpack.c.l.b16 %v2450
        %v2483 = vunpack.c.l.b16 %v2451
        %v2484 = vunpack.c.l.b16 %v2452
        %v2485 = vunpack.c.l.b16 %v2453
        %v2486 = vunpack.c.l.b16 %v2454
        %v2487 = vunpack.c.l.b16 %v2455
        %v2488 = vpack.c.b16 %v2473, %v2472
        %v2489 = vpack.c.b16 %v2475, %v2474
        %v2490 = vpack.c.b16 %v2477, %v2476
        %v2491 = vpack.c.b16 %v2479, %v2478
        %v2492 = vpack.c.b16 %v2481, %v2480
        %v2493 = vpack.c.b16 %v2483, %v2482
        %v2494 = vpack.c.b16 %v2485, %v2484
        %v2495 = vpack.c.b16 %v2487, %v2486
        %2504 = vmatprep.subr.bf16.mxu0 0
        %2505 = vmatpush1.bf16.msra.mxu0 %v2488
        %2506 = vmatprep.subr.bf16.mxu0 0
        %2507 = vmatpush1.bf16.msra.mxu0 %v2489
        %2508 = vmatprep.subr.bf16.mxu0 0
        %2509 = vmatpush1.bf16.msra.mxu0 %v2490
        %2510 = vmatprep.subr.bf16.mxu0 0
        %2511 = vmatpush1.bf16.msra.mxu0 %v2491
        %2512 = vmatprep.subr.bf16.mxu0 0
        %2513 = vmatpush1.bf16.msra.mxu0 %v2492
        %2514 = vmatprep.subr.bf16.mxu0 0
        %2515 = vmatpush1.bf16.msra.mxu0 %v2493
        %2516 = vmatprep.subr.bf16.mxu0 0
        %2517 = vmatpush1.bf16.msra.mxu0 %v2494
        %2518 = vmatprep.subr.bf16.mxu0 0
        %2519 = vmatpush1.bf16.msra.mxu0 %v2495
        %2520 = vmatprep.subr.bf16.mxu0 0
        %2521 = vmatpush1.bf16.msra.mxu0 0
        %2522 = vmatprep.subr.bf16.mxu0 0
        %2523 = vmatpush1.bf16.msra.mxu0 0
        %2524 = vmatprep.subr.bf16.mxu0 0
        %2525 = vmatpush1.bf16.msra.mxu0 0
        %2526 = vmatprep.subr.bf16.mxu0 0
        %2527 = vmatpush1.bf16.msra.mxu0 0
        %2528 = vmatprep.subr.bf16.mxu0 0
        %2529 = vmatpush1.bf16.msra.mxu0 0
        %2530 = vmatprep.subr.bf16.mxu0 0
        %2531 = vmatpush1.bf16.msra.mxu0 0
        %2532 = vmatprep.subr.bf16.mxu0 0
        %2533 = vmatpush1.bf16.msra.mxu0 0
        %2534 = vmatprep.subr.bf16.mxu0 0
        %2535 = vmatpush1.bf16.msra.mxu0 0
        %2536 = vmatprep.mubr.bf16.mxu0 0
        %2537 = vmatmul.mubr.bf16.gmra.mrb[0].mxu0 %v2423
        %v2538 = vpop.f32.mrb[0].mxu0
        %v2539 = vadd.f32 0.0, %v2538
        %v2540 = vpop.f32.mrb[0].mxu0
        %v2541 = vpop.f32.mrb[0].mxu0
        %v2542 = vadd.f32 0.0, %v2541
        %v2543 = vpop.f32.mrb[0].mxu0
        %2544 = vmatprep.mubr.bf16.mxu0 0
        %2545 = vmatmul.mubr.bf16.gmra.mrb[0].mxu0 %v2424
        %v2546 = vpop.f32.mrb[0].mxu0
        %v2547 = vadd.f32 0.0, %v2546
        %v2548 = vpop.f32.mrb[0].mxu0
        %v2549 = vpop.f32.mrb[0].mxu0
        %v2550 = vadd.f32 0.0, %v2549
        %v2551 = vpop.f32.mrb[0].mxu0
        %2552 = vmatprep.mubr.bf16.mxu0 0
        %2553 = vmatmul.mubr.bf16.gmra.mrb[0].mxu0 %v2425
        %v2554 = vpop.f32.mrb[0].mxu0
        %v2555 = vadd.f32 0.0, %v2554
        %v2556 = vpop.f32.mrb[0].mxu0
        %v2557 = vpop.f32.mrb[0].mxu0
        %v2558 = vadd.f32 0.0, %v2557
        %v2559 = vpop.f32.mrb[0].mxu0
        %2560 = vmatprep.mubr.bf16.mxu0 0
        %2561 = vmatmul.mubr.bf16.gmra.mrb[0].mxu0 %v2426
        %v2562 = vpop.f32.mrb[0].mxu0
        %v2563 = vadd.f32 0.0, %v2562
        %v2564 = vpop.f32.mrb[0].mxu0
        %v2565 = vpop.f32.mrb[0].mxu0
        %v2566 = vadd.f32 0.0, %v2565
        %v2567 = vpop.f32.mrb[0].mxu0
        %2568 = vmatprep.mubr.bf16.mxu0 0
        %2569 = vmatmul.mubr.bf16.gmra.mrb[0].mxu0 %v2427
        %v2570 = vpop.f32.mrb[0].mxu0
        %v2571 = vadd.f32 0.0, %v2570
        %v2572 = vpop.f32.mrb[0].mxu0
        %v2573 = vpop.f32.mrb[0].mxu0
        %v2574 = vadd.f32 0.0, %v2573
        %v2575 = vpop.f32.mrb[0].mxu0
        %2576 = vmatprep.mubr.bf16.mxu0 0
        %2577 = vmatmul.mubr.bf16.gmra.mrb[0].mxu0 %v2428
        %v2578 = vpop.f32.mrb[0].mxu0
        %v2579 = vadd.f32 0.0, %v2578
        %v2580 = vpop.f32.mrb[0].mxu0
        %v2581 = vpop.f32.mrb[0].mxu0
        %v2582 = vadd.f32 0.0, %v2581
        %v2583 = vpop.f32.mrb[0].mxu0
        %2584 = vmatprep.mubr.bf16.mxu0 0
        %2585 = vmatmul.mubr.bf16.gmra.mrb[0].mxu0 %v2429
        %v2586 = vpop.f32.mrb[0].mxu0
        %v2587 = vadd.f32 0.0, %v2586
        %v2588 = vpop.f32.mrb[0].mxu0
        %v2589 = vpop.f32.mrb[0].mxu0
        %v2590 = vadd.f32 0.0, %v2589
        %v2591 = vpop.f32.mrb[0].mxu0
        %2592 = vmatprep.mubr.bf16.mxu0 0
        %2593 = vmatmul.mubr.bf16.gmra.mrb[0].mxu0 %v2430
        %v2594 = vpop.f32.mrb[0].mxu0
        %v2595 = vadd.f32 0.0, %v2594
        %v2596 = vpop.f32.mrb[0].mxu0
        %v2597 = vpop.f32.mrb[0].mxu0
        %v2598 = vadd.f32 0.0, %v2597
        %v2599 = vpop.f32.mrb[0].mxu0
        %2600 = vmatprep.mubr.bf16.mxu0 0
        %2601 = vmatmul.mubr.bf16.gmra.mrb[0].mxu0 %v2431
        %v2602 = vpop.f32.mrb[0].mxu0
        %v2603 = vadd.f32 0.0, %v2602
        %v2604 = vpop.f32.mrb[0].mxu0
        %v2605 = vpop.f32.mrb[0].mxu0
        %v2606 = vadd.f32 0.0, %v2605
        %v2607 = vpop.f32.mrb[0].mxu0
        %2608 = vmatprep.mubr.bf16.mxu0 0
        %2609 = vmatmul.mubr.bf16.gmra.mrb[0].mxu0 %v2432
        %v2610 = vpop.f32.mrb[0].mxu0
        %v2611 = vadd.f32 0.0, %v2610
        %v2612 = vpop.f32.mrb[0].mxu0
        %v2613 = vpop.f32.mrb[0].mxu0
        %v2614 = vadd.f32 0.0, %v2613
        %v2615 = vpop.f32.mrb[0].mxu0
        %2616 = vmatprep.mubr.bf16.mxu0 0
        %2617 = vmatmul.mubr.bf16.gmra.mrb[0].mxu0 %v2433
        %v2618 = vpop.f32.mrb[0].mxu0
        %v2619 = vadd.f32 0.0, %v2618
        %v2620 = vpop.f32.mrb[0].mxu0
        %v2621 = vpop.f32.mrb[0].mxu0
        %v2622 = vadd.f32 0.0, %v2621
        %v2623 = vpop.f32.mrb[0].mxu0
        %2624 = vmatprep.mubr.bf16.mxu0 0
        %2625 = vmatmul.mubr.bf16.gmra.mrb[0].mxu0 %v2434
        %v2626 = vpop.f32.mrb[0].mxu0
        %v2627 = vadd.f32 0.0, %v2626
        %v2628 = vpop.f32.mrb[0].mxu0
        %v2629 = vpop.f32.mrb[0].mxu0
        %v2630 = vadd.f32 0.0, %v2629
        %v2631 = vpop.f32.mrb[0].mxu0
        %2632 = vmatprep.mubr.bf16.mxu0 0
        %2633 = vmatmul.mubr.bf16.gmra.mrb[0].mxu0 %v2435
        %v2634 = vpop.f32.mrb[0].mxu0
        %v2635 = vadd.f32 0.0, %v2634
        %v2636 = vpop.f32.mrb[0].mxu0
        %v2637 = vpop.f32.mrb[0].mxu0
        %v2638 = vadd.f32 0.0, %v2637
        %v2639 = vpop.f32.mrb[0].mxu0
        %2640 = vmatprep.mubr.bf16.mxu0 0
        %2641 = vmatmul.mubr.bf16.gmra.mrb[0].mxu0 %v2436
        %v2642 = vpop.f32.mrb[0].mxu0
        %v2643 = vadd.f32 0.0, %v2642
        %v2644 = vpop.f32.mrb[0].mxu0
        %v2645 = vpop.f32.mrb[0].mxu0
        %v2646 = vadd.f32 0.0, %v2645
        %v2647 = vpop.f32.mrb[0].mxu0
        %2648 = vmatprep.mubr.bf16.mxu0 0
        %2649 = vmatmul.mubr.bf16.gmra.mrb[0].mxu0 %v2437
        %v2650 = vpop.f32.mrb[0].mxu0
        %v2651 = vadd.f32 0.0, %v2650
        %v2652 = vpop.f32.mrb[0].mxu0
        %v2653 = vpop.f32.mrb[0].mxu0
        %v2654 = vadd.f32 0.0, %v2653
        %v2655 = vpop.f32.mrb[0].mxu0
        %2656 = vmatprep.mubr.bf16.mxu0 0
        %2657 = vmatmul.mubr.bf16.gmra.mrb[0].mxu0 %v2438
        %v2658 = vpop.f32.mrb[0].mxu0
        %v2659 = vadd.f32 0.0, %v2658
        %v2660 = vpop.f32.mrb[0].mxu0
        %v2661 = vpop.f32.mrb[0].mxu0
        %v2662 = vadd.f32 0.0, %v2661
        %v2663 = vpop.f32.mrb[0].mxu0
        %2664 = vdwg.mxu0
        %v2665 = vadd.f32 %v2391, %v2539
        %v2666 = vadd.f32 %v2392, %v2542
        %v2667 = vadd.f32 %v2393, %v2547
        %v2668 = vadd.f32 %v2394, %v2550
        %v2669 = vadd.f32 %v2395, %v2555
        %v2670 = vadd.f32 %v2396, %v2558
        %v2671 = vadd.f32 %v2397, %v2563
        %v2672 = vadd.f32 %v2398, %v2566
        %v2673 = vadd.f32 %v2399, %v2571
        %v2674 = vadd.f32 %v2400, %v2574
        %v2675 = vadd.f32 %v2401, %v2579
        %v2676 = vadd.f32 %v2402, %v2582
        %v2677 = vadd.f32 %v2403, %v2587
        %v2678 = vadd.f32 %v2404, %v2590
        %v2679 = vadd.f32 %v2405, %v2595
        %v2680 = vadd.f32 %v2406, %v2598
        %v2681 = vadd.f32 %v2407, %v2603
        %v2682 = vadd.f32 %v2408, %v2606
        %v2683 = vadd.f32 %v2409, %v2611
        %v2684 = vadd.f32 %v2410, %v2614
        %v2685 = vadd.f32 %v2411, %v2619
        %v2686 = vadd.f32 %v2412, %v2622
        %v2687 = vadd.f32 %v2413, %v2627
        %v2688 = vadd.f32 %v2414, %v2630
        %v2689 = vadd.f32 %v2415, %v2635
        %v2690 = vadd.f32 %v2416, %v2638
        %v2691 = vadd.f32 %v2417, %v2643
        %v2692 = vadd.f32 %v2418, %v2646
        %v2693 = vadd.f32 %v2419, %v2651
        %v2694 = vadd.f32 %v2420, %v2654
        %v2695 = vadd.f32 %v2421, %v2659
        %v2696 = vadd.f32 %v2422, %v2662
        %2697 = vst [vmem:[#allocation4] sm:$0xff] %v2665
        %2698 = vst [vmem:[#allocation4 + $0x8] sm:$0xff] %v2666
        %2699 = vst [vmem:[#allocation4 + $0x10] sm:$0xff] %v2667
        %2700 = vst [vmem:[#allocation4 + $0x18] sm:$0xff] %v2668
        %2701 = vst [vmem:[#allocation4 + $0x20] sm:$0xff] %v2669
        %2702 = vst [vmem:[#allocation4 + $0x28] sm:$0xff] %v2670
        %2703 = vst [vmem:[#allocation4 + $0x30] sm:$0xff] %v2671
        %2704 = vst [vmem:[#allocation4 + $0x38] sm:$0xff] %v2672
        %2705 = vst [vmem:[#allocation4 + $0x40] sm:$0xff] %v2673
        %2706 = vst [vmem:[#allocation4 + $0x48] sm:$0xff] %v2674
        %2707 = vst [vmem:[#allocation4 + $0x50] sm:$0xff] %v2675
        %2708 = vst [vmem:[#allocation4 + $0x58] sm:$0xff] %v2676
        %2709 = vst [vmem:[#allocation4 + $0x60] sm:$0xff] %v2677
        %2710 = vst [vmem:[#allocation4 + $0x68] sm:$0xff] %v2678
        %2711 = vst [vmem:[#allocation4 + $0x70] sm:$0xff] %v2679
        %2712 = vst [vmem:[#allocation4 + $0x78] sm:$0xff] %v2680
        %2713 = vst [vmem:[#allocation4 + $0x80] sm:$0xff] %v2681
        %2714 = vst [vmem:[#allocation4 + $0x88] sm:$0xff] %v2682
        %2715 = vst [vmem:[#allocation4 + $0x90] sm:$0xff] %v2683
        %2716 = vst [vmem:[#allocation4 + $0x98] sm:$0xff] %v2684
        %2717 = vst [vmem:[#allocation4 + $0xa0] sm:$0xff] %v2685
        %2718 = vst [vmem:[#allocation4 + $0xa8] sm:$0xff] %v2686
        %2719 = vst [vmem:[#allocation4 + $0xb0] sm:$0xff] %v2687
        %2720 = vst [vmem:[#allocation4 + $0xb8] sm:$0xff] %v2688
        %2721 = vst [vmem:[#allocation4 + $0xc0] sm:$0xff] %v2689
        %2722 = vst [vmem:[#allocation4 + $0xc8] sm:$0xff] %v2690
        %2723 = vst [vmem:[#allocation4 + $0xd0] sm:$0xff] %v2691
        %2724 = vst [vmem:[#allocation4 + $0xd8] sm:$0xff] %v2692
        %2725 = vst [vmem:[#allocation4 + $0xe0] sm:$0xff] %v2693
        %2726 = vst [vmem:[#allocation4 + $0xe8] sm:$0xff] %v2694
        %2727 = vst [vmem:[#allocation4 + $0xf0] sm:$0xff] %v2695
        %2728 = vst [vmem:[#allocation4 + $0xf8] sm:$0xff] %v2696
        %s2729 = scalar_lea.vmem [#allocation2], 48
        %v2730 = vld [vmem:[%s2729] sm:$0xff]
        %v2731 = vld [vmem:[%s2729 + $0x8] sm:$0xff]
        %v2732 = vld [vmem:[%s2729 + $0x18] sm:$0xff]
        %v2733 = vld [vmem:[%s2729 + $0x20] sm:$0xff]
        %v2734 = vld [vmem:[%s2729 + $0x30] sm:$0xff]
        %v2735 = vld [vmem:[%s2729 + $0x38] sm:$0xff]
        %v2736 = vld [vmem:[%s2729 + $0x48] sm:$0xff]
        %v2737 = vld [vmem:[%s2729 + $0x50] sm:$0xff]
        %v2738 = vld [vmem:[%s2729 + $0x60] sm:$0xff]
        %v2739 = vld [vmem:[%s2729 + $0x68] sm:$0xff]
        %v2740 = vld [vmem:[%s2729 + $0x78] sm:$0xff]
        %v2741 = vld [vmem:[%s2729 + $0x80] sm:$0xff]
        %v2742 = vld [vmem:[%s2729 + $0x90] sm:$0xff]
        %v2743 = vld [vmem:[%s2729 + $0x98] sm:$0xff]
        %v2744 = vld [vmem:[%s2729 + $0xa8] sm:$0xff]
        %v2745 = vld [vmem:[%s2729 + $0xb0] sm:$0xff]
        %v2746 = vld [vmem:[%s2729 + $0xc0] sm:$0xff]
        %v2747 = vld [vmem:[%s2729 + $0xc8] sm:$0xff]
        %v2748 = vld [vmem:[%s2729 + $0xd8] sm:$0xff]
        %v2749 = vld [vmem:[%s2729 + $0xe0] sm:$0xff]
        %v2750 = vld [vmem:[%s2729 + $0xf0] sm:$0xff]
        %v2751 = vld [vmem:[%s2729 + $0xf8] sm:$0xff]
        %v2752 = vld [vmem:[%s2729 + $0x108] sm:$0xff]
        %v2753 = vld [vmem:[%s2729 + $0x110] sm:$0xff]
        %v2754 = vld [vmem:[%s2729 + $0x120] sm:$0xff]
        %v2755 = vld [vmem:[%s2729 + $0x128] sm:$0xff]
        %v2756 = vld [vmem:[%s2729 + $0x138] sm:$0xff]
        %v2757 = vld [vmem:[%s2729 + $0x140] sm:$0xff]
        %v2758 = vld [vmem:[%s2729 + $0x150] sm:$0xff]
        %v2759 = vld [vmem:[%s2729 + $0x158] sm:$0xff]
        %v2760 = vld [vmem:[%s2729 + $0x168] sm:$0xff]
        %v2761 = vld [vmem:[%s2729 + $0x170] sm:$0xff]
        %v2762 = vld [vmem:[#allocation4] sm:$0xff]
        %v2763 = vld [vmem:[#allocation4 + $0x8] sm:$0xff]
        %v2764 = vld [vmem:[#allocation4 + $0x10] sm:$0xff]
        %v2765 = vld [vmem:[#allocation4 + $0x18] sm:$0xff]
        %v2766 = vld [vmem:[#allocation4 + $0x20] sm:$0xff]
        %v2767 = vld [vmem:[#allocation4 + $0x28] sm:$0xff]
        %v2768 = vld [vmem:[#allocation4 + $0x30] sm:$0xff]
        %v2769 = vld [vmem:[#allocation4 + $0x38] sm:$0xff]
        %v2770 = vld [vmem:[#allocation4 + $0x40] sm:$0xff]
        %v2771 = vld [vmem:[#allocation4 + $0x48] sm:$0xff]
        %v2772 = vld [vmem:[#allocation4 + $0x50] sm:$0xff]
        %v2773 = vld [vmem:[#allocation4 + $0x58] sm:$0xff]
        %v2774 = vld [vmem:[#allocation4 + $0x60] sm:$0xff]
        %v2775 = vld [vmem:[#allocation4 + $0x68] sm:$0xff]
        %v2776 = vld [vmem:[#allocation4 + $0x70] sm:$0xff]
        %v2777 = vld [vmem:[#allocation4 + $0x78] sm:$0xff]
        %v2778 = vld [vmem:[#allocation4 + $0x80] sm:$0xff]
        %v2779 = vld [vmem:[#allocation4 + $0x88] sm:$0xff]
        %v2780 = vld [vmem:[#allocation4 + $0x90] sm:$0xff]
        %v2781 = vld [vmem:[#allocation4 + $0x98] sm:$0xff]
        %v2782 = vld [vmem:[#allocation4 + $0xa0] sm:$0xff]
        %v2783 = vld [vmem:[#allocation4 + $0xa8] sm:$0xff]
        %v2784 = vld [vmem:[#allocation4 + $0xb0] sm:$0xff]
        %v2785 = vld [vmem:[#allocation4 + $0xb8] sm:$0xff]
        %v2786 = vld [vmem:[#allocation4 + $0xc0] sm:$0xff]
        %v2787 = vld [vmem:[#allocation4 + $0xc8] sm:$0xff]
        %v2788 = vld [vmem:[#allocation4 + $0xd0] sm:$0xff]
        %v2789 = vld [vmem:[#allocation4 + $0xd8] sm:$0xff]
        %v2790 = vld [vmem:[#allocation4 + $0xe0] sm:$0xff]
        %v2791 = vld [vmem:[#allocation4 + $0xe8] sm:$0xff]
        %v2792 = vld [vmem:[#allocation4 + $0xf0] sm:$0xff]
        %v2793 = vld [vmem:[#allocation4 + $0xf8] sm:$0xff]
        %v2794 = vpack.c.bf16 %v2731, %v2730
        %v2795 = vpack.c.bf16 %v2733, %v2732
        %v2796 = vpack.c.bf16 %v2735, %v2734
        %v2797 = vpack.c.bf16 %v2737, %v2736
        %v2798 = vpack.c.bf16 %v2739, %v2738
        %v2799 = vpack.c.bf16 %v2741, %v2740
        %v2800 = vpack.c.bf16 %v2743, %v2742
        %v2801 = vpack.c.bf16 %v2745, %v2744
        %v2802 = vpack.c.bf16 %v2747, %v2746
        %v2803 = vpack.c.bf16 %v2749, %v2748
        %v2804 = vpack.c.bf16 %v2751, %v2750
        %v2805 = vpack.c.bf16 %v2753, %v2752
        %v2806 = vpack.c.bf16 %v2755, %v2754
        %v2807 = vpack.c.bf16 %v2757, %v2756
        %v2808 = vpack.c.bf16 %v2759, %v2758
        %v2809 = vpack.c.bf16 %v2761, %v2760
        %s2810 = scalar_lea.vmem [#allocation8], 384
        %v2811 = vld [vmem:[%s2810] sm:$0xf]
        %v2812 = vld [vmem:[%s2810 + $0x4] sm:$0xf]
        %v2813 = vld [vmem:[%s2810 + $0x8] sm:$0xf]
        %v2814 = vld [vmem:[%s2810 + $0xc] sm:$0xf]
        %v2815 = vld [vmem:[%s2810 + $0x10] sm:$0xf]
        %v2816 = vld [vmem:[%s2810 + $0x14] sm:$0xf]
        %v2817 = vld [vmem:[%s2810 + $0x18] sm:$0xf]
        %v2818 = vld [vmem:[%s2810 + $0x1c] sm:$0xf]
        %v2819 = vld [vmem:[%s2810 + $0x20] sm:$0xf]
        %v2820 = vld [vmem:[%s2810 + $0x24] sm:$0xf]
        %v2821 = vld [vmem:[%s2810 + $0x28] sm:$0xf]
        %v2822 = vld [vmem:[%s2810 + $0x2c] sm:$0xf]
        %v2823 = vld [vmem:[%s2810 + $0x30] sm:$0xf]
        %v2824 = vld [vmem:[%s2810 + $0x34] sm:$0xf]
        %v2825 = vld [vmem:[%s2810 + $0x38] sm:$0xf]
        %v2826 = vld [vmem:[%s2810 + $0x3c] sm:$0xf]
        %v2843 = vunpack.c.l.b16 %v2811
        %v2844 = vunpack.c.l.b16 %v2812
        %v2845 = vunpack.c.l.b16 %v2813
        %v2846 = vunpack.c.l.b16 %v2814
        %v2847 = vunpack.c.l.b16 %v2815
        %v2848 = vunpack.c.l.b16 %v2816
        %v2849 = vunpack.c.l.b16 %v2817
        %v2850 = vunpack.c.l.b16 %v2818
        %v2851 = vunpack.c.l.b16 %v2819
        %v2852 = vunpack.c.l.b16 %v2820
        %v2853 = vunpack.c.l.b16 %v2821
        %v2854 = vunpack.c.l.b16 %v2822
        %v2855 = vunpack.c.l.b16 %v2823
        %v2856 = vunpack.c.l.b16 %v2824
        %v2857 = vunpack.c.l.b16 %v2825
        %v2858 = vunpack.c.l.b16 %v2826
        %v2859 = vpack.c.b16 %v2844, %v2843
        %v2860 = vpack.c.b16 %v2846, %v2845
        %v2861 = vpack.c.b16 %v2848, %v2847
        %v2862 = vpack.c.b16 %v2850, %v2849
        %v2863 = vpack.c.b16 %v2852, %v2851
        %v2864 = vpack.c.b16 %v2854, %v2853
        %v2865 = vpack.c.b16 %v2856, %v2855
        %v2866 = vpack.c.b16 %v2858, %v2857
        %2875 = vmatprep.subr.bf16.mxu0 0
        %2876 = vmatpush1.bf16.msra.mxu0 %v2859
        %2877 = vmatprep.subr.bf16.mxu0 0
        %2878 = vmatpush1.bf16.msra.mxu0 %v2860
        %2879 = vmatprep.subr.bf16.mxu0 0
        %2880 = vmatpush1.bf16.msra.mxu0 %v2861
        %2881 = vmatprep.subr.bf16.mxu0 0
        %2882 = vmatpush1.bf16.msra.mxu0 %v2862
        %2883 = vmatprep.subr.bf16.mxu0 0
        %2884 = vmatpush1.bf16.msra.mxu0 %v2863
        %2885 = vmatprep.subr.bf16.mxu0 0
        %2886 = vmatpush1.bf16.msra.mxu0 %v2864
        %2887 = vmatprep.subr.bf16.mxu0 0
        %2888 = vmatpush1.bf16.msra.mxu0 %v2865
        %2889 = vmatprep.subr.bf16.mxu0 0
        %2890 = vmatpush1.bf16.msra.mxu0 %v2866
        %2891 = vmatprep.subr.bf16.mxu0 0
        %2892 = vmatpush1.bf16.msra.mxu0 0
        %2893 = vmatprep.subr.bf16.mxu0 0
        %2894 = vmatpush1.bf16.msra.mxu0 0
        %2895 = vmatprep.subr.bf16.mxu0 0
        %2896 = vmatpush1.bf16.msra.mxu0 0
        %2897 = vmatprep.subr.bf16.mxu0 0
        %2898 = vmatpush1.bf16.msra.mxu0 0
        %2899 = vmatprep.subr.bf16.mxu0 0
        %2900 = vmatpush1.bf16.msra.mxu0 0
        %2901 = vmatprep.subr.bf16.mxu0 0
        %2902 = vmatpush1.bf16.msra.mxu0 0
        %2903 = vmatprep.subr.bf16.mxu0 0
        %2904 = vmatpush1.bf16.msra.mxu0 0
        %2905 = vmatprep.subr.bf16.mxu0 0
        %2906 = vmatpush1.bf16.msra.mxu0 0
        %2907 = vmatprep.mubr.bf16.mxu0 0
        %2908 = vmatmul.mubr.bf16.gmra.mrb[0].mxu0 %v2794
        %v2909 = vpop.f32.mrb[0].mxu0
        %v2910 = vadd.f32 0.0, %v2909
        %v2911 = vpop.f32.mrb[0].mxu0
        %v2912 = vpop.f32.mrb[0].mxu0
        %v2913 = vadd.f32 0.0, %v2912
        %v2914 = vpop.f32.mrb[0].mxu0
        %2915 = vmatprep.mubr.bf16.mxu0 0
        %2916 = vmatmul.mubr.bf16.gmra.mrb[0].mxu0 %v2795
        %v2917 = vpop.f32.mrb[0].mxu0
        %v2918 = vadd.f32 0.0, %v2917
        %v2919 = vpop.f32.mrb[0].mxu0
        %v2920 = vpop.f32.mrb[0].mxu0
        %v2921 = vadd.f32 0.0, %v2920
        %v2922 = vpop.f32.mrb[0].mxu0
        %2923 = vmatprep.mubr.bf16.mxu0 0
        %2924 = vmatmul.mubr.bf16.gmra.mrb[0].mxu0 %v2796
        %v2925 = vpop.f32.mrb[0].mxu0
        %v2926 = vadd.f32 0.0, %v2925
        %v2927 = vpop.f32.mrb[0].mxu0
        %v2928 = vpop.f32.mrb[0].mxu0
        %v2929 = vadd.f32 0.0, %v2928
        %v2930 = vpop.f32.mrb[0].mxu0
        %2931 = vmatprep.mubr.bf16.mxu0 0
        %2932 = vmatmul.mubr.bf16.gmra.mrb[0].mxu0 %v2797
        %v2933 = vpop.f32.mrb[0].mxu0
        %v2934 = vadd.f32 0.0, %v2933
        %v2935 = vpop.f32.mrb[0].mxu0
        %v2936 = vpop.f32.mrb[0].mxu0
        %v2937 = vadd.f32 0.0, %v2936
        %v2938 = vpop.f32.mrb[0].mxu0
        %2939 = vmatprep.mubr.bf16.mxu0 0
        %2940 = vmatmul.mubr.bf16.gmra.mrb[0].mxu0 %v2798
        %v2941 = vpop.f32.mrb[0].mxu0
        %v2942 = vadd.f32 0.0, %v2941
        %v2943 = vpop.f32.mrb[0].mxu0
        %v2944 = vpop.f32.mrb[0].mxu0
        %v2945 = vadd.f32 0.0, %v2944
        %v2946 = vpop.f32.mrb[0].mxu0
        %2947 = vmatprep.mubr.bf16.mxu0 0
        %2948 = vmatmul.mubr.bf16.gmra.mrb[0].mxu0 %v2799
        %v2949 = vpop.f32.mrb[0].mxu0
        %v2950 = vadd.f32 0.0, %v2949
        %v2951 = vpop.f32.mrb[0].mxu0
        %v2952 = vpop.f32.mrb[0].mxu0
        %v2953 = vadd.f32 0.0, %v2952
        %v2954 = vpop.f32.mrb[0].mxu0
        %2955 = vmatprep.mubr.bf16.mxu0 0
        %2956 = vmatmul.mubr.bf16.gmra.mrb[0].mxu0 %v2800
        %v2957 = vpop.f32.mrb[0].mxu0
        %v2958 = vadd.f32 0.0, %v2957
        %v2959 = vpop.f32.mrb[0].mxu0
        %v2960 = vpop.f32.mrb[0].mxu0
        %v2961 = vadd.f32 0.0, %v2960
        %v2962 = vpop.f32.mrb[0].mxu0
        %2963 = vmatprep.mubr.bf16.mxu0 0
        %2964 = vmatmul.mubr.bf16.gmra.mrb[0].mxu0 %v2801
        %v2965 = vpop.f32.mrb[0].mxu0
        %v2966 = vadd.f32 0.0, %v2965
        %v2967 = vpop.f32.mrb[0].mxu0
        %v2968 = vpop.f32.mrb[0].mxu0
        %v2969 = vadd.f32 0.0, %v2968
        %v2970 = vpop.f32.mrb[0].mxu0
        %2971 = vmatprep.mubr.bf16.mxu0 0
        %2972 = vmatmul.mubr.bf16.gmra.mrb[0].mxu0 %v2802
        %v2973 = vpop.f32.mrb[0].mxu0
        %v2974 = vadd.f32 0.0, %v2973
        %v2975 = vpop.f32.mrb[0].mxu0
        %v2976 = vpop.f32.mrb[0].mxu0
        %v2977 = vadd.f32 0.0, %v2976
        %v2978 = vpop.f32.mrb[0].mxu0
        %2979 = vmatprep.mubr.bf16.mxu0 0
        %2980 = vmatmul.mubr.bf16.gmra.mrb[0].mxu0 %v2803
        %v2981 = vpop.f32.mrb[0].mxu0
        %v2982 = vadd.f32 0.0, %v2981
        %v2983 = vpop.f32.mrb[0].mxu0
        %v2984 = vpop.f32.mrb[0].mxu0
        %v2985 = vadd.f32 0.0, %v2984
        %v2986 = vpop.f32.mrb[0].mxu0
        %2987 = vmatprep.mubr.bf16.mxu0 0
        %2988 = vmatmul.mubr.bf16.gmra.mrb[0].mxu0 %v2804
        %v2989 = vpop.f32.mrb[0].mxu0
        %v2990 = vadd.f32 0.0, %v2989
        %v2991 = vpop.f32.mrb[0].mxu0
        %v2992 = vpop.f32.mrb[0].mxu0
        %v2993 = vadd.f32 0.0, %v2992
        %v2994 = vpop.f32.mrb[0].mxu0
        %2995 = vmatprep.mubr.bf16.mxu0 0
        %2996 = vmatmul.mubr.bf16.gmra.mrb[0].mxu0 %v2805
        %v2997 = vpop.f32.mrb[0].mxu0
        %v2998 = vadd.f32 0.0, %v2997
        %v2999 = vpop.f32.mrb[0].mxu0
        %v3000 = vpop.f32.mrb[0].mxu0
        %v3001 = vadd.f32 0.0, %v3000
        %v3002 = vpop.f32.mrb[0].mxu0
        %3003 = vmatprep.mubr.bf16.mxu0 0
        %3004 = vmatmul.mubr.bf16.gmra.mrb[0].mxu0 %v2806
        %v3005 = vpop.f32.mrb[0].mxu0
        %v3006 = vadd.f32 0.0, %v3005
        %v3007 = vpop.f32.mrb[0].mxu0
        %v3008 = vpop.f32.mrb[0].mxu0
        %v3009 = vadd.f32 0.0, %v3008
        %v3010 = vpop.f32.mrb[0].mxu0
        %3011 = vmatprep.mubr.bf16.mxu0 0
        %3012 = vmatmul.mubr.bf16.gmra.mrb[0].mxu0 %v2807
        %v3013 = vpop.f32.mrb[0].mxu0
        %v3014 = vadd.f32 0.0, %v3013
        %v3015 = vpop.f32.mrb[0].mxu0
        %v3016 = vpop.f32.mrb[0].mxu0
        %v3017 = vadd.f32 0.0, %v3016
        %v3018 = vpop.f32.mrb[0].mxu0
        %3019 = vmatprep.mubr.bf16.mxu0 0
        %3020 = vmatmul.mubr.bf16.gmra.mrb[0].mxu0 %v2808
        %v3021 = vpop.f32.mrb[0].mxu0
        %v3022 = vadd.f32 0.0, %v3021
        %v3023 = vpop.f32.mrb[0].mxu0
        %v3024 = vpop.f32.mrb[0].mxu0
        %v3025 = vadd.f32 0.0, %v3024
        %v3026 = vpop.f32.mrb[0].mxu0
        %3027 = vmatprep.mubr.bf16.mxu0 0
        %3028 = vmatmul.mubr.bf16.gmra.mrb[0].mxu0 %v2809
        %v3029 = vpop.f32.mrb[0].mxu0
        %v3030 = vadd.f32 0.0, %v3029
        %v3031 = vpop.f32.mrb[0].mxu0
        %v3032 = vpop.f32.mrb[0].mxu0
        %v3033 = vadd.f32 0.0, %v3032
        %v3034 = vpop.f32.mrb[0].mxu0
        %3035 = vdwg.mxu0
        %v3036 = vadd.f32 %v2762, %v2910
        %v3037 = vadd.f32 %v2763, %v2913
        %v3038 = vadd.f32 %v2764, %v2918
        %v3039 = vadd.f32 %v2765, %v2921
        %v3040 = vadd.f32 %v2766, %v2926
        %v3041 = vadd.f32 %v2767, %v2929
        %v3042 = vadd.f32 %v2768, %v2934
        %v3043 = vadd.f32 %v2769, %v2937
        %v3044 = vadd.f32 %v2770, %v2942
        %v3045 = vadd.f32 %v2771, %v2945
        %v3046 = vadd.f32 %v2772, %v2950
        %v3047 = vadd.f32 %v2773, %v2953
        %v3048 = vadd.f32 %v2774, %v2958
        %v3049 = vadd.f32 %v2775, %v2961
        %v3050 = vadd.f32 %v2776, %v2966
        %v3051 = vadd.f32 %v2777, %v2969
        %v3052 = vadd.f32 %v2778, %v2974
        %v3053 = vadd.f32 %v2779, %v2977
        %v3054 = vadd.f32 %v2780, %v2982
        %v3055 = vadd.f32 %v2781, %v2985
        %v3056 = vadd.f32 %v2782, %v2990
        %v3057 = vadd.f32 %v2783, %v2993
        %v3058 = vadd.f32 %v2784, %v2998
        %v3059 = vadd.f32 %v2785, %v3001
        %v3060 = vadd.f32 %v2786, %v3006
        %v3061 = vadd.f32 %v2787, %v3009
        %v3062 = vadd.f32 %v2788, %v3014
        %v3063 = vadd.f32 %v2789, %v3017
        %v3064 = vadd.f32 %v2790, %v3022
        %v3065 = vadd.f32 %v2791, %v3025
        %v3066 = vadd.f32 %v2792, %v3030
        %v3067 = vadd.f32 %v2793, %v3033
        %3068 = vst [vmem:[#allocation4] sm:$0xff] %v3036
        %3069 = vst [vmem:[#allocation4 + $0x8] sm:$0xff] %v3037
        %3070 = vst [vmem:[#allocation4 + $0x10] sm:$0xff] %v3038
        %3071 = vst [vmem:[#allocation4 + $0x18] sm:$0xff] %v3039
        %3072 = vst [vmem:[#allocation4 + $0x20] sm:$0xff] %v3040
        %3073 = vst [vmem:[#allocation4 + $0x28] sm:$0xff] %v3041
        %3074 = vst [vmem:[#allocation4 + $0x30] sm:$0xff] %v3042
        %3075 = vst [vmem:[#allocation4 + $0x38] sm:$0xff] %v3043
        %3076 = vst [vmem:[#allocation4 + $0x40] sm:$0xff] %v3044
        %3077 = vst [vmem:[#allocation4 + $0x48] sm:$0xff] %v3045
        %3078 = vst [vmem:[#allocation4 + $0x50] sm:$0xff] %v3046
        %3079 = vst [vmem:[#allocation4 + $0x58] sm:$0xff] %v3047
        %3080 = vst [vmem:[#allocation4 + $0x60] sm:$0xff] %v3048
        %3081 = vst [vmem:[#allocation4 + $0x68] sm:$0xff] %v3049
        %3082 = vst [vmem:[#allocation4 + $0x70] sm:$0xff] %v3050
        %3083 = vst [vmem:[#allocation4 + $0x78] sm:$0xff] %v3051
        %3084 = vst [vmem:[#allocation4 + $0x80] sm:$0xff] %v3052
        %3085 = vst [vmem:[#allocation4 + $0x88] sm:$0xff] %v3053
        %3086 = vst [vmem:[#allocation4 + $0x90] sm:$0xff] %v3054
        %3087 = vst [vmem:[#allocation4 + $0x98] sm:$0xff] %v3055
        %3088 = vst [vmem:[#allocation4 + $0xa0] sm:$0xff] %v3056
        %3089 = vst [vmem:[#allocation4 + $0xa8] sm:$0xff] %v3057
        %3090 = vst [vmem:[#allocation4 + $0xb0] sm:$0xff] %v3058
        %3091 = vst [vmem:[#allocation4 + $0xb8] sm:$0xff] %v3059
        %3092 = vst [vmem:[#allocation4 + $0xc0] sm:$0xff] %v3060
        %3093 = vst [vmem:[#allocation4 + $0xc8] sm:$0xff] %v3061
        %3094 = vst [vmem:[#allocation4 + $0xd0] sm:$0xff] %v3062
        %3095 = vst [vmem:[#allocation4 + $0xd8] sm:$0xff] %v3063
        %3096 = vst [vmem:[#allocation4 + $0xe0] sm:$0xff] %v3064
        %3097 = vst [vmem:[#allocation4 + $0xe8] sm:$0xff] %v3065
        %3098 = vst [vmem:[#allocation4 + $0xf0] sm:$0xff] %v3066
        %3099 = vst [vmem:[#allocation4 + $0xf8] sm:$0xff] %v3067
        %v3100 = vld [vmem:[%s2729 + $0x1] sm:$0xff]
        %v3101 = vld [vmem:[%s2729 + $0x9] sm:$0xff]
        %v3102 = vld [vmem:[%s2729 + $0x19] sm:$0xff]
        %v3103 = vld [vmem:[%s2729 + $0x21] sm:$0xff]
        %v3104 = vld [vmem:[%s2729 + $0x31] sm:$0xff]
        %v3105 = vld [vmem:[%s2729 + $0x39] sm:$0xff]
        %v3106 = vld [vmem:[%s2729 + $0x49] sm:$0xff]
        %v3107 = vld [vmem:[%s2729 + $0x51] sm:$0xff]
        %v3108 = vld [vmem:[%s2729 + $0x61] sm:$0xff]
        %v3109 = vld [vmem:[%s2729 + $0x69] sm:$0xff]
        %v3110 = vld [vmem:[%s2729 + $0x79] sm:$0xff]
        %v3111 = vld [vmem:[%s2729 + $0x81] sm:$0xff]
        %v3112 = vld [vmem:[%s2729 + $0x91] sm:$0xff]
        %v3113 = vld [vmem:[%s2729 + $0x99] sm:$0xff]
        %v3114 = vld [vmem:[%s2729 + $0xa9] sm:$0xff]
        %v3115 = vld [vmem:[%s2729 + $0xb1] sm:$0xff]
        %v3116 = vld [vmem:[%s2729 + $0xc1] sm:$0xff]
        %v3117 = vld [vmem:[%s2729 + $0xc9] sm:$0xff]
        %v3118 = vld [vmem:[%s2729 + $0xd9] sm:$0xff]
        %v3119 = vld [vmem:[%s2729 + $0xe1] sm:$0xff]
        %v3120 = vld [vmem:[%s2729 + $0xf1] sm:$0xff]
        %v3121 = vld [vmem:[%s2729 + $0xf9] sm:$0xff]
        %v3122 = vld [vmem:[%s2729 + $0x109] sm:$0xff]
        %v3123 = vld [vmem:[%s2729 + $0x111] sm:$0xff]
        %v3124 = vld [vmem:[%s2729 + $0x121] sm:$0xff]
        %v3125 = vld [vmem:[%s2729 + $0x129] sm:$0xff]
        %v3126 = vld [vmem:[%s2729 + $0x139] sm:$0xff]
        %v3127 = vld [vmem:[%s2729 + $0x141] sm:$0xff]
        %v3128 = vld [vmem:[%s2729 + $0x151] sm:$0xff]
        %v3129 = vld [vmem:[%s2729 + $0x159] sm:$0xff]
        %v3130 = vld [vmem:[%s2729 + $0x169] sm:$0xff]
        %v3131 = vld [vmem:[%s2729 + $0x171] sm:$0xff]
        %v3132 = vld [vmem:[#allocation4] sm:$0xff]
        %v3133 = vld [vmem:[#allocation4 + $0x8] sm:$0xff]
        %v3134 = vld [vmem:[#allocation4 + $0x10] sm:$0xff]
        %v3135 = vld [vmem:[#allocation4 + $0x18] sm:$0xff]
        %v3136 = vld [vmem:[#allocation4 + $0x20] sm:$0xff]
        %v3137 = vld [vmem:[#allocation4 + $0x28] sm:$0xff]
        %v3138 = vld [vmem:[#allocation4 + $0x30] sm:$0xff]
        %v3139 = vld [vmem:[#allocation4 + $0x38] sm:$0xff]
        %v3140 = vld [vmem:[#allocation4 + $0x40] sm:$0xff]
        %v3141 = vld [vmem:[#allocation4 + $0x48] sm:$0xff]
        %v3142 = vld [vmem:[#allocation4 + $0x50] sm:$0xff]
        %v3143 = vld [vmem:[#allocation4 + $0x58] sm:$0xff]
        %v3144 = vld [vmem:[#allocation4 + $0x60] sm:$0xff]
        %v3145 = vld [vmem:[#allocation4 + $0x68] sm:$0xff]
        %v3146 = vld [vmem:[#allocation4 + $0x70] sm:$0xff]
        %v3147 = vld [vmem:[#allocation4 + $0x78] sm:$0xff]
        %v3148 = vld [vmem:[#allocation4 + $0x80] sm:$0xff]
        %v3149 = vld [vmem:[#allocation4 + $0x88] sm:$0xff]
        %v3150 = vld [vmem:[#allocation4 + $0x90] sm:$0xff]
        %v3151 = vld [vmem:[#allocation4 + $0x98] sm:$0xff]
        %v3152 = vld [vmem:[#allocation4 + $0xa0] sm:$0xff]
        %v3153 = vld [vmem:[#allocation4 + $0xa8] sm:$0xff]
        %v3154 = vld [vmem:[#allocation4 + $0xb0] sm:$0xff]
        %v3155 = vld [vmem:[#allocation4 + $0xb8] sm:$0xff]
        %v3156 = vld [vmem:[#allocation4 + $0xc0] sm:$0xff]
        %v3157 = vld [vmem:[#allocation4 + $0xc8] sm:$0xff]
        %v3158 = vld [vmem:[#allocation4 + $0xd0] sm:$0xff]
        %v3159 = vld [vmem:[#allocation4 + $0xd8] sm:$0xff]
        %v3160 = vld [vmem:[#allocation4 + $0xe0] sm:$0xff]
        %v3161 = vld [vmem:[#allocation4 + $0xe8] sm:$0xff]
        %v3162 = vld [vmem:[#allocation4 + $0xf0] sm:$0xff]
        %v3163 = vld [vmem:[#allocation4 + $0xf8] sm:$0xff]
        %v3164 = vpack.c.bf16 %v3101, %v3100
        %v3165 = vpack.c.bf16 %v3103, %v3102
        %v3166 = vpack.c.bf16 %v3105, %v3104
        %v3167 = vpack.c.bf16 %v3107, %v3106
        %v3168 = vpack.c.bf16 %v3109, %v3108
        %v3169 = vpack.c.bf16 %v3111, %v3110
        %v3170 = vpack.c.bf16 %v3113, %v3112
        %v3171 = vpack.c.bf16 %v3115, %v3114
        %v3172 = vpack.c.bf16 %v3117, %v3116
        %v3173 = vpack.c.bf16 %v3119, %v3118
        %v3174 = vpack.c.bf16 %v3121, %v3120
        %v3175 = vpack.c.bf16 %v3123, %v3122
        %v3176 = vpack.c.bf16 %v3125, %v3124
        %v3177 = vpack.c.bf16 %v3127, %v3126
        %v3178 = vpack.c.bf16 %v3129, %v3128
        %v3179 = vpack.c.bf16 %v3131, %v3130
        %s3180 = scalar_lea.vmem [#allocation8], 448
        %v3181 = vld [vmem:[%s3180] sm:$0xf]
        %v3182 = vld [vmem:[%s3180 + $0x4] sm:$0xf]
        %v3183 = vld [vmem:[%s3180 + $0x8] sm:$0xf]
        %v3184 = vld [vmem:[%s3180 + $0xc] sm:$0xf]
        %v3185 = vld [vmem:[%s3180 + $0x10] sm:$0xf]
        %v3186 = vld [vmem:[%s3180 + $0x14] sm:$0xf]
        %v3187 = vld [vmem:[%s3180 + $0x18] sm:$0xf]
        %v3188 = vld [vmem:[%s3180 + $0x1c] sm:$0xf]
        %v3189 = vld [vmem:[%s3180 + $0x20] sm:$0xf]
        %v3190 = vld [vmem:[%s3180 + $0x24] sm:$0xf]
        %v3191 = vld [vmem:[%s3180 + $0x28] sm:$0xf]
        %v3192 = vld [vmem:[%s3180 + $0x2c] sm:$0xf]
        %v3193 = vld [vmem:[%s3180 + $0x30] sm:$0xf]
        %v3194 = vld [vmem:[%s3180 + $0x34] sm:$0xf]
        %v3195 = vld [vmem:[%s3180 + $0x38] sm:$0xf]
        %v3196 = vld [vmem:[%s3180 + $0x3c] sm:$0xf]
        %v3213 = vunpack.c.l.b16 %v3181
        %v3214 = vunpack.c.l.b16 %v3182
        %v3215 = vunpack.c.l.b16 %v3183
        %v3216 = vunpack.c.l.b16 %v3184
        %v3217 = vunpack.c.l.b16 %v3185
        %v3218 = vunpack.c.l.b16 %v3186
        %v3219 = vunpack.c.l.b16 %v3187
        %v3220 = vunpack.c.l.b16 %v3188
        %v3221 = vunpack.c.l.b16 %v3189
        %v3222 = vunpack.c.l.b16 %v3190
        %v3223 = vunpack.c.l.b16 %v3191
        %v3224 = vunpack.c.l.b16 %v3192
        %v3225 = vunpack.c.l.b16 %v3193
        %v3226 = vunpack.c.l.b16 %v3194
        %v3227 = vunpack.c.l.b16 %v3195
        %v3228 = vunpack.c.l.b16 %v3196
        %v3229 = vpack.c.b16 %v3214, %v3213
        %v3230 = vpack.c.b16 %v3216, %v3215
        %v3231 = vpack.c.b16 %v3218, %v3217
        %v3232 = vpack.c.b16 %v3220, %v3219
        %v3233 = vpack.c.b16 %v3222, %v3221
        %v3234 = vpack.c.b16 %v3224, %v3223
        %v3235 = vpack.c.b16 %v3226, %v3225
        %v3236 = vpack.c.b16 %v3228, %v3227
        %3245 = vmatprep.subr.bf16.mxu0 0
        %3246 = vmatpush1.bf16.msra.mxu0 %v3229
        %3247 = vmatprep.subr.bf16.mxu0 0
        %3248 = vmatpush1.bf16.msra.mxu0 %v3230
        %3249 = vmatprep.subr.bf16.mxu0 0
        %3250 = vmatpush1.bf16.msra.mxu0 %v3231
        %3251 = vmatprep.subr.bf16.mxu0 0
        %3252 = vmatpush1.bf16.msra.mxu0 %v3232
        %3253 = vmatprep.subr.bf16.mxu0 0
        %3254 = vmatpush1.bf16.msra.mxu0 %v3233
        %3255 = vmatprep.subr.bf16.mxu0 0
        %3256 = vmatpush1.bf16.msra.mxu0 %v3234
        %3257 = vmatprep.subr.bf16.mxu0 0
        %3258 = vmatpush1.bf16.msra.mxu0 %v3235
        %3259 = vmatprep.subr.bf16.mxu0 0
        %3260 = vmatpush1.bf16.msra.mxu0 %v3236
        %3261 = vmatprep.subr.bf16.mxu0 0
        %3262 = vmatpush1.bf16.msra.mxu0 0
        %3263 = vmatprep.subr.bf16.mxu0 0
        %3264 = vmatpush1.bf16.msra.mxu0 0
        %3265 = vmatprep.subr.bf16.mxu0 0
        %3266 = vmatpush1.bf16.msra.mxu0 0
        %3267 = vmatprep.subr.bf16.mxu0 0
        %3268 = vmatpush1.bf16.msra.mxu0 0
        %3269 = vmatprep.subr.bf16.mxu0 0
        %3270 = vmatpush1.bf16.msra.mxu0 0
        %3271 = vmatprep.subr.bf16.mxu0 0
        %3272 = vmatpush1.bf16.msra.mxu0 0
        %3273 = vmatprep.subr.bf16.mxu0 0
        %3274 = vmatpush1.bf16.msra.mxu0 0
        %3275 = vmatprep.subr.bf16.mxu0 0
        %3276 = vmatpush1.bf16.msra.mxu0 0
        %3277 = vmatprep.mubr.bf16.mxu0 0
        %3278 = vmatmul.mubr.bf16.gmra.mrb[0].mxu0 %v3164
        %v3279 = vpop.f32.mrb[0].mxu0
        %v3280 = vadd.f32 0.0, %v3279
        %v3281 = vpop.f32.mrb[0].mxu0
        %v3282 = vpop.f32.mrb[0].mxu0
        %v3283 = vadd.f32 0.0, %v3282
        %v3284 = vpop.f32.mrb[0].mxu0
        %3285 = vmatprep.mubr.bf16.mxu0 0
        %3286 = vmatmul.mubr.bf16.gmra.mrb[0].mxu0 %v3165
        %v3287 = vpop.f32.mrb[0].mxu0
        %v3288 = vadd.f32 0.0, %v3287
        %v3289 = vpop.f32.mrb[0].mxu0
        %v3290 = vpop.f32.mrb[0].mxu0
        %v3291 = vadd.f32 0.0, %v3290
        %v3292 = vpop.f32.mrb[0].mxu0
        %3293 = vmatprep.mubr.bf16.mxu0 0
        %3294 = vmatmul.mubr.bf16.gmra.mrb[0].mxu0 %v3166
        %v3295 = vpop.f32.mrb[0].mxu0
        %v3296 = vadd.f32 0.0, %v3295
        %v3297 = vpop.f32.mrb[0].mxu0
        %v3298 = vpop.f32.mrb[0].mxu0
        %v3299 = vadd.f32 0.0, %v3298
        %v3300 = vpop.f32.mrb[0].mxu0
        %3301 = vmatprep.mubr.bf16.mxu0 0
        %3302 = vmatmul.mubr.bf16.gmra.mrb[0].mxu0 %v3167
        %v3303 = vpop.f32.mrb[0].mxu0
        %v3304 = vadd.f32 0.0, %v3303
        %v3305 = vpop.f32.mrb[0].mxu0
        %v3306 = vpop.f32.mrb[0].mxu0
        %v3307 = vadd.f32 0.0, %v3306
        %v3308 = vpop.f32.mrb[0].mxu0
        %3309 = vmatprep.mubr.bf16.mxu0 0
        %3310 = vmatmul.mubr.bf16.gmra.mrb[0].mxu0 %v3168
        %v3311 = vpop.f32.mrb[0].mxu0
        %v3312 = vadd.f32 0.0, %v3311
        %v3313 = vpop.f32.mrb[0].mxu0
        %v3314 = vpop.f32.mrb[0].mxu0
        %v3315 = vadd.f32 0.0, %v3314
        %v3316 = vpop.f32.mrb[0].mxu0
        %3317 = vmatprep.mubr.bf16.mxu0 0
        %3318 = vmatmul.mubr.bf16.gmra.mrb[0].mxu0 %v3169
        %v3319 = vpop.f32.mrb[0].mxu0
        %v3320 = vadd.f32 0.0, %v3319
        %v3321 = vpop.f32.mrb[0].mxu0
        %v3322 = vpop.f32.mrb[0].mxu0
        %v3323 = vadd.f32 0.0, %v3322
        %v3324 = vpop.f32.mrb[0].mxu0
        %3325 = vmatprep.mubr.bf16.mxu0 0
        %3326 = vmatmul.mubr.bf16.gmra.mrb[0].mxu0 %v3170
        %v3327 = vpop.f32.mrb[0].mxu0
        %v3328 = vadd.f32 0.0, %v3327
        %v3329 = vpop.f32.mrb[0].mxu0
        %v3330 = vpop.f32.mrb[0].mxu0
        %v3331 = vadd.f32 0.0, %v3330
        %v3332 = vpop.f32.mrb[0].mxu0
        %3333 = vmatprep.mubr.bf16.mxu0 0
        %3334 = vmatmul.mubr.bf16.gmra.mrb[0].mxu0 %v3171
        %v3335 = vpop.f32.mrb[0].mxu0
        %v3336 = vadd.f32 0.0, %v3335
        %v3337 = vpop.f32.mrb[0].mxu0
        %v3338 = vpop.f32.mrb[0].mxu0
        %v3339 = vadd.f32 0.0, %v3338
        %v3340 = vpop.f32.mrb[0].mxu0
        %3341 = vmatprep.mubr.bf16.mxu0 0
        %3342 = vmatmul.mubr.bf16.gmra.mrb[0].mxu0 %v3172
        %v3343 = vpop.f32.mrb[0].mxu0
        %v3344 = vadd.f32 0.0, %v3343
        %v3345 = vpop.f32.mrb[0].mxu0
        %v3346 = vpop.f32.mrb[0].mxu0
        %v3347 = vadd.f32 0.0, %v3346
        %v3348 = vpop.f32.mrb[0].mxu0
        %3349 = vmatprep.mubr.bf16.mxu0 0
        %3350 = vmatmul.mubr.bf16.gmra.mrb[0].mxu0 %v3173
        %v3351 = vpop.f32.mrb[0].mxu0
        %v3352 = vadd.f32 0.0, %v3351
        %v3353 = vpop.f32.mrb[0].mxu0
        %v3354 = vpop.f32.mrb[0].mxu0
        %v3355 = vadd.f32 0.0, %v3354
        %v3356 = vpop.f32.mrb[0].mxu0
        %3357 = vmatprep.mubr.bf16.mxu0 0
        %3358 = vmatmul.mubr.bf16.gmra.mrb[0].mxu0 %v3174
        %v3359 = vpop.f32.mrb[0].mxu0
        %v3360 = vadd.f32 0.0, %v3359
        %v3361 = vpop.f32.mrb[0].mxu0
        %v3362 = vpop.f32.mrb[0].mxu0
        %v3363 = vadd.f32 0.0, %v3362
        %v3364 = vpop.f32.mrb[0].mxu0
        %3365 = vmatprep.mubr.bf16.mxu0 0
        %3366 = vmatmul.mubr.bf16.gmra.mrb[0].mxu0 %v3175
        %v3367 = vpop.f32.mrb[0].mxu0
        %v3368 = vadd.f32 0.0, %v3367
        %v3369 = vpop.f32.mrb[0].mxu0
        %v3370 = vpop.f32.mrb[0].mxu0
        %v3371 = vadd.f32 0.0, %v3370
        %v3372 = vpop.f32.mrb[0].mxu0
        %3373 = vmatprep.mubr.bf16.mxu0 0
        %3374 = vmatmul.mubr.bf16.gmra.mrb[0].mxu0 %v3176
        %v3375 = vpop.f32.mrb[0].mxu0
        %v3376 = vadd.f32 0.0, %v3375
        %v3377 = vpop.f32.mrb[0].mxu0
        %v3378 = vpop.f32.mrb[0].mxu0
        %v3379 = vadd.f32 0.0, %v3378
        %v3380 = vpop.f32.mrb[0].mxu0
        %3381 = vmatprep.mubr.bf16.mxu0 0
        %3382 = vmatmul.mubr.bf16.gmra.mrb[0].mxu0 %v3177
        %v3383 = vpop.f32.mrb[0].mxu0
        %v3384 = vadd.f32 0.0, %v3383
        %v3385 = vpop.f32.mrb[0].mxu0
        %v3386 = vpop.f32.mrb[0].mxu0
        %v3387 = vadd.f32 0.0, %v3386
        %v3388 = vpop.f32.mrb[0].mxu0
        %3389 = vmatprep.mubr.bf16.mxu0 0
        %3390 = vmatmul.mubr.bf16.gmra.mrb[0].mxu0 %v3178
        %v3391 = vpop.f32.mrb[0].mxu0
        %v3392 = vadd.f32 0.0, %v3391
        %v3393 = vpop.f32.mrb[0].mxu0
        %v3394 = vpop.f32.mrb[0].mxu0
        %v3395 = vadd.f32 0.0, %v3394
        %v3396 = vpop.f32.mrb[0].mxu0
        %3397 = vmatprep.mubr.bf16.mxu0 0
        %3398 = vmatmul.mubr.bf16.gmra.mrb[0].mxu0 %v3179
        %v3399 = vpop.f32.mrb[0].mxu0
        %v3400 = vadd.f32 0.0, %v3399
        %v3401 = vpop.f32.mrb[0].mxu0
        %v3402 = vpop.f32.mrb[0].mxu0
        %v3403 = vadd.f32 0.0, %v3402
        %v3404 = vpop.f32.mrb[0].mxu0
        %3405 = vdwg.mxu0
        %v3406 = vadd.f32 %v3132, %v3280
        %v3407 = vadd.f32 %v3133, %v3283
        %v3408 = vadd.f32 %v3134, %v3288
        %v3409 = vadd.f32 %v3135, %v3291
        %v3410 = vadd.f32 %v3136, %v3296
        %v3411 = vadd.f32 %v3137, %v3299
        %v3412 = vadd.f32 %v3138, %v3304
        %v3413 = vadd.f32 %v3139, %v3307
        %v3414 = vadd.f32 %v3140, %v3312
        %v3415 = vadd.f32 %v3141, %v3315
        %v3416 = vadd.f32 %v3142, %v3320
        %v3417 = vadd.f32 %v3143, %v3323
        %v3418 = vadd.f32 %v3144, %v3328
        %v3419 = vadd.f32 %v3145, %v3331
        %v3420 = vadd.f32 %v3146, %v3336
        %v3421 = vadd.f32 %v3147, %v3339
        %v3422 = vadd.f32 %v3148, %v3344
        %v3423 = vadd.f32 %v3149, %v3347
        %v3424 = vadd.f32 %v3150, %v3352
        %v3425 = vadd.f32 %v3151, %v3355
        %v3426 = vadd.f32 %v3152, %v3360
        %v3427 = vadd.f32 %v3153, %v3363
        %v3428 = vadd.f32 %v3154, %v3368
        %v3429 = vadd.f32 %v3155, %v3371
        %v3430 = vadd.f32 %v3156, %v3376
        %v3431 = vadd.f32 %v3157, %v3379
        %v3432 = vadd.f32 %v3158, %v3384
        %v3433 = vadd.f32 %v3159, %v3387
        %v3434 = vadd.f32 %v3160, %v3392
        %v3435 = vadd.f32 %v3161, %v3395
        %v3436 = vadd.f32 %v3162, %v3400
        %v3437 = vadd.f32 %v3163, %v3403
        %3438 = vst [vmem:[#allocation4] sm:$0xff] %v3406
        %3439 = vst [vmem:[#allocation4 + $0x8] sm:$0xff] %v3407
        %3440 = vst [vmem:[#allocation4 + $0x10] sm:$0xff] %v3408
        %3441 = vst [vmem:[#allocation4 + $0x18] sm:$0xff] %v3409
        %3442 = vst [vmem:[#allocation4 + $0x20] sm:$0xff] %v3410
        %3443 = vst [vmem:[#allocation4 + $0x28] sm:$0xff] %v3411
        %3444 = vst [vmem:[#allocation4 + $0x30] sm:$0xff] %v3412
        %3445 = vst [vmem:[#allocation4 + $0x38] sm:$0xff] %v3413
        %3446 = vst [vmem:[#allocation4 + $0x40] sm:$0xff] %v3414
        %3447 = vst [vmem:[#allocation4 + $0x48] sm:$0xff] %v3415
        %3448 = vst [vmem:[#allocation4 + $0x50] sm:$0xff] %v3416
        %3449 = vst [vmem:[#allocation4 + $0x58] sm:$0xff] %v3417
        %3450 = vst [vmem:[#allocation4 + $0x60] sm:$0xff] %v3418
        %3451 = vst [vmem:[#allocation4 + $0x68] sm:$0xff] %v3419
        %3452 = vst [vmem:[#allocation4 + $0x70] sm:$0xff] %v3420
        %3453 = vst [vmem:[#allocation4 + $0x78] sm:$0xff] %v3421
        %3454 = vst [vmem:[#allocation4 + $0x80] sm:$0xff] %v3422
        %3455 = vst [vmem:[#allocation4 + $0x88] sm:$0xff] %v3423
        %3456 = vst [vmem:[#allocation4 + $0x90] sm:$0xff] %v3424
        %3457 = vst [vmem:[#allocation4 + $0x98] sm:$0xff] %v3425
        %3458 = vst [vmem:[#allocation4 + $0xa0] sm:$0xff] %v3426
        %3459 = vst [vmem:[#allocation4 + $0xa8] sm:$0xff] %v3427
        %3460 = vst [vmem:[#allocation4 + $0xb0] sm:$0xff] %v3428
        %3461 = vst [vmem:[#allocation4 + $0xb8] sm:$0xff] %v3429
        %3462 = vst [vmem:[#allocation4 + $0xc0] sm:$0xff] %v3430
        %3463 = vst [vmem:[#allocation4 + $0xc8] sm:$0xff] %v3431
        %3464 = vst [vmem:[#allocation4 + $0xd0] sm:$0xff] %v3432
        %3465 = vst [vmem:[#allocation4 + $0xd8] sm:$0xff] %v3433
        %3466 = vst [vmem:[#allocation4 + $0xe0] sm:$0xff] %v3434
        %3467 = vst [vmem:[#allocation4 + $0xe8] sm:$0xff] %v3435
        %3468 = vst [vmem:[#allocation4 + $0xf0] sm:$0xff] %v3436
        %3469 = vst [vmem:[#allocation4 + $0xf8] sm:$0xff] %v3437
        %v3470 = vld [vmem:[%s2729 + $0x2] sm:$0xff]
        %v3471 = vld [vmem:[%s2729 + $0xa] sm:$0xff]
        %v3472 = vld [vmem:[%s2729 + $0x1a] sm:$0xff]
        %v3473 = vld [vmem:[%s2729 + $0x22] sm:$0xff]
        %v3474 = vld [vmem:[%s2729 + $0x32] sm:$0xff]
        %v3475 = vld [vmem:[%s2729 + $0x3a] sm:$0xff]
        %v3476 = vld [vmem:[%s2729 + $0x4a] sm:$0xff]
        %v3477 = vld [vmem:[%s2729 + $0x52] sm:$0xff]
        %v3478 = vld [vmem:[%s2729 + $0x62] sm:$0xff]
        %v3479 = vld [vmem:[%s2729 + $0x6a] sm:$0xff]
        %v3480 = vld [vmem:[%s2729 + $0x7a] sm:$0xff]
        %v3481 = vld [vmem:[%s2729 + $0x82] sm:$0xff]
        %v3482 = vld [vmem:[%s2729 + $0x92] sm:$0xff]
        %v3483 = vld [vmem:[%s2729 + $0x9a] sm:$0xff]
        %v3484 = vld [vmem:[%s2729 + $0xaa] sm:$0xff]
        %v3485 = vld [vmem:[%s2729 + $0xb2] sm:$0xff]
        %v3486 = vld [vmem:[%s2729 + $0xc2] sm:$0xff]
        %v3487 = vld [vmem:[%s2729 + $0xca] sm:$0xff]
        %v3488 = vld [vmem:[%s2729 + $0xda] sm:$0xff]
        %v3489 = vld [vmem:[%s2729 + $0xe2] sm:$0xff]
        %v3490 = vld [vmem:[%s2729 + $0xf2] sm:$0xff]
        %v3491 = vld [vmem:[%s2729 + $0xfa] sm:$0xff]
        %v3492 = vld [vmem:[%s2729 + $0x10a] sm:$0xff]
        %v3493 = vld [vmem:[%s2729 + $0x112] sm:$0xff]
        %v3494 = vld [vmem:[%s2729 + $0x122] sm:$0xff]
        %v3495 = vld [vmem:[%s2729 + $0x12a] sm:$0xff]
        %v3496 = vld [vmem:[%s2729 + $0x13a] sm:$0xff]
        %v3497 = vld [vmem:[%s2729 + $0x142] sm:$0xff]
        %v3498 = vld [vmem:[%s2729 + $0x152] sm:$0xff]
        %v3499 = vld [vmem:[%s2729 + $0x15a] sm:$0xff]
        %v3500 = vld [vmem:[%s2729 + $0x16a] sm:$0xff]
        %v3501 = vld [vmem:[%s2729 + $0x172] sm:$0xff]
        %v3502 = vld [vmem:[#allocation4] sm:$0xff]
        %v3503 = vld [vmem:[#allocation4 + $0x8] sm:$0xff]
        %v3504 = vld [vmem:[#allocation4 + $0x10] sm:$0xff]
        %v3505 = vld [vmem:[#allocation4 + $0x18] sm:$0xff]
        %v3506 = vld [vmem:[#allocation4 + $0x20] sm:$0xff]
        %v3507 = vld [vmem:[#allocation4 + $0x28] sm:$0xff]
        %v3508 = vld [vmem:[#allocation4 + $0x30] sm:$0xff]
        %v3509 = vld [vmem:[#allocation4 + $0x38] sm:$0xff]
        %v3510 = vld [vmem:[#allocation4 + $0x40] sm:$0xff]
        %v3511 = vld [vmem:[#allocation4 + $0x48] sm:$0xff]
        %v3512 = vld [vmem:[#allocation4 + $0x50] sm:$0xff]
        %v3513 = vld [vmem:[#allocation4 + $0x58] sm:$0xff]
        %v3514 = vld [vmem:[#allocation4 + $0x60] sm:$0xff]
        %v3515 = vld [vmem:[#allocation4 + $0x68] sm:$0xff]
        %v3516 = vld [vmem:[#allocation4 + $0x70] sm:$0xff]
        %v3517 = vld [vmem:[#allocation4 + $0x78] sm:$0xff]
        %v3518 = vld [vmem:[#allocation4 + $0x80] sm:$0xff]
        %v3519 = vld [vmem:[#allocation4 + $0x88] sm:$0xff]
        %v3520 = vld [vmem:[#allocation4 + $0x90] sm:$0xff]
        %v3521 = vld [vmem:[#allocation4 + $0x98] sm:$0xff]
        %v3522 = vld [vmem:[#allocation4 + $0xa0] sm:$0xff]
        %v3523 = vld [vmem:[#allocation4 + $0xa8] sm:$0xff]
        %v3524 = vld [vmem:[#allocation4 + $0xb0] sm:$0xff]
        %v3525 = vld [vmem:[#allocation4 + $0xb8] sm:$0xff]
        %v3526 = vld [vmem:[#allocation4 + $0xc0] sm:$0xff]
        %v3527 = vld [vmem:[#allocation4 + $0xc8] sm:$0xff]
        %v3528 = vld [vmem:[#allocation4 + $0xd0] sm:$0xff]
        %v3529 = vld [vmem:[#allocation4 + $0xd8] sm:$0xff]
        %v3530 = vld [vmem:[#allocation4 + $0xe0] sm:$0xff]
        %v3531 = vld [vmem:[#allocation4 + $0xe8] sm:$0xff]
        %v3532 = vld [vmem:[#allocation4 + $0xf0] sm:$0xff]
        %v3533 = vld [vmem:[#allocation4 + $0xf8] sm:$0xff]
        %v3534 = vpack.c.bf16 %v3471, %v3470
        %v3535 = vpack.c.bf16 %v3473, %v3472
        %v3536 = vpack.c.bf16 %v3475, %v3474
        %v3537 = vpack.c.bf16 %v3477, %v3476
        %v3538 = vpack.c.bf16 %v3479, %v3478
        %v3539 = vpack.c.bf16 %v3481, %v3480
        %v3540 = vpack.c.bf16 %v3483, %v3482
        %v3541 = vpack.c.bf16 %v3485, %v3484
        %v3542 = vpack.c.bf16 %v3487, %v3486
        %v3543 = vpack.c.bf16 %v3489, %v3488
        %v3544 = vpack.c.bf16 %v3491, %v3490
        %v3545 = vpack.c.bf16 %v3493, %v3492
        %v3546 = vpack.c.bf16 %v3495, %v3494
        %v3547 = vpack.c.bf16 %v3497, %v3496
        %v3548 = vpack.c.bf16 %v3499, %v3498
        %v3549 = vpack.c.bf16 %v3501, %v3500
        %s3550 = scalar_lea.vmem [#allocation8], 512
        %v3551 = vld [vmem:[%s3550] sm:$0xf]
        %v3552 = vld [vmem:[%s3550 + $0x4] sm:$0xf]
        %v3553 = vld [vmem:[%s3550 + $0x8] sm:$0xf]
        %v3554 = vld [vmem:[%s3550 + $0xc] sm:$0xf]
        %v3555 = vld [vmem:[%s3550 + $0x10] sm:$0xf]
        %v3556 = vld [vmem:[%s3550 + $0x14] sm:$0xf]
        %v3557 = vld [vmem:[%s3550 + $0x18] sm:$0xf]
        %v3558 = vld [vmem:[%s3550 + $0x1c] sm:$0xf]
        %v3559 = vld [vmem:[%s3550 + $0x20] sm:$0xf]
        %v3560 = vld [vmem:[%s3550 + $0x24] sm:$0xf]
        %v3561 = vld [vmem:[%s3550 + $0x28] sm:$0xf]
        %v3562 = vld [vmem:[%s3550 + $0x2c] sm:$0xf]
        %v3563 = vld [vmem:[%s3550 + $0x30] sm:$0xf]
        %v3564 = vld [vmem:[%s3550 + $0x34] sm:$0xf]
        %v3565 = vld [vmem:[%s3550 + $0x38] sm:$0xf]
        %v3566 = vld [vmem:[%s3550 + $0x3c] sm:$0xf]
        %v3583 = vunpack.c.l.b16 %v3551
        %v3584 = vunpack.c.l.b16 %v3552
        %v3585 = vunpack.c.l.b16 %v3553
        %v3586 = vunpack.c.l.b16 %v3554
        %v3587 = vunpack.c.l.b16 %v3555
        %v3588 = vunpack.c.l.b16 %v3556
        %v3589 = vunpack.c.l.b16 %v3557
        %v3590 = vunpack.c.l.b16 %v3558
        %v3591 = vunpack.c.l.b16 %v3559
        %v3592 = vunpack.c.l.b16 %v3560
        %v3593 = vunpack.c.l.b16 %v3561
        %v3594 = vunpack.c.l.b16 %v3562
        %v3595 = vunpack.c.l.b16 %v3563
        %v3596 = vunpack.c.l.b16 %v3564
        %v3597 = vunpack.c.l.b16 %v3565
        %v3598 = vunpack.c.l.b16 %v3566
        %v3599 = vpack.c.b16 %v3584, %v3583
        %v3600 = vpack.c.b16 %v3586, %v3585
        %v3601 = vpack.c.b16 %v3588, %v3587
        %v3602 = vpack.c.b16 %v3590, %v3589
        %v3603 = vpack.c.b16 %v3592, %v3591
        %v3604 = vpack.c.b16 %v3594, %v3593
        %v3605 = vpack.c.b16 %v3596, %v3595
        %v3606 = vpack.c.b16 %v3598, %v3597
        %3615 = vmatprep.subr.bf16.mxu0 0
        %3616 = vmatpush1.bf16.msra.mxu0 %v3599
        %3617 = vmatprep.subr.bf16.mxu0 0
        %3618 = vmatpush1.bf16.msra.mxu0 %v3600
        %3619 = vmatprep.subr.bf16.mxu0 0
        %3620 = vmatpush1.bf16.msra.mxu0 %v3601
        %3621 = vmatprep.subr.bf16.mxu0 0
        %3622 = vmatpush1.bf16.msra.mxu0 %v3602
        %3623 = vmatprep.subr.bf16.mxu0 0
        %3624 = vmatpush1.bf16.msra.mxu0 %v3603
        %3625 = vmatprep.subr.bf16.mxu0 0
        %3626 = vmatpush1.bf16.msra.mxu0 %v3604
        %3627 = vmatprep.subr.bf16.mxu0 0
        %3628 = vmatpush1.bf16.msra.mxu0 %v3605
        %3629 = vmatprep.subr.bf16.mxu0 0
        %3630 = vmatpush1.bf16.msra.mxu0 %v3606
        %3631 = vmatprep.subr.bf16.mxu0 0
        %3632 = vmatpush1.bf16.msra.mxu0 0
        %3633 = vmatprep.subr.bf16.mxu0 0
        %3634 = vmatpush1.bf16.msra.mxu0 0
        %3635 = vmatprep.subr.bf16.mxu0 0
        %3636 = vmatpush1.bf16.msra.mxu0 0
        %3637 = vmatprep.subr.bf16.mxu0 0
        %3638 = vmatpush1.bf16.msra.mxu0 0
        %3639 = vmatprep.subr.bf16.mxu0 0
        %3640 = vmatpush1.bf16.msra.mxu0 0
        %3641 = vmatprep.subr.bf16.mxu0 0
        %3642 = vmatpush1.bf16.msra.mxu0 0
        %3643 = vmatprep.subr.bf16.mxu0 0
        %3644 = vmatpush1.bf16.msra.mxu0 0
        %3645 = vmatprep.subr.bf16.mxu0 0
        %3646 = vmatpush1.bf16.msra.mxu0 0
        %3647 = vmatprep.mubr.bf16.mxu0 0
        %3648 = vmatmul.mubr.bf16.gmra.mrb[0].mxu0 %v3534
        %v3649 = vpop.f32.mrb[0].mxu0
        %v3650 = vadd.f32 0.0, %v3649
        %v3651 = vpop.f32.mrb[0].mxu0
        %v3652 = vpop.f32.mrb[0].mxu0
        %v3653 = vadd.f32 0.0, %v3652
        %v3654 = vpop.f32.mrb[0].mxu0
        %3655 = vmatprep.mubr.bf16.mxu0 0
        %3656 = vmatmul.mubr.bf16.gmra.mrb[0].mxu0 %v3535
        %v3657 = vpop.f32.mrb[0].mxu0
        %v3658 = vadd.f32 0.0, %v3657
        %v3659 = vpop.f32.mrb[0].mxu0
        %v3660 = vpop.f32.mrb[0].mxu0
        %v3661 = vadd.f32 0.0, %v3660
        %v3662 = vpop.f32.mrb[0].mxu0
        %3663 = vmatprep.mubr.bf16.mxu0 0
        %3664 = vmatmul.mubr.bf16.gmra.mrb[0].mxu0 %v3536
        %v3665 = vpop.f32.mrb[0].mxu0
        %v3666 = vadd.f32 0.0, %v3665
        %v3667 = vpop.f32.mrb[0].mxu0
        %v3668 = vpop.f32.mrb[0].mxu0
        %v3669 = vadd.f32 0.0, %v3668
        %v3670 = vpop.f32.mrb[0].mxu0
        %3671 = vmatprep.mubr.bf16.mxu0 0
        %3672 = vmatmul.mubr.bf16.gmra.mrb[0].mxu0 %v3537
        %v3673 = vpop.f32.mrb[0].mxu0
        %v3674 = vadd.f32 0.0, %v3673
        %v3675 = vpop.f32.mrb[0].mxu0
        %v3676 = vpop.f32.mrb[0].mxu0
        %v3677 = vadd.f32 0.0, %v3676
        %v3678 = vpop.f32.mrb[0].mxu0
        %3679 = vmatprep.mubr.bf16.mxu0 0
        %3680 = vmatmul.mubr.bf16.gmra.mrb[0].mxu0 %v3538
        %v3681 = vpop.f32.mrb[0].mxu0
        %v3682 = vadd.f32 0.0, %v3681
        %v3683 = vpop.f32.mrb[0].mxu0
        %v3684 = vpop.f32.mrb[0].mxu0
        %v3685 = vadd.f32 0.0, %v3684
        %v3686 = vpop.f32.mrb[0].mxu0
        %3687 = vmatprep.mubr.bf16.mxu0 0
        %3688 = vmatmul.mubr.bf16.gmra.mrb[0].mxu0 %v3539
        %v3689 = vpop.f32.mrb[0].mxu0
        %v3690 = vadd.f32 0.0, %v3689
        %v3691 = vpop.f32.mrb[0].mxu0
        %v3692 = vpop.f32.mrb[0].mxu0
        %v3693 = vadd.f32 0.0, %v3692
        %v3694 = vpop.f32.mrb[0].mxu0
        %3695 = vmatprep.mubr.bf16.mxu0 0
        %3696 = vmatmul.mubr.bf16.gmra.mrb[0].mxu0 %v3540
        %v3697 = vpop.f32.mrb[0].mxu0
        %v3698 = vadd.f32 0.0, %v3697
        %v3699 = vpop.f32.mrb[0].mxu0
        %v3700 = vpop.f32.mrb[0].mxu0
        %v3701 = vadd.f32 0.0, %v3700
        %v3702 = vpop.f32.mrb[0].mxu0
        %3703 = vmatprep.mubr.bf16.mxu0 0
        %3704 = vmatmul.mubr.bf16.gmra.mrb[0].mxu0 %v3541
        %v3705 = vpop.f32.mrb[0].mxu0
        %v3706 = vadd.f32 0.0, %v3705
        %v3707 = vpop.f32.mrb[0].mxu0
        %v3708 = vpop.f32.mrb[0].mxu0
        %v3709 = vadd.f32 0.0, %v3708
        %v3710 = vpop.f32.mrb[0].mxu0
        %3711 = vmatprep.mubr.bf16.mxu0 0
        %3712 = vmatmul.mubr.bf16.gmra.mrb[0].mxu0 %v3542
        %v3713 = vpop.f32.mrb[0].mxu0
        %v3714 = vadd.f32 0.0, %v3713
        %v3715 = vpop.f32.mrb[0].mxu0
        %v3716 = vpop.f32.mrb[0].mxu0
        %v3717 = vadd.f32 0.0, %v3716
        %v3718 = vpop.f32.mrb[0].mxu0
        %3719 = vmatprep.mubr.bf16.mxu0 0
        %3720 = vmatmul.mubr.bf16.gmra.mrb[0].mxu0 %v3543
        %v3721 = vpop.f32.mrb[0].mxu0
        %v3722 = vadd.f32 0.0, %v3721
        %v3723 = vpop.f32.mrb[0].mxu0
        %v3724 = vpop.f32.mrb[0].mxu0
        %v3725 = vadd.f32 0.0, %v3724
        %v3726 = vpop.f32.mrb[0].mxu0
        %3727 = vmatprep.mubr.bf16.mxu0 0
        %3728 = vmatmul.mubr.bf16.gmra.mrb[0].mxu0 %v3544
        %v3729 = vpop.f32.mrb[0].mxu0
        %v3730 = vadd.f32 0.0, %v3729
        %v3731 = vpop.f32.mrb[0].mxu0
        %v3732 = vpop.f32.mrb[0].mxu0
        %v3733 = vadd.f32 0.0, %v3732
        %v3734 = vpop.f32.mrb[0].mxu0
        %3735 = vmatprep.mubr.bf16.mxu0 0
        %3736 = vmatmul.mubr.bf16.gmra.mrb[0].mxu0 %v3545
        %v3737 = vpop.f32.mrb[0].mxu0
        %v3738 = vadd.f32 0.0, %v3737
        %v3739 = vpop.f32.mrb[0].mxu0
        %v3740 = vpop.f32.mrb[0].mxu0
        %v3741 = vadd.f32 0.0, %v3740
        %v3742 = vpop.f32.mrb[0].mxu0
        %3743 = vmatprep.mubr.bf16.mxu0 0
        %3744 = vmatmul.mubr.bf16.gmra.mrb[0].mxu0 %v3546
        %v3745 = vpop.f32.mrb[0].mxu0
        %v3746 = vadd.f32 0.0, %v3745
        %v3747 = vpop.f32.mrb[0].mxu0
        %v3748 = vpop.f32.mrb[0].mxu0
        %v3749 = vadd.f32 0.0, %v3748
        %v3750 = vpop.f32.mrb[0].mxu0
        %3751 = vmatprep.mubr.bf16.mxu0 0
        %3752 = vmatmul.mubr.bf16.gmra.mrb[0].mxu0 %v3547
        %v3753 = vpop.f32.mrb[0].mxu0
        %v3754 = vadd.f32 0.0, %v3753
        %v3755 = vpop.f32.mrb[0].mxu0
        %v3756 = vpop.f32.mrb[0].mxu0
        %v3757 = vadd.f32 0.0, %v3756
        %v3758 = vpop.f32.mrb[0].mxu0
        %3759 = vmatprep.mubr.bf16.mxu0 0
        %3760 = vmatmul.mubr.bf16.gmra.mrb[0].mxu0 %v3548
        %v3761 = vpop.f32.mrb[0].mxu0
        %v3762 = vadd.f32 0.0, %v3761
        %v3763 = vpop.f32.mrb[0].mxu0
        %v3764 = vpop.f32.mrb[0].mxu0
        %v3765 = vadd.f32 0.0, %v3764
        %v3766 = vpop.f32.mrb[0].mxu0
        %3767 = vmatprep.mubr.bf16.mxu0 0
        %3768 = vmatmul.mubr.bf16.gmra.mrb[0].mxu0 %v3549
        %v3769 = vpop.f32.mrb[0].mxu0
        %v3770 = vadd.f32 0.0, %v3769
        %v3771 = vpop.f32.mrb[0].mxu0
        %v3772 = vpop.f32.mrb[0].mxu0
        %v3773 = vadd.f32 0.0, %v3772
        %v3774 = vpop.f32.mrb[0].mxu0
        %3775 = vdwg.mxu0
        %v3776 = vadd.f32 %v3502, %v3650
        %v3777 = vadd.f32 %v3503, %v3653
        %v3778 = vadd.f32 %v3504, %v3658
        %v3779 = vadd.f32 %v3505, %v3661
        %v3780 = vadd.f32 %v3506, %v3666
        %v3781 = vadd.f32 %v3507, %v3669
        %v3782 = vadd.f32 %v3508, %v3674
        %v3783 = vadd.f32 %v3509, %v3677
        %v3784 = vadd.f32 %v3510, %v3682
        %v3785 = vadd.f32 %v3511, %v3685
        %v3786 = vadd.f32 %v3512, %v3690
        %v3787 = vadd.f32 %v3513, %v3693
        %v3788 = vadd.f32 %v3514, %v3698
        %v3789 = vadd.f32 %v3515, %v3701
        %v3790 = vadd.f32 %v3516, %v3706
        %v3791 = vadd.f32 %v3517, %v3709
        %v3792 = vadd.f32 %v3518, %v3714
        %v3793 = vadd.f32 %v3519, %v3717
        %v3794 = vadd.f32 %v3520, %v3722
        %v3795 = vadd.f32 %v3521, %v3725
        %v3796 = vadd.f32 %v3522, %v3730
        %v3797 = vadd.f32 %v3523, %v3733
        %v3798 = vadd.f32 %v3524, %v3738
        %v3799 = vadd.f32 %v3525, %v3741
        %v3800 = vadd.f32 %v3526, %v3746
        %v3801 = vadd.f32 %v3527, %v3749
        %v3802 = vadd.f32 %v3528, %v3754
        %v3803 = vadd.f32 %v3529, %v3757
        %v3804 = vadd.f32 %v3530, %v3762
        %v3805 = vadd.f32 %v3531, %v3765
        %v3806 = vadd.f32 %v3532, %v3770
        %v3807 = vadd.f32 %v3533, %v3773
        %3808 = vst [vmem:[#allocation4] sm:$0xff] %v3776
        %3809 = vst [vmem:[#allocation4 + $0x8] sm:$0xff] %v3777
        %3810 = vst [vmem:[#allocation4 + $0x10] sm:$0xff] %v3778
        %3811 = vst [vmem:[#allocation4 + $0x18] sm:$0xff] %v3779
        %3812 = vst [vmem:[#allocation4 + $0x20] sm:$0xff] %v3780
        %3813 = vst [vmem:[#allocation4 + $0x28] sm:$0xff] %v3781
        %3814 = vst [vmem:[#allocation4 + $0x30] sm:$0xff] %v3782
        %3815 = vst [vmem:[#allocation4 + $0x38] sm:$0xff] %v3783
        %3816 = vst [vmem:[#allocation4 + $0x40] sm:$0xff] %v3784
        %3817 = vst [vmem:[#allocation4 + $0x48] sm:$0xff] %v3785
        %3818 = vst [vmem:[#allocation4 + $0x50] sm:$0xff] %v3786
        %3819 = vst [vmem:[#allocation4 + $0x58] sm:$0xff] %v3787
        %3820 = vst [vmem:[#allocation4 + $0x60] sm:$0xff] %v3788
        %3821 = vst [vmem:[#allocation4 + $0x68] sm:$0xff] %v3789
        %3822 = vst [vmem:[#allocation4 + $0x70] sm:$0xff] %v3790
        %3823 = vst [vmem:[#allocation4 + $0x78] sm:$0xff] %v3791
        %3824 = vst [vmem:[#allocation4 + $0x80] sm:$0xff] %v3792
        %3825 = vst [vmem:[#allocation4 + $0x88] sm:$0xff] %v3793
        %3826 = vst [vmem:[#allocation4 + $0x90] sm:$0xff] %v3794
        %3827 = vst [vmem:[#allocation4 + $0x98] sm:$0xff] %v3795
        %3828 = vst [vmem:[#allocation4 + $0xa0] sm:$0xff] %v3796
        %3829 = vst [vmem:[#allocation4 + $0xa8] sm:$0xff] %v3797
        %3830 = vst [vmem:[#allocation4 + $0xb0] sm:$0xff] %v3798
        %3831 = vst [vmem:[#allocation4 + $0xb8] sm:$0xff] %v3799
        %3832 = vst [vmem:[#allocation4 + $0xc0] sm:$0xff] %v3800
        %3833 = vst [vmem:[#allocation4 + $0xc8] sm:$0xff] %v3801
        %3834 = vst [vmem:[#allocation4 + $0xd0] sm:$0xff] %v3802
        %3835 = vst [vmem:[#allocation4 + $0xd8] sm:$0xff] %v3803
        %3836 = vst [vmem:[#allocation4 + $0xe0] sm:$0xff] %v3804
        %3837 = vst [vmem:[#allocation4 + $0xe8] sm:$0xff] %v3805
        %3838 = vst [vmem:[#allocation4 + $0xf0] sm:$0xff] %v3806
        %3839 = vst [vmem:[#allocation4 + $0xf8] sm:$0xff] %v3807
        %v3840 = vld [vmem:[#allocation4] sm:$0xff]
        %v3841 = vld [vmem:[#allocation4 + $0x8] sm:$0xff]
        %v3842 = vld [vmem:[#allocation4 + $0x10] sm:$0xff]
        %v3843 = vld [vmem:[#allocation4 + $0x18] sm:$0xff]
        %v3844 = vld [vmem:[#allocation4 + $0x20] sm:$0xff]
        %v3845 = vld [vmem:[#allocation4 + $0x28] sm:$0xff]
        %v3846 = vld [vmem:[#allocation4 + $0x30] sm:$0xff]
        %v3847 = vld [vmem:[#allocation4 + $0x38] sm:$0xff]
        %v3848 = vld [vmem:[#allocation4 + $0x40] sm:$0xff]
        %v3849 = vld [vmem:[#allocation4 + $0x48] sm:$0xff]
        %v3850 = vld [vmem:[#allocation4 + $0x50] sm:$0xff]
        %v3851 = vld [vmem:[#allocation4 + $0x58] sm:$0xff]
        %v3852 = vld [vmem:[#allocation4 + $0x60] sm:$0xff]
        %v3853 = vld [vmem:[#allocation4 + $0x68] sm:$0xff]
        %v3854 = vld [vmem:[#allocation4 + $0x70] sm:$0xff]
        %v3855 = vld [vmem:[#allocation4 + $0x78] sm:$0xff]
        %v3856 = vld [vmem:[#allocation4 + $0x80] sm:$0xff]
        %v3857 = vld [vmem:[#allocation4 + $0x88] sm:$0xff]
        %v3858 = vld [vmem:[#allocation4 + $0x90] sm:$0xff]
        %v3859 = vld [vmem:[#allocation4 + $0x98] sm:$0xff]
        %v3860 = vld [vmem:[#allocation4 + $0xa0] sm:$0xff]
        %v3861 = vld [vmem:[#allocation4 + $0xa8] sm:$0xff]
        %v3862 = vld [vmem:[#allocation4 + $0xb0] sm:$0xff]
        %v3863 = vld [vmem:[#allocation4 + $0xb8] sm:$0xff]
        %v3864 = vld [vmem:[#allocation4 + $0xc0] sm:$0xff]
        %v3865 = vld [vmem:[#allocation4 + $0xc8] sm:$0xff]
        %v3866 = vld [vmem:[#allocation4 + $0xd0] sm:$0xff]
        %v3867 = vld [vmem:[#allocation4 + $0xd8] sm:$0xff]
        %v3868 = vld [vmem:[#allocation4 + $0xe0] sm:$0xff]
        %v3869 = vld [vmem:[#allocation4 + $0xe8] sm:$0xff]
        %v3870 = vld [vmem:[#allocation4 + $0xf0] sm:$0xff]
        %v3871 = vld [vmem:[#allocation4 + $0xf8] sm:$0xff]
        %v3872 = vld [vmem:[%s2] sm:$0x1]
        %v3874 = vlaneseq
        %v3875 = vshrl.u32 %v3874, 7
        %v3876 = vsub.s32 0, %v3875
        %v3877 = vrot.slane %v3872, %v3876
        %v3879 = vmul.f32 %v3840, %v3877
        %v3880 = vmul.f32 %v3841, %v3877
        %v3881 = vmul.f32 %v3842, %v3877
        %v3882 = vmul.f32 %v3843, %v3877
        %v3883 = vmul.f32 %v3844, %v3877
        %v3884 = vmul.f32 %v3845, %v3877
        %v3885 = vmul.f32 %v3846, %v3877
        %v3886 = vmul.f32 %v3847, %v3877
        %v3887 = vmul.f32 %v3848, %v3877
        %v3888 = vmul.f32 %v3849, %v3877
        %v3889 = vmul.f32 %v3850, %v3877
        %v3890 = vmul.f32 %v3851, %v3877
        %v3891 = vmul.f32 %v3852, %v3877
        %v3892 = vmul.f32 %v3853, %v3877
        %v3893 = vmul.f32 %v3854, %v3877
        %v3894 = vmul.f32 %v3855, %v3877
        %v3895 = vmul.f32 %v3856, %v3877
        %v3896 = vmul.f32 %v3857, %v3877
        %v3897 = vmul.f32 %v3858, %v3877
        %v3898 = vmul.f32 %v3859, %v3877
        %v3899 = vmul.f32 %v3860, %v3877
        %v3900 = vmul.f32 %v3861, %v3877
        %v3901 = vmul.f32 %v3862, %v3877
        %v3902 = vmul.f32 %v3863, %v3877
        %v3903 = vmul.f32 %v3864, %v3877
        %v3904 = vmul.f32 %v3865, %v3877
        %v3905 = vmul.f32 %v3866, %v3877
        %v3906 = vmul.f32 %v3867, %v3877
        %v3907 = vmul.f32 %v3868, %v3877
        %v3908 = vmul.f32 %v3869, %v3877
        %v3909 = vmul.f32 %v3870, %v3877
        %v3910 = vmul.f32 %v3871, %v3877
        %v3911 = vld [vmem:[%s3] sm:$0x1]
        %v3913 = vlaneseq
        %v3914 = vshrl.u32 %v3913, 7
        %v3915 = vsub.s32 0, %v3914
        %v3916 = vrot.slane %v3911, %v3915
        %v3918 = vadd.f32 %v3879, %v3916
        %v3919 = vadd.f32 %v3880, %v3916
        %v3920 = vadd.f32 %v3881, %v3916
        %v3921 = vadd.f32 %v3882, %v3916
        %v3922 = vadd.f32 %v3883, %v3916
        %v3923 = vadd.f32 %v3884, %v3916
        %v3924 = vadd.f32 %v3885, %v3916
        %v3925 = vadd.f32 %v3886, %v3916
        %v3926 = vadd.f32 %v3887, %v3916
        %v3927 = vadd.f32 %v3888, %v3916
        %v3928 = vadd.f32 %v3889, %v3916
        %v3929 = vadd.f32 %v3890, %v3916
        %v3930 = vadd.f32 %v3891, %v3916
        %v3931 = vadd.f32 %v3892, %v3916
        %v3932 = vadd.f32 %v3893, %v3916
        %v3933 = vadd.f32 %v3894, %v3916
        %v3934 = vadd.f32 %v3895, %v3916
        %v3935 = vadd.f32 %v3896, %v3916
        %v3936 = vadd.f32 %v3897, %v3916
        %v3937 = vadd.f32 %v3898, %v3916
        %v3938 = vadd.f32 %v3899, %v3916
        %v3939 = vadd.f32 %v3900, %v3916
        %v3940 = vadd.f32 %v3901, %v3916
        %v3941 = vadd.f32 %v3902, %v3916
        %v3942 = vadd.f32 %v3903, %v3916
        %v3943 = vadd.f32 %v3904, %v3916
        %v3944 = vadd.f32 %v3905, %v3916
        %v3945 = vadd.f32 %v3906, %v3916
        %v3946 = vadd.f32 %v3907, %v3916
        %v3947 = vadd.f32 %v3908, %v3916
        %v3948 = vadd.f32 %v3909, %v3916
        %v3949 = vadd.f32 %v3910, %v3916
        %v3950 = vmax.f32 %v3918, 0.0
        %v3951 = vmax.f32 %v3919, 0.0
        %v3952 = vmax.f32 %v3920, 0.0
        %v3953 = vmax.f32 %v3921, 0.0
        %v3954 = vmax.f32 %v3922, 0.0
        %v3955 = vmax.f32 %v3923, 0.0
        %v3956 = vmax.f32 %v3924, 0.0
        %v3957 = vmax.f32 %v3925, 0.0
        %v3958 = vmax.f32 %v3926, 0.0
        %v3959 = vmax.f32 %v3927, 0.0
        %v3960 = vmax.f32 %v3928, 0.0
        %v3961 = vmax.f32 %v3929, 0.0
        %v3962 = vmax.f32 %v3930, 0.0
        %v3963 = vmax.f32 %v3931, 0.0
        %v3964 = vmax.f32 %v3932, 0.0
        %v3965 = vmax.f32 %v3933, 0.0
        %v3966 = vmax.f32 %v3934, 0.0
        %v3967 = vmax.f32 %v3935, 0.0
        %v3968 = vmax.f32 %v3936, 0.0
        %v3969 = vmax.f32 %v3937, 0.0
        %v3970 = vmax.f32 %v3938, 0.0
        %v3971 = vmax.f32 %v3939, 0.0
        %v3972 = vmax.f32 %v3940, 0.0
        %v3973 = vmax.f32 %v3941, 0.0
        %v3974 = vmax.f32 %v3942, 0.0
        %v3975 = vmax.f32 %v3943, 0.0
        %v3976 = vmax.f32 %v3944, 0.0
        %v3977 = vmax.f32 %v3945, 0.0
        %v3978 = vmax.f32 %v3946, 0.0
        %v3979 = vmax.f32 %v3947, 0.0
        %v3980 = vmax.f32 %v3948, 0.0
        %v3981 = vmax.f32 %v3949, 0.0
        %s3982 = scalar_lea.vmem [#allocation3], 24
        %3983 = vst [vmem:[%s3982 + $0x1] sm:$0xff] %v3950
        %3984 = vst [vmem:[%s3982 + $0x9] sm:$0xff] %v3951
        %3985 = vst [vmem:[%s3982 + $0x19] sm:$0xff] %v3952
        %3986 = vst [vmem:[%s3982 + $0x21] sm:$0xff] %v3953
        %3987 = vst [vmem:[%s3982 + $0x31] sm:$0xff] %v3954
        %3988 = vst [vmem:[%s3982 + $0x39] sm:$0xff] %v3955
        %3989 = vst [vmem:[%s3982 + $0x49] sm:$0xff] %v3956
        %3990 = vst [vmem:[%s3982 + $0x51] sm:$0xff] %v3957
        %3991 = vst [vmem:[%s3982 + $0x61] sm:$0xff] %v3958
        %3992 = vst [vmem:[%s3982 + $0x69] sm:$0xff] %v3959
        %3993 = vst [vmem:[%s3982 + $0x79] sm:$0xff] %v3960
        %3994 = vst [vmem:[%s3982 + $0x81] sm:$0xff] %v3961
        %3995 = vst [vmem:[%s3982 + $0x91] sm:$0xff] %v3962
        %3996 = vst [vmem:[%s3982 + $0x99] sm:$0xff] %v3963
        %3997 = vst [vmem:[%s3982 + $0xa9] sm:$0xff] %v3964
        %3998 = vst [vmem:[%s3982 + $0xb1] sm:$0xff] %v3965
        %3999 = vst [vmem:[%s3982 + $0xc1] sm:$0xff] %v3966
        %4000 = vst [vmem:[%s3982 + $0xc9] sm:$0xff] %v3967
        %4001 = vst [vmem:[%s3982 + $0xd9] sm:$0xff] %v3968
        %4002 = vst [vmem:[%s3982 + $0xe1] sm:$0xff] %v3969
        %4003 = vst [vmem:[%s3982 + $0xf1] sm:$0xff] %v3970
        %4004 = vst [vmem:[%s3982 + $0xf9] sm:$0xff] %v3971
        %4005 = vst [vmem:[%s3982 + $0x109] sm:$0xff] %v3972
        %4006 = vst [vmem:[%s3982 + $0x111] sm:$0xff] %v3973
        %4007 = vst [vmem:[%s3982 + $0x121] sm:$0xff] %v3974
        %4008 = vst [vmem:[%s3982 + $0x129] sm:$0xff] %v3975
        %4009 = vst [vmem:[%s3982 + $0x139] sm:$0xff] %v3976
        %4010 = vst [vmem:[%s3982 + $0x141] sm:$0xff] %v3977
        %4011 = vst [vmem:[%s3982 + $0x151] sm:$0xff] %v3978
        %4012 = vst [vmem:[%s3982 + $0x159] sm:$0xff] %v3979
        %4013 = vst [vmem:[%s3982 + $0x169] sm:$0xff] %v3980
        %4014 = vst [vmem:[%s3982 + $0x171] sm:$0xff] %v3981
        %4015 = vst [vmem:[#allocation4] sm:$0xff] 0.0
        %4016 = vst [vmem:[#allocation4 + $0x8] sm:$0xff] 0.0
        %4017 = vst [vmem:[#allocation4 + $0x10] sm:$0xff] 0.0
        %4018 = vst [vmem:[#allocation4 + $0x18] sm:$0xff] 0.0
        %4019 = vst [vmem:[#allocation4 + $0x20] sm:$0xff] 0.0
        %4020 = vst [vmem:[#allocation4 + $0x28] sm:$0xff] 0.0
        %4021 = vst [vmem:[#allocation4 + $0x30] sm:$0xff] 0.0
        %4022 = vst [vmem:[#allocation4 + $0x38] sm:$0xff] 0.0
        %4023 = vst [vmem:[#allocation4 + $0x40] sm:$0xff] 0.0
        %4024 = vst [vmem:[#allocation4 + $0x48] sm:$0xff] 0.0
        %4025 = vst [vmem:[#allocation4 + $0x50] sm:$0xff] 0.0
        %4026 = vst [vmem:[#allocation4 + $0x58] sm:$0xff] 0.0
        %4027 = vst [vmem:[#allocation4 + $0x60] sm:$0xff] 0.0
        %4028 = vst [vmem:[#allocation4 + $0x68] sm:$0xff] 0.0
        %4029 = vst [vmem:[#allocation4 + $0x70] sm:$0xff] 0.0
        %4030 = vst [vmem:[#allocation4 + $0x78] sm:$0xff] 0.0
        %4031 = vst [vmem:[#allocation4 + $0x80] sm:$0xff] 0.0
        %4032 = vst [vmem:[#allocation4 + $0x88] sm:$0xff] 0.0
        %4033 = vst [vmem:[#allocation4 + $0x90] sm:$0xff] 0.0
        %4034 = vst [vmem:[#allocation4 + $0x98] sm:$0xff] 0.0
        %4035 = vst [vmem:[#allocation4 + $0xa0] sm:$0xff] 0.0
        %4036 = vst [vmem:[#allocation4 + $0xa8] sm:$0xff] 0.0
        %4037 = vst [vmem:[#allocation4 + $0xb0] sm:$0xff] 0.0
        %4038 = vst [vmem:[#allocation4 + $0xb8] sm:$0xff] 0.0
        %4039 = vst [vmem:[#allocation4 + $0xc0] sm:$0xff] 0.0
        %4040 = vst [vmem:[#allocation4 + $0xc8] sm:$0xff] 0.0
        %4041 = vst [vmem:[#allocation4 + $0xd0] sm:$0xff] 0.0
        %4042 = vst [vmem:[#allocation4 + $0xd8] sm:$0xff] 0.0
        %4043 = vst [vmem:[#allocation4 + $0xe0] sm:$0xff] 0.0
        %4044 = vst [vmem:[#allocation4 + $0xe8] sm:$0xff] 0.0
        %4045 = vst [vmem:[#allocation4 + $0xf0] sm:$0xff] 0.0
        %4046 = vst [vmem:[#allocation4 + $0xf8] sm:$0xff] 0.0
        %v4047 = vld [vmem:[#allocation3] sm:$0xff]
        %v4048 = vld [vmem:[#allocation3 + $0x8] sm:$0xff]
        %v4049 = vld [vmem:[#allocation3 + $0x18] sm:$0xff]
        %v4050 = vld [vmem:[#allocation3 + $0x20] sm:$0xff]
        %v4051 = vld [vmem:[#allocation3 + $0x30] sm:$0xff]
        %v4052 = vld [vmem:[#allocation3 + $0x38] sm:$0xff]
        %v4053 = vld [vmem:[#allocation3 + $0x48] sm:$0xff]
        %v4054 = vld [vmem:[#allocation3 + $0x50] sm:$0xff]
        %v4055 = vld [vmem:[#allocation3 + $0x60] sm:$0xff]
        %v4056 = vld [vmem:[#allocation3 + $0x68] sm:$0xff]
        %v4057 = vld [vmem:[#allocation3 + $0x78] sm:$0xff]
        %v4058 = vld [vmem:[#allocation3 + $0x80] sm:$0xff]
        %v4059 = vld [vmem:[#allocation3 + $0x90] sm:$0xff]
        %v4060 = vld [vmem:[#allocation3 + $0x98] sm:$0xff]
        %v4061 = vld [vmem:[#allocation3 + $0xa8] sm:$0xff]
        %v4062 = vld [vmem:[#allocation3 + $0xb0] sm:$0xff]
        %v4063 = vld [vmem:[#allocation3 + $0xc0] sm:$0xff]
        %v4064 = vld [vmem:[#allocation3 + $0xc8] sm:$0xff]
        %v4065 = vld [vmem:[#allocation3 + $0xd8] sm:$0xff]
        %v4066 = vld [vmem:[#allocation3 + $0xe0] sm:$0xff]
        %v4067 = vld [vmem:[#allocation3 + $0xf0] sm:$0xff]
        %v4068 = vld [vmem:[#allocation3 + $0xf8] sm:$0xff]
        %v4069 = vld [vmem:[#allocation3 + $0x108] sm:$0xff]
        %v4070 = vld [vmem:[#allocation3 + $0x110] sm:$0xff]
        %v4071 = vld [vmem:[#allocation3 + $0x120] sm:$0xff]
        %v4072 = vld [vmem:[#allocation3 + $0x128] sm:$0xff]
        %v4073 = vld [vmem:[#allocation3 + $0x138] sm:$0xff]
        %v4074 = vld [vmem:[#allocation3 + $0x140] sm:$0xff]
        %v4075 = vld [vmem:[#allocation3 + $0x150] sm:$0xff]
        %v4076 = vld [vmem:[#allocation3 + $0x158] sm:$0xff]
        %v4077 = vld [vmem:[#allocation3 + $0x168] sm:$0xff]
        %v4078 = vld [vmem:[#allocation3 + $0x170] sm:$0xff]
        %v4079 = vld [vmem:[#allocation4] sm:$0xff]
        %v4080 = vld [vmem:[#allocation4 + $0x8] sm:$0xff]
        %v4081 = vld [vmem:[#allocation4 + $0x10] sm:$0xff]
        %v4082 = vld [vmem:[#allocation4 + $0x18] sm:$0xff]
        %v4083 = vld [vmem:[#allocation4 + $0x20] sm:$0xff]
        %v4084 = vld [vmem:[#allocation4 + $0x28] sm:$0xff]
        %v4085 = vld [vmem:[#allocation4 + $0x30] sm:$0xff]
        %v4086 = vld [vmem:[#allocation4 + $0x38] sm:$0xff]
        %v4087 = vld [vmem:[#allocation4 + $0x40] sm:$0xff]
        %v4088 = vld [vmem:[#allocation4 + $0x48] sm:$0xff]
        %v4089 = vld [vmem:[#allocation4 + $0x50] sm:$0xff]
        %v4090 = vld [vmem:[#allocation4 + $0x58] sm:$0xff]
        %v4091 = vld [vmem:[#allocation4 + $0x60] sm:$0xff]
        %v4092 = vld [vmem:[#allocation4 + $0x68] sm:$0xff]
        %v4093 = vld [vmem:[#allocation4 + $0x70] sm:$0xff]
        %v4094 = vld [vmem:[#allocation4 + $0x78] sm:$0xff]
        %v4095 = vld [vmem:[#allocation4 + $0x80] sm:$0xff]
        %v4096 = vld [vmem:[#allocation4 + $0x88] sm:$0xff]
        %v4097 = vld [vmem:[#allocation4 + $0x90] sm:$0xff]
        %v4098 = vld [vmem:[#allocation4 + $0x98] sm:$0xff]
        %v4099 = vld [vmem:[#allocation4 + $0xa0] sm:$0xff]
        %v4100 = vld [vmem:[#allocation4 + $0xa8] sm:$0xff]
        %v4101 = vld [vmem:[#allocation4 + $0xb0] sm:$0xff]
        %v4102 = vld [vmem:[#allocation4 + $0xb8] sm:$0xff]
        %v4103 = vld [vmem:[#allocation4 + $0xc0] sm:$0xff]
        %v4104 = vld [vmem:[#allocation4 + $0xc8] sm:$0xff]
        %v4105 = vld [vmem:[#allocation4 + $0xd0] sm:$0xff]
        %v4106 = vld [vmem:[#allocation4 + $0xd8] sm:$0xff]
        %v4107 = vld [vmem:[#allocation4 + $0xe0] sm:$0xff]
        %v4108 = vld [vmem:[#allocation4 + $0xe8] sm:$0xff]
        %v4109 = vld [vmem:[#allocation4 + $0xf0] sm:$0xff]
        %v4110 = vld [vmem:[#allocation4 + $0xf8] sm:$0xff]
        %v4111 = vpack.c.bf16 %v4048, %v4047
        %v4112 = vpack.c.bf16 %v4050, %v4049
        %v4113 = vpack.c.bf16 %v4052, %v4051
        %v4114 = vpack.c.bf16 %v4054, %v4053
        %v4115 = vpack.c.bf16 %v4056, %v4055
        %v4116 = vpack.c.bf16 %v4058, %v4057
        %v4117 = vpack.c.bf16 %v4060, %v4059
        %v4118 = vpack.c.bf16 %v4062, %v4061
        %v4119 = vpack.c.bf16 %v4064, %v4063
        %v4120 = vpack.c.bf16 %v4066, %v4065
        %v4121 = vpack.c.bf16 %v4068, %v4067
        %v4122 = vpack.c.bf16 %v4070, %v4069
        %v4123 = vpack.c.bf16 %v4072, %v4071
        %v4124 = vpack.c.bf16 %v4074, %v4073
        %v4125 = vpack.c.bf16 %v4076, %v4075
        %v4126 = vpack.c.bf16 %v4078, %v4077
        %v4127 = vld [vmem:[#allocation10] sm:$0xf]
        %v4128 = vld [vmem:[#allocation10 + $0x4] sm:$0xf]
        %v4129 = vld [vmem:[#allocation10 + $0x8] sm:$0xf]
        %v4130 = vld [vmem:[#allocation10 + $0xc] sm:$0xf]
        %v4131 = vld [vmem:[#allocation10 + $0x10] sm:$0xf]
        %v4132 = vld [vmem:[#allocation10 + $0x14] sm:$0xf]
        %v4133 = vld [vmem:[#allocation10 + $0x18] sm:$0xf]
        %v4134 = vld [vmem:[#allocation10 + $0x1c] sm:$0xf]
        %v4135 = vld [vmem:[#allocation10 + $0x20] sm:$0xf]
        %v4136 = vld [vmem:[#allocation10 + $0x24] sm:$0xf]
        %v4137 = vld [vmem:[#allocation10 + $0x28] sm:$0xf]
        %v4138 = vld [vmem:[#allocation10 + $0x2c] sm:$0xf]
        %v4139 = vld [vmem:[#allocation10 + $0x30] sm:$0xf]
        %v4140 = vld [vmem:[#allocation10 + $0x34] sm:$0xf]
        %v4141 = vld [vmem:[#allocation10 + $0x38] sm:$0xf]
        %v4142 = vld [vmem:[#allocation10 + $0x3c] sm:$0xf]
        %v4159 = vunpack.c.l.b16 %v4127
        %v4160 = vunpack.c.l.b16 %v4128
        %v4161 = vunpack.c.l.b16 %v4129
        %v4162 = vunpack.c.l.b16 %v4130
        %v4163 = vunpack.c.l.b16 %v4131
        %v4164 = vunpack.c.l.b16 %v4132
        %v4165 = vunpack.c.l.b16 %v4133
        %v4166 = vunpack.c.l.b16 %v4134
        %v4167 = vunpack.c.l.b16 %v4135
        %v4168 = vunpack.c.l.b16 %v4136
        %v4169 = vunpack.c.l.b16 %v4137
        %v4170 = vunpack.c.l.b16 %v4138
        %v4171 = vunpack.c.l.b16 %v4139
        %v4172 = vunpack.c.l.b16 %v4140
        %v4173 = vunpack.c.l.b16 %v4141
        %v4174 = vunpack.c.l.b16 %v4142
        %v4175 = vpack.c.b16 %v4160, %v4159
        %v4176 = vpack.c.b16 %v4162, %v4161
        %v4177 = vpack.c.b16 %v4164, %v4163
        %v4178 = vpack.c.b16 %v4166, %v4165
        %v4179 = vpack.c.b16 %v4168, %v4167
        %v4180 = vpack.c.b16 %v4170, %v4169
        %v4181 = vpack.c.b16 %v4172, %v4171
        %v4182 = vpack.c.b16 %v4174, %v4173
        %4191 = vmatprep.subr.bf16.mxu0 0
        %4192 = vmatpush1.bf16.msra.mxu0 %v4175
        %4193 = vmatprep.subr.bf16.mxu0 0
        %4194 = vmatpush1.bf16.msra.mxu0 %v4176
        %4195 = vmatprep.subr.bf16.mxu0 0
        %4196 = vmatpush1.bf16.msra.mxu0 %v4177
        %4197 = vmatprep.subr.bf16.mxu0 0
        %4198 = vmatpush1.bf16.msra.mxu0 %v4178
        %4199 = vmatprep.subr.bf16.mxu0 0
        %4200 = vmatpush1.bf16.msra.mxu0 %v4179
        %4201 = vmatprep.subr.bf16.mxu0 0
        %4202 = vmatpush1.bf16.msra.mxu0 %v4180
        %4203 = vmatprep.subr.bf16.mxu0 0
        %4204 = vmatpush1.bf16.msra.mxu0 %v4181
        %4205 = vmatprep.subr.bf16.mxu0 0
        %4206 = vmatpush1.bf16.msra.mxu0 %v4182
        %4207 = vmatprep.subr.bf16.mxu0 0
        %4208 = vmatpush1.bf16.msra.mxu0 0
        %4209 = vmatprep.subr.bf16.mxu0 0
        %4210 = vmatpush1.bf16.msra.mxu0 0
        %4211 = vmatprep.subr.bf16.mxu0 0
        %4212 = vmatpush1.bf16.msra.mxu0 0
        %4213 = vmatprep.subr.bf16.mxu0 0
        %4214 = vmatpush1.bf16.msra.mxu0 0
        %4215 = vmatprep.subr.bf16.mxu0 0
        %4216 = vmatpush1.bf16.msra.mxu0 0
        %4217 = vmatprep.subr.bf16.mxu0 0
        %4218 = vmatpush1.bf16.msra.mxu0 0
        %4219 = vmatprep.subr.bf16.mxu0 0
        %4220 = vmatpush1.bf16.msra.mxu0 0
        %4221 = vmatprep.subr.bf16.mxu0 0
        %4222 = vmatpush1.bf16.msra.mxu0 0
        %4223 = vmatprep.mubr.bf16.mxu0 0
        %4224 = vmatmul.mubr.bf16.gmra.mrb[0].mxu0 %v4111
        %v4225 = vpop.f32.mrb[0].mxu0
        %v4226 = vadd.f32 0.0, %v4225
        %v4227 = vpop.f32.mrb[0].mxu0
        %v4228 = vpop.f32.mrb[0].mxu0
        %v4229 = vadd.f32 0.0, %v4228
        %v4230 = vpop.f32.mrb[0].mxu0
        %4231 = vmatprep.mubr.bf16.mxu0 0
        %4232 = vmatmul.mubr.bf16.gmra.mrb[0].mxu0 %v4112
        %v4233 = vpop.f32.mrb[0].mxu0
        %v4234 = vadd.f32 0.0, %v4233
        %v4235 = vpop.f32.mrb[0].mxu0
        %v4236 = vpop.f32.mrb[0].mxu0
        %v4237 = vadd.f32 0.0, %v4236
        %v4238 = vpop.f32.mrb[0].mxu0
        %4239 = vmatprep.mubr.bf16.mxu0 0
        %4240 = vmatmul.mubr.bf16.gmra.mrb[0].mxu0 %v4113
        %v4241 = vpop.f32.mrb[0].mxu0
        %v4242 = vadd.f32 0.0, %v4241
        %v4243 = vpop.f32.mrb[0].mxu0
        %v4244 = vpop.f32.mrb[0].mxu0
        %v4245 = vadd.f32 0.0, %v4244
        %v4246 = vpop.f32.mrb[0].mxu0
        %4247 = vmatprep.mubr.bf16.mxu0 0
        %4248 = vmatmul.mubr.bf16.gmra.mrb[0].mxu0 %v4114
        %v4249 = vpop.f32.mrb[0].mxu0
        %v4250 = vadd.f32 0.0, %v4249
        %v4251 = vpop.f32.mrb[0].mxu0
        %v4252 = vpop.f32.mrb[0].mxu0
        %v4253 = vadd.f32 0.0, %v4252
        %v4254 = vpop.f32.mrb[0].mxu0
        %4255 = vmatprep.mubr.bf16.mxu0 0
        %4256 = vmatmul.mubr.bf16.gmra.mrb[0].mxu0 %v4115
        %v4257 = vpop.f32.mrb[0].mxu0
        %v4258 = vadd.f32 0.0, %v4257
        %v4259 = vpop.f32.mrb[0].mxu0
        %v4260 = vpop.f32.mrb[0].mxu0
        %v4261 = vadd.f32 0.0, %v4260
        %v4262 = vpop.f32.mrb[0].mxu0
        %4263 = vmatprep.mubr.bf16.mxu0 0
        %4264 = vmatmul.mubr.bf16.gmra.mrb[0].mxu0 %v4116
        %v4265 = vpop.f32.mrb[0].mxu0
        %v4266 = vadd.f32 0.0, %v4265
        %v4267 = vpop.f32.mrb[0].mxu0
        %v4268 = vpop.f32.mrb[0].mxu0
        %v4269 = vadd.f32 0.0, %v4268
        %v4270 = vpop.f32.mrb[0].mxu0
        %4271 = vmatprep.mubr.bf16.mxu0 0
        %4272 = vmatmul.mubr.bf16.gmra.mrb[0].mxu0 %v4117
        %v4273 = vpop.f32.mrb[0].mxu0
        %v4274 = vadd.f32 0.0, %v4273
        %v4275 = vpop.f32.mrb[0].mxu0
        %v4276 = vpop.f32.mrb[0].mxu0
        %v4277 = vadd.f32 0.0, %v4276
        %v4278 = vpop.f32.mrb[0].mxu0
        %4279 = vmatprep.mubr.bf16.mxu0 0
        %4280 = vmatmul.mubr.bf16.gmra.mrb[0].mxu0 %v4118
        %v4281 = vpop.f32.mrb[0].mxu0
        %v4282 = vadd.f32 0.0, %v4281
        %v4283 = vpop.f32.mrb[0].mxu0
        %v4284 = vpop.f32.mrb[0].mxu0
        %v4285 = vadd.f32 0.0, %v4284
        %v4286 = vpop.f32.mrb[0].mxu0
        %4287 = vmatprep.mubr.bf16.mxu0 0
        %4288 = vmatmul.mubr.bf16.gmra.mrb[0].mxu0 %v4119
        %v4289 = vpop.f32.mrb[0].mxu0
        %v4290 = vadd.f32 0.0, %v4289
        %v4291 = vpop.f32.mrb[0].mxu0
        %v4292 = vpop.f32.mrb[0].mxu0
        %v4293 = vadd.f32 0.0, %v4292
        %v4294 = vpop.f32.mrb[0].mxu0
        %4295 = vmatprep.mubr.bf16.mxu0 0
        %4296 = vmatmul.mubr.bf16.gmra.mrb[0].mxu0 %v4120
        %v4297 = vpop.f32.mrb[0].mxu0
        %v4298 = vadd.f32 0.0, %v4297
        %v4299 = vpop.f32.mrb[0].mxu0
        %v4300 = vpop.f32.mrb[0].mxu0
        %v4301 = vadd.f32 0.0, %v4300
        %v4302 = vpop.f32.mrb[0].mxu0
        %4303 = vmatprep.mubr.bf16.mxu0 0
        %4304 = vmatmul.mubr.bf16.gmra.mrb[0].mxu0 %v4121
        %v4305 = vpop.f32.mrb[0].mxu0
        %v4306 = vadd.f32 0.0, %v4305
        %v4307 = vpop.f32.mrb[0].mxu0
        %v4308 = vpop.f32.mrb[0].mxu0
        %v4309 = vadd.f32 0.0, %v4308
        %v4310 = vpop.f32.mrb[0].mxu0
        %4311 = vmatprep.mubr.bf16.mxu0 0
        %4312 = vmatmul.mubr.bf16.gmra.mrb[0].mxu0 %v4122
        %v4313 = vpop.f32.mrb[0].mxu0
        %v4314 = vadd.f32 0.0, %v4313
        %v4315 = vpop.f32.mrb[0].mxu0
        %v4316 = vpop.f32.mrb[0].mxu0
        %v4317 = vadd.f32 0.0, %v4316
        %v4318 = vpop.f32.mrb[0].mxu0
        %4319 = vmatprep.mubr.bf16.mxu0 0
        %4320 = vmatmul.mubr.bf16.gmra.mrb[0].mxu0 %v4123
        %v4321 = vpop.f32.mrb[0].mxu0
        %v4322 = vadd.f32 0.0, %v4321
        %v4323 = vpop.f32.mrb[0].mxu0
        %v4324 = vpop.f32.mrb[0].mxu0
        %v4325 = vadd.f32 0.0, %v4324
        %v4326 = vpop.f32.mrb[0].mxu0
        %4327 = vmatprep.mubr.bf16.mxu0 0
        %4328 = vmatmul.mubr.bf16.gmra.mrb[0].mxu0 %v4124
        %v4329 = vpop.f32.mrb[0].mxu0
        %v4330 = vadd.f32 0.0, %v4329
        %v4331 = vpop.f32.mrb[0].mxu0
        %v4332 = vpop.f32.mrb[0].mxu0
        %v4333 = vadd.f32 0.0, %v4332
        %v4334 = vpop.f32.mrb[0].mxu0
        %4335 = vmatprep.mubr.bf16.mxu0 0
        %4336 = vmatmul.mubr.bf16.gmra.mrb[0].mxu0 %v4125
        %v4337 = vpop.f32.mrb[0].mxu0
        %v4338 = vadd.f32 0.0, %v4337
        %v4339 = vpop.f32.mrb[0].mxu0
        %v4340 = vpop.f32.mrb[0].mxu0
        %v4341 = vadd.f32 0.0, %v4340
        %v4342 = vpop.f32.mrb[0].mxu0
        %4343 = vmatprep.mubr.bf16.mxu0 0
        %4344 = vmatmul.mubr.bf16.gmra.mrb[0].mxu0 %v4126
        %v4345 = vpop.f32.mrb[0].mxu0
        %v4346 = vadd.f32 0.0, %v4345
        %v4347 = vpop.f32.mrb[0].mxu0
        %v4348 = vpop.f32.mrb[0].mxu0
        %v4349 = vadd.f32 0.0, %v4348
        %v4350 = vpop.f32.mrb[0].mxu0
        %4351 = vdwg.mxu0
        %v4352 = vadd.f32 %v4079, %v4226
        %v4353 = vadd.f32 %v4080, %v4229
        %v4354 = vadd.f32 %v4081, %v4234
        %v4355 = vadd.f32 %v4082, %v4237
        %v4356 = vadd.f32 %v4083, %v4242
        %v4357 = vadd.f32 %v4084, %v4245
        %v4358 = vadd.f32 %v4085, %v4250
        %v4359 = vadd.f32 %v4086, %v4253
        %v4360 = vadd.f32 %v4087, %v4258
        %v4361 = vadd.f32 %v4088, %v4261
        %v4362 = vadd.f32 %v4089, %v4266
        %v4363 = vadd.f32 %v4090, %v4269
        %v4364 = vadd.f32 %v4091, %v4274
        %v4365 = vadd.f32 %v4092, %v4277
        %v4366 = vadd.f32 %v4093, %v4282
        %v4367 = vadd.f32 %v4094, %v4285
        %v4368 = vadd.f32 %v4095, %v4290
        %v4369 = vadd.f32 %v4096, %v4293
        %v4370 = vadd.f32 %v4097, %v4298
        %v4371 = vadd.f32 %v4098, %v4301
        %v4372 = vadd.f32 %v4099, %v4306
        %v4373 = vadd.f32 %v4100, %v4309
        %v4374 = vadd.f32 %v4101, %v4314
        %v4375 = vadd.f32 %v4102, %v4317
        %v4376 = vadd.f32 %v4103, %v4322
        %v4377 = vadd.f32 %v4104, %v4325
        %v4378 = vadd.f32 %v4105, %v4330
        %v4379 = vadd.f32 %v4106, %v4333
        %v4380 = vadd.f32 %v4107, %v4338
        %v4381 = vadd.f32 %v4108, %v4341
        %v4382 = vadd.f32 %v4109, %v4346
        %v4383 = vadd.f32 %v4110, %v4349
        %4384 = vst [vmem:[#allocation4] sm:$0xff] %v4352
        %4385 = vst [vmem:[#allocation4 + $0x8] sm:$0xff] %v4353
        %4386 = vst [vmem:[#allocation4 + $0x10] sm:$0xff] %v4354
        %4387 = vst [vmem:[#allocation4 + $0x18] sm:$0xff] %v4355
        %4388 = vst [vmem:[#allocation4 + $0x20] sm:$0xff] %v4356
        %4389 = vst [vmem:[#allocation4 + $0x28] sm:$0xff] %v4357
        %4390 = vst [vmem:[#allocation4 + $0x30] sm:$0xff] %v4358
        %4391 = vst [vmem:[#allocation4 + $0x38] sm:$0xff] %v4359
        %4392 = vst [vmem:[#allocation4 + $0x40] sm:$0xff] %v4360
        %4393 = vst [vmem:[#allocation4 + $0x48] sm:$0xff] %v4361
        %4394 = vst [vmem:[#allocation4 + $0x50] sm:$0xff] %v4362
        %4395 = vst [vmem:[#allocation4 + $0x58] sm:$0xff] %v4363
        %4396 = vst [vmem:[#allocation4 + $0x60] sm:$0xff] %v4364
        %4397 = vst [vmem:[#allocation4 + $0x68] sm:$0xff] %v4365
        %4398 = vst [vmem:[#allocation4 + $0x70] sm:$0xff] %v4366
        %4399 = vst [vmem:[#allocation4 + $0x78] sm:$0xff] %v4367
        %4400 = vst [vmem:[#allocation4 + $0x80] sm:$0xff] %v4368
        %4401 = vst [vmem:[#allocation4 + $0x88] sm:$0xff] %v4369
        %4402 = vst [vmem:[#allocation4 + $0x90] sm:$0xff] %v4370
        %4403 = vst [vmem:[#allocation4 + $0x98] sm:$0xff] %v4371
        %4404 = vst [vmem:[#allocation4 + $0xa0] sm:$0xff] %v4372
        %4405 = vst [vmem:[#allocation4 + $0xa8] sm:$0xff] %v4373
        %4406 = vst [vmem:[#allocation4 + $0xb0] sm:$0xff] %v4374
        %4407 = vst [vmem:[#allocation4 + $0xb8] sm:$0xff] %v4375
        %4408 = vst [vmem:[#allocation4 + $0xc0] sm:$0xff] %v4376
        %4409 = vst [vmem:[#allocation4 + $0xc8] sm:$0xff] %v4377
        %4410 = vst [vmem:[#allocation4 + $0xd0] sm:$0xff] %v4378
        %4411 = vst [vmem:[#allocation4 + $0xd8] sm:$0xff] %v4379
        %4412 = vst [vmem:[#allocation4 + $0xe0] sm:$0xff] %v4380
        %4413 = vst [vmem:[#allocation4 + $0xe8] sm:$0xff] %v4381
        %4414 = vst [vmem:[#allocation4 + $0xf0] sm:$0xff] %v4382
        %4415 = vst [vmem:[#allocation4 + $0xf8] sm:$0xff] %v4383
        %v4416 = vld [vmem:[#allocation3 + $0x1] sm:$0xff]
        %v4417 = vld [vmem:[#allocation3 + $0x9] sm:$0xff]
        %v4418 = vld [vmem:[#allocation3 + $0x19] sm:$0xff]
        %v4419 = vld [vmem:[#allocation3 + $0x21] sm:$0xff]
        %v4420 = vld [vmem:[#allocation3 + $0x31] sm:$0xff]
        %v4421 = vld [vmem:[#allocation3 + $0x39] sm:$0xff]
        %v4422 = vld [vmem:[#allocation3 + $0x49] sm:$0xff]
        %v4423 = vld [vmem:[#allocation3 + $0x51] sm:$0xff]
        %v4424 = vld [vmem:[#allocation3 + $0x61] sm:$0xff]
        %v4425 = vld [vmem:[#allocation3 + $0x69] sm:$0xff]
        %v4426 = vld [vmem:[#allocation3 + $0x79] sm:$0xff]
        %v4427 = vld [vmem:[#allocation3 + $0x81] sm:$0xff]
        %v4428 = vld [vmem:[#allocation3 + $0x91] sm:$0xff]
        %v4429 = vld [vmem:[#allocation3 + $0x99] sm:$0xff]
        %v4430 = vld [vmem:[#allocation3 + $0xa9] sm:$0xff]
        %v4431 = vld [vmem:[#allocation3 + $0xb1] sm:$0xff]
        %v4432 = vld [vmem:[#allocation3 + $0xc1] sm:$0xff]
        %v4433 = vld [vmem:[#allocation3 + $0xc9] sm:$0xff]
        %v4434 = vld [vmem:[#allocation3 + $0xd9] sm:$0xff]
        %v4435 = vld [vmem:[#allocation3 + $0xe1] sm:$0xff]
        %v4436 = vld [vmem:[#allocation3 + $0xf1] sm:$0xff]
        %v4437 = vld [vmem:[#allocation3 + $0xf9] sm:$0xff]
        %v4438 = vld [vmem:[#allocation3 + $0x109] sm:$0xff]
        %v4439 = vld [vmem:[#allocation3 + $0x111] sm:$0xff]
        %v4440 = vld [vmem:[#allocation3 + $0x121] sm:$0xff]
        %v4441 = vld [vmem:[#allocation3 + $0x129] sm:$0xff]
        %v4442 = vld [vmem:[#allocation3 + $0x139] sm:$0xff]
        %v4443 = vld [vmem:[#allocation3 + $0x141] sm:$0xff]
        %v4444 = vld [vmem:[#allocation3 + $0x151] sm:$0xff]
        %v4445 = vld [vmem:[#allocation3 + $0x159] sm:$0xff]
        %v4446 = vld [vmem:[#allocation3 + $0x169] sm:$0xff]
        %v4447 = vld [vmem:[#allocation3 + $0x171] sm:$0xff]
        %v4448 = vld [vmem:[#allocation4] sm:$0xff]
        %v4449 = vld [vmem:[#allocation4 + $0x8] sm:$0xff]
        %v4450 = vld [vmem:[#allocation4 + $0x10] sm:$0xff]
        %v4451 = vld [vmem:[#allocation4 + $0x18] sm:$0xff]
        %v4452 = vld [vmem:[#allocation4 + $0x20] sm:$0xff]
        %v4453 = vld [vmem:[#allocation4 + $0x28] sm:$0xff]
        %v4454 = vld [vmem:[#allocation4 + $0x30] sm:$0xff]
        %v4455 = vld [vmem:[#allocation4 + $0x38] sm:$0xff]
        %v4456 = vld [vmem:[#allocation4 + $0x40] sm:$0xff]
        %v4457 = vld [vmem:[#allocation4 + $0x48] sm:$0xff]
        %v4458 = vld [vmem:[#allocation4 + $0x50] sm:$0xff]
        %v4459 = vld [vmem:[#allocation4 + $0x58] sm:$0xff]
        %v4460 = vld [vmem:[#allocation4 + $0x60] sm:$0xff]
        %v4461 = vld [vmem:[#allocation4 + $0x68] sm:$0xff]
        %v4462 = vld [vmem:[#allocation4 + $0x70] sm:$0xff]
        %v4463 = vld [vmem:[#allocation4 + $0x78] sm:$0xff]
        %v4464 = vld [vmem:[#allocation4 + $0x80] sm:$0xff]
        %v4465 = vld [vmem:[#allocation4 + $0x88] sm:$0xff]
        %v4466 = vld [vmem:[#allocation4 + $0x90] sm:$0xff]
        %v4467 = vld [vmem:[#allocation4 + $0x98] sm:$0xff]
        %v4468 = vld [vmem:[#allocation4 + $0xa0] sm:$0xff]
        %v4469 = vld [vmem:[#allocation4 + $0xa8] sm:$0xff]
        %v4470 = vld [vmem:[#allocation4 + $0xb0] sm:$0xff]
        %v4471 = vld [vmem:[#allocation4 + $0xb8] sm:$0xff]
        %v4472 = vld [vmem:[#allocation4 + $0xc0] sm:$0xff]
        %v4473 = vld [vmem:[#allocation4 + $0xc8] sm:$0xff]
        %v4474 = vld [vmem:[#allocation4 + $0xd0] sm:$0xff]
        %v4475 = vld [vmem:[#allocation4 + $0xd8] sm:$0xff]
        %v4476 = vld [vmem:[#allocation4 + $0xe0] sm:$0xff]
        %v4477 = vld [vmem:[#allocation4 + $0xe8] sm:$0xff]
        %v4478 = vld [vmem:[#allocation4 + $0xf0] sm:$0xff]
        %v4479 = vld [vmem:[#allocation4 + $0xf8] sm:$0xff]
        %v4480 = vpack.c.bf16 %v4417, %v4416
        %v4481 = vpack.c.bf16 %v4419, %v4418
        %v4482 = vpack.c.bf16 %v4421, %v4420
        %v4483 = vpack.c.bf16 %v4423, %v4422
        %v4484 = vpack.c.bf16 %v4425, %v4424
        %v4485 = vpack.c.bf16 %v4427, %v4426
        %v4486 = vpack.c.bf16 %v4429, %v4428
        %v4487 = vpack.c.bf16 %v4431, %v4430
        %v4488 = vpack.c.bf16 %v4433, %v4432
        %v4489 = vpack.c.bf16 %v4435, %v4434
        %v4490 = vpack.c.bf16 %v4437, %v4436
        %v4491 = vpack.c.bf16 %v4439, %v4438
        %v4492 = vpack.c.bf16 %v4441, %v4440
        %v4493 = vpack.c.bf16 %v4443, %v4442
        %v4494 = vpack.c.bf16 %v4445, %v4444
        %v4495 = vpack.c.bf16 %v4447, %v4446
        %s4496 = scalar_lea.vmem [#allocation10], 64
        %v4497 = vld [vmem:[%s4496] sm:$0xf]
        %v4498 = vld [vmem:[%s4496 + $0x4] sm:$0xf]
        %v4499 = vld [vmem:[%s4496 + $0x8] sm:$0xf]
        %v4500 = vld [vmem:[%s4496 + $0xc] sm:$0xf]
        %v4501 = vld [vmem:[%s4496 + $0x10] sm:$0xf]
        %v4502 = vld [vmem:[%s4496 + $0x14] sm:$0xf]
        %v4503 = vld [vmem:[%s4496 + $0x18] sm:$0xf]
        %v4504 = vld [vmem:[%s4496 + $0x1c] sm:$0xf]
        %v4505 = vld [vmem:[%s4496 + $0x20] sm:$0xf]
        %v4506 = vld [vmem:[%s4496 + $0x24] sm:$0xf]
        %v4507 = vld [vmem:[%s4496 + $0x28] sm:$0xf]
        %v4508 = vld [vmem:[%s4496 + $0x2c] sm:$0xf]
        %v4509 = vld [vmem:[%s4496 + $0x30] sm:$0xf]
        %v4510 = vld [vmem:[%s4496 + $0x34] sm:$0xf]
        %v4511 = vld [vmem:[%s4496 + $0x38] sm:$0xf]
        %v4512 = vld [vmem:[%s4496 + $0x3c] sm:$0xf]
        %v4529 = vunpack.c.l.b16 %v4497
        %v4530 = vunpack.c.l.b16 %v4498
        %v4531 = vunpack.c.l.b16 %v4499
        %v4532 = vunpack.c.l.b16 %v4500
        %v4533 = vunpack.c.l.b16 %v4501
        %v4534 = vunpack.c.l.b16 %v4502
        %v4535 = vunpack.c.l.b16 %v4503
        %v4536 = vunpack.c.l.b16 %v4504
        %v4537 = vunpack.c.l.b16 %v4505
        %v4538 = vunpack.c.l.b16 %v4506
        %v4539 = vunpack.c.l.b16 %v4507
        %v4540 = vunpack.c.l.b16 %v4508
        %v4541 = vunpack.c.l.b16 %v4509
        %v4542 = vunpack.c.l.b16 %v4510
        %v4543 = vunpack.c.l.b16 %v4511
        %v4544 = vunpack.c.l.b16 %v4512
        %v4545 = vpack.c.b16 %v4530, %v4529
        %v4546 = vpack.c.b16 %v4532, %v4531
        %v4547 = vpack.c.b16 %v4534, %v4533
        %v4548 = vpack.c.b16 %v4536, %v4535
        %v4549 = vpack.c.b16 %v4538, %v4537
        %v4550 = vpack.c.b16 %v4540, %v4539
        %v4551 = vpack.c.b16 %v4542, %v4541
        %v4552 = vpack.c.b16 %v4544, %v4543
        %4561 = vmatprep.subr.bf16.mxu0 0
        %4562 = vmatpush1.bf16.msra.mxu0 %v4545
        %4563 = vmatprep.subr.bf16.mxu0 0
        %4564 = vmatpush1.bf16.msra.mxu0 %v4546
        %4565 = vmatprep.subr.bf16.mxu0 0
        %4566 = vmatpush1.bf16.msra.mxu0 %v4547
        %4567 = vmatprep.subr.bf16.mxu0 0
        %4568 = vmatpush1.bf16.msra.mxu0 %v4548
        %4569 = vmatprep.subr.bf16.mxu0 0
        %4570 = vmatpush1.bf16.msra.mxu0 %v4549
        %4571 = vmatprep.subr.bf16.mxu0 0
        %4572 = vmatpush1.bf16.msra.mxu0 %v4550
        %4573 = vmatprep.subr.bf16.mxu0 0
        %4574 = vmatpush1.bf16.msra.mxu0 %v4551
        %4575 = vmatprep.subr.bf16.mxu0 0
        %4576 = vmatpush1.bf16.msra.mxu0 %v4552
        %4577 = vmatprep.subr.bf16.mxu0 0
        %4578 = vmatpush1.bf16.msra.mxu0 0
        %4579 = vmatprep.subr.bf16.mxu0 0
        %4580 = vmatpush1.bf16.msra.mxu0 0
        %4581 = vmatprep.subr.bf16.mxu0 0
        %4582 = vmatpush1.bf16.msra.mxu0 0
        %4583 = vmatprep.subr.bf16.mxu0 0
        %4584 = vmatpush1.bf16.msra.mxu0 0
        %4585 = vmatprep.subr.bf16.mxu0 0
        %4586 = vmatpush1.bf16.msra.mxu0 0
        %4587 = vmatprep.subr.bf16.mxu0 0
        %4588 = vmatpush1.bf16.msra.mxu0 0
        %4589 = vmatprep.subr.bf16.mxu0 0
        %4590 = vmatpush1.bf16.msra.mxu0 0
        %4591 = vmatprep.subr.bf16.mxu0 0
        %4592 = vmatpush1.bf16.msra.mxu0 0
        %4593 = vmatprep.mubr.bf16.mxu0 0
        %4594 = vmatmul.mubr.bf16.gmra.mrb[0].mxu0 %v4480
        %v4595 = vpop.f32.mrb[0].mxu0
        %v4596 = vadd.f32 0.0, %v4595
        %v4597 = vpop.f32.mrb[0].mxu0
        %v4598 = vpop.f32.mrb[0].mxu0
        %v4599 = vadd.f32 0.0, %v4598
        %v4600 = vpop.f32.mrb[0].mxu0
        %4601 = vmatprep.mubr.bf16.mxu0 0
        %4602 = vmatmul.mubr.bf16.gmra.mrb[0].mxu0 %v4481
        %v4603 = vpop.f32.mrb[0].mxu0
        %v4604 = vadd.f32 0.0, %v4603
        %v4605 = vpop.f32.mrb[0].mxu0
        %v4606 = vpop.f32.mrb[0].mxu0
        %v4607 = vadd.f32 0.0, %v4606
        %v4608 = vpop.f32.mrb[0].mxu0
        %4609 = vmatprep.mubr.bf16.mxu0 0
        %4610 = vmatmul.mubr.bf16.gmra.mrb[0].mxu0 %v4482
        %v4611 = vpop.f32.mrb[0].mxu0
        %v4612 = vadd.f32 0.0, %v4611
        %v4613 = vpop.f32.mrb[0].mxu0
        %v4614 = vpop.f32.mrb[0].mxu0
        %v4615 = vadd.f32 0.0, %v4614
        %v4616 = vpop.f32.mrb[0].mxu0
        %4617 = vmatprep.mubr.bf16.mxu0 0
        %4618 = vmatmul.mubr.bf16.gmra.mrb[0].mxu0 %v4483
        %v4619 = vpop.f32.mrb[0].mxu0
        %v4620 = vadd.f32 0.0, %v4619
        %v4621 = vpop.f32.mrb[0].mxu0
        %v4622 = vpop.f32.mrb[0].mxu0
        %v4623 = vadd.f32 0.0, %v4622
        %v4624 = vpop.f32.mrb[0].mxu0
        %4625 = vmatprep.mubr.bf16.mxu0 0
        %4626 = vmatmul.mubr.bf16.gmra.mrb[0].mxu0 %v4484
        %v4627 = vpop.f32.mrb[0].mxu0
        %v4628 = vadd.f32 0.0, %v4627
        %v4629 = vpop.f32.mrb[0].mxu0
        %v4630 = vpop.f32.mrb[0].mxu0
        %v4631 = vadd.f32 0.0, %v4630
        %v4632 = vpop.f32.mrb[0].mxu0
        %4633 = vmatprep.mubr.bf16.mxu0 0
        %4634 = vmatmul.mubr.bf16.gmra.mrb[0].mxu0 %v4485
        %v4635 = vpop.f32.mrb[0].mxu0
        %v4636 = vadd.f32 0.0, %v4635
        %v4637 = vpop.f32.mrb[0].mxu0
        %v4638 = vpop.f32.mrb[0].mxu0
        %v4639 = vadd.f32 0.0, %v4638
        %v4640 = vpop.f32.mrb[0].mxu0
        %4641 = vmatprep.mubr.bf16.mxu0 0
        %4642 = vmatmul.mubr.bf16.gmra.mrb[0].mxu0 %v4486
        %v4643 = vpop.f32.mrb[0].mxu0
        %v4644 = vadd.f32 0.0, %v4643
        %v4645 = vpop.f32.mrb[0].mxu0
        %v4646 = vpop.f32.mrb[0].mxu0
        %v4647 = vadd.f32 0.0, %v4646
        %v4648 = vpop.f32.mrb[0].mxu0
        %4649 = vmatprep.mubr.bf16.mxu0 0
        %4650 = vmatmul.mubr.bf16.gmra.mrb[0].mxu0 %v4487
        %v4651 = vpop.f32.mrb[0].mxu0
        %v4652 = vadd.f32 0.0, %v4651
        %v4653 = vpop.f32.mrb[0].mxu0
        %v4654 = vpop.f32.mrb[0].mxu0
        %v4655 = vadd.f32 0.0, %v4654
        %v4656 = vpop.f32.mrb[0].mxu0
        %4657 = vmatprep.mubr.bf16.mxu0 0
        %4658 = vmatmul.mubr.bf16.gmra.mrb[0].mxu0 %v4488
        %v4659 = vpop.f32.mrb[0].mxu0
        %v4660 = vadd.f32 0.0, %v4659
        %v4661 = vpop.f32.mrb[0].mxu0
        %v4662 = vpop.f32.mrb[0].mxu0
        %v4663 = vadd.f32 0.0, %v4662
        %v4664 = vpop.f32.mrb[0].mxu0
        %4665 = vmatprep.mubr.bf16.mxu0 0
        %4666 = vmatmul.mubr.bf16.gmra.mrb[0].mxu0 %v4489
        %v4667 = vpop.f32.mrb[0].mxu0
        %v4668 = vadd.f32 0.0, %v4667
        %v4669 = vpop.f32.mrb[0].mxu0
        %v4670 = vpop.f32.mrb[0].mxu0
        %v4671 = vadd.f32 0.0, %v4670
        %v4672 = vpop.f32.mrb[0].mxu0
        %4673 = vmatprep.mubr.bf16.mxu0 0
        %4674 = vmatmul.mubr.bf16.gmra.mrb[0].mxu0 %v4490
        %v4675 = vpop.f32.mrb[0].mxu0
        %v4676 = vadd.f32 0.0, %v4675
        %v4677 = vpop.f32.mrb[0].mxu0
        %v4678 = vpop.f32.mrb[0].mxu0
        %v4679 = vadd.f32 0.0, %v4678
        %v4680 = vpop.f32.mrb[0].mxu0
        %4681 = vmatprep.mubr.bf16.mxu0 0
        %4682 = vmatmul.mubr.bf16.gmra.mrb[0].mxu0 %v4491
        %v4683 = vpop.f32.mrb[0].mxu0
        %v4684 = vadd.f32 0.0, %v4683
        %v4685 = vpop.f32.mrb[0].mxu0
        %v4686 = vpop.f32.mrb[0].mxu0
        %v4687 = vadd.f32 0.0, %v4686
        %v4688 = vpop.f32.mrb[0].mxu0
        %4689 = vmatprep.mubr.bf16.mxu0 0
        %4690 = vmatmul.mubr.bf16.gmra.mrb[0].mxu0 %v4492
        %v4691 = vpop.f32.mrb[0].mxu0
        %v4692 = vadd.f32 0.0, %v4691
        %v4693 = vpop.f32.mrb[0].mxu0
        %v4694 = vpop.f32.mrb[0].mxu0
        %v4695 = vadd.f32 0.0, %v4694
        %v4696 = vpop.f32.mrb[0].mxu0
        %4697 = vmatprep.mubr.bf16.mxu0 0
        %4698 = vmatmul.mubr.bf16.gmra.mrb[0].mxu0 %v4493
        %v4699 = vpop.f32.mrb[0].mxu0
        %v4700 = vadd.f32 0.0, %v4699
        %v4701 = vpop.f32.mrb[0].mxu0
        %v4702 = vpop.f32.mrb[0].mxu0
        %v4703 = vadd.f32 0.0, %v4702
        %v4704 = vpop.f32.mrb[0].mxu0
        %4705 = vmatprep.mubr.bf16.mxu0 0
        %4706 = vmatmul.mubr.bf16.gmra.mrb[0].mxu0 %v4494
        %v4707 = vpop.f32.mrb[0].mxu0
        %v4708 = vadd.f32 0.0, %v4707
        %v4709 = vpop.f32.mrb[0].mxu0
        %v4710 = vpop.f32.mrb[0].mxu0
        %v4711 = vadd.f32 0.0, %v4710
        %v4712 = vpop.f32.mrb[0].mxu0
        %4713 = vmatprep.mubr.bf16.mxu0 0
        %4714 = vmatmul.mubr.bf16.gmra.mrb[0].mxu0 %v4495
        %v4715 = vpop.f32.mrb[0].mxu0
        %v4716 = vadd.f32 0.0, %v4715
        %v4717 = vpop.f32.mrb[0].mxu0
        %v4718 = vpop.f32.mrb[0].mxu0
        %v4719 = vadd.f32 0.0, %v4718
        %v4720 = vpop.f32.mrb[0].mxu0
        %4721 = vdwg.mxu0
        %v4722 = vadd.f32 %v4448, %v4596
        %v4723 = vadd.f32 %v4449, %v4599
        %v4724 = vadd.f32 %v4450, %v4604
        %v4725 = vadd.f32 %v4451, %v4607
        %v4726 = vadd.f32 %v4452, %v4612
        %v4727 = vadd.f32 %v4453, %v4615
        %v4728 = vadd.f32 %v4454, %v4620
        %v4729 = vadd.f32 %v4455, %v4623
        %v4730 = vadd.f32 %v4456, %v4628
        %v4731 = vadd.f32 %v4457, %v4631
        %v4732 = vadd.f32 %v4458, %v4636
        %v4733 = vadd.f32 %v4459, %v4639
        %v4734 = vadd.f32 %v4460, %v4644
        %v4735 = vadd.f32 %v4461, %v4647
        %v4736 = vadd.f32 %v4462, %v4652
        %v4737 = vadd.f32 %v4463, %v4655
        %v4738 = vadd.f32 %v4464, %v4660
        %v4739 = vadd.f32 %v4465, %v4663
        %v4740 = vadd.f32 %v4466, %v4668
        %v4741 = vadd.f32 %v4467, %v4671
        %v4742 = vadd.f32 %v4468, %v4676
        %v4743 = vadd.f32 %v4469, %v4679
        %v4744 = vadd.f32 %v4470, %v4684
        %v4745 = vadd.f32 %v4471, %v4687
        %v4746 = vadd.f32 %v4472, %v4692
        %v4747 = vadd.f32 %v4473, %v4695
        %v4748 = vadd.f32 %v4474, %v4700
        %v4749 = vadd.f32 %v4475, %v4703
        %v4750 = vadd.f32 %v4476, %v4708
        %v4751 = vadd.f32 %v4477, %v4711
        %v4752 = vadd.f32 %v4478, %v4716
        %v4753 = vadd.f32 %v4479, %v4719
        %4754 = vst [vmem:[#allocation4] sm:$0xff] %v4722
        %4755 = vst [vmem:[#allocation4 + $0x8] sm:$0xff] %v4723
        %4756 = vst [vmem:[#allocation4 + $0x10] sm:$0xff] %v4724
        %4757 = vst [vmem:[#allocation4 + $0x18] sm:$0xff] %v4725
        %4758 = vst [vmem:[#allocation4 + $0x20] sm:$0xff] %v4726
        %4759 = vst [vmem:[#allocation4 + $0x28] sm:$0xff] %v4727
        %4760 = vst [vmem:[#allocation4 + $0x30] sm:$0xff] %v4728
        %4761 = vst [vmem:[#allocation4 + $0x38] sm:$0xff] %v4729
        %4762 = vst [vmem:[#allocation4 + $0x40] sm:$0xff] %v4730
        %4763 = vst [vmem:[#allocation4 + $0x48] sm:$0xff] %v4731
        %4764 = vst [vmem:[#allocation4 + $0x50] sm:$0xff] %v4732
        %4765 = vst [vmem:[#allocation4 + $0x58] sm:$0xff] %v4733
        %4766 = vst [vmem:[#allocation4 + $0x60] sm:$0xff] %v4734
        %4767 = vst [vmem:[#allocation4 + $0x68] sm:$0xff] %v4735
        %4768 = vst [vmem:[#allocation4 + $0x70] sm:$0xff] %v4736
        %4769 = vst [vmem:[#allocation4 + $0x78] sm:$0xff] %v4737
        %4770 = vst [vmem:[#allocation4 + $0x80] sm:$0xff] %v4738
        %4771 = vst [vmem:[#allocation4 + $0x88] sm:$0xff] %v4739
        %4772 = vst [vmem:[#allocation4 + $0x90] sm:$0xff] %v4740
        %4773 = vst [vmem:[#allocation4 + $0x98] sm:$0xff] %v4741
        %4774 = vst [vmem:[#allocation4 + $0xa0] sm:$0xff] %v4742
        %4775 = vst [vmem:[#allocation4 + $0xa8] sm:$0xff] %v4743
        %4776 = vst [vmem:[#allocation4 + $0xb0] sm:$0xff] %v4744
        %4777 = vst [vmem:[#allocation4 + $0xb8] sm:$0xff] %v4745
        %4778 = vst [vmem:[#allocation4 + $0xc0] sm:$0xff] %v4746
        %4779 = vst [vmem:[#allocation4 + $0xc8] sm:$0xff] %v4747
        %4780 = vst [vmem:[#allocation4 + $0xd0] sm:$0xff] %v4748
        %4781 = vst [vmem:[#allocation4 + $0xd8] sm:$0xff] %v4749
        %4782 = vst [vmem:[#allocation4 + $0xe0] sm:$0xff] %v4750
        %4783 = vst [vmem:[#allocation4 + $0xe8] sm:$0xff] %v4751
        %4784 = vst [vmem:[#allocation4 + $0xf0] sm:$0xff] %v4752
        %4785 = vst [vmem:[#allocation4 + $0xf8] sm:$0xff] %v4753
        %v4786 = vld [vmem:[#allocation3 + $0x2] sm:$0xff]
        %v4787 = vld [vmem:[#allocation3 + $0xa] sm:$0xff]
        %v4788 = vld [vmem:[#allocation3 + $0x1a] sm:$0xff]
        %v4789 = vld [vmem:[#allocation3 + $0x22] sm:$0xff]
        %v4790 = vld [vmem:[#allocation3 + $0x32] sm:$0xff]
        %v4791 = vld [vmem:[#allocation3 + $0x3a] sm:$0xff]
        %v4792 = vld [vmem:[#allocation3 + $0x4a] sm:$0xff]
        %v4793 = vld [vmem:[#allocation3 + $0x52] sm:$0xff]
        %v4794 = vld [vmem:[#allocation3 + $0x62] sm:$0xff]
        %v4795 = vld [vmem:[#allocation3 + $0x6a] sm:$0xff]
        %v4796 = vld [vmem:[#allocation3 + $0x7a] sm:$0xff]
        %v4797 = vld [vmem:[#allocation3 + $0x82] sm:$0xff]
        %v4798 = vld [vmem:[#allocation3 + $0x92] sm:$0xff]
        %v4799 = vld [vmem:[#allocation3 + $0x9a] sm:$0xff]
        %v4800 = vld [vmem:[#allocation3 + $0xaa] sm:$0xff]
        %v4801 = vld [vmem:[#allocation3 + $0xb2] sm:$0xff]
        %v4802 = vld [vmem:[#allocation3 + $0xc2] sm:$0xff]
        %v4803 = vld [vmem:[#allocation3 + $0xca] sm:$0xff]
        %v4804 = vld [vmem:[#allocation3 + $0xda] sm:$0xff]
        %v4805 = vld [vmem:[#allocation3 + $0xe2] sm:$0xff]
        %v4806 = vld [vmem:[#allocation3 + $0xf2] sm:$0xff]
        %v4807 = vld [vmem:[#allocation3 + $0xfa] sm:$0xff]
        %v4808 = vld [vmem:[#allocation3 + $0x10a] sm:$0xff]
        %v4809 = vld [vmem:[#allocation3 + $0x112] sm:$0xff]
        %v4810 = vld [vmem:[#allocation3 + $0x122] sm:$0xff]
        %v4811 = vld [vmem:[#allocation3 + $0x12a] sm:$0xff]
        %v4812 = vld [vmem:[#allocation3 + $0x13a] sm:$0xff]
        %v4813 = vld [vmem:[#allocation3 + $0x142] sm:$0xff]
        %v4814 = vld [vmem:[#allocation3 + $0x152] sm:$0xff]
        %v4815 = vld [vmem:[#allocation3 + $0x15a] sm:$0xff]
        %v4816 = vld [vmem:[#allocation3 + $0x16a] sm:$0xff]
        %v4817 = vld [vmem:[#allocation3 + $0x172] sm:$0xff]
        %v4818 = vld [vmem:[#allocation4] sm:$0xff]
        %v4819 = vld [vmem:[#allocation4 + $0x8] sm:$0xff]
        %v4820 = vld [vmem:[#allocation4 + $0x10] sm:$0xff]
        %v4821 = vld [vmem:[#allocation4 + $0x18] sm:$0xff]
        %v4822 = vld [vmem:[#allocation4 + $0x20] sm:$0xff]
        %v4823 = vld [vmem:[#allocation4 + $0x28] sm:$0xff]
        %v4824 = vld [vmem:[#allocation4 + $0x30] sm:$0xff]
        %v4825 = vld [vmem:[#allocation4 + $0x38] sm:$0xff]
        %v4826 = vld [vmem:[#allocation4 + $0x40] sm:$0xff]
        %v4827 = vld [vmem:[#allocation4 + $0x48] sm:$0xff]
        %v4828 = vld [vmem:[#allocation4 + $0x50] sm:$0xff]
        %v4829 = vld [vmem:[#allocation4 + $0x58] sm:$0xff]
        %v4830 = vld [vmem:[#allocation4 + $0x60] sm:$0xff]
        %v4831 = vld [vmem:[#allocation4 + $0x68] sm:$0xff]
        %v4832 = vld [vmem:[#allocation4 + $0x70] sm:$0xff]
        %v4833 = vld [vmem:[#allocation4 + $0x78] sm:$0xff]
        %v4834 = vld [vmem:[#allocation4 + $0x80] sm:$0xff]
        %v4835 = vld [vmem:[#allocation4 + $0x88] sm:$0xff]
        %v4836 = vld [vmem:[#allocation4 + $0x90] sm:$0xff]
        %v4837 = vld [vmem:[#allocation4 + $0x98] sm:$0xff]
        %v4838 = vld [vmem:[#allocation4 + $0xa0] sm:$0xff]
        %v4839 = vld [vmem:[#allocation4 + $0xa8] sm:$0xff]
        %v4840 = vld [vmem:[#allocation4 + $0xb0] sm:$0xff]
        %v4841 = vld [vmem:[#allocation4 + $0xb8] sm:$0xff]
        %v4842 = vld [vmem:[#allocation4 + $0xc0] sm:$0xff]
        %v4843 = vld [vmem:[#allocation4 + $0xc8] sm:$0xff]
        %v4844 = vld [vmem:[#allocation4 + $0xd0] sm:$0xff]
        %v4845 = vld [vmem:[#allocation4 + $0xd8] sm:$0xff]
        %v4846 = vld [vmem:[#allocation4 + $0xe0] sm:$0xff]
        %v4847 = vld [vmem:[#allocation4 + $0xe8] sm:$0xff]
        %v4848 = vld [vmem:[#allocation4 + $0xf0] sm:$0xff]
        %v4849 = vld [vmem:[#allocation4 + $0xf8] sm:$0xff]
        %v4850 = vpack.c.bf16 %v4787, %v4786
        %v4851 = vpack.c.bf16 %v4789, %v4788
        %v4852 = vpack.c.bf16 %v4791, %v4790
        %v4853 = vpack.c.bf16 %v4793, %v4792
        %v4854 = vpack.c.bf16 %v4795, %v4794
        %v4855 = vpack.c.bf16 %v4797, %v4796
        %v4856 = vpack.c.bf16 %v4799, %v4798
        %v4857 = vpack.c.bf16 %v4801, %v4800
        %v4858 = vpack.c.bf16 %v4803, %v4802
        %v4859 = vpack.c.bf16 %v4805, %v4804
        %v4860 = vpack.c.bf16 %v4807, %v4806
        %v4861 = vpack.c.bf16 %v4809, %v4808
        %v4862 = vpack.c.bf16 %v4811, %v4810
        %v4863 = vpack.c.bf16 %v4813, %v4812
        %v4864 = vpack.c.bf16 %v4815, %v4814
        %v4865 = vpack.c.bf16 %v4817, %v4816
        %s4866 = scalar_lea.vmem [#allocation10], 128
        %v4867 = vld [vmem:[%s4866] sm:$0xf]
        %v4868 = vld [vmem:[%s4866 + $0x4] sm:$0xf]
        %v4869 = vld [vmem:[%s4866 + $0x8] sm:$0xf]
        %v4870 = vld [vmem:[%s4866 + $0xc] sm:$0xf]
        %v4871 = vld [vmem:[%s4866 + $0x10] sm:$0xf]
        %v4872 = vld [vmem:[%s4866 + $0x14] sm:$0xf]
        %v4873 = vld [vmem:[%s4866 + $0x18] sm:$0xf]
        %v4874 = vld [vmem:[%s4866 + $0x1c] sm:$0xf]
        %v4875 = vld [vmem:[%s4866 + $0x20] sm:$0xf]
        %v4876 = vld [vmem:[%s4866 + $0x24] sm:$0xf]
        %v4877 = vld [vmem:[%s4866 + $0x28] sm:$0xf]
        %v4878 = vld [vmem:[%s4866 + $0x2c] sm:$0xf]
        %v4879 = vld [vmem:[%s4866 + $0x30] sm:$0xf]
        %v4880 = vld [vmem:[%s4866 + $0x34] sm:$0xf]
        %v4881 = vld [vmem:[%s4866 + $0x38] sm:$0xf]
        %v4882 = vld [vmem:[%s4866 + $0x3c] sm:$0xf]
        %v4899 = vunpack.c.l.b16 %v4867
        %v4900 = vunpack.c.l.b16 %v4868
        %v4901 = vunpack.c.l.b16 %v4869
        %v4902 = vunpack.c.l.b16 %v4870
        %v4903 = vunpack.c.l.b16 %v4871
        %v4904 = vunpack.c.l.b16 %v4872
        %v4905 = vunpack.c.l.b16 %v4873
        %v4906 = vunpack.c.l.b16 %v4874
        %v4907 = vunpack.c.l.b16 %v4875
        %v4908 = vunpack.c.l.b16 %v4876
        %v4909 = vunpack.c.l.b16 %v4877
        %v4910 = vunpack.c.l.b16 %v4878
        %v4911 = vunpack.c.l.b16 %v4879
        %v4912 = vunpack.c.l.b16 %v4880
        %v4913 = vunpack.c.l.b16 %v4881
        %v4914 = vunpack.c.l.b16 %v4882
        %v4915 = vpack.c.b16 %v4900, %v4899
        %v4916 = vpack.c.b16 %v4902, %v4901
        %v4917 = vpack.c.b16 %v4904, %v4903
        %v4918 = vpack.c.b16 %v4906, %v4905
        %v4919 = vpack.c.b16 %v4908, %v4907
        %v4920 = vpack.c.b16 %v4910, %v4909
        %v4921 = vpack.c.b16 %v4912, %v4911
        %v4922 = vpack.c.b16 %v4914, %v4913
        %4931 = vmatprep.subr.bf16.mxu0 0
        %4932 = vmatpush1.bf16.msra.mxu0 %v4915
        %4933 = vmatprep.subr.bf16.mxu0 0
        %4934 = vmatpush1.bf16.msra.mxu0 %v4916
        %4935 = vmatprep.subr.bf16.mxu0 0
        %4936 = vmatpush1.bf16.msra.mxu0 %v4917
        %4937 = vmatprep.subr.bf16.mxu0 0
        %4938 = vmatpush1.bf16.msra.mxu0 %v4918
        %4939 = vmatprep.subr.bf16.mxu0 0
        %4940 = vmatpush1.bf16.msra.mxu0 %v4919
        %4941 = vmatprep.subr.bf16.mxu0 0
        %4942 = vmatpush1.bf16.msra.mxu0 %v4920
        %4943 = vmatprep.subr.bf16.mxu0 0
        %4944 = vmatpush1.bf16.msra.mxu0 %v4921
        %4945 = vmatprep.subr.bf16.mxu0 0
        %4946 = vmatpush1.bf16.msra.mxu0 %v4922
        %4947 = vmatprep.subr.bf16.mxu0 0
        %4948 = vmatpush1.bf16.msra.mxu0 0
        %4949 = vmatprep.subr.bf16.mxu0 0
        %4950 = vmatpush1.bf16.msra.mxu0 0
        %4951 = vmatprep.subr.bf16.mxu0 0
        %4952 = vmatpush1.bf16.msra.mxu0 0
        %4953 = vmatprep.subr.bf16.mxu0 0
        %4954 = vmatpush1.bf16.msra.mxu0 0
        %4955 = vmatprep.subr.bf16.mxu0 0
        %4956 = vmatpush1.bf16.msra.mxu0 0
        %4957 = vmatprep.subr.bf16.mxu0 0
        %4958 = vmatpush1.bf16.msra.mxu0 0
        %4959 = vmatprep.subr.bf16.mxu0 0
        %4960 = vmatpush1.bf16.msra.mxu0 0
        %4961 = vmatprep.subr.bf16.mxu0 0
        %4962 = vmatpush1.bf16.msra.mxu0 0
        %4963 = vmatprep.mubr.bf16.mxu0 0
        %4964 = vmatmul.mubr.bf16.gmra.mrb[0].mxu0 %v4850
        %v4965 = vpop.f32.mrb[0].mxu0
        %v4966 = vadd.f32 0.0, %v4965
        %v4967 = vpop.f32.mrb[0].mxu0
        %v4968 = vpop.f32.mrb[0].mxu0
        %v4969 = vadd.f32 0.0, %v4968
        %v4970 = vpop.f32.mrb[0].mxu0
        %4971 = vmatprep.mubr.bf16.mxu0 0
        %4972 = vmatmul.mubr.bf16.gmra.mrb[0].mxu0 %v4851
        %v4973 = vpop.f32.mrb[0].mxu0
        %v4974 = vadd.f32 0.0, %v4973
        %v4975 = vpop.f32.mrb[0].mxu0
        %v4976 = vpop.f32.mrb[0].mxu0
        %v4977 = vadd.f32 0.0, %v4976
        %v4978 = vpop.f32.mrb[0].mxu0
        %4979 = vmatprep.mubr.bf16.mxu0 0
        %4980 = vmatmul.mubr.bf16.gmra.mrb[0].mxu0 %v4852
        %v4981 = vpop.f32.mrb[0].mxu0
        %v4982 = vadd.f32 0.0, %v4981
        %v4983 = vpop.f32.mrb[0].mxu0
        %v4984 = vpop.f32.mrb[0].mxu0
        %v4985 = vadd.f32 0.0, %v4984
        %v4986 = vpop.f32.mrb[0].mxu0
        %4987 = vmatprep.mubr.bf16.mxu0 0
        %4988 = vmatmul.mubr.bf16.gmra.mrb[0].mxu0 %v4853
        %v4989 = vpop.f32.mrb[0].mxu0
        %v4990 = vadd.f32 0.0, %v4989
        %v4991 = vpop.f32.mrb[0].mxu0
        %v4992 = vpop.f32.mrb[0].mxu0
        %v4993 = vadd.f32 0.0, %v4992
        %v4994 = vpop.f32.mrb[0].mxu0
        %4995 = vmatprep.mubr.bf16.mxu0 0
        %4996 = vmatmul.mubr.bf16.gmra.mrb[0].mxu0 %v4854
        %v4997 = vpop.f32.mrb[0].mxu0
        %v4998 = vadd.f32 0.0, %v4997
        %v4999 = vpop.f32.mrb[0].mxu0
        %v5000 = vpop.f32.mrb[0].mxu0
        %v5001 = vadd.f32 0.0, %v5000
        %v5002 = vpop.f32.mrb[0].mxu0
        %5003 = vmatprep.mubr.bf16.mxu0 0
        %5004 = vmatmul.mubr.bf16.gmra.mrb[0].mxu0 %v4855
        %v5005 = vpop.f32.mrb[0].mxu0
        %v5006 = vadd.f32 0.0, %v5005
        %v5007 = vpop.f32.mrb[0].mxu0
        %v5008 = vpop.f32.mrb[0].mxu0
        %v5009 = vadd.f32 0.0, %v5008
        %v5010 = vpop.f32.mrb[0].mxu0
        %5011 = vmatprep.mubr.bf16.mxu0 0
        %5012 = vmatmul.mubr.bf16.gmra.mrb[0].mxu0 %v4856
        %v5013 = vpop.f32.mrb[0].mxu0
        %v5014 = vadd.f32 0.0, %v5013
        %v5015 = vpop.f32.mrb[0].mxu0
        %v5016 = vpop.f32.mrb[0].mxu0
        %v5017 = vadd.f32 0.0, %v5016
        %v5018 = vpop.f32.mrb[0].mxu0
        %5019 = vmatprep.mubr.bf16.mxu0 0
        %5020 = vmatmul.mubr.bf16.gmra.mrb[0].mxu0 %v4857
        %v5021 = vpop.f32.mrb[0].mxu0
        %v5022 = vadd.f32 0.0, %v5021
        %v5023 = vpop.f32.mrb[0].mxu0
        %v5024 = vpop.f32.mrb[0].mxu0
        %v5025 = vadd.f32 0.0, %v5024
        %v5026 = vpop.f32.mrb[0].mxu0
        %5027 = vmatprep.mubr.bf16.mxu0 0
        %5028 = vmatmul.mubr.bf16.gmra.mrb[0].mxu0 %v4858
        %v5029 = vpop.f32.mrb[0].mxu0
        %v5030 = vadd.f32 0.0, %v5029
        %v5031 = vpop.f32.mrb[0].mxu0
        %v5032 = vpop.f32.mrb[0].mxu0
        %v5033 = vadd.f32 0.0, %v5032
        %v5034 = vpop.f32.mrb[0].mxu0
        %5035 = vmatprep.mubr.bf16.mxu0 0
        %5036 = vmatmul.mubr.bf16.gmra.mrb[0].mxu0 %v4859
        %v5037 = vpop.f32.mrb[0].mxu0
        %v5038 = vadd.f32 0.0, %v5037
        %v5039 = vpop.f32.mrb[0].mxu0
        %v5040 = vpop.f32.mrb[0].mxu0
        %v5041 = vadd.f32 0.0, %v5040
        %v5042 = vpop.f32.mrb[0].mxu0
        %5043 = vmatprep.mubr.bf16.mxu0 0
        %5044 = vmatmul.mubr.bf16.gmra.mrb[0].mxu0 %v4860
        %v5045 = vpop.f32.mrb[0].mxu0
        %v5046 = vadd.f32 0.0, %v5045
        %v5047 = vpop.f32.mrb[0].mxu0
        %v5048 = vpop.f32.mrb[0].mxu0
        %v5049 = vadd.f32 0.0, %v5048
        %v5050 = vpop.f32.mrb[0].mxu0
        %5051 = vmatprep.mubr.bf16.mxu0 0
        %5052 = vmatmul.mubr.bf16.gmra.mrb[0].mxu0 %v4861
        %v5053 = vpop.f32.mrb[0].mxu0
        %v5054 = vadd.f32 0.0, %v5053
        %v5055 = vpop.f32.mrb[0].mxu0
        %v5056 = vpop.f32.mrb[0].mxu0
        %v5057 = vadd.f32 0.0, %v5056
        %v5058 = vpop.f32.mrb[0].mxu0
        %5059 = vmatprep.mubr.bf16.mxu0 0
        %5060 = vmatmul.mubr.bf16.gmra.mrb[0].mxu0 %v4862
        %v5061 = vpop.f32.mrb[0].mxu0
        %v5062 = vadd.f32 0.0, %v5061
        %v5063 = vpop.f32.mrb[0].mxu0
        %v5064 = vpop.f32.mrb[0].mxu0
        %v5065 = vadd.f32 0.0, %v5064
        %v5066 = vpop.f32.mrb[0].mxu0
        %5067 = vmatprep.mubr.bf16.mxu0 0
        %5068 = vmatmul.mubr.bf16.gmra.mrb[0].mxu0 %v4863
        %v5069 = vpop.f32.mrb[0].mxu0
        %v5070 = vadd.f32 0.0, %v5069
        %v5071 = vpop.f32.mrb[0].mxu0
        %v5072 = vpop.f32.mrb[0].mxu0
        %v5073 = vadd.f32 0.0, %v5072
        %v5074 = vpop.f32.mrb[0].mxu0
        %5075 = vmatprep.mubr.bf16.mxu0 0
        %5076 = vmatmul.mubr.bf16.gmra.mrb[0].mxu0 %v4864
        %v5077 = vpop.f32.mrb[0].mxu0
        %v5078 = vadd.f32 0.0, %v5077
        %v5079 = vpop.f32.mrb[0].mxu0
        %v5080 = vpop.f32.mrb[0].mxu0
        %v5081 = vadd.f32 0.0, %v5080
        %v5082 = vpop.f32.mrb[0].mxu0
        %5083 = vmatprep.mubr.bf16.mxu0 0
        %5084 = vmatmul.mubr.bf16.gmra.mrb[0].mxu0 %v4865
        %v5085 = vpop.f32.mrb[0].mxu0
        %v5086 = vadd.f32 0.0, %v5085
        %v5087 = vpop.f32.mrb[0].mxu0
        %v5088 = vpop.f32.mrb[0].mxu0
        %v5089 = vadd.f32 0.0, %v5088
        %v5090 = vpop.f32.mrb[0].mxu0
        %5091 = vdwg.mxu0
        %v5092 = vadd.f32 %v4818, %v4966
        %v5093 = vadd.f32 %v4819, %v4969
        %v5094 = vadd.f32 %v4820, %v4974
        %v5095 = vadd.f32 %v4821, %v4977
        %v5096 = vadd.f32 %v4822, %v4982
        %v5097 = vadd.f32 %v4823, %v4985
        %v5098 = vadd.f32 %v4824, %v4990
        %v5099 = vadd.f32 %v4825, %v4993
        %v5100 = vadd.f32 %v4826, %v4998
        %v5101 = vadd.f32 %v4827, %v5001
        %v5102 = vadd.f32 %v4828, %v5006
        %v5103 = vadd.f32 %v4829, %v5009
        %v5104 = vadd.f32 %v4830, %v5014
        %v5105 = vadd.f32 %v4831, %v5017
        %v5106 = vadd.f32 %v4832, %v5022
        %v5107 = vadd.f32 %v4833, %v5025
        %v5108 = vadd.f32 %v4834, %v5030
        %v5109 = vadd.f32 %v4835, %v5033
        %v5110 = vadd.f32 %v4836, %v5038
        %v5111 = vadd.f32 %v4837, %v5041
        %v5112 = vadd.f32 %v4838, %v5046
        %v5113 = vadd.f32 %v4839, %v5049
        %v5114 = vadd.f32 %v4840, %v5054
        %v5115 = vadd.f32 %v4841, %v5057
        %v5116 = vadd.f32 %v4842, %v5062
        %v5117 = vadd.f32 %v4843, %v5065
        %v5118 = vadd.f32 %v4844, %v5070
        %v5119 = vadd.f32 %v4845, %v5073
        %v5120 = vadd.f32 %v4846, %v5078
        %v5121 = vadd.f32 %v4847, %v5081
        %v5122 = vadd.f32 %v4848, %v5086
        %v5123 = vadd.f32 %v4849, %v5089
        %5124 = vst [vmem:[#allocation4] sm:$0xff] %v5092
        %5125 = vst [vmem:[#allocation4 + $0x8] sm:$0xff] %v5093
        %5126 = vst [vmem:[#allocation4 + $0x10] sm:$0xff] %v5094
        %5127 = vst [vmem:[#allocation4 + $0x18] sm:$0xff] %v5095
        %5128 = vst [vmem:[#allocation4 + $0x20] sm:$0xff] %v5096
        %5129 = vst [vmem:[#allocation4 + $0x28] sm:$0xff] %v5097
        %5130 = vst [vmem:[#allocation4 + $0x30] sm:$0xff] %v5098
        %5131 = vst [vmem:[#allocation4 + $0x38] sm:$0xff] %v5099
        %5132 = vst [vmem:[#allocation4 + $0x40] sm:$0xff] %v5100
        %5133 = vst [vmem:[#allocation4 + $0x48] sm:$0xff] %v5101
        %5134 = vst [vmem:[#allocation4 + $0x50] sm:$0xff] %v5102
        %5135 = vst [vmem:[#allocation4 + $0x58] sm:$0xff] %v5103
        %5136 = vst [vmem:[#allocation4 + $0x60] sm:$0xff] %v5104
        %5137 = vst [vmem:[#allocation4 + $0x68] sm:$0xff] %v5105
        %5138 = vst [vmem:[#allocation4 + $0x70] sm:$0xff] %v5106
        %5139 = vst [vmem:[#allocation4 + $0x78] sm:$0xff] %v5107
        %5140 = vst [vmem:[#allocation4 + $0x80] sm:$0xff] %v5108
        %5141 = vst [vmem:[#allocation4 + $0x88] sm:$0xff] %v5109
        %5142 = vst [vmem:[#allocation4 + $0x90] sm:$0xff] %v5110
        %5143 = vst [vmem:[#allocation4 + $0x98] sm:$0xff] %v5111
        %5144 = vst [vmem:[#allocation4 + $0xa0] sm:$0xff] %v5112
        %5145 = vst [vmem:[#allocation4 + $0xa8] sm:$0xff] %v5113
        %5146 = vst [vmem:[#allocation4 + $0xb0] sm:$0xff] %v5114
        %5147 = vst [vmem:[#allocation4 + $0xb8] sm:$0xff] %v5115
        %5148 = vst [vmem:[#allocation4 + $0xc0] sm:$0xff] %v5116
        %5149 = vst [vmem:[#allocation4 + $0xc8] sm:$0xff] %v5117
        %5150 = vst [vmem:[#allocation4 + $0xd0] sm:$0xff] %v5118
        %5151 = vst [vmem:[#allocation4 + $0xd8] sm:$0xff] %v5119
        %5152 = vst [vmem:[#allocation4 + $0xe0] sm:$0xff] %v5120
        %5153 = vst [vmem:[#allocation4 + $0xe8] sm:$0xff] %v5121
        %5154 = vst [vmem:[#allocation4 + $0xf0] sm:$0xff] %v5122
        %5155 = vst [vmem:[#allocation4 + $0xf8] sm:$0xff] %v5123
        %v5156 = vld [vmem:[%s3982] sm:$0xff]
        %v5157 = vld [vmem:[%s3982 + $0x8] sm:$0xff]
        %v5158 = vld [vmem:[%s3982 + $0x18] sm:$0xff]
        %v5159 = vld [vmem:[%s3982 + $0x20] sm:$0xff]
        %v5160 = vld [vmem:[%s3982 + $0x30] sm:$0xff]
        %v5161 = vld [vmem:[%s3982 + $0x38] sm:$0xff]
        %v5162 = vld [vmem:[%s3982 + $0x48] sm:$0xff]
        %v5163 = vld [vmem:[%s3982 + $0x50] sm:$0xff]
        %v5164 = vld [vmem:[%s3982 + $0x60] sm:$0xff]
        %v5165 = vld [vmem:[%s3982 + $0x68] sm:$0xff]
        %v5166 = vld [vmem:[%s3982 + $0x78] sm:$0xff]
        %v5167 = vld [vmem:[%s3982 + $0x80] sm:$0xff]
        %v5168 = vld [vmem:[%s3982 + $0x90] sm:$0xff]
        %v5169 = vld [vmem:[%s3982 + $0x98] sm:$0xff]
        %v5170 = vld [vmem:[%s3982 + $0xa8] sm:$0xff]
        %v5171 = vld [vmem:[%s3982 + $0xb0] sm:$0xff]
        %v5172 = vld [vmem:[%s3982 + $0xc0] sm:$0xff]
        %v5173 = vld [vmem:[%s3982 + $0xc8] sm:$0xff]
        %v5174 = vld [vmem:[%s3982 + $0xd8] sm:$0xff]
        %v5175 = vld [vmem:[%s3982 + $0xe0] sm:$0xff]
        %v5176 = vld [vmem:[%s3982 + $0xf0] sm:$0xff]
        %v5177 = vld [vmem:[%s3982 + $0xf8] sm:$0xff]
        %v5178 = vld [vmem:[%s3982 + $0x108] sm:$0xff]
        %v5179 = vld [vmem:[%s3982 + $0x110] sm:$0xff]
        %v5180 = vld [vmem:[%s3982 + $0x120] sm:$0xff]
        %v5181 = vld [vmem:[%s3982 + $0x128] sm:$0xff]
        %v5182 = vld [vmem:[%s3982 + $0x138] sm:$0xff]
        %v5183 = vld [vmem:[%s3982 + $0x140] sm:$0xff]
        %v5184 = vld [vmem:[%s3982 + $0x150] sm:$0xff]
        %v5185 = vld [vmem:[%s3982 + $0x158] sm:$0xff]
        %v5186 = vld [vmem:[%s3982 + $0x168] sm:$0xff]
        %v5187 = vld [vmem:[%s3982 + $0x170] sm:$0xff]
        %v5188 = vld [vmem:[#allocation4] sm:$0xff]
        %v5189 = vld [vmem:[#allocation4 + $0x8] sm:$0xff]
        %v5190 = vld [vmem:[#allocation4 + $0x10] sm:$0xff]
        %v5191 = vld [vmem:[#allocation4 + $0x18] sm:$0xff]
        %v5192 = vld [vmem:[#allocation4 + $0x20] sm:$0xff]
        %v5193 = vld [vmem:[#allocation4 + $0x28] sm:$0xff]
        %v5194 = vld [vmem:[#allocation4 + $0x30] sm:$0xff]
        %v5195 = vld [vmem:[#allocation4 + $0x38] sm:$0xff]
        %v5196 = vld [vmem:[#allocation4 + $0x40] sm:$0xff]
        %v5197 = vld [vmem:[#allocation4 + $0x48] sm:$0xff]
        %v5198 = vld [vmem:[#allocation4 + $0x50] sm:$0xff]
        %v5199 = vld [vmem:[#allocation4 + $0x58] sm:$0xff]
        %v5200 = vld [vmem:[#allocation4 + $0x60] sm:$0xff]
        %v5201 = vld [vmem:[#allocation4 + $0x68] sm:$0xff]
        %v5202 = vld [vmem:[#allocation4 + $0x70] sm:$0xff]
        %v5203 = vld [vmem:[#allocation4 + $0x78] sm:$0xff]
        %v5204 = vld [vmem:[#allocation4 + $0x80] sm:$0xff]
        %v5205 = vld [vmem:[#allocation4 + $0x88] sm:$0xff]
        %v5206 = vld [vmem:[#allocation4 + $0x90] sm:$0xff]
        %v5207 = vld [vmem:[#allocation4 + $0x98] sm:$0xff]
        %v5208 = vld [vmem:[#allocation4 + $0xa0] sm:$0xff]
        %v5209 = vld [vmem:[#allocation4 + $0xa8] sm:$0xff]
        %v5210 = vld [vmem:[#allocation4 + $0xb0] sm:$0xff]
        %v5211 = vld [vmem:[#allocation4 + $0xb8] sm:$0xff]
        %v5212 = vld [vmem:[#allocation4 + $0xc0] sm:$0xff]
        %v5213 = vld [vmem:[#allocation4 + $0xc8] sm:$0xff]
        %v5214 = vld [vmem:[#allocation4 + $0xd0] sm:$0xff]
        %v5215 = vld [vmem:[#allocation4 + $0xd8] sm:$0xff]
        %v5216 = vld [vmem:[#allocation4 + $0xe0] sm:$0xff]
        %v5217 = vld [vmem:[#allocation4 + $0xe8] sm:$0xff]
        %v5218 = vld [vmem:[#allocation4 + $0xf0] sm:$0xff]
        %v5219 = vld [vmem:[#allocation4 + $0xf8] sm:$0xff]
        %v5220 = vpack.c.bf16 %v5157, %v5156
        %v5221 = vpack.c.bf16 %v5159, %v5158
        %v5222 = vpack.c.bf16 %v5161, %v5160
        %v5223 = vpack.c.bf16 %v5163, %v5162
        %v5224 = vpack.c.bf16 %v5165, %v5164
        %v5225 = vpack.c.bf16 %v5167, %v5166
        %v5226 = vpack.c.bf16 %v5169, %v5168
        %v5227 = vpack.c.bf16 %v5171, %v5170
        %v5228 = vpack.c.bf16 %v5173, %v5172
        %v5229 = vpack.c.bf16 %v5175, %v5174
        %v5230 = vpack.c.bf16 %v5177, %v5176
        %v5231 = vpack.c.bf16 %v5179, %v5178
        %v5232 = vpack.c.bf16 %v5181, %v5180
        %v5233 = vpack.c.bf16 %v5183, %v5182
        %v5234 = vpack.c.bf16 %v5185, %v5184
        %v5235 = vpack.c.bf16 %v5187, %v5186
        %s5236 = scalar_lea.vmem [#allocation10], 192
        %v5237 = vld [vmem:[%s5236] sm:$0xf]
        %v5238 = vld [vmem:[%s5236 + $0x4] sm:$0xf]
        %v5239 = vld [vmem:[%s5236 + $0x8] sm:$0xf]
        %v5240 = vld [vmem:[%s5236 + $0xc] sm:$0xf]
        %v5241 = vld [vmem:[%s5236 + $0x10] sm:$0xf]
        %v5242 = vld [vmem:[%s5236 + $0x14] sm:$0xf]
        %v5243 = vld [vmem:[%s5236 + $0x18] sm:$0xf]
        %v5244 = vld [vmem:[%s5236 + $0x1c] sm:$0xf]
        %v5245 = vld [vmem:[%s5236 + $0x20] sm:$0xf]
        %v5246 = vld [vmem:[%s5236 + $0x24] sm:$0xf]
        %v5247 = vld [vmem:[%s5236 + $0x28] sm:$0xf]
        %v5248 = vld [vmem:[%s5236 + $0x2c] sm:$0xf]
        %v5249 = vld [vmem:[%s5236 + $0x30] sm:$0xf]
        %v5250 = vld [vmem:[%s5236 + $0x34] sm:$0xf]
        %v5251 = vld [vmem:[%s5236 + $0x38] sm:$0xf]
        %v5252 = vld [vmem:[%s5236 + $0x3c] sm:$0xf]
        %v5269 = vunpack.c.l.b16 %v5237
        %v5270 = vunpack.c.l.b16 %v5238
        %v5271 = vunpack.c.l.b16 %v5239
        %v5272 = vunpack.c.l.b16 %v5240
        %v5273 = vunpack.c.l.b16 %v5241
        %v5274 = vunpack.c.l.b16 %v5242
        %v5275 = vunpack.c.l.b16 %v5243
        %v5276 = vunpack.c.l.b16 %v5244
        %v5277 = vunpack.c.l.b16 %v5245
        %v5278 = vunpack.c.l.b16 %v5246
        %v5279 = vunpack.c.l.b16 %v5247
        %v5280 = vunpack.c.l.b16 %v5248
        %v5281 = vunpack.c.l.b16 %v5249
        %v5282 = vunpack.c.l.b16 %v5250
        %v5283 = vunpack.c.l.b16 %v5251
        %v5284 = vunpack.c.l.b16 %v5252
        %v5285 = vpack.c.b16 %v5270, %v5269
        %v5286 = vpack.c.b16 %v5272, %v5271
        %v5287 = vpack.c.b16 %v5274, %v5273
        %v5288 = vpack.c.b16 %v5276, %v5275
        %v5289 = vpack.c.b16 %v5278, %v5277
        %v5290 = vpack.c.b16 %v5280, %v5279
        %v5291 = vpack.c.b16 %v5282, %v5281
        %v5292 = vpack.c.b16 %v5284, %v5283
        %5301 = vmatprep.subr.bf16.mxu0 0
        %5302 = vmatpush1.bf16.msra.mxu0 %v5285
        %5303 = vmatprep.subr.bf16.mxu0 0
        %5304 = vmatpush1.bf16.msra.mxu0 %v5286
        %5305 = vmatprep.subr.bf16.mxu0 0
        %5306 = vmatpush1.bf16.msra.mxu0 %v5287
        %5307 = vmatprep.subr.bf16.mxu0 0
        %5308 = vmatpush1.bf16.msra.mxu0 %v5288
        %5309 = vmatprep.subr.bf16.mxu0 0
        %5310 = vmatpush1.bf16.msra.mxu0 %v5289
        %5311 = vmatprep.subr.bf16.mxu0 0
        %5312 = vmatpush1.bf16.msra.mxu0 %v5290
        %5313 = vmatprep.subr.bf16.mxu0 0
        %5314 = vmatpush1.bf16.msra.mxu0 %v5291
        %5315 = vmatprep.subr.bf16.mxu0 0
        %5316 = vmatpush1.bf16.msra.mxu0 %v5292
        %5317 = vmatprep.subr.bf16.mxu0 0
        %5318 = vmatpush1.bf16.msra.mxu0 0
        %5319 = vmatprep.subr.bf16.mxu0 0
        %5320 = vmatpush1.bf16.msra.mxu0 0
        %5321 = vmatprep.subr.bf16.mxu0 0
        %5322 = vmatpush1.bf16.msra.mxu0 0
        %5323 = vmatprep.subr.bf16.mxu0 0
        %5324 = vmatpush1.bf16.msra.mxu0 0
        %5325 = vmatprep.subr.bf16.mxu0 0
        %5326 = vmatpush1.bf16.msra.mxu0 0
        %5327 = vmatprep.subr.bf16.mxu0 0
        %5328 = vmatpush1.bf16.msra.mxu0 0
        %5329 = vmatprep.subr.bf16.mxu0 0
        %5330 = vmatpush1.bf16.msra.mxu0 0
        %5331 = vmatprep.subr.bf16.mxu0 0
        %5332 = vmatpush1.bf16.msra.mxu0 0
        %5333 = vmatprep.mubr.bf16.mxu0 0
        %5334 = vmatmul.mubr.bf16.gmra.mrb[0].mxu0 %v5220
        %v5335 = vpop.f32.mrb[0].mxu0
        %v5336 = vadd.f32 0.0, %v5335
        %v5337 = vpop.f32.mrb[0].mxu0
        %v5338 = vpop.f32.mrb[0].mxu0
        %v5339 = vadd.f32 0.0, %v5338
        %v5340 = vpop.f32.mrb[0].mxu0
        %5341 = vmatprep.mubr.bf16.mxu0 0
        %5342 = vmatmul.mubr.bf16.gmra.mrb[0].mxu0 %v5221
        %v5343 = vpop.f32.mrb[0].mxu0
        %v5344 = vadd.f32 0.0, %v5343
        %v5345 = vpop.f32.mrb[0].mxu0
        %v5346 = vpop.f32.mrb[0].mxu0
        %v5347 = vadd.f32 0.0, %v5346
        %v5348 = vpop.f32.mrb[0].mxu0
        %5349 = vmatprep.mubr.bf16.mxu0 0
        %5350 = vmatmul.mubr.bf16.gmra.mrb[0].mxu0 %v5222
        %v5351 = vpop.f32.mrb[0].mxu0
        %v5352 = vadd.f32 0.0, %v5351
        %v5353 = vpop.f32.mrb[0].mxu0
        %v5354 = vpop.f32.mrb[0].mxu0
        %v5355 = vadd.f32 0.0, %v5354
        %v5356 = vpop.f32.mrb[0].mxu0
        %5357 = vmatprep.mubr.bf16.mxu0 0
        %5358 = vmatmul.mubr.bf16.gmra.mrb[0].mxu0 %v5223
        %v5359 = vpop.f32.mrb[0].mxu0
        %v5360 = vadd.f32 0.0, %v5359
        %v5361 = vpop.f32.mrb[0].mxu0
        %v5362 = vpop.f32.mrb[0].mxu0
        %v5363 = vadd.f32 0.0, %v5362
        %v5364 = vpop.f32.mrb[0].mxu0
        %5365 = vmatprep.mubr.bf16.mxu0 0
        %5366 = vmatmul.mubr.bf16.gmra.mrb[0].mxu0 %v5224
        %v5367 = vpop.f32.mrb[0].mxu0
        %v5368 = vadd.f32 0.0, %v5367
        %v5369 = vpop.f32.mrb[0].mxu0
        %v5370 = vpop.f32.mrb[0].mxu0
        %v5371 = vadd.f32 0.0, %v5370
        %v5372 = vpop.f32.mrb[0].mxu0
        %5373 = vmatprep.mubr.bf16.mxu0 0
        %5374 = vmatmul.mubr.bf16.gmra.mrb[0].mxu0 %v5225
        %v5375 = vpop.f32.mrb[0].mxu0
        %v5376 = vadd.f32 0.0, %v5375
        %v5377 = vpop.f32.mrb[0].mxu0
        %v5378 = vpop.f32.mrb[0].mxu0
        %v5379 = vadd.f32 0.0, %v5378
        %v5380 = vpop.f32.mrb[0].mxu0
        %5381 = vmatprep.mubr.bf16.mxu0 0
        %5382 = vmatmul.mubr.bf16.gmra.mrb[0].mxu0 %v5226
        %v5383 = vpop.f32.mrb[0].mxu0
        %v5384 = vadd.f32 0.0, %v5383
        %v5385 = vpop.f32.mrb[0].mxu0
        %v5386 = vpop.f32.mrb[0].mxu0
        %v5387 = vadd.f32 0.0, %v5386
        %v5388 = vpop.f32.mrb[0].mxu0
        %5389 = vmatprep.mubr.bf16.mxu0 0
        %5390 = vmatmul.mubr.bf16.gmra.mrb[0].mxu0 %v5227
        %v5391 = vpop.f32.mrb[0].mxu0
        %v5392 = vadd.f32 0.0, %v5391
        %v5393 = vpop.f32.mrb[0].mxu0
        %v5394 = vpop.f32.mrb[0].mxu0
        %v5395 = vadd.f32 0.0, %v5394
        %v5396 = vpop.f32.mrb[0].mxu0
        %5397 = vmatprep.mubr.bf16.mxu0 0
        %5398 = vmatmul.mubr.bf16.gmra.mrb[0].mxu0 %v5228
        %v5399 = vpop.f32.mrb[0].mxu0
        %v5400 = vadd.f32 0.0, %v5399
        %v5401 = vpop.f32.mrb[0].mxu0
        %v5402 = vpop.f32.mrb[0].mxu0
        %v5403 = vadd.f32 0.0, %v5402
        %v5404 = vpop.f32.mrb[0].mxu0
        %5405 = vmatprep.mubr.bf16.mxu0 0
        %5406 = vmatmul.mubr.bf16.gmra.mrb[0].mxu0 %v5229
        %v5407 = vpop.f32.mrb[0].mxu0
        %v5408 = vadd.f32 0.0, %v5407
        %v5409 = vpop.f32.mrb[0].mxu0
        %v5410 = vpop.f32.mrb[0].mxu0
        %v5411 = vadd.f32 0.0, %v5410
        %v5412 = vpop.f32.mrb[0].mxu0
        %5413 = vmatprep.mubr.bf16.mxu0 0
        %5414 = vmatmul.mubr.bf16.gmra.mrb[0].mxu0 %v5230
        %v5415 = vpop.f32.mrb[0].mxu0
        %v5416 = vadd.f32 0.0, %v5415
        %v5417 = vpop.f32.mrb[0].mxu0
        %v5418 = vpop.f32.mrb[0].mxu0
        %v5419 = vadd.f32 0.0, %v5418
        %v5420 = vpop.f32.mrb[0].mxu0
        %5421 = vmatprep.mubr.bf16.mxu0 0
        %5422 = vmatmul.mubr.bf16.gmra.mrb[0].mxu0 %v5231
        %v5423 = vpop.f32.mrb[0].mxu0
        %v5424 = vadd.f32 0.0, %v5423
        %v5425 = vpop.f32.mrb[0].mxu0
        %v5426 = vpop.f32.mrb[0].mxu0
        %v5427 = vadd.f32 0.0, %v5426
        %v5428 = vpop.f32.mrb[0].mxu0
        %5429 = vmatprep.mubr.bf16.mxu0 0
        %5430 = vmatmul.mubr.bf16.gmra.mrb[0].mxu0 %v5232
        %v5431 = vpop.f32.mrb[0].mxu0
        %v5432 = vadd.f32 0.0, %v5431
        %v5433 = vpop.f32.mrb[0].mxu0
        %v5434 = vpop.f32.mrb[0].mxu0
        %v5435 = vadd.f32 0.0, %v5434
        %v5436 = vpop.f32.mrb[0].mxu0
        %5437 = vmatprep.mubr.bf16.mxu0 0
        %5438 = vmatmul.mubr.bf16.gmra.mrb[0].mxu0 %v5233
        %v5439 = vpop.f32.mrb[0].mxu0
        %v5440 = vadd.f32 0.0, %v5439
        %v5441 = vpop.f32.mrb[0].mxu0
        %v5442 = vpop.f32.mrb[0].mxu0
        %v5443 = vadd.f32 0.0, %v5442
        %v5444 = vpop.f32.mrb[0].mxu0
        %5445 = vmatprep.mubr.bf16.mxu0 0
        %5446 = vmatmul.mubr.bf16.gmra.mrb[0].mxu0 %v5234
        %v5447 = vpop.f32.mrb[0].mxu0
        %v5448 = vadd.f32 0.0, %v5447
        %v5449 = vpop.f32.mrb[0].mxu0
        %v5450 = vpop.f32.mrb[0].mxu0
        %v5451 = vadd.f32 0.0, %v5450
        %v5452 = vpop.f32.mrb[0].mxu0
        %5453 = vmatprep.mubr.bf16.mxu0 0
        %5454 = vmatmul.mubr.bf16.gmra.mrb[0].mxu0 %v5235
        %v5455 = vpop.f32.mrb[0].mxu0
        %v5456 = vadd.f32 0.0, %v5455
        %v5457 = vpop.f32.mrb[0].mxu0
        %v5458 = vpop.f32.mrb[0].mxu0
        %v5459 = vadd.f32 0.0, %v5458
        %v5460 = vpop.f32.mrb[0].mxu0
        %5461 = vdwg.mxu0
        %v5462 = vadd.f32 %v5188, %v5336
        %v5463 = vadd.f32 %v5189, %v5339
        %v5464 = vadd.f32 %v5190, %v5344
        %v5465 = vadd.f32 %v5191, %v5347
        %v5466 = vadd.f32 %v5192, %v5352
        %v5467 = vadd.f32 %v5193, %v5355
        %v5468 = vadd.f32 %v5194, %v5360
        %v5469 = vadd.f32 %v5195, %v5363
        %v5470 = vadd.f32 %v5196, %v5368
        %v5471 = vadd.f32 %v5197, %v5371
        %v5472 = vadd.f32 %v5198, %v5376
        %v5473 = vadd.f32 %v5199, %v5379
        %v5474 = vadd.f32 %v5200, %v5384
        %v5475 = vadd.f32 %v5201, %v5387
        %v5476 = vadd.f32 %v5202, %v5392
        %v5477 = vadd.f32 %v5203, %v5395
        %v5478 = vadd.f32 %v5204, %v5400
        %v5479 = vadd.f32 %v5205, %v5403
        %v5480 = vadd.f32 %v5206, %v5408
        %v5481 = vadd.f32 %v5207, %v5411
        %v5482 = vadd.f32 %v5208, %v5416
        %v5483 = vadd.f32 %v5209, %v5419
        %v5484 = vadd.f32 %v5210, %v5424
        %v5485 = vadd.f32 %v5211, %v5427
        %v5486 = vadd.f32 %v5212, %v5432
        %v5487 = vadd.f32 %v5213, %v5435
        %v5488 = vadd.f32 %v5214, %v5440
        %v5489 = vadd.f32 %v5215, %v5443
        %v5490 = vadd.f32 %v5216, %v5448
        %v5491 = vadd.f32 %v5217, %v5451
        %v5492 = vadd.f32 %v5218, %v5456
        %v5493 = vadd.f32 %v5219, %v5459
        %5494 = vst [vmem:[#allocation4] sm:$0xff] %v5462
        %5495 = vst [vmem:[#allocation4 + $0x8] sm:$0xff] %v5463
        %5496 = vst [vmem:[#allocation4 + $0x10] sm:$0xff] %v5464
        %5497 = vst [vmem:[#allocation4 + $0x18] sm:$0xff] %v5465
        %5498 = vst [vmem:[#allocation4 + $0x20] sm:$0xff] %v5466
        %5499 = vst [vmem:[#allocation4 + $0x28] sm:$0xff] %v5467
        %5500 = vst [vmem:[#allocation4 + $0x30] sm:$0xff] %v5468
        %5501 = vst [vmem:[#allocation4 + $0x38] sm:$0xff] %v5469
        %5502 = vst [vmem:[#allocation4 + $0x40] sm:$0xff] %v5470
        %5503 = vst [vmem:[#allocation4 + $0x48] sm:$0xff] %v5471
        %5504 = vst [vmem:[#allocation4 + $0x50] sm:$0xff] %v5472
        %5505 = vst [vmem:[#allocation4 + $0x58] sm:$0xff] %v5473
        %5506 = vst [vmem:[#allocation4 + $0x60] sm:$0xff] %v5474
        %5507 = vst [vmem:[#allocation4 + $0x68] sm:$0xff] %v5475
        %5508 = vst [vmem:[#allocation4 + $0x70] sm:$0xff] %v5476
        %5509 = vst [vmem:[#allocation4 + $0x78] sm:$0xff] %v5477
        %5510 = vst [vmem:[#allocation4 + $0x80] sm:$0xff] %v5478
        %5511 = vst [vmem:[#allocation4 + $0x88] sm:$0xff] %v5479
        %5512 = vst [vmem:[#allocation4 + $0x90] sm:$0xff] %v5480
        %5513 = vst [vmem:[#allocation4 + $0x98] sm:$0xff] %v5481
        %5514 = vst [vmem:[#allocation4 + $0xa0] sm:$0xff] %v5482
        %5515 = vst [vmem:[#allocation4 + $0xa8] sm:$0xff] %v5483
        %5516 = vst [vmem:[#allocation4 + $0xb0] sm:$0xff] %v5484
        %5517 = vst [vmem:[#allocation4 + $0xb8] sm:$0xff] %v5485
        %5518 = vst [vmem:[#allocation4 + $0xc0] sm:$0xff] %v5486
        %5519 = vst [vmem:[#allocation4 + $0xc8] sm:$0xff] %v5487
        %5520 = vst [vmem:[#allocation4 + $0xd0] sm:$0xff] %v5488
        %5521 = vst [vmem:[#allocation4 + $0xd8] sm:$0xff] %v5489
        %5522 = vst [vmem:[#allocation4 + $0xe0] sm:$0xff] %v5490
        %5523 = vst [vmem:[#allocation4 + $0xe8] sm:$0xff] %v5491
        %5524 = vst [vmem:[#allocation4 + $0xf0] sm:$0xff] %v5492
        %5525 = vst [vmem:[#allocation4 + $0xf8] sm:$0xff] %v5493
        %v5526 = vld [vmem:[%s3982 + $0x1] sm:$0xff]
        %v5527 = vld [vmem:[%s3982 + $0x9] sm:$0xff]
        %v5528 = vld [vmem:[%s3982 + $0x19] sm:$0xff]
        %v5529 = vld [vmem:[%s3982 + $0x21] sm:$0xff]
        %v5530 = vld [vmem:[%s3982 + $0x31] sm:$0xff]
        %v5531 = vld [vmem:[%s3982 + $0x39] sm:$0xff]
        %v5532 = vld [vmem:[%s3982 + $0x49] sm:$0xff]
        %v5533 = vld [vmem:[%s3982 + $0x51] sm:$0xff]
        %v5534 = vld [vmem:[%s3982 + $0x61] sm:$0xff]
        %v5535 = vld [vmem:[%s3982 + $0x69] sm:$0xff]
        %v5536 = vld [vmem:[%s3982 + $0x79] sm:$0xff]
        %v5537 = vld [vmem:[%s3982 + $0x81] sm:$0xff]
        %v5538 = vld [vmem:[%s3982 + $0x91] sm:$0xff]
        %v5539 = vld [vmem:[%s3982 + $0x99] sm:$0xff]
        %v5540 = vld [vmem:[%s3982 + $0xa9] sm:$0xff]
        %v5541 = vld [vmem:[%s3982 + $0xb1] sm:$0xff]
        %v5542 = vld [vmem:[%s3982 + $0xc1] sm:$0xff]
        %v5543 = vld [vmem:[%s3982 + $0xc9] sm:$0xff]
        %v5544 = vld [vmem:[%s3982 + $0xd9] sm:$0xff]
        %v5545 = vld [vmem:[%s3982 + $0xe1] sm:$0xff]
        %v5546 = vld [vmem:[%s3982 + $0xf1] sm:$0xff]
        %v5547 = vld [vmem:[%s3982 + $0xf9] sm:$0xff]
        %v5548 = vld [vmem:[%s3982 + $0x109] sm:$0xff]
        %v5549 = vld [vmem:[%s3982 + $0x111] sm:$0xff]
        %v5550 = vld [vmem:[%s3982 + $0x121] sm:$0xff]
        %v5551 = vld [vmem:[%s3982 + $0x129] sm:$0xff]
        %v5552 = vld [vmem:[%s3982 + $0x139] sm:$0xff]
        %v5553 = vld [vmem:[%s3982 + $0x141] sm:$0xff]
        %v5554 = vld [vmem:[%s3982 + $0x151] sm:$0xff]
        %v5555 = vld [vmem:[%s3982 + $0x159] sm:$0xff]
        %v5556 = vld [vmem:[%s3982 + $0x169] sm:$0xff]
        %v5557 = vld [vmem:[%s3982 + $0x171] sm:$0xff]
        %v5558 = vld [vmem:[#allocation4] sm:$0xff]
        %v5559 = vld [vmem:[#allocation4 + $0x8] sm:$0xff]
        %v5560 = vld [vmem:[#allocation4 + $0x10] sm:$0xff]
        %v5561 = vld [vmem:[#allocation4 + $0x18] sm:$0xff]
        %v5562 = vld [vmem:[#allocation4 + $0x20] sm:$0xff]
        %v5563 = vld [vmem:[#allocation4 + $0x28] sm:$0xff]
        %v5564 = vld [vmem:[#allocation4 + $0x30] sm:$0xff]
        %v5565 = vld [vmem:[#allocation4 + $0x38] sm:$0xff]
        %v5566 = vld [vmem:[#allocation4 + $0x40] sm:$0xff]
        %v5567 = vld [vmem:[#allocation4 + $0x48] sm:$0xff]
        %v5568 = vld [vmem:[#allocation4 + $0x50] sm:$0xff]
        %v5569 = vld [vmem:[#allocation4 + $0x58] sm:$0xff]
        %v5570 = vld [vmem:[#allocation4 + $0x60] sm:$0xff]
        %v5571 = vld [vmem:[#allocation4 + $0x68] sm:$0xff]
        %v5572 = vld [vmem:[#allocation4 + $0x70] sm:$0xff]
        %v5573 = vld [vmem:[#allocation4 + $0x78] sm:$0xff]
        %v5574 = vld [vmem:[#allocation4 + $0x80] sm:$0xff]
        %v5575 = vld [vmem:[#allocation4 + $0x88] sm:$0xff]
        %v5576 = vld [vmem:[#allocation4 + $0x90] sm:$0xff]
        %v5577 = vld [vmem:[#allocation4 + $0x98] sm:$0xff]
        %v5578 = vld [vmem:[#allocation4 + $0xa0] sm:$0xff]
        %v5579 = vld [vmem:[#allocation4 + $0xa8] sm:$0xff]
        %v5580 = vld [vmem:[#allocation4 + $0xb0] sm:$0xff]
        %v5581 = vld [vmem:[#allocation4 + $0xb8] sm:$0xff]
        %v5582 = vld [vmem:[#allocation4 + $0xc0] sm:$0xff]
        %v5583 = vld [vmem:[#allocation4 + $0xc8] sm:$0xff]
        %v5584 = vld [vmem:[#allocation4 + $0xd0] sm:$0xff]
        %v5585 = vld [vmem:[#allocation4 + $0xd8] sm:$0xff]
        %v5586 = vld [vmem:[#allocation4 + $0xe0] sm:$0xff]
        %v5587 = vld [vmem:[#allocation4 + $0xe8] sm:$0xff]
        %v5588 = vld [vmem:[#allocation4 + $0xf0] sm:$0xff]
        %v5589 = vld [vmem:[#allocation4 + $0xf8] sm:$0xff]
        %v5590 = vpack.c.bf16 %v5527, %v5526
        %v5591 = vpack.c.bf16 %v5529, %v5528
        %v5592 = vpack.c.bf16 %v5531, %v5530
        %v5593 = vpack.c.bf16 %v5533, %v5532
        %v5594 = vpack.c.bf16 %v5535, %v5534
        %v5595 = vpack.c.bf16 %v5537, %v5536
        %v5596 = vpack.c.bf16 %v5539, %v5538
        %v5597 = vpack.c.bf16 %v5541, %v5540
        %v5598 = vpack.c.bf16 %v5543, %v5542
        %v5599 = vpack.c.bf16 %v5545, %v5544
        %v5600 = vpack.c.bf16 %v5547, %v5546
        %v5601 = vpack.c.bf16 %v5549, %v5548
        %v5602 = vpack.c.bf16 %v5551, %v5550
        %v5603 = vpack.c.bf16 %v5553, %v5552
        %v5604 = vpack.c.bf16 %v5555, %v5554
        %v5605 = vpack.c.bf16 %v5557, %v5556
        %s5606 = scalar_lea.vmem [#allocation10], 256
        %v5607 = vld [vmem:[%s5606] sm:$0xf]
        %v5608 = vld [vmem:[%s5606 + $0x4] sm:$0xf]
        %v5609 = vld [vmem:[%s5606 + $0x8] sm:$0xf]
        %v5610 = vld [vmem:[%s5606 + $0xc] sm:$0xf]
        %v5611 = vld [vmem:[%s5606 + $0x10] sm:$0xf]
        %v5612 = vld [vmem:[%s5606 + $0x14] sm:$0xf]
        %v5613 = vld [vmem:[%s5606 + $0x18] sm:$0xf]
        %v5614 = vld [vmem:[%s5606 + $0x1c] sm:$0xf]
        %v5615 = vld [vmem:[%s5606 + $0x20] sm:$0xf]
        %v5616 = vld [vmem:[%s5606 + $0x24] sm:$0xf]
        %v5617 = vld [vmem:[%s5606 + $0x28] sm:$0xf]
        %v5618 = vld [vmem:[%s5606 + $0x2c] sm:$0xf]
        %v5619 = vld [vmem:[%s5606 + $0x30] sm:$0xf]
        %v5620 = vld [vmem:[%s5606 + $0x34] sm:$0xf]
        %v5621 = vld [vmem:[%s5606 + $0x38] sm:$0xf]
        %v5622 = vld [vmem:[%s5606 + $0x3c] sm:$0xf]
        %v5639 = vunpack.c.l.b16 %v5607
        %v5640 = vunpack.c.l.b16 %v5608
        %v5641 = vunpack.c.l.b16 %v5609
        %v5642 = vunpack.c.l.b16 %v5610
        %v5643 = vunpack.c.l.b16 %v5611
        %v5644 = vunpack.c.l.b16 %v5612
        %v5645 = vunpack.c.l.b16 %v5613
        %v5646 = vunpack.c.l.b16 %v5614
        %v5647 = vunpack.c.l.b16 %v5615
        %v5648 = vunpack.c.l.b16 %v5616
        %v5649 = vunpack.c.l.b16 %v5617
        %v5650 = vunpack.c.l.b16 %v5618
        %v5651 = vunpack.c.l.b16 %v5619
        %v5652 = vunpack.c.l.b16 %v5620
        %v5653 = vunpack.c.l.b16 %v5621
        %v5654 = vunpack.c.l.b16 %v5622
        %v5655 = vpack.c.b16 %v5640, %v5639
        %v5656 = vpack.c.b16 %v5642, %v5641
        %v5657 = vpack.c.b16 %v5644, %v5643
        %v5658 = vpack.c.b16 %v5646, %v5645
        %v5659 = vpack.c.b16 %v5648, %v5647
        %v5660 = vpack.c.b16 %v5650, %v5649
        %v5661 = vpack.c.b16 %v5652, %v5651
        %v5662 = vpack.c.b16 %v5654, %v5653
        %5671 = vmatprep.subr.bf16.mxu0 0
        %5672 = vmatpush1.bf16.msra.mxu0 %v5655
        %5673 = vmatprep.subr.bf16.mxu0 0
        %5674 = vmatpush1.bf16.msra.mxu0 %v5656
        %5675 = vmatprep.subr.bf16.mxu0 0
        %5676 = vmatpush1.bf16.msra.mxu0 %v5657
        %5677 = vmatprep.subr.bf16.mxu0 0
        %5678 = vmatpush1.bf16.msra.mxu0 %v5658
        %5679 = vmatprep.subr.bf16.mxu0 0
        %5680 = vmatpush1.bf16.msra.mxu0 %v5659
        %5681 = vmatprep.subr.bf16.mxu0 0
        %5682 = vmatpush1.bf16.msra.mxu0 %v5660
        %5683 = vmatprep.subr.bf16.mxu0 0
        %5684 = vmatpush1.bf16.msra.mxu0 %v5661
        %5685 = vmatprep.subr.bf16.mxu0 0
        %5686 = vmatpush1.bf16.msra.mxu0 %v5662
        %5687 = vmatprep.subr.bf16.mxu0 0
        %5688 = vmatpush1.bf16.msra.mxu0 0
        %5689 = vmatprep.subr.bf16.mxu0 0
        %5690 = vmatpush1.bf16.msra.mxu0 0
        %5691 = vmatprep.subr.bf16.mxu0 0
        %5692 = vmatpush1.bf16.msra.mxu0 0
        %5693 = vmatprep.subr.bf16.mxu0 0
        %5694 = vmatpush1.bf16.msra.mxu0 0
        %5695 = vmatprep.subr.bf16.mxu0 0
        %5696 = vmatpush1.bf16.msra.mxu0 0
        %5697 = vmatprep.subr.bf16.mxu0 0
        %5698 = vmatpush1.bf16.msra.mxu0 0
        %5699 = vmatprep.subr.bf16.mxu0 0
        %5700 = vmatpush1.bf16.msra.mxu0 0
        %5701 = vmatprep.subr.bf16.mxu0 0
        %5702 = vmatpush1.bf16.msra.mxu0 0
        %5703 = vmatprep.mubr.bf16.mxu0 0
        %5704 = vmatmul.mubr.bf16.gmra.mrb[0].mxu0 %v5590
        %v5705 = vpop.f32.mrb[0].mxu0
        %v5706 = vadd.f32 0.0, %v5705
        %v5707 = vpop.f32.mrb[0].mxu0
        %v5708 = vpop.f32.mrb[0].mxu0
        %v5709 = vadd.f32 0.0, %v5708
        %v5710 = vpop.f32.mrb[0].mxu0
        %5711 = vmatprep.mubr.bf16.mxu0 0
        %5712 = vmatmul.mubr.bf16.gmra.mrb[0].mxu0 %v5591
        %v5713 = vpop.f32.mrb[0].mxu0
        %v5714 = vadd.f32 0.0, %v5713
        %v5715 = vpop.f32.mrb[0].mxu0
        %v5716 = vpop.f32.mrb[0].mxu0
        %v5717 = vadd.f32 0.0, %v5716
        %v5718 = vpop.f32.mrb[0].mxu0
        %5719 = vmatprep.mubr.bf16.mxu0 0
        %5720 = vmatmul.mubr.bf16.gmra.mrb[0].mxu0 %v5592
        %v5721 = vpop.f32.mrb[0].mxu0
        %v5722 = vadd.f32 0.0, %v5721
        %v5723 = vpop.f32.mrb[0].mxu0
        %v5724 = vpop.f32.mrb[0].mxu0
        %v5725 = vadd.f32 0.0, %v5724
        %v5726 = vpop.f32.mrb[0].mxu0
        %5727 = vmatprep.mubr.bf16.mxu0 0
        %5728 = vmatmul.mubr.bf16.gmra.mrb[0].mxu0 %v5593
        %v5729 = vpop.f32.mrb[0].mxu0
        %v5730 = vadd.f32 0.0, %v5729
        %v5731 = vpop.f32.mrb[0].mxu0
        %v5732 = vpop.f32.mrb[0].mxu0
        %v5733 = vadd.f32 0.0, %v5732
        %v5734 = vpop.f32.mrb[0].mxu0
        %5735 = vmatprep.mubr.bf16.mxu0 0
        %5736 = vmatmul.mubr.bf16.gmra.mrb[0].mxu0 %v5594
        %v5737 = vpop.f32.mrb[0].mxu0
        %v5738 = vadd.f32 0.0, %v5737
        %v5739 = vpop.f32.mrb[0].mxu0
        %v5740 = vpop.f32.mrb[0].mxu0
        %v5741 = vadd.f32 0.0, %v5740
        %v5742 = vpop.f32.mrb[0].mxu0
        %5743 = vmatprep.mubr.bf16.mxu0 0
        %5744 = vmatmul.mubr.bf16.gmra.mrb[0].mxu0 %v5595
        %v5745 = vpop.f32.mrb[0].mxu0
        %v5746 = vadd.f32 0.0, %v5745
        %v5747 = vpop.f32.mrb[0].mxu0
        %v5748 = vpop.f32.mrb[0].mxu0
        %v5749 = vadd.f32 0.0, %v5748
        %v5750 = vpop.f32.mrb[0].mxu0
        %5751 = vmatprep.mubr.bf16.mxu0 0
        %5752 = vmatmul.mubr.bf16.gmra.mrb[0].mxu0 %v5596
        %v5753 = vpop.f32.mrb[0].mxu0
        %v5754 = vadd.f32 0.0, %v5753
        %v5755 = vpop.f32.mrb[0].mxu0
        %v5756 = vpop.f32.mrb[0].mxu0
        %v5757 = vadd.f32 0.0, %v5756
        %v5758 = vpop.f32.mrb[0].mxu0
        %5759 = vmatprep.mubr.bf16.mxu0 0
        %5760 = vmatmul.mubr.bf16.gmra.mrb[0].mxu0 %v5597
        %v5761 = vpop.f32.mrb[0].mxu0
        %v5762 = vadd.f32 0.0, %v5761
        %v5763 = vpop.f32.mrb[0].mxu0
        %v5764 = vpop.f32.mrb[0].mxu0
        %v5765 = vadd.f32 0.0, %v5764
        %v5766 = vpop.f32.mrb[0].mxu0
        %5767 = vmatprep.mubr.bf16.mxu0 0
        %5768 = vmatmul.mubr.bf16.gmra.mrb[0].mxu0 %v5598
        %v5769 = vpop.f32.mrb[0].mxu0
        %v5770 = vadd.f32 0.0, %v5769
        %v5771 = vpop.f32.mrb[0].mxu0
        %v5772 = vpop.f32.mrb[0].mxu0
        %v5773 = vadd.f32 0.0, %v5772
        %v5774 = vpop.f32.mrb[0].mxu0
        %5775 = vmatprep.mubr.bf16.mxu0 0
        %5776 = vmatmul.mubr.bf16.gmra.mrb[0].mxu0 %v5599
        %v5777 = vpop.f32.mrb[0].mxu0
        %v5778 = vadd.f32 0.0, %v5777
        %v5779 = vpop.f32.mrb[0].mxu0
        %v5780 = vpop.f32.mrb[0].mxu0
        %v5781 = vadd.f32 0.0, %v5780
        %v5782 = vpop.f32.mrb[0].mxu0
        %5783 = vmatprep.mubr.bf16.mxu0 0
        %5784 = vmatmul.mubr.bf16.gmra.mrb[0].mxu0 %v5600
        %v5785 = vpop.f32.mrb[0].mxu0
        %v5786 = vadd.f32 0.0, %v5785
        %v5787 = vpop.f32.mrb[0].mxu0
        %v5788 = vpop.f32.mrb[0].mxu0
        %v5789 = vadd.f32 0.0, %v5788
        %v5790 = vpop.f32.mrb[0].mxu0
        %5791 = vmatprep.mubr.bf16.mxu0 0
        %5792 = vmatmul.mubr.bf16.gmra.mrb[0].mxu0 %v5601
        %v5793 = vpop.f32.mrb[0].mxu0
        %v5794 = vadd.f32 0.0, %v5793
        %v5795 = vpop.f32.mrb[0].mxu0
        %v5796 = vpop.f32.mrb[0].mxu0
        %v5797 = vadd.f32 0.0, %v5796
        %v5798 = vpop.f32.mrb[0].mxu0
        %5799 = vmatprep.mubr.bf16.mxu0 0
        %5800 = vmatmul.mubr.bf16.gmra.mrb[0].mxu0 %v5602
        %v5801 = vpop.f32.mrb[0].mxu0
        %v5802 = vadd.f32 0.0, %v5801
        %v5803 = vpop.f32.mrb[0].mxu0
        %v5804 = vpop.f32.mrb[0].mxu0
        %v5805 = vadd.f32 0.0, %v5804
        %v5806 = vpop.f32.mrb[0].mxu0
        %5807 = vmatprep.mubr.bf16.mxu0 0
        %5808 = vmatmul.mubr.bf16.gmra.mrb[0].mxu0 %v5603
        %v5809 = vpop.f32.mrb[0].mxu0
        %v5810 = vadd.f32 0.0, %v5809
        %v5811 = vpop.f32.mrb[0].mxu0
        %v5812 = vpop.f32.mrb[0].mxu0
        %v5813 = vadd.f32 0.0, %v5812
        %v5814 = vpop.f32.mrb[0].mxu0
        %5815 = vmatprep.mubr.bf16.mxu0 0
        %5816 = vmatmul.mubr.bf16.gmra.mrb[0].mxu0 %v5604
        %v5817 = vpop.f32.mrb[0].mxu0
        %v5818 = vadd.f32 0.0, %v5817
        %v5819 = vpop.f32.mrb[0].mxu0
        %v5820 = vpop.f32.mrb[0].mxu0
        %v5821 = vadd.f32 0.0, %v5820
        %v5822 = vpop.f32.mrb[0].mxu0
        %5823 = vmatprep.mubr.bf16.mxu0 0
        %5824 = vmatmul.mubr.bf16.gmra.mrb[0].mxu0 %v5605
        %v5825 = vpop.f32.mrb[0].mxu0
        %v5826 = vadd.f32 0.0, %v5825
        %v5827 = vpop.f32.mrb[0].mxu0
        %v5828 = vpop.f32.mrb[0].mxu0
        %v5829 = vadd.f32 0.0, %v5828
        %v5830 = vpop.f32.mrb[0].mxu0
        %5831 = vdwg.mxu0
        %v5832 = vadd.f32 %v5558, %v5706
        %v5833 = vadd.f32 %v5559, %v5709
        %v5834 = vadd.f32 %v5560, %v5714
        %v5835 = vadd.f32 %v5561, %v5717
        %v5836 = vadd.f32 %v5562, %v5722
        %v5837 = vadd.f32 %v5563, %v5725
        %v5838 = vadd.f32 %v5564, %v5730
        %v5839 = vadd.f32 %v5565, %v5733
        %v5840 = vadd.f32 %v5566, %v5738
        %v5841 = vadd.f32 %v5567, %v5741
        %v5842 = vadd.f32 %v5568, %v5746
        %v5843 = vadd.f32 %v5569, %v5749
        %v5844 = vadd.f32 %v5570, %v5754
        %v5845 = vadd.f32 %v5571, %v5757
        %v5846 = vadd.f32 %v5572, %v5762
        %v5847 = vadd.f32 %v5573, %v5765
        %v5848 = vadd.f32 %v5574, %v5770
        %v5849 = vadd.f32 %v5575, %v5773
        %v5850 = vadd.f32 %v5576, %v5778
        %v5851 = vadd.f32 %v5577, %v5781
        %v5852 = vadd.f32 %v5578, %v5786
        %v5853 = vadd.f32 %v5579, %v5789
        %v5854 = vadd.f32 %v5580, %v5794
        %v5855 = vadd.f32 %v5581, %v5797
        %v5856 = vadd.f32 %v5582, %v5802
        %v5857 = vadd.f32 %v5583, %v5805
        %v5858 = vadd.f32 %v5584, %v5810
        %v5859 = vadd.f32 %v5585, %v5813
        %v5860 = vadd.f32 %v5586, %v5818
        %v5861 = vadd.f32 %v5587, %v5821
        %v5862 = vadd.f32 %v5588, %v5826
        %v5863 = vadd.f32 %v5589, %v5829
        %5864 = vst [vmem:[#allocation4] sm:$0xff] %v5832
        %5865 = vst [vmem:[#allocation4 + $0x8] sm:$0xff] %v5833
        %5866 = vst [vmem:[#allocation4 + $0x10] sm:$0xff] %v5834
        %5867 = vst [vmem:[#allocation4 + $0x18] sm:$0xff] %v5835
        %5868 = vst [vmem:[#allocation4 + $0x20] sm:$0xff] %v5836
        %5869 = vst [vmem:[#allocation4 + $0x28] sm:$0xff] %v5837
        %5870 = vst [vmem:[#allocation4 + $0x30] sm:$0xff] %v5838
        %5871 = vst [vmem:[#allocation4 + $0x38] sm:$0xff] %v5839
        %5872 = vst [vmem:[#allocation4 + $0x40] sm:$0xff] %v5840
        %5873 = vst [vmem:[#allocation4 + $0x48] sm:$0xff] %v5841
        %5874 = vst [vmem:[#allocation4 + $0x50] sm:$0xff] %v5842
        %5875 = vst [vmem:[#allocation4 + $0x58] sm:$0xff] %v5843
        %5876 = vst [vmem:[#allocation4 + $0x60] sm:$0xff] %v5844
        %5877 = vst [vmem:[#allocation4 + $0x68] sm:$0xff] %v5845
        %5878 = vst [vmem:[#allocation4 + $0x70] sm:$0xff] %v5846
        %5879 = vst [vmem:[#allocation4 + $0x78] sm:$0xff] %v5847
        %5880 = vst [vmem:[#allocation4 + $0x80] sm:$0xff] %v5848
        %5881 = vst [vmem:[#allocation4 + $0x88] sm:$0xff] %v5849
        %5882 = vst [vmem:[#allocation4 + $0x90] sm:$0xff] %v5850
        %5883 = vst [vmem:[#allocation4 + $0x98] sm:$0xff] %v5851
        %5884 = vst [vmem:[#allocation4 + $0xa0] sm:$0xff] %v5852
        %5885 = vst [vmem:[#allocation4 + $0xa8] sm:$0xff] %v5853
        %5886 = vst [vmem:[#allocation4 + $0xb0] sm:$0xff] %v5854
        %5887 = vst [vmem:[#allocation4 + $0xb8] sm:$0xff] %v5855
        %5888 = vst [vmem:[#allocation4 + $0xc0] sm:$0xff] %v5856
        %5889 = vst [vmem:[#allocation4 + $0xc8] sm:$0xff] %v5857
        %5890 = vst [vmem:[#allocation4 + $0xd0] sm:$0xff] %v5858
        %5891 = vst [vmem:[#allocation4 + $0xd8] sm:$0xff] %v5859
        %5892 = vst [vmem:[#allocation4 + $0xe0] sm:$0xff] %v5860
        %5893 = vst [vmem:[#allocation4 + $0xe8] sm:$0xff] %v5861
        %5894 = vst [vmem:[#allocation4 + $0xf0] sm:$0xff] %v5862
        %5895 = vst [vmem:[#allocation4 + $0xf8] sm:$0xff] %v5863
        %v5896 = vld [vmem:[%s3982 + $0x2] sm:$0xff]
        %v5897 = vld [vmem:[%s3982 + $0xa] sm:$0xff]
        %v5898 = vld [vmem:[%s3982 + $0x1a] sm:$0xff]
        %v5899 = vld [vmem:[%s3982 + $0x22] sm:$0xff]
        %v5900 = vld [vmem:[%s3982 + $0x32] sm:$0xff]
        %v5901 = vld [vmem:[%s3982 + $0x3a] sm:$0xff]
        %v5902 = vld [vmem:[%s3982 + $0x4a] sm:$0xff]
        %v5903 = vld [vmem:[%s3982 + $0x52] sm:$0xff]
        %v5904 = vld [vmem:[%s3982 + $0x62] sm:$0xff]
        %v5905 = vld [vmem:[%s3982 + $0x6a] sm:$0xff]
        %v5906 = vld [vmem:[%s3982 + $0x7a] sm:$0xff]
        %v5907 = vld [vmem:[%s3982 + $0x82] sm:$0xff]
        %v5908 = vld [vmem:[%s3982 + $0x92] sm:$0xff]
        %v5909 = vld [vmem:[%s3982 + $0x9a] sm:$0xff]
        %v5910 = vld [vmem:[%s3982 + $0xaa] sm:$0xff]
        %v5911 = vld [vmem:[%s3982 + $0xb2] sm:$0xff]
        %v5912 = vld [vmem:[%s3982 + $0xc2] sm:$0xff]
        %v5913 = vld [vmem:[%s3982 + $0xca] sm:$0xff]
        %v5914 = vld [vmem:[%s3982 + $0xda] sm:$0xff]
        %v5915 = vld [vmem:[%s3982 + $0xe2] sm:$0xff]
        %v5916 = vld [vmem:[%s3982 + $0xf2] sm:$0xff]
        %v5917 = vld [vmem:[%s3982 + $0xfa] sm:$0xff]
        %v5918 = vld [vmem:[%s3982 + $0x10a] sm:$0xff]
        %v5919 = vld [vmem:[%s3982 + $0x112] sm:$0xff]
        %v5920 = vld [vmem:[%s3982 + $0x122] sm:$0xff]
        %v5921 = vld [vmem:[%s3982 + $0x12a] sm:$0xff]
        %v5922 = vld [vmem:[%s3982 + $0x13a] sm:$0xff]
        %v5923 = vld [vmem:[%s3982 + $0x142] sm:$0xff]
        %v5924 = vld [vmem:[%s3982 + $0x152] sm:$0xff]
        %v5925 = vld [vmem:[%s3982 + $0x15a] sm:$0xff]
        %v5926 = vld [vmem:[%s3982 + $0x16a] sm:$0xff]
        %v5927 = vld [vmem:[%s3982 + $0x172] sm:$0xff]
        %v5928 = vld [vmem:[#allocation4] sm:$0xff]
        %v5929 = vld [vmem:[#allocation4 + $0x8] sm:$0xff]
        %v5930 = vld [vmem:[#allocation4 + $0x10] sm:$0xff]
        %v5931 = vld [vmem:[#allocation4 + $0x18] sm:$0xff]
        %v5932 = vld [vmem:[#allocation4 + $0x20] sm:$0xff]
        %v5933 = vld [vmem:[#allocation4 + $0x28] sm:$0xff]
        %v5934 = vld [vmem:[#allocation4 + $0x30] sm:$0xff]
        %v5935 = vld [vmem:[#allocation4 + $0x38] sm:$0xff]
        %v5936 = vld [vmem:[#allocation4 + $0x40] sm:$0xff]
        %v5937 = vld [vmem:[#allocation4 + $0x48] sm:$0xff]
        %v5938 = vld [vmem:[#allocation4 + $0x50] sm:$0xff]
        %v5939 = vld [vmem:[#allocation4 + $0x58] sm:$0xff]
        %v5940 = vld [vmem:[#allocation4 + $0x60] sm:$0xff]
        %v5941 = vld [vmem:[#allocation4 + $0x68] sm:$0xff]
        %v5942 = vld [vmem:[#allocation4 + $0x70] sm:$0xff]
        %v5943 = vld [vmem:[#allocation4 + $0x78] sm:$0xff]
        %v5944 = vld [vmem:[#allocation4 + $0x80] sm:$0xff]
        %v5945 = vld [vmem:[#allocation4 + $0x88] sm:$0xff]
        %v5946 = vld [vmem:[#allocation4 + $0x90] sm:$0xff]
        %v5947 = vld [vmem:[#allocation4 + $0x98] sm:$0xff]
        %v5948 = vld [vmem:[#allocation4 + $0xa0] sm:$0xff]
        %v5949 = vld [vmem:[#allocation4 + $0xa8] sm:$0xff]
        %v5950 = vld [vmem:[#allocation4 + $0xb0] sm:$0xff]
        %v5951 = vld [vmem:[#allocation4 + $0xb8] sm:$0xff]
        %v5952 = vld [vmem:[#allocation4 + $0xc0] sm:$0xff]
        %v5953 = vld [vmem:[#allocation4 + $0xc8] sm:$0xff]
        %v5954 = vld [vmem:[#allocation4 + $0xd0] sm:$0xff]
        %v5955 = vld [vmem:[#allocation4 + $0xd8] sm:$0xff]
        %v5956 = vld [vmem:[#allocation4 + $0xe0] sm:$0xff]
        %v5957 = vld [vmem:[#allocation4 + $0xe8] sm:$0xff]
        %v5958 = vld [vmem:[#allocation4 + $0xf0] sm:$0xff]
        %v5959 = vld [vmem:[#allocation4 + $0xf8] sm:$0xff]
        %v5960 = vpack.c.bf16 %v5897, %v5896
        %v5961 = vpack.c.bf16 %v5899, %v5898
        %v5962 = vpack.c.bf16 %v5901, %v5900
        %v5963 = vpack.c.bf16 %v5903, %v5902
        %v5964 = vpack.c.bf16 %v5905, %v5904
        %v5965 = vpack.c.bf16 %v5907, %v5906
        %v5966 = vpack.c.bf16 %v5909, %v5908
        %v5967 = vpack.c.bf16 %v5911, %v5910
        %v5968 = vpack.c.bf16 %v5913, %v5912
        %v5969 = vpack.c.bf16 %v5915, %v5914
        %v5970 = vpack.c.bf16 %v5917, %v5916
        %v5971 = vpack.c.bf16 %v5919, %v5918
        %v5972 = vpack.c.bf16 %v5921, %v5920
        %v5973 = vpack.c.bf16 %v5923, %v5922
        %v5974 = vpack.c.bf16 %v5925, %v5924
        %v5975 = vpack.c.bf16 %v5927, %v5926
        %s5976 = scalar_lea.vmem [#allocation10], 320
        %v5977 = vld [vmem:[%s5976] sm:$0xf]
        %v5978 = vld [vmem:[%s5976 + $0x4] sm:$0xf]
        %v5979 = vld [vmem:[%s5976 + $0x8] sm:$0xf]
        %v5980 = vld [vmem:[%s5976 + $0xc] sm:$0xf]
        %v5981 = vld [vmem:[%s5976 + $0x10] sm:$0xf]
        %v5982 = vld [vmem:[%s5976 + $0x14] sm:$0xf]
        %v5983 = vld [vmem:[%s5976 + $0x18] sm:$0xf]
        %v5984 = vld [vmem:[%s5976 + $0x1c] sm:$0xf]
        %v5985 = vld [vmem:[%s5976 + $0x20] sm:$0xf]
        %v5986 = vld [vmem:[%s5976 + $0x24] sm:$0xf]
        %v5987 = vld [vmem:[%s5976 + $0x28] sm:$0xf]
        %v5988 = vld [vmem:[%s5976 + $0x2c] sm:$0xf]
        %v5989 = vld [vmem:[%s5976 + $0x30] sm:$0xf]
        %v5990 = vld [vmem:[%s5976 + $0x34] sm:$0xf]
        %v5991 = vld [vmem:[%s5976 + $0x38] sm:$0xf]
        %v5992 = vld [vmem:[%s5976 + $0x3c] sm:$0xf]
        %v6009 = vunpack.c.l.b16 %v5977
        %v6010 = vunpack.c.l.b16 %v5978
        %v6011 = vunpack.c.l.b16 %v5979
        %v6012 = vunpack.c.l.b16 %v5980
        %v6013 = vunpack.c.l.b16 %v5981
        %v6014 = vunpack.c.l.b16 %v5982
        %v6015 = vunpack.c.l.b16 %v5983
        %v6016 = vunpack.c.l.b16 %v5984
        %v6017 = vunpack.c.l.b16 %v5985
        %v6018 = vunpack.c.l.b16 %v5986
        %v6019 = vunpack.c.l.b16 %v5987
        %v6020 = vunpack.c.l.b16 %v5988
        %v6021 = vunpack.c.l.b16 %v5989
        %v6022 = vunpack.c.l.b16 %v5990
        %v6023 = vunpack.c.l.b16 %v5991
        %v6024 = vunpack.c.l.b16 %v5992
        %v6025 = vpack.c.b16 %v6010, %v6009
        %v6026 = vpack.c.b16 %v6012, %v6011
        %v6027 = vpack.c.b16 %v6014, %v6013
        %v6028 = vpack.c.b16 %v6016, %v6015
        %v6029 = vpack.c.b16 %v6018, %v6017
        %v6030 = vpack.c.b16 %v6020, %v6019
        %v6031 = vpack.c.b16 %v6022, %v6021
        %v6032 = vpack.c.b16 %v6024, %v6023
        %6041 = vmatprep.subr.bf16.mxu0 0
        %6042 = vmatpush1.bf16.msra.mxu0 %v6025
        %6043 = vmatprep.subr.bf16.mxu0 0
        %6044 = vmatpush1.bf16.msra.mxu0 %v6026
        %6045 = vmatprep.subr.bf16.mxu0 0
        %6046 = vmatpush1.bf16.msra.mxu0 %v6027
        %6047 = vmatprep.subr.bf16.mxu0 0
        %6048 = vmatpush1.bf16.msra.mxu0 %v6028
        %6049 = vmatprep.subr.bf16.mxu0 0
        %6050 = vmatpush1.bf16.msra.mxu0 %v6029
        %6051 = vmatprep.subr.bf16.mxu0 0
        %6052 = vmatpush1.bf16.msra.mxu0 %v6030
        %6053 = vmatprep.subr.bf16.mxu0 0
        %6054 = vmatpush1.bf16.msra.mxu0 %v6031
        %6055 = vmatprep.subr.bf16.mxu0 0
        %6056 = vmatpush1.bf16.msra.mxu0 %v6032
        %6057 = vmatprep.subr.bf16.mxu0 0
        %6058 = vmatpush1.bf16.msra.mxu0 0
        %6059 = vmatprep.subr.bf16.mxu0 0
        %6060 = vmatpush1.bf16.msra.mxu0 0
        %6061 = vmatprep.subr.bf16.mxu0 0
        %6062 = vmatpush1.bf16.msra.mxu0 0
        %6063 = vmatprep.subr.bf16.mxu0 0
        %6064 = vmatpush1.bf16.msra.mxu0 0
        %6065 = vmatprep.subr.bf16.mxu0 0
        %6066 = vmatpush1.bf16.msra.mxu0 0
        %6067 = vmatprep.subr.bf16.mxu0 0
        %6068 = vmatpush1.bf16.msra.mxu0 0
        %6069 = vmatprep.subr.bf16.mxu0 0
        %6070 = vmatpush1.bf16.msra.mxu0 0
        %6071 = vmatprep.subr.bf16.mxu0 0
        %6072 = vmatpush1.bf16.msra.mxu0 0
        %6073 = vmatprep.mubr.bf16.mxu0 0
        %6074 = vmatmul.mubr.bf16.gmra.mrb[0].mxu0 %v5960
        %v6075 = vpop.f32.mrb[0].mxu0
        %v6076 = vadd.f32 0.0, %v6075
        %v6077 = vpop.f32.mrb[0].mxu0
        %v6078 = vpop.f32.mrb[0].mxu0
        %v6079 = vadd.f32 0.0, %v6078
        %v6080 = vpop.f32.mrb[0].mxu0
        %6081 = vmatprep.mubr.bf16.mxu0 0
        %6082 = vmatmul.mubr.bf16.gmra.mrb[0].mxu0 %v5961
        %v6083 = vpop.f32.mrb[0].mxu0
        %v6084 = vadd.f32 0.0, %v6083
        %v6085 = vpop.f32.mrb[0].mxu0
        %v6086 = vpop.f32.mrb[0].mxu0
        %v6087 = vadd.f32 0.0, %v6086
        %v6088 = vpop.f32.mrb[0].mxu0
        %6089 = vmatprep.mubr.bf16.mxu0 0
        %6090 = vmatmul.mubr.bf16.gmra.mrb[0].mxu0 %v5962
        %v6091 = vpop.f32.mrb[0].mxu0
        %v6092 = vadd.f32 0.0, %v6091
        %v6093 = vpop.f32.mrb[0].mxu0
        %v6094 = vpop.f32.mrb[0].mxu0
        %v6095 = vadd.f32 0.0, %v6094
        %v6096 = vpop.f32.mrb[0].mxu0
        %6097 = vmatprep.mubr.bf16.mxu0 0
        %6098 = vmatmul.mubr.bf16.gmra.mrb[0].mxu0 %v5963
        %v6099 = vpop.f32.mrb[0].mxu0
        %v6100 = vadd.f32 0.0, %v6099
        %v6101 = vpop.f32.mrb[0].mxu0
        %v6102 = vpop.f32.mrb[0].mxu0
        %v6103 = vadd.f32 0.0, %v6102
        %v6104 = vpop.f32.mrb[0].mxu0
        %6105 = vmatprep.mubr.bf16.mxu0 0
        %6106 = vmatmul.mubr.bf16.gmra.mrb[0].mxu0 %v5964
        %v6107 = vpop.f32.mrb[0].mxu0
        %v6108 = vadd.f32 0.0, %v6107
        %v6109 = vpop.f32.mrb[0].mxu0
        %v6110 = vpop.f32.mrb[0].mxu0
        %v6111 = vadd.f32 0.0, %v6110
        %v6112 = vpop.f32.mrb[0].mxu0
        %6113 = vmatprep.mubr.bf16.mxu0 0
        %6114 = vmatmul.mubr.bf16.gmra.mrb[0].mxu0 %v5965
        %v6115 = vpop.f32.mrb[0].mxu0
        %v6116 = vadd.f32 0.0, %v6115
        %v6117 = vpop.f32.mrb[0].mxu0
        %v6118 = vpop.f32.mrb[0].mxu0
        %v6119 = vadd.f32 0.0, %v6118
        %v6120 = vpop.f32.mrb[0].mxu0
        %6121 = vmatprep.mubr.bf16.mxu0 0
        %6122 = vmatmul.mubr.bf16.gmra.mrb[0].mxu0 %v5966
        %v6123 = vpop.f32.mrb[0].mxu0
        %v6124 = vadd.f32 0.0, %v6123
        %v6125 = vpop.f32.mrb[0].mxu0
        %v6126 = vpop.f32.mrb[0].mxu0
        %v6127 = vadd.f32 0.0, %v6126
        %v6128 = vpop.f32.mrb[0].mxu0
        %6129 = vmatprep.mubr.bf16.mxu0 0
        %6130 = vmatmul.mubr.bf16.gmra.mrb[0].mxu0 %v5967
        %v6131 = vpop.f32.mrb[0].mxu0
        %v6132 = vadd.f32 0.0, %v6131
        %v6133 = vpop.f32.mrb[0].mxu0
        %v6134 = vpop.f32.mrb[0].mxu0
        %v6135 = vadd.f32 0.0, %v6134
        %v6136 = vpop.f32.mrb[0].mxu0
        %6137 = vmatprep.mubr.bf16.mxu0 0
        %6138 = vmatmul.mubr.bf16.gmra.mrb[0].mxu0 %v5968
        %v6139 = vpop.f32.mrb[0].mxu0
        %v6140 = vadd.f32 0.0, %v6139
        %v6141 = vpop.f32.mrb[0].mxu0
        %v6142 = vpop.f32.mrb[0].mxu0
        %v6143 = vadd.f32 0.0, %v6142
        %v6144 = vpop.f32.mrb[0].mxu0
        %6145 = vmatprep.mubr.bf16.mxu0 0
        %6146 = vmatmul.mubr.bf16.gmra.mrb[0].mxu0 %v5969
        %v6147 = vpop.f32.mrb[0].mxu0
        %v6148 = vadd.f32 0.0, %v6147
        %v6149 = vpop.f32.mrb[0].mxu0
        %v6150 = vpop.f32.mrb[0].mxu0
        %v6151 = vadd.f32 0.0, %v6150
        %v6152 = vpop.f32.mrb[0].mxu0
        %6153 = vmatprep.mubr.bf16.mxu0 0
        %6154 = vmatmul.mubr.bf16.gmra.mrb[0].mxu0 %v5970
        %v6155 = vpop.f32.mrb[0].mxu0
        %v6156 = vadd.f32 0.0, %v6155
        %v6157 = vpop.f32.mrb[0].mxu0
        %v6158 = vpop.f32.mrb[0].mxu0
        %v6159 = vadd.f32 0.0, %v6158
        %v6160 = vpop.f32.mrb[0].mxu0
        %6161 = vmatprep.mubr.bf16.mxu0 0
        %6162 = vmatmul.mubr.bf16.gmra.mrb[0].mxu0 %v5971
        %v6163 = vpop.f32.mrb[0].mxu0
        %v6164 = vadd.f32 0.0, %v6163
        %v6165 = vpop.f32.mrb[0].mxu0
        %v6166 = vpop.f32.mrb[0].mxu0
        %v6167 = vadd.f32 0.0, %v6166
        %v6168 = vpop.f32.mrb[0].mxu0
        %6169 = vmatprep.mubr.bf16.mxu0 0
        %6170 = vmatmul.mubr.bf16.gmra.mrb[0].mxu0 %v5972
        %v6171 = vpop.f32.mrb[0].mxu0
        %v6172 = vadd.f32 0.0, %v6171
        %v6173 = vpop.f32.mrb[0].mxu0
        %v6174 = vpop.f32.mrb[0].mxu0
        %v6175 = vadd.f32 0.0, %v6174
        %v6176 = vpop.f32.mrb[0].mxu0
        %6177 = vmatprep.mubr.bf16.mxu0 0
        %6178 = vmatmul.mubr.bf16.gmra.mrb[0].mxu0 %v5973
        %v6179 = vpop.f32.mrb[0].mxu0
        %v6180 = vadd.f32 0.0, %v6179
        %v6181 = vpop.f32.mrb[0].mxu0
        %v6182 = vpop.f32.mrb[0].mxu0
        %v6183 = vadd.f32 0.0, %v6182
        %v6184 = vpop.f32.mrb[0].mxu0
        %6185 = vmatprep.mubr.bf16.mxu0 0
        %6186 = vmatmul.mubr.bf16.gmra.mrb[0].mxu0 %v5974
        %v6187 = vpop.f32.mrb[0].mxu0
        %v6188 = vadd.f32 0.0, %v6187
        %v6189 = vpop.f32.mrb[0].mxu0
        %v6190 = vpop.f32.mrb[0].mxu0
        %v6191 = vadd.f32 0.0, %v6190
        %v6192 = vpop.f32.mrb[0].mxu0
        %6193 = vmatprep.mubr.bf16.mxu0 0
        %6194 = vmatmul.mubr.bf16.gmra.mrb[0].mxu0 %v5975
        %v6195 = vpop.f32.mrb[0].mxu0
        %v6196 = vadd.f32 0.0, %v6195
        %v6197 = vpop.f32.mrb[0].mxu0
        %v6198 = vpop.f32.mrb[0].mxu0
        %v6199 = vadd.f32 0.0, %v6198
        %v6200 = vpop.f32.mrb[0].mxu0
        %6201 = vdwg.mxu0
        %v6202 = vadd.f32 %v5928, %v6076
        %v6203 = vadd.f32 %v5929, %v6079
        %v6204 = vadd.f32 %v5930, %v6084
        %v6205 = vadd.f32 %v5931, %v6087
        %v6206 = vadd.f32 %v5932, %v6092
        %v6207 = vadd.f32 %v5933, %v6095
        %v6208 = vadd.f32 %v5934, %v6100
        %v6209 = vadd.f32 %v5935, %v6103
        %v6210 = vadd.f32 %v5936, %v6108
        %v6211 = vadd.f32 %v5937, %v6111
        %v6212 = vadd.f32 %v5938, %v6116
        %v6213 = vadd.f32 %v5939, %v6119
        %v6214 = vadd.f32 %v5940, %v6124
        %v6215 = vadd.f32 %v5941, %v6127
        %v6216 = vadd.f32 %v5942, %v6132
        %v6217 = vadd.f32 %v5943, %v6135
        %v6218 = vadd.f32 %v5944, %v6140
        %v6219 = vadd.f32 %v5945, %v6143
        %v6220 = vadd.f32 %v5946, %v6148
        %v6221 = vadd.f32 %v5947, %v6151
        %v6222 = vadd.f32 %v5948, %v6156
        %v6223 = vadd.f32 %v5949, %v6159
        %v6224 = vadd.f32 %v5950, %v6164
        %v6225 = vadd.f32 %v5951, %v6167
        %v6226 = vadd.f32 %v5952, %v6172
        %v6227 = vadd.f32 %v5953, %v6175
        %v6228 = vadd.f32 %v5954, %v6180
        %v6229 = vadd.f32 %v5955, %v6183
        %v6230 = vadd.f32 %v5956, %v6188
        %v6231 = vadd.f32 %v5957, %v6191
        %v6232 = vadd.f32 %v5958, %v6196
        %v6233 = vadd.f32 %v5959, %v6199
        %6234 = vst [vmem:[#allocation4] sm:$0xff] %v6202
        %6235 = vst [vmem:[#allocation4 + $0x8] sm:$0xff] %v6203
        %6236 = vst [vmem:[#allocation4 + $0x10] sm:$0xff] %v6204
        %6237 = vst [vmem:[#allocation4 + $0x18] sm:$0xff] %v6205
        %6238 = vst [vmem:[#allocation4 + $0x20] sm:$0xff] %v6206
        %6239 = vst [vmem:[#allocation4 + $0x28] sm:$0xff] %v6207
        %6240 = vst [vmem:[#allocation4 + $0x30] sm:$0xff] %v6208
        %6241 = vst [vmem:[#allocation4 + $0x38] sm:$0xff] %v6209
        %6242 = vst [vmem:[#allocation4 + $0x40] sm:$0xff] %v6210
        %6243 = vst [vmem:[#allocation4 + $0x48] sm:$0xff] %v6211
        %6244 = vst [vmem:[#allocation4 + $0x50] sm:$0xff] %v6212
        %6245 = vst [vmem:[#allocation4 + $0x58] sm:$0xff] %v6213
        %6246 = vst [vmem:[#allocation4 + $0x60] sm:$0xff] %v6214
        %6247 = vst [vmem:[#allocation4 + $0x68] sm:$0xff] %v6215
        %6248 = vst [vmem:[#allocation4 + $0x70] sm:$0xff] %v6216
        %6249 = vst [vmem:[#allocation4 + $0x78] sm:$0xff] %v6217
        %6250 = vst [vmem:[#allocation4 + $0x80] sm:$0xff] %v6218
        %6251 = vst [vmem:[#allocation4 + $0x88] sm:$0xff] %v6219
        %6252 = vst [vmem:[#allocation4 + $0x90] sm:$0xff] %v6220
        %6253 = vst [vmem:[#allocation4 + $0x98] sm:$0xff] %v6221
        %6254 = vst [vmem:[#allocation4 + $0xa0] sm:$0xff] %v6222
        %6255 = vst [vmem:[#allocation4 + $0xa8] sm:$0xff] %v6223
        %6256 = vst [vmem:[#allocation4 + $0xb0] sm:$0xff] %v6224
        %6257 = vst [vmem:[#allocation4 + $0xb8] sm:$0xff] %v6225
        %6258 = vst [vmem:[#allocation4 + $0xc0] sm:$0xff] %v6226
        %6259 = vst [vmem:[#allocation4 + $0xc8] sm:$0xff] %v6227
        %6260 = vst [vmem:[#allocation4 + $0xd0] sm:$0xff] %v6228
        %6261 = vst [vmem:[#allocation4 + $0xd8] sm:$0xff] %v6229
        %6262 = vst [vmem:[#allocation4 + $0xe0] sm:$0xff] %v6230
        %6263 = vst [vmem:[#allocation4 + $0xe8] sm:$0xff] %v6231
        %6264 = vst [vmem:[#allocation4 + $0xf0] sm:$0xff] %v6232
        %6265 = vst [vmem:[#allocation4 + $0xf8] sm:$0xff] %v6233
        %s6266 = scalar_lea.vmem [#allocation3], 48
        %v6267 = vld [vmem:[%s6266] sm:$0xff]
        %v6268 = vld [vmem:[%s6266 + $0x8] sm:$0xff]
        %v6269 = vld [vmem:[%s6266 + $0x18] sm:$0xff]
        %v6270 = vld [vmem:[%s6266 + $0x20] sm:$0xff]
        %v6271 = vld [vmem:[%s6266 + $0x30] sm:$0xff]
        %v6272 = vld [vmem:[%s6266 + $0x38] sm:$0xff]
        %v6273 = vld [vmem:[%s6266 + $0x48] sm:$0xff]
        %v6274 = vld [vmem:[%s6266 + $0x50] sm:$0xff]
        %v6275 = vld [vmem:[%s6266 + $0x60] sm:$0xff]
        %v6276 = vld [vmem:[%s6266 + $0x68] sm:$0xff]
        %v6277 = vld [vmem:[%s6266 + $0x78] sm:$0xff]
        %v6278 = vld [vmem:[%s6266 + $0x80] sm:$0xff]
        %v6279 = vld [vmem:[%s6266 + $0x90] sm:$0xff]
        %v6280 = vld [vmem:[%s6266 + $0x98] sm:$0xff]
        %v6281 = vld [vmem:[%s6266 + $0xa8] sm:$0xff]
        %v6282 = vld [vmem:[%s6266 + $0xb0] sm:$0xff]
        %v6283 = vld [vmem:[%s6266 + $0xc0] sm:$0xff]
        %v6284 = vld [vmem:[%s6266 + $0xc8] sm:$0xff]
        %v6285 = vld [vmem:[%s6266 + $0xd8] sm:$0xff]
        %v6286 = vld [vmem:[%s6266 + $0xe0] sm:$0xff]
        %v6287 = vld [vmem:[%s6266 + $0xf0] sm:$0xff]
        %v6288 = vld [vmem:[%s6266 + $0xf8] sm:$0xff]
        %v6289 = vld [vmem:[%s6266 + $0x108] sm:$0xff]
        %v6290 = vld [vmem:[%s6266 + $0x110] sm:$0xff]
        %v6291 = vld [vmem:[%s6266 + $0x120] sm:$0xff]
        %v6292 = vld [vmem:[%s6266 + $0x128] sm:$0xff]
        %v6293 = vld [vmem:[%s6266 + $0x138] sm:$0xff]
        %v6294 = vld [vmem:[%s6266 + $0x140] sm:$0xff]
        %v6295 = vld [vmem:[%s6266 + $0x150] sm:$0xff]
        %v6296 = vld [vmem:[%s6266 + $0x158] sm:$0xff]
        %v6297 = vld [vmem:[%s6266 + $0x168] sm:$0xff]
        %v6298 = vld [vmem:[%s6266 + $0x170] sm:$0xff]
        %v6299 = vld [vmem:[#allocation4] sm:$0xff]
        %v6300 = vld [vmem:[#allocation4 + $0x8] sm:$0xff]
        %v6301 = vld [vmem:[#allocation4 + $0x10] sm:$0xff]
        %v6302 = vld [vmem:[#allocation4 + $0x18] sm:$0xff]
        %v6303 = vld [vmem:[#allocation4 + $0x20] sm:$0xff]
        %v6304 = vld [vmem:[#allocation4 + $0x28] sm:$0xff]
        %v6305 = vld [vmem:[#allocation4 + $0x30] sm:$0xff]
        %v6306 = vld [vmem:[#allocation4 + $0x38] sm:$0xff]
        %v6307 = vld [vmem:[#allocation4 + $0x40] sm:$0xff]
        %v6308 = vld [vmem:[#allocation4 + $0x48] sm:$0xff]
        %v6309 = vld [vmem:[#allocation4 + $0x50] sm:$0xff]
        %v6310 = vld [vmem:[#allocation4 + $0x58] sm:$0xff]
        %v6311 = vld [vmem:[#allocation4 + $0x60] sm:$0xff]
        %v6312 = vld [vmem:[#allocation4 + $0x68] sm:$0xff]
        %v6313 = vld [vmem:[#allocation4 + $0x70] sm:$0xff]
        %v6314 = vld [vmem:[#allocation4 + $0x78] sm:$0xff]
        %v6315 = vld [vmem:[#allocation4 + $0x80] sm:$0xff]
        %v6316 = vld [vmem:[#allocation4 + $0x88] sm:$0xff]
        %v6317 = vld [vmem:[#allocation4 + $0x90] sm:$0xff]
        %v6318 = vld [vmem:[#allocation4 + $0x98] sm:$0xff]
        %v6319 = vld [vmem:[#allocation4 + $0xa0] sm:$0xff]
        %v6320 = vld [vmem:[#allocation4 + $0xa8] sm:$0xff]
        %v6321 = vld [vmem:[#allocation4 + $0xb0] sm:$0xff]
        %v6322 = vld [vmem:[#allocation4 + $0xb8] sm:$0xff]
        %v6323 = vld [vmem:[#allocation4 + $0xc0] sm:$0xff]
        %v6324 = vld [vmem:[#allocation4 + $0xc8] sm:$0xff]
        %v6325 = vld [vmem:[#allocation4 + $0xd0] sm:$0xff]
        %v6326 = vld [vmem:[#allocation4 + $0xd8] sm:$0xff]
        %v6327 = vld [vmem:[#allocation4 + $0xe0] sm:$0xff]
        %v6328 = vld [vmem:[#allocation4 + $0xe8] sm:$0xff]
        %v6329 = vld [vmem:[#allocation4 + $0xf0] sm:$0xff]
        %v6330 = vld [vmem:[#allocation4 + $0xf8] sm:$0xff]
        %v6331 = vpack.c.bf16 %v6268, %v6267
        %v6332 = vpack.c.bf16 %v6270, %v6269
        %v6333 = vpack.c.bf16 %v6272, %v6271
        %v6334 = vpack.c.bf16 %v6274, %v6273
        %v6335 = vpack.c.bf16 %v6276, %v6275
        %v6336 = vpack.c.bf16 %v6278, %v6277
        %v6337 = vpack.c.bf16 %v6280, %v6279
        %v6338 = vpack.c.bf16 %v6282, %v6281
        %v6339 = vpack.c.bf16 %v6284, %v6283
        %v6340 = vpack.c.bf16 %v6286, %v6285
        %v6341 = vpack.c.bf16 %v6288, %v6287
        %v6342 = vpack.c.bf16 %v6290, %v6289
        %v6343 = vpack.c.bf16 %v6292, %v6291
        %v6344 = vpack.c.bf16 %v6294, %v6293
        %v6345 = vpack.c.bf16 %v6296, %v6295
        %v6346 = vpack.c.bf16 %v6298, %v6297
        %s6347 = scalar_lea.vmem [#allocation10], 384
        %v6348 = vld [vmem:[%s6347] sm:$0xf]
        %v6349 = vld [vmem:[%s6347 + $0x4] sm:$0xf]
        %v6350 = vld [vmem:[%s6347 + $0x8] sm:$0xf]
        %v6351 = vld [vmem:[%s6347 + $0xc] sm:$0xf]
        %v6352 = vld [vmem:[%s6347 + $0x10] sm:$0xf]
        %v6353 = vld [vmem:[%s6347 + $0x14] sm:$0xf]
        %v6354 = vld [vmem:[%s6347 + $0x18] sm:$0xf]
        %v6355 = vld [vmem:[%s6347 + $0x1c] sm:$0xf]
        %v6356 = vld [vmem:[%s6347 + $0x20] sm:$0xf]
        %v6357 = vld [vmem:[%s6347 + $0x24] sm:$0xf]
        %v6358 = vld [vmem:[%s6347 + $0x28] sm:$0xf]
        %v6359 = vld [vmem:[%s6347 + $0x2c] sm:$0xf]
        %v6360 = vld [vmem:[%s6347 + $0x30] sm:$0xf]
        %v6361 = vld [vmem:[%s6347 + $0x34] sm:$0xf]
        %v6362 = vld [vmem:[%s6347 + $0x38] sm:$0xf]
        %v6363 = vld [vmem:[%s6347 + $0x3c] sm:$0xf]
        %v6380 = vunpack.c.l.b16 %v6348
        %v6381 = vunpack.c.l.b16 %v6349
        %v6382 = vunpack.c.l.b16 %v6350
        %v6383 = vunpack.c.l.b16 %v6351
        %v6384 = vunpack.c.l.b16 %v6352
        %v6385 = vunpack.c.l.b16 %v6353
        %v6386 = vunpack.c.l.b16 %v6354
        %v6387 = vunpack.c.l.b16 %v6355
        %v6388 = vunpack.c.l.b16 %v6356
        %v6389 = vunpack.c.l.b16 %v6357
        %v6390 = vunpack.c.l.b16 %v6358
        %v6391 = vunpack.c.l.b16 %v6359
        %v6392 = vunpack.c.l.b16 %v6360
        %v6393 = vunpack.c.l.b16 %v6361
        %v6394 = vunpack.c.l.b16 %v6362
        %v6395 = vunpack.c.l.b16 %v6363
        %v6396 = vpack.c.b16 %v6381, %v6380
        %v6397 = vpack.c.b16 %v6383, %v6382
        %v6398 = vpack.c.b16 %v6385, %v6384
        %v6399 = vpack.c.b16 %v6387, %v6386
        %v6400 = vpack.c.b16 %v6389, %v6388
        %v6401 = vpack.c.b16 %v6391, %v6390
        %v6402 = vpack.c.b16 %v6393, %v6392
        %v6403 = vpack.c.b16 %v6395, %v6394
        %6412 = vmatprep.subr.bf16.mxu0 0
        %6413 = vmatpush1.bf16.msra.mxu0 %v6396
        %6414 = vmatprep.subr.bf16.mxu0 0
        %6415 = vmatpush1.bf16.msra.mxu0 %v6397
        %6416 = vmatprep.subr.bf16.mxu0 0
        %6417 = vmatpush1.bf16.msra.mxu0 %v6398
        %6418 = vmatprep.subr.bf16.mxu0 0
        %6419 = vmatpush1.bf16.msra.mxu0 %v6399
        %6420 = vmatprep.subr.bf16.mxu0 0
        %6421 = vmatpush1.bf16.msra.mxu0 %v6400
        %6422 = vmatprep.subr.bf16.mxu0 0
        %6423 = vmatpush1.bf16.msra.mxu0 %v6401
        %6424 = vmatprep.subr.bf16.mxu0 0
        %6425 = vmatpush1.bf16.msra.mxu0 %v6402
        %6426 = vmatprep.subr.bf16.mxu0 0
        %6427 = vmatpush1.bf16.msra.mxu0 %v6403
        %6428 = vmatprep.subr.bf16.mxu0 0
        %6429 = vmatpush1.bf16.msra.mxu0 0
        %6430 = vmatprep.subr.bf16.mxu0 0
        %6431 = vmatpush1.bf16.msra.mxu0 0
        %6432 = vmatprep.subr.bf16.mxu0 0
        %6433 = vmatpush1.bf16.msra.mxu0 0
        %6434 = vmatprep.subr.bf16.mxu0 0
        %6435 = vmatpush1.bf16.msra.mxu0 0
        %6436 = vmatprep.subr.bf16.mxu0 0
        %6437 = vmatpush1.bf16.msra.mxu0 0
        %6438 = vmatprep.subr.bf16.mxu0 0
        %6439 = vmatpush1.bf16.msra.mxu0 0
        %6440 = vmatprep.subr.bf16.mxu0 0
        %6441 = vmatpush1.bf16.msra.mxu0 0
        %6442 = vmatprep.subr.bf16.mxu0 0
        %6443 = vmatpush1.bf16.msra.mxu0 0
        %6444 = vmatprep.mubr.bf16.mxu0 0
        %6445 = vmatmul.mubr.bf16.gmra.mrb[0].mxu0 %v6331
        %v6446 = vpop.f32.mrb[0].mxu0
        %v6447 = vadd.f32 0.0, %v6446
        %v6448 = vpop.f32.mrb[0].mxu0
        %v6449 = vpop.f32.mrb[0].mxu0
        %v6450 = vadd.f32 0.0, %v6449
        %v6451 = vpop.f32.mrb[0].mxu0
        %6452 = vmatprep.mubr.bf16.mxu0 0
        %6453 = vmatmul.mubr.bf16.gmra.mrb[0].mxu0 %v6332
        %v6454 = vpop.f32.mrb[0].mxu0
        %v6455 = vadd.f32 0.0, %v6454
        %v6456 = vpop.f32.mrb[0].mxu0
        %v6457 = vpop.f32.mrb[0].mxu0
        %v6458 = vadd.f32 0.0, %v6457
        %v6459 = vpop.f32.mrb[0].mxu0
        %6460 = vmatprep.mubr.bf16.mxu0 0
        %6461 = vmatmul.mubr.bf16.gmra.mrb[0].mxu0 %v6333
        %v6462 = vpop.f32.mrb[0].mxu0
        %v6463 = vadd.f32 0.0, %v6462
        %v6464 = vpop.f32.mrb[0].mxu0
        %v6465 = vpop.f32.mrb[0].mxu0
        %v6466 = vadd.f32 0.0, %v6465
        %v6467 = vpop.f32.mrb[0].mxu0
        %6468 = vmatprep.mubr.bf16.mxu0 0
        %6469 = vmatmul.mubr.bf16.gmra.mrb[0].mxu0 %v6334
        %v6470 = vpop.f32.mrb[0].mxu0
        %v6471 = vadd.f32 0.0, %v6470
        %v6472 = vpop.f32.mrb[0].mxu0
        %v6473 = vpop.f32.mrb[0].mxu0
        %v6474 = vadd.f32 0.0, %v6473
        %v6475 = vpop.f32.mrb[0].mxu0
        %6476 = vmatprep.mubr.bf16.mxu0 0
        %6477 = vmatmul.mubr.bf16.gmra.mrb[0].mxu0 %v6335
        %v6478 = vpop.f32.mrb[0].mxu0
        %v6479 = vadd.f32 0.0, %v6478
        %v6480 = vpop.f32.mrb[0].mxu0
        %v6481 = vpop.f32.mrb[0].mxu0
        %v6482 = vadd.f32 0.0, %v6481
        %v6483 = vpop.f32.mrb[0].mxu0
        %6484 = vmatprep.mubr.bf16.mxu0 0
        %6485 = vmatmul.mubr.bf16.gmra.mrb[0].mxu0 %v6336
        %v6486 = vpop.f32.mrb[0].mxu0
        %v6487 = vadd.f32 0.0, %v6486
        %v6488 = vpop.f32.mrb[0].mxu0
        %v6489 = vpop.f32.mrb[0].mxu0
        %v6490 = vadd.f32 0.0, %v6489
        %v6491 = vpop.f32.mrb[0].mxu0
        %6492 = vmatprep.mubr.bf16.mxu0 0
        %6493 = vmatmul.mubr.bf16.gmra.mrb[0].mxu0 %v6337
        %v6494 = vpop.f32.mrb[0].mxu0
        %v6495 = vadd.f32 0.0, %v6494
        %v6496 = vpop.f32.mrb[0].mxu0
        %v6497 = vpop.f32.mrb[0].mxu0
        %v6498 = vadd.f32 0.0, %v6497
        %v6499 = vpop.f32.mrb[0].mxu0
        %6500 = vmatprep.mubr.bf16.mxu0 0
        %6501 = vmatmul.mubr.bf16.gmra.mrb[0].mxu0 %v6338
        %v6502 = vpop.f32.mrb[0].mxu0
        %v6503 = vadd.f32 0.0, %v6502
        %v6504 = vpop.f32.mrb[0].mxu0
        %v6505 = vpop.f32.mrb[0].mxu0
        %v6506 = vadd.f32 0.0, %v6505
        %v6507 = vpop.f32.mrb[0].mxu0
        %6508 = vmatprep.mubr.bf16.mxu0 0
        %6509 = vmatmul.mubr.bf16.gmra.mrb[0].mxu0 %v6339
        %v6510 = vpop.f32.mrb[0].mxu0
        %v6511 = vadd.f32 0.0, %v6510
        %v6512 = vpop.f32.mrb[0].mxu0
        %v6513 = vpop.f32.mrb[0].mxu0
        %v6514 = vadd.f32 0.0, %v6513
        %v6515 = vpop.f32.mrb[0].mxu0
        %6516 = vmatprep.mubr.bf16.mxu0 0
        %6517 = vmatmul.mubr.bf16.gmra.mrb[0].mxu0 %v6340
        %v6518 = vpop.f32.mrb[0].mxu0
        %v6519 = vadd.f32 0.0, %v6518
        %v6520 = vpop.f32.mrb[0].mxu0
        %v6521 = vpop.f32.mrb[0].mxu0
        %v6522 = vadd.f32 0.0, %v6521
        %v6523 = vpop.f32.mrb[0].mxu0
        %6524 = vmatprep.mubr.bf16.mxu0 0
        %6525 = vmatmul.mubr.bf16.gmra.mrb[0].mxu0 %v6341
        %v6526 = vpop.f32.mrb[0].mxu0
        %v6527 = vadd.f32 0.0, %v6526
        %v6528 = vpop.f32.mrb[0].mxu0
        %v6529 = vpop.f32.mrb[0].mxu0
        %v6530 = vadd.f32 0.0, %v6529
        %v6531 = vpop.f32.mrb[0].mxu0
        %6532 = vmatprep.mubr.bf16.mxu0 0
        %6533 = vmatmul.mubr.bf16.gmra.mrb[0].mxu0 %v6342
        %v6534 = vpop.f32.mrb[0].mxu0
        %v6535 = vadd.f32 0.0, %v6534
        %v6536 = vpop.f32.mrb[0].mxu0
        %v6537 = vpop.f32.mrb[0].mxu0
        %v6538 = vadd.f32 0.0, %v6537
        %v6539 = vpop.f32.mrb[0].mxu0
        %6540 = vmatprep.mubr.bf16.mxu0 0
        %6541 = vmatmul.mubr.bf16.gmra.mrb[0].mxu0 %v6343
        %v6542 = vpop.f32.mrb[0].mxu0
        %v6543 = vadd.f32 0.0, %v6542
        %v6544 = vpop.f32.mrb[0].mxu0
        %v6545 = vpop.f32.mrb[0].mxu0
        %v6546 = vadd.f32 0.0, %v6545
        %v6547 = vpop.f32.mrb[0].mxu0
        %6548 = vmatprep.mubr.bf16.mxu0 0
        %6549 = vmatmul.mubr.bf16.gmra.mrb[0].mxu0 %v6344
        %v6550 = vpop.f32.mrb[0].mxu0
        %v6551 = vadd.f32 0.0, %v6550
        %v6552 = vpop.f32.mrb[0].mxu0
        %v6553 = vpop.f32.mrb[0].mxu0
        %v6554 = vadd.f32 0.0, %v6553
        %v6555 = vpop.f32.mrb[0].mxu0
        %6556 = vmatprep.mubr.bf16.mxu0 0
        %6557 = vmatmul.mubr.bf16.gmra.mrb[0].mxu0 %v6345
        %v6558 = vpop.f32.mrb[0].mxu0
        %v6559 = vadd.f32 0.0, %v6558
        %v6560 = vpop.f32.mrb[0].mxu0
        %v6561 = vpop.f32.mrb[0].mxu0
        %v6562 = vadd.f32 0.0, %v6561
        %v6563 = vpop.f32.mrb[0].mxu0
        %6564 = vmatprep.mubr.bf16.mxu0 0
        %6565 = vmatmul.mubr.bf16.gmra.mrb[0].mxu0 %v6346
        %v6566 = vpop.f32.mrb[0].mxu0
        %v6567 = vadd.f32 0.0, %v6566
        %v6568 = vpop.f32.mrb[0].mxu0
        %v6569 = vpop.f32.mrb[0].mxu0
        %v6570 = vadd.f32 0.0, %v6569
        %v6571 = vpop.f32.mrb[0].mxu0
        %6572 = vdwg.mxu0
        %v6573 = vadd.f32 %v6299, %v6447
        %v6574 = vadd.f32 %v6300, %v6450
        %v6575 = vadd.f32 %v6301, %v6455
        %v6576 = vadd.f32 %v6302, %v6458
        %v6577 = vadd.f32 %v6303, %v6463
        %v6578 = vadd.f32 %v6304, %v6466
        %v6579 = vadd.f32 %v6305, %v6471
        %v6580 = vadd.f32 %v6306, %v6474
        %v6581 = vadd.f32 %v6307, %v6479
        %v6582 = vadd.f32 %v6308, %v6482
        %v6583 = vadd.f32 %v6309, %v6487
        %v6584 = vadd.f32 %v6310, %v6490
        %v6585 = vadd.f32 %v6311, %v6495
        %v6586 = vadd.f32 %v6312, %v6498
        %v6587 = vadd.f32 %v6313, %v6503
        %v6588 = vadd.f32 %v6314, %v6506
        %v6589 = vadd.f32 %v6315, %v6511
        %v6590 = vadd.f32 %v6316, %v6514
        %v6591 = vadd.f32 %v6317, %v6519
        %v6592 = vadd.f32 %v6318, %v6522
        %v6593 = vadd.f32 %v6319, %v6527
        %v6594 = vadd.f32 %v6320, %v6530
        %v6595 = vadd.f32 %v6321, %v6535
        %v6596 = vadd.f32 %v6322, %v6538
        %v6597 = vadd.f32 %v6323, %v6543
        %v6598 = vadd.f32 %v6324, %v6546
        %v6599 = vadd.f32 %v6325, %v6551
        %v6600 = vadd.f32 %v6326, %v6554
        %v6601 = vadd.f32 %v6327, %v6559
        %v6602 = vadd.f32 %v6328, %v6562
        %v6603 = vadd.f32 %v6329, %v6567
        %v6604 = vadd.f32 %v6330, %v6570
        %6605 = vst [vmem:[#allocation4] sm:$0xff] %v6573
        %6606 = vst [vmem:[#allocation4 + $0x8] sm:$0xff] %v6574
        %6607 = vst [vmem:[#allocation4 + $0x10] sm:$0xff] %v6575
        %6608 = vst [vmem:[#allocation4 + $0x18] sm:$0xff] %v6576
        %6609 = vst [vmem:[#allocation4 + $0x20] sm:$0xff] %v6577
        %6610 = vst [vmem:[#allocation4 + $0x28] sm:$0xff] %v6578
        %6611 = vst [vmem:[#allocation4 + $0x30] sm:$0xff] %v6579
        %6612 = vst [vmem:[#allocation4 + $0x38] sm:$0xff] %v6580
        %6613 = vst [vmem:[#allocation4 + $0x40] sm:$0xff] %v6581
        %6614 = vst [vmem:[#allocation4 + $0x48] sm:$0xff] %v6582
        %6615 = vst [vmem:[#allocation4 + $0x50] sm:$0xff] %v6583
        %6616 = vst [vmem:[#allocation4 + $0x58] sm:$0xff] %v6584
        %6617 = vst [vmem:[#allocation4 + $0x60] sm:$0xff] %v6585
        %6618 = vst [vmem:[#allocation4 + $0x68] sm:$0xff] %v6586
        %6619 = vst [vmem:[#allocation4 + $0x70] sm:$0xff] %v6587
        %6620 = vst [vmem:[#allocation4 + $0x78] sm:$0xff] %v6588
        %6621 = vst [vmem:[#allocation4 + $0x80] sm:$0xff] %v6589
        %6622 = vst [vmem:[#allocation4 + $0x88] sm:$0xff] %v6590
        %6623 = vst [vmem:[#allocation4 + $0x90] sm:$0xff] %v6591
        %6624 = vst [vmem:[#allocation4 + $0x98] sm:$0xff] %v6592
        %6625 = vst [vmem:[#allocation4 + $0xa0] sm:$0xff] %v6593
        %6626 = vst [vmem:[#allocation4 + $0xa8] sm:$0xff] %v6594
        %6627 = vst [vmem:[#allocation4 + $0xb0] sm:$0xff] %v6595
        %6628 = vst [vmem:[#allocation4 + $0xb8] sm:$0xff] %v6596
        %6629 = vst [vmem:[#allocation4 + $0xc0] sm:$0xff] %v6597
        %6630 = vst [vmem:[#allocation4 + $0xc8] sm:$0xff] %v6598
        %6631 = vst [vmem:[#allocation4 + $0xd0] sm:$0xff] %v6599
        %6632 = vst [vmem:[#allocation4 + $0xd8] sm:$0xff] %v6600
        %6633 = vst [vmem:[#allocation4 + $0xe0] sm:$0xff] %v6601
        %6634 = vst [vmem:[#allocation4 + $0xe8] sm:$0xff] %v6602
        %6635 = vst [vmem:[#allocation4 + $0xf0] sm:$0xff] %v6603
        %6636 = vst [vmem:[#allocation4 + $0xf8] sm:$0xff] %v6604
        %v6637 = vld [vmem:[%s6266 + $0x1] sm:$0xff]
        %v6638 = vld [vmem:[%s6266 + $0x9] sm:$0xff]
        %v6639 = vld [vmem:[%s6266 + $0x19] sm:$0xff]
        %v6640 = vld [vmem:[%s6266 + $0x21] sm:$0xff]
        %v6641 = vld [vmem:[%s6266 + $0x31] sm:$0xff]
        %v6642 = vld [vmem:[%s6266 + $0x39] sm:$0xff]
        %v6643 = vld [vmem:[%s6266 + $0x49] sm:$0xff]
        %v6644 = vld [vmem:[%s6266 + $0x51] sm:$0xff]
        %v6645 = vld [vmem:[%s6266 + $0x61] sm:$0xff]
        %v6646 = vld [vmem:[%s6266 + $0x69] sm:$0xff]
        %v6647 = vld [vmem:[%s6266 + $0x79] sm:$0xff]
        %v6648 = vld [vmem:[%s6266 + $0x81] sm:$0xff]
        %v6649 = vld [vmem:[%s6266 + $0x91] sm:$0xff]
        %v6650 = vld [vmem:[%s6266 + $0x99] sm:$0xff]
        %v6651 = vld [vmem:[%s6266 + $0xa9] sm:$0xff]
        %v6652 = vld [vmem:[%s6266 + $0xb1] sm:$0xff]
        %v6653 = vld [vmem:[%s6266 + $0xc1] sm:$0xff]
        %v6654 = vld [vmem:[%s6266 + $0xc9] sm:$0xff]
        %v6655 = vld [vmem:[%s6266 + $0xd9] sm:$0xff]
        %v6656 = vld [vmem:[%s6266 + $0xe1] sm:$0xff]
        %v6657 = vld [vmem:[%s6266 + $0xf1] sm:$0xff]
        %v6658 = vld [vmem:[%s6266 + $0xf9] sm:$0xff]
        %v6659 = vld [vmem:[%s6266 + $0x109] sm:$0xff]
        %v6660 = vld [vmem:[%s6266 + $0x111] sm:$0xff]
        %v6661 = vld [vmem:[%s6266 + $0x121] sm:$0xff]
        %v6662 = vld [vmem:[%s6266 + $0x129] sm:$0xff]
        %v6663 = vld [vmem:[%s6266 + $0x139] sm:$0xff]
        %v6664 = vld [vmem:[%s6266 + $0x141] sm:$0xff]
        %v6665 = vld [vmem:[%s6266 + $0x151] sm:$0xff]
        %v6666 = vld [vmem:[%s6266 + $0x159] sm:$0xff]
        %v6667 = vld [vmem:[%s6266 + $0x169] sm:$0xff]
        %v6668 = vld [vmem:[%s6266 + $0x171] sm:$0xff]
        %v6669 = vld [vmem:[#allocation4] sm:$0xff]
        %v6670 = vld [vmem:[#allocation4 + $0x8] sm:$0xff]
        %v6671 = vld [vmem:[#allocation4 + $0x10] sm:$0xff]
        %v6672 = vld [vmem:[#allocation4 + $0x18] sm:$0xff]
        %v6673 = vld [vmem:[#allocation4 + $0x20] sm:$0xff]
        %v6674 = vld [vmem:[#allocation4 + $0x28] sm:$0xff]
        %v6675 = vld [vmem:[#allocation4 + $0x30] sm:$0xff]
        %v6676 = vld [vmem:[#allocation4 + $0x38] sm:$0xff]
        %v6677 = vld [vmem:[#allocation4 + $0x40] sm:$0xff]
        %v6678 = vld [vmem:[#allocation4 + $0x48] sm:$0xff]
        %v6679 = vld [vmem:[#allocation4 + $0x50] sm:$0xff]
        %v6680 = vld [vmem:[#allocation4 + $0x58] sm:$0xff]
        %v6681 = vld [vmem:[#allocation4 + $0x60] sm:$0xff]
        %v6682 = vld [vmem:[#allocation4 + $0x68] sm:$0xff]
        %v6683 = vld [vmem:[#allocation4 + $0x70] sm:$0xff]
        %v6684 = vld [vmem:[#allocation4 + $0x78] sm:$0xff]
        %v6685 = vld [vmem:[#allocation4 + $0x80] sm:$0xff]
        %v6686 = vld [vmem:[#allocation4 + $0x88] sm:$0xff]
        %v6687 = vld [vmem:[#allocation4 + $0x90] sm:$0xff]
        %v6688 = vld [vmem:[#allocation4 + $0x98] sm:$0xff]
        %v6689 = vld [vmem:[#allocation4 + $0xa0] sm:$0xff]
        %v6690 = vld [vmem:[#allocation4 + $0xa8] sm:$0xff]
        %v6691 = vld [vmem:[#allocation4 + $0xb0] sm:$0xff]
        %v6692 = vld [vmem:[#allocation4 + $0xb8] sm:$0xff]
        %v6693 = vld [vmem:[#allocation4 + $0xc0] sm:$0xff]
        %v6694 = vld [vmem:[#allocation4 + $0xc8] sm:$0xff]
        %v6695 = vld [vmem:[#allocation4 + $0xd0] sm:$0xff]
        %v6696 = vld [vmem:[#allocation4 + $0xd8] sm:$0xff]
        %v6697 = vld [vmem:[#allocation4 + $0xe0] sm:$0xff]
        %v6698 = vld [vmem:[#allocation4 + $0xe8] sm:$0xff]
        %v6699 = vld [vmem:[#allocation4 + $0xf0] sm:$0xff]
        %v6700 = vld [vmem:[#allocation4 + $0xf8] sm:$0xff]
        %v6701 = vpack.c.bf16 %v6638, %v6637
        %v6702 = vpack.c.bf16 %v6640, %v6639
        %v6703 = vpack.c.bf16 %v6642, %v6641
        %v6704 = vpack.c.bf16 %v6644, %v6643
        %v6705 = vpack.c.bf16 %v6646, %v6645
        %v6706 = vpack.c.bf16 %v6648, %v6647
        %v6707 = vpack.c.bf16 %v6650, %v6649
        %v6708 = vpack.c.bf16 %v6652, %v6651
        %v6709 = vpack.c.bf16 %v6654, %v6653
        %v6710 = vpack.c.bf16 %v6656, %v6655
        %v6711 = vpack.c.bf16 %v6658, %v6657
        %v6712 = vpack.c.bf16 %v6660, %v6659
        %v6713 = vpack.c.bf16 %v6662, %v6661
        %v6714 = vpack.c.bf16 %v6664, %v6663
        %v6715 = vpack.c.bf16 %v6666, %v6665
        %v6716 = vpack.c.bf16 %v6668, %v6667
        %s6717 = scalar_lea.vmem [#allocation10], 448
        %v6718 = vld [vmem:[%s6717] sm:$0xf]
        %v6719 = vld [vmem:[%s6717 + $0x4] sm:$0xf]
        %v6720 = vld [vmem:[%s6717 + $0x8] sm:$0xf]
        %v6721 = vld [vmem:[%s6717 + $0xc] sm:$0xf]
        %v6722 = vld [vmem:[%s6717 + $0x10] sm:$0xf]
        %v6723 = vld [vmem:[%s6717 + $0x14] sm:$0xf]
        %v6724 = vld [vmem:[%s6717 + $0x18] sm:$0xf]
        %v6725 = vld [vmem:[%s6717 + $0x1c] sm:$0xf]
        %v6726 = vld [vmem:[%s6717 + $0x20] sm:$0xf]
        %v6727 = vld [vmem:[%s6717 + $0x24] sm:$0xf]
        %v6728 = vld [vmem:[%s6717 + $0x28] sm:$0xf]
        %v6729 = vld [vmem:[%s6717 + $0x2c] sm:$0xf]
        %v6730 = vld [vmem:[%s6717 + $0x30] sm:$0xf]
        %v6731 = vld [vmem:[%s6717 + $0x34] sm:$0xf]
        %v6732 = vld [vmem:[%s6717 + $0x38] sm:$0xf]
        %v6733 = vld [vmem:[%s6717 + $0x3c] sm:$0xf]
        %v6750 = vunpack.c.l.b16 %v6718
        %v6751 = vunpack.c.l.b16 %v6719
        %v6752 = vunpack.c.l.b16 %v6720
        %v6753 = vunpack.c.l.b16 %v6721
        %v6754 = vunpack.c.l.b16 %v6722
        %v6755 = vunpack.c.l.b16 %v6723
        %v6756 = vunpack.c.l.b16 %v6724
        %v6757 = vunpack.c.l.b16 %v6725
        %v6758 = vunpack.c.l.b16 %v6726
        %v6759 = vunpack.c.l.b16 %v6727
        %v6760 = vunpack.c.l.b16 %v6728
        %v6761 = vunpack.c.l.b16 %v6729
        %v6762 = vunpack.c.l.b16 %v6730
        %v6763 = vunpack.c.l.b16 %v6731
        %v6764 = vunpack.c.l.b16 %v6732
        %v6765 = vunpack.c.l.b16 %v6733
        %v6766 = vpack.c.b16 %v6751, %v6750
        %v6767 = vpack.c.b16 %v6753, %v6752
        %v6768 = vpack.c.b16 %v6755, %v6754
        %v6769 = vpack.c.b16 %v6757, %v6756
        %v6770 = vpack.c.b16 %v6759, %v6758
        %v6771 = vpack.c.b16 %v6761, %v6760
        %v6772 = vpack.c.b16 %v6763, %v6762
        %v6773 = vpack.c.b16 %v6765, %v6764
        %6782 = vmatprep.subr.bf16.mxu0 0
        %6783 = vmatpush1.bf16.msra.mxu0 %v6766
        %6784 = vmatprep.subr.bf16.mxu0 0
        %6785 = vmatpush1.bf16.msra.mxu0 %v6767
        %6786 = vmatprep.subr.bf16.mxu0 0
        %6787 = vmatpush1.bf16.msra.mxu0 %v6768
        %6788 = vmatprep.subr.bf16.mxu0 0
        %6789 = vmatpush1.bf16.msra.mxu0 %v6769
        %6790 = vmatprep.subr.bf16.mxu0 0
        %6791 = vmatpush1.bf16.msra.mxu0 %v6770
        %6792 = vmatprep.subr.bf16.mxu0 0
        %6793 = vmatpush1.bf16.msra.mxu0 %v6771
        %6794 = vmatprep.subr.bf16.mxu0 0
        %6795 = vmatpush1.bf16.msra.mxu0 %v6772
        %6796 = vmatprep.subr.bf16.mxu0 0
        %6797 = vmatpush1.bf16.msra.mxu0 %v6773
        %6798 = vmatprep.subr.bf16.mxu0 0
        %6799 = vmatpush1.bf16.msra.mxu0 0
        %6800 = vmatprep.subr.bf16.mxu0 0
        %6801 = vmatpush1.bf16.msra.mxu0 0
        %6802 = vmatprep.subr.bf16.mxu0 0
        %6803 = vmatpush1.bf16.msra.mxu0 0
        %6804 = vmatprep.subr.bf16.mxu0 0
        %6805 = vmatpush1.bf16.msra.mxu0 0
        %6806 = vmatprep.subr.bf16.mxu0 0
        %6807 = vmatpush1.bf16.msra.mxu0 0
        %6808 = vmatprep.subr.bf16.mxu0 0
        %6809 = vmatpush1.bf16.msra.mxu0 0
        %6810 = vmatprep.subr.bf16.mxu0 0
        %6811 = vmatpush1.bf16.msra.mxu0 0
        %6812 = vmatprep.subr.bf16.mxu0 0
        %6813 = vmatpush1.bf16.msra.mxu0 0
        %6814 = vmatprep.mubr.bf16.mxu0 0
        %6815 = vmatmul.mubr.bf16.gmra.mrb[0].mxu0 %v6701
        %v6816 = vpop.f32.mrb[0].mxu0
        %v6817 = vadd.f32 0.0, %v6816
        %v6818 = vpop.f32.mrb[0].mxu0
        %v6819 = vpop.f32.mrb[0].mxu0
        %v6820 = vadd.f32 0.0, %v6819
        %v6821 = vpop.f32.mrb[0].mxu0
        %6822 = vmatprep.mubr.bf16.mxu0 0
        %6823 = vmatmul.mubr.bf16.gmra.mrb[0].mxu0 %v6702
        %v6824 = vpop.f32.mrb[0].mxu0
        %v6825 = vadd.f32 0.0, %v6824
        %v6826 = vpop.f32.mrb[0].mxu0
        %v6827 = vpop.f32.mrb[0].mxu0
        %v6828 = vadd.f32 0.0, %v6827
        %v6829 = vpop.f32.mrb[0].mxu0
        %6830 = vmatprep.mubr.bf16.mxu0 0
        %6831 = vmatmul.mubr.bf16.gmra.mrb[0].mxu0 %v6703
        %v6832 = vpop.f32.mrb[0].mxu0
        %v6833 = vadd.f32 0.0, %v6832
        %v6834 = vpop.f32.mrb[0].mxu0
        %v6835 = vpop.f32.mrb[0].mxu0
        %v6836 = vadd.f32 0.0, %v6835
        %v6837 = vpop.f32.mrb[0].mxu0
        %6838 = vmatprep.mubr.bf16.mxu0 0
        %6839 = vmatmul.mubr.bf16.gmra.mrb[0].mxu0 %v6704
        %v6840 = vpop.f32.mrb[0].mxu0
        %v6841 = vadd.f32 0.0, %v6840
        %v6842 = vpop.f32.mrb[0].mxu0
        %v6843 = vpop.f32.mrb[0].mxu0
        %v6844 = vadd.f32 0.0, %v6843
        %v6845 = vpop.f32.mrb[0].mxu0
        %6846 = vmatprep.mubr.bf16.mxu0 0
        %6847 = vmatmul.mubr.bf16.gmra.mrb[0].mxu0 %v6705
        %v6848 = vpop.f32.mrb[0].mxu0
        %v6849 = vadd.f32 0.0, %v6848
        %v6850 = vpop.f32.mrb[0].mxu0
        %v6851 = vpop.f32.mrb[0].mxu0
        %v6852 = vadd.f32 0.0, %v6851
        %v6853 = vpop.f32.mrb[0].mxu0
        %6854 = vmatprep.mubr.bf16.mxu0 0
        %6855 = vmatmul.mubr.bf16.gmra.mrb[0].mxu0 %v6706
        %v6856 = vpop.f32.mrb[0].mxu0
        %v6857 = vadd.f32 0.0, %v6856
        %v6858 = vpop.f32.mrb[0].mxu0
        %v6859 = vpop.f32.mrb[0].mxu0
        %v6860 = vadd.f32 0.0, %v6859
        %v6861 = vpop.f32.mrb[0].mxu0
        %6862 = vmatprep.mubr.bf16.mxu0 0
        %6863 = vmatmul.mubr.bf16.gmra.mrb[0].mxu0 %v6707
        %v6864 = vpop.f32.mrb[0].mxu0
        %v6865 = vadd.f32 0.0, %v6864
        %v6866 = vpop.f32.mrb[0].mxu0
        %v6867 = vpop.f32.mrb[0].mxu0
        %v6868 = vadd.f32 0.0, %v6867
        %v6869 = vpop.f32.mrb[0].mxu0
        %6870 = vmatprep.mubr.bf16.mxu0 0
        %6871 = vmatmul.mubr.bf16.gmra.mrb[0].mxu0 %v6708
        %v6872 = vpop.f32.mrb[0].mxu0
        %v6873 = vadd.f32 0.0, %v6872
        %v6874 = vpop.f32.mrb[0].mxu0
        %v6875 = vpop.f32.mrb[0].mxu0
        %v6876 = vadd.f32 0.0, %v6875
        %v6877 = vpop.f32.mrb[0].mxu0
        %6878 = vmatprep.mubr.bf16.mxu0 0
        %6879 = vmatmul.mubr.bf16.gmra.mrb[0].mxu0 %v6709
        %v6880 = vpop.f32.mrb[0].mxu0
        %v6881 = vadd.f32 0.0, %v6880
        %v6882 = vpop.f32.mrb[0].mxu0
        %v6883 = vpop.f32.mrb[0].mxu0
        %v6884 = vadd.f32 0.0, %v6883
        %v6885 = vpop.f32.mrb[0].mxu0
        %6886 = vmatprep.mubr.bf16.mxu0 0
        %6887 = vmatmul.mubr.bf16.gmra.mrb[0].mxu0 %v6710
        %v6888 = vpop.f32.mrb[0].mxu0
        %v6889 = vadd.f32 0.0, %v6888
        %v6890 = vpop.f32.mrb[0].mxu0
        %v6891 = vpop.f32.mrb[0].mxu0
        %v6892 = vadd.f32 0.0, %v6891
        %v6893 = vpop.f32.mrb[0].mxu0
        %6894 = vmatprep.mubr.bf16.mxu0 0
        %6895 = vmatmul.mubr.bf16.gmra.mrb[0].mxu0 %v6711
        %v6896 = vpop.f32.mrb[0].mxu0
        %v6897 = vadd.f32 0.0, %v6896
        %v6898 = vpop.f32.mrb[0].mxu0
        %v6899 = vpop.f32.mrb[0].mxu0
        %v6900 = vadd.f32 0.0, %v6899
        %v6901 = vpop.f32.mrb[0].mxu0
        %6902 = vmatprep.mubr.bf16.mxu0 0
        %6903 = vmatmul.mubr.bf16.gmra.mrb[0].mxu0 %v6712
        %v6904 = vpop.f32.mrb[0].mxu0
        %v6905 = vadd.f32 0.0, %v6904
        %v6906 = vpop.f32.mrb[0].mxu0
        %v6907 = vpop.f32.mrb[0].mxu0
        %v6908 = vadd.f32 0.0, %v6907
        %v6909 = vpop.f32.mrb[0].mxu0
        %6910 = vmatprep.mubr.bf16.mxu0 0
        %6911 = vmatmul.mubr.bf16.gmra.mrb[0].mxu0 %v6713
        %v6912 = vpop.f32.mrb[0].mxu0
        %v6913 = vadd.f32 0.0, %v6912
        %v6914 = vpop.f32.mrb[0].mxu0
        %v6915 = vpop.f32.mrb[0].mxu0
        %v6916 = vadd.f32 0.0, %v6915
        %v6917 = vpop.f32.mrb[0].mxu0
        %6918 = vmatprep.mubr.bf16.mxu0 0
        %6919 = vmatmul.mubr.bf16.gmra.mrb[0].mxu0 %v6714
        %v6920 = vpop.f32.mrb[0].mxu0
        %v6921 = vadd.f32 0.0, %v6920
        %v6922 = vpop.f32.mrb[0].mxu0
        %v6923 = vpop.f32.mrb[0].mxu0
        %v6924 = vadd.f32 0.0, %v6923
        %v6925 = vpop.f32.mrb[0].mxu0
        %6926 = vmatprep.mubr.bf16.mxu0 0
        %6927 = vmatmul.mubr.bf16.gmra.mrb[0].mxu0 %v6715
        %v6928 = vpop.f32.mrb[0].mxu0
        %v6929 = vadd.f32 0.0, %v6928
        %v6930 = vpop.f32.mrb[0].mxu0
        %v6931 = vpop.f32.mrb[0].mxu0
        %v6932 = vadd.f32 0.0, %v6931
        %v6933 = vpop.f32.mrb[0].mxu0
        %6934 = vmatprep.mubr.bf16.mxu0 0
        %6935 = vmatmul.mubr.bf16.gmra.mrb[0].mxu0 %v6716
        %v6936 = vpop.f32.mrb[0].mxu0
        %v6937 = vadd.f32 0.0, %v6936
        %v6938 = vpop.f32.mrb[0].mxu0
        %v6939 = vpop.f32.mrb[0].mxu0
        %v6940 = vadd.f32 0.0, %v6939
        %v6941 = vpop.f32.mrb[0].mxu0
        %6942 = vdwg.mxu0
        %v6943 = vadd.f32 %v6669, %v6817
        %v6944 = vadd.f32 %v6670, %v6820
        %v6945 = vadd.f32 %v6671, %v6825
        %v6946 = vadd.f32 %v6672, %v6828
        %v6947 = vadd.f32 %v6673, %v6833
        %v6948 = vadd.f32 %v6674, %v6836
        %v6949 = vadd.f32 %v6675, %v6841
        %v6950 = vadd.f32 %v6676, %v6844
        %v6951 = vadd.f32 %v6677, %v6849
        %v6952 = vadd.f32 %v6678, %v6852
        %v6953 = vadd.f32 %v6679, %v6857
        %v6954 = vadd.f32 %v6680, %v6860
        %v6955 = vadd.f32 %v6681, %v6865
        %v6956 = vadd.f32 %v6682, %v6868
        %v6957 = vadd.f32 %v6683, %v6873
        %v6958 = vadd.f32 %v6684, %v6876
        %v6959 = vadd.f32 %v6685, %v6881
        %v6960 = vadd.f32 %v6686, %v6884
        %v6961 = vadd.f32 %v6687, %v6889
        %v6962 = vadd.f32 %v6688, %v6892
        %v6963 = vadd.f32 %v6689, %v6897
        %v6964 = vadd.f32 %v6690, %v6900
        %v6965 = vadd.f32 %v6691, %v6905
        %v6966 = vadd.f32 %v6692, %v6908
        %v6967 = vadd.f32 %v6693, %v6913
        %v6968 = vadd.f32 %v6694, %v6916
        %v6969 = vadd.f32 %v6695, %v6921
        %v6970 = vadd.f32 %v6696, %v6924
        %v6971 = vadd.f32 %v6697, %v6929
        %v6972 = vadd.f32 %v6698, %v6932
        %v6973 = vadd.f32 %v6699, %v6937
        %v6974 = vadd.f32 %v6700, %v6940
        %6975 = vst [vmem:[#allocation4] sm:$0xff] %v6943
        %6976 = vst [vmem:[#allocation4 + $0x8] sm:$0xff] %v6944
        %6977 = vst [vmem:[#allocation4 + $0x10] sm:$0xff] %v6945
        %6978 = vst [vmem:[#allocation4 + $0x18] sm:$0xff] %v6946
        %6979 = vst [vmem:[#allocation4 + $0x20] sm:$0xff] %v6947
        %6980 = vst [vmem:[#allocation4 + $0x28] sm:$0xff] %v6948
        %6981 = vst [vmem:[#allocation4 + $0x30] sm:$0xff] %v6949
        %6982 = vst [vmem:[#allocation4 + $0x38] sm:$0xff] %v6950
        %6983 = vst [vmem:[#allocation4 + $0x40] sm:$0xff] %v6951
        %6984 = vst [vmem:[#allocation4 + $0x48] sm:$0xff] %v6952
        %6985 = vst [vmem:[#allocation4 + $0x50] sm:$0xff] %v6953
        %6986 = vst [vmem:[#allocation4 + $0x58] sm:$0xff] %v6954
        %6987 = vst [vmem:[#allocation4 + $0x60] sm:$0xff] %v6955
        %6988 = vst [vmem:[#allocation4 + $0x68] sm:$0xff] %v6956
        %6989 = vst [vmem:[#allocation4 + $0x70] sm:$0xff] %v6957
        %6990 = vst [vmem:[#allocation4 + $0x78] sm:$0xff] %v6958
        %6991 = vst [vmem:[#allocation4 + $0x80] sm:$0xff] %v6959
        %6992 = vst [vmem:[#allocation4 + $0x88] sm:$0xff] %v6960
        %6993 = vst [vmem:[#allocation4 + $0x90] sm:$0xff] %v6961
        %6994 = vst [vmem:[#allocation4 + $0x98] sm:$0xff] %v6962
        %6995 = vst [vmem:[#allocation4 + $0xa0] sm:$0xff] %v6963
        %6996 = vst [vmem:[#allocation4 + $0xa8] sm:$0xff] %v6964
        %6997 = vst [vmem:[#allocation4 + $0xb0] sm:$0xff] %v6965
        %6998 = vst [vmem:[#allocation4 + $0xb8] sm:$0xff] %v6966
        %6999 = vst [vmem:[#allocation4 + $0xc0] sm:$0xff] %v6967
        %7000 = vst [vmem:[#allocation4 + $0xc8] sm:$0xff] %v6968
        %7001 = vst [vmem:[#allocation4 + $0xd0] sm:$0xff] %v6969
        %7002 = vst [vmem:[#allocation4 + $0xd8] sm:$0xff] %v6970
        %7003 = vst [vmem:[#allocation4 + $0xe0] sm:$0xff] %v6971
        %7004 = vst [vmem:[#allocation4 + $0xe8] sm:$0xff] %v6972
        %7005 = vst [vmem:[#allocation4 + $0xf0] sm:$0xff] %v6973
        %7006 = vst [vmem:[#allocation4 + $0xf8] sm:$0xff] %v6974
        %v7007 = vld [vmem:[%s6266 + $0x2] sm:$0xff]
        %v7008 = vld [vmem:[%s6266 + $0xa] sm:$0xff]
        %v7009 = vld [vmem:[%s6266 + $0x1a] sm:$0xff]
        %v7010 = vld [vmem:[%s6266 + $0x22] sm:$0xff]
        %v7011 = vld [vmem:[%s6266 + $0x32] sm:$0xff]
        %v7012 = vld [vmem:[%s6266 + $0x3a] sm:$0xff]
        %v7013 = vld [vmem:[%s6266 + $0x4a] sm:$0xff]
        %v7014 = vld [vmem:[%s6266 + $0x52] sm:$0xff]
        %v7015 = vld [vmem:[%s6266 + $0x62] sm:$0xff]
        %v7016 = vld [vmem:[%s6266 + $0x6a] sm:$0xff]
        %v7017 = vld [vmem:[%s6266 + $0x7a] sm:$0xff]
        %v7018 = vld [vmem:[%s6266 + $0x82] sm:$0xff]
        %v7019 = vld [vmem:[%s6266 + $0x92] sm:$0xff]
        %v7020 = vld [vmem:[%s6266 + $0x9a] sm:$0xff]
        %v7021 = vld [vmem:[%s6266 + $0xaa] sm:$0xff]
        %v7022 = vld [vmem:[%s6266 + $0xb2] sm:$0xff]
        %v7023 = vld [vmem:[%s6266 + $0xc2] sm:$0xff]
        %v7024 = vld [vmem:[%s6266 + $0xca] sm:$0xff]
        %v7025 = vld [vmem:[%s6266 + $0xda] sm:$0xff]
        %v7026 = vld [vmem:[%s6266 + $0xe2] sm:$0xff]
        %v7027 = vld [vmem:[%s6266 + $0xf2] sm:$0xff]
        %v7028 = vld [vmem:[%s6266 + $0xfa] sm:$0xff]
        %v7029 = vld [vmem:[%s6266 + $0x10a] sm:$0xff]
        %v7030 = vld [vmem:[%s6266 + $0x112] sm:$0xff]
        %v7031 = vld [vmem:[%s6266 + $0x122] sm:$0xff]
        %v7032 = vld [vmem:[%s6266 + $0x12a] sm:$0xff]
        %v7033 = vld [vmem:[%s6266 + $0x13a] sm:$0xff]
        %v7034 = vld [vmem:[%s6266 + $0x142] sm:$0xff]
        %v7035 = vld [vmem:[%s6266 + $0x152] sm:$0xff]
        %v7036 = vld [vmem:[%s6266 + $0x15a] sm:$0xff]
        %v7037 = vld [vmem:[%s6266 + $0x16a] sm:$0xff]
        %v7038 = vld [vmem:[%s6266 + $0x172] sm:$0xff]
        %v7039 = vld [vmem:[#allocation4] sm:$0xff]
        %v7040 = vld [vmem:[#allocation4 + $0x8] sm:$0xff]
        %v7041 = vld [vmem:[#allocation4 + $0x10] sm:$0xff]
        %v7042 = vld [vmem:[#allocation4 + $0x18] sm:$0xff]
        %v7043 = vld [vmem:[#allocation4 + $0x20] sm:$0xff]
        %v7044 = vld [vmem:[#allocation4 + $0x28] sm:$0xff]
        %v7045 = vld [vmem:[#allocation4 + $0x30] sm:$0xff]
        %v7046 = vld [vmem:[#allocation4 + $0x38] sm:$0xff]
        %v7047 = vld [vmem:[#allocation4 + $0x40] sm:$0xff]
        %v7048 = vld [vmem:[#allocation4 + $0x48] sm:$0xff]
        %v7049 = vld [vmem:[#allocation4 + $0x50] sm:$0xff]
        %v7050 = vld [vmem:[#allocation4 + $0x58] sm:$0xff]
        %v7051 = vld [vmem:[#allocation4 + $0x60] sm:$0xff]
        %v7052 = vld [vmem:[#allocation4 + $0x68] sm:$0xff]
        %v7053 = vld [vmem:[#allocation4 + $0x70] sm:$0xff]
        %v7054 = vld [vmem:[#allocation4 + $0x78] sm:$0xff]
        %v7055 = vld [vmem:[#allocation4 + $0x80] sm:$0xff]
        %v7056 = vld [vmem:[#allocation4 + $0x88] sm:$0xff]
        %v7057 = vld [vmem:[#allocation4 + $0x90] sm:$0xff]
        %v7058 = vld [vmem:[#allocation4 + $0x98] sm:$0xff]
        %v7059 = vld [vmem:[#allocation4 + $0xa0] sm:$0xff]
        %v7060 = vld [vmem:[#allocation4 + $0xa8] sm:$0xff]
        %v7061 = vld [vmem:[#allocation4 + $0xb0] sm:$0xff]
        %v7062 = vld [vmem:[#allocation4 + $0xb8] sm:$0xff]
        %v7063 = vld [vmem:[#allocation4 + $0xc0] sm:$0xff]
        %v7064 = vld [vmem:[#allocation4 + $0xc8] sm:$0xff]
        %v7065 = vld [vmem:[#allocation4 + $0xd0] sm:$0xff]
        %v7066 = vld [vmem:[#allocation4 + $0xd8] sm:$0xff]
        %v7067 = vld [vmem:[#allocation4 + $0xe0] sm:$0xff]
        %v7068 = vld [vmem:[#allocation4 + $0xe8] sm:$0xff]
        %v7069 = vld [vmem:[#allocation4 + $0xf0] sm:$0xff]
        %v7070 = vld [vmem:[#allocation4 + $0xf8] sm:$0xff]
        %v7071 = vpack.c.bf16 %v7008, %v7007
        %v7072 = vpack.c.bf16 %v7010, %v7009
        %v7073 = vpack.c.bf16 %v7012, %v7011
        %v7074 = vpack.c.bf16 %v7014, %v7013
        %v7075 = vpack.c.bf16 %v7016, %v7015
        %v7076 = vpack.c.bf16 %v7018, %v7017
        %v7077 = vpack.c.bf16 %v7020, %v7019
        %v7078 = vpack.c.bf16 %v7022, %v7021
        %v7079 = vpack.c.bf16 %v7024, %v7023
        %v7080 = vpack.c.bf16 %v7026, %v7025
        %v7081 = vpack.c.bf16 %v7028, %v7027
        %v7082 = vpack.c.bf16 %v7030, %v7029
        %v7083 = vpack.c.bf16 %v7032, %v7031
        %v7084 = vpack.c.bf16 %v7034, %v7033
        %v7085 = vpack.c.bf16 %v7036, %v7035
        %v7086 = vpack.c.bf16 %v7038, %v7037
        %s7087 = scalar_lea.vmem [#allocation10], 512
        %v7088 = vld [vmem:[%s7087] sm:$0xf]
        %v7089 = vld [vmem:[%s7087 + $0x4] sm:$0xf]
        %v7090 = vld [vmem:[%s7087 + $0x8] sm:$0xf]
        %v7091 = vld [vmem:[%s7087 + $0xc] sm:$0xf]
        %v7092 = vld [vmem:[%s7087 + $0x10] sm:$0xf]
        %v7093 = vld [vmem:[%s7087 + $0x14] sm:$0xf]
        %v7094 = vld [vmem:[%s7087 + $0x18] sm:$0xf]
        %v7095 = vld [vmem:[%s7087 + $0x1c] sm:$0xf]
        %v7096 = vld [vmem:[%s7087 + $0x20] sm:$0xf]
        %v7097 = vld [vmem:[%s7087 + $0x24] sm:$0xf]
        %v7098 = vld [vmem:[%s7087 + $0x28] sm:$0xf]
        %v7099 = vld [vmem:[%s7087 + $0x2c] sm:$0xf]
        %v7100 = vld [vmem:[%s7087 + $0x30] sm:$0xf]
        %v7101 = vld [vmem:[%s7087 + $0x34] sm:$0xf]
        %v7102 = vld [vmem:[%s7087 + $0x38] sm:$0xf]
        %v7103 = vld [vmem:[%s7087 + $0x3c] sm:$0xf]
        %v7120 = vunpack.c.l.b16 %v7088
        %v7121 = vunpack.c.l.b16 %v7089
        %v7122 = vunpack.c.l.b16 %v7090
        %v7123 = vunpack.c.l.b16 %v7091
        %v7124 = vunpack.c.l.b16 %v7092
        %v7125 = vunpack.c.l.b16 %v7093
        %v7126 = vunpack.c.l.b16 %v7094
        %v7127 = vunpack.c.l.b16 %v7095
        %v7128 = vunpack.c.l.b16 %v7096
        %v7129 = vunpack.c.l.b16 %v7097
        %v7130 = vunpack.c.l.b16 %v7098
        %v7131 = vunpack.c.l.b16 %v7099
        %v7132 = vunpack.c.l.b16 %v7100
        %v7133 = vunpack.c.l.b16 %v7101
        %v7134 = vunpack.c.l.b16 %v7102
        %v7135 = vunpack.c.l.b16 %v7103
        %v7136 = vpack.c.b16 %v7121, %v7120
        %v7137 = vpack.c.b16 %v7123, %v7122
        %v7138 = vpack.c.b16 %v7125, %v7124
        %v7139 = vpack.c.b16 %v7127, %v7126
        %v7140 = vpack.c.b16 %v7129, %v7128
        %v7141 = vpack.c.b16 %v7131, %v7130
        %v7142 = vpack.c.b16 %v7133, %v7132
        %v7143 = vpack.c.b16 %v7135, %v7134
        %7152 = vmatprep.subr.bf16.mxu0 0
        %7153 = vmatpush1.bf16.msra.mxu0 %v7136
        %7154 = vmatprep.subr.bf16.mxu0 0
        %7155 = vmatpush1.bf16.msra.mxu0 %v7137
        %7156 = vmatprep.subr.bf16.mxu0 0
        %7157 = vmatpush1.bf16.msra.mxu0 %v7138
        %7158 = vmatprep.subr.bf16.mxu0 0
        %7159 = vmatpush1.bf16.msra.mxu0 %v7139
        %7160 = vmatprep.subr.bf16.mxu0 0
        %7161 = vmatpush1.bf16.msra.mxu0 %v7140
        %7162 = vmatprep.subr.bf16.mxu0 0
        %7163 = vmatpush1.bf16.msra.mxu0 %v7141
        %7164 = vmatprep.subr.bf16.mxu0 0
        %7165 = vmatpush1.bf16.msra.mxu0 %v7142
        %7166 = vmatprep.subr.bf16.mxu0 0
        %7167 = vmatpush1.bf16.msra.mxu0 %v7143
        %7168 = vmatprep.subr.bf16.mxu0 0
        %7169 = vmatpush1.bf16.msra.mxu0 0
        %7170 = vmatprep.subr.bf16.mxu0 0
        %7171 = vmatpush1.bf16.msra.mxu0 0
        %7172 = vmatprep.subr.bf16.mxu0 0
        %7173 = vmatpush1.bf16.msra.mxu0 0
        %7174 = vmatprep.subr.bf16.mxu0 0
        %7175 = vmatpush1.bf16.msra.mxu0 0
        %7176 = vmatprep.subr.bf16.mxu0 0
        %7177 = vmatpush1.bf16.msra.mxu0 0
        %7178 = vmatprep.subr.bf16.mxu0 0
        %7179 = vmatpush1.bf16.msra.mxu0 0
        %7180 = vmatprep.subr.bf16.mxu0 0
        %7181 = vmatpush1.bf16.msra.mxu0 0
        %7182 = vmatprep.subr.bf16.mxu0 0
        %7183 = vmatpush1.bf16.msra.mxu0 0
        %7184 = vmatprep.mubr.bf16.mxu0 0
        %7185 = vmatmul.mubr.bf16.gmra.mrb[0].mxu0 %v7071
        %v7186 = vpop.f32.mrb[0].mxu0
        %v7187 = vadd.f32 0.0, %v7186
        %v7188 = vpop.f32.mrb[0].mxu0
        %v7189 = vpop.f32.mrb[0].mxu0
        %v7190 = vadd.f32 0.0, %v7189
        %v7191 = vpop.f32.mrb[0].mxu0
        %7192 = vmatprep.mubr.bf16.mxu0 0
        %7193 = vmatmul.mubr.bf16.gmra.mrb[0].mxu0 %v7072
        %v7194 = vpop.f32.mrb[0].mxu0
        %v7195 = vadd.f32 0.0, %v7194
        %v7196 = vpop.f32.mrb[0].mxu0
        %v7197 = vpop.f32.mrb[0].mxu0
        %v7198 = vadd.f32 0.0, %v7197
        %v7199 = vpop.f32.mrb[0].mxu0
        %7200 = vmatprep.mubr.bf16.mxu0 0
        %7201 = vmatmul.mubr.bf16.gmra.mrb[0].mxu0 %v7073
        %v7202 = vpop.f32.mrb[0].mxu0
        %v7203 = vadd.f32 0.0, %v7202
        %v7204 = vpop.f32.mrb[0].mxu0
        %v7205 = vpop.f32.mrb[0].mxu0
        %v7206 = vadd.f32 0.0, %v7205
        %v7207 = vpop.f32.mrb[0].mxu0
        %7208 = vmatprep.mubr.bf16.mxu0 0
        %7209 = vmatmul.mubr.bf16.gmra.mrb[0].mxu0 %v7074
        %v7210 = vpop.f32.mrb[0].mxu0
        %v7211 = vadd.f32 0.0, %v7210
        %v7212 = vpop.f32.mrb[0].mxu0
        %v7213 = vpop.f32.mrb[0].mxu0
        %v7214 = vadd.f32 0.0, %v7213
        %v7215 = vpop.f32.mrb[0].mxu0
        %7216 = vmatprep.mubr.bf16.mxu0 0
        %7217 = vmatmul.mubr.bf16.gmra.mrb[0].mxu0 %v7075
        %v7218 = vpop.f32.mrb[0].mxu0
        %v7219 = vadd.f32 0.0, %v7218
        %v7220 = vpop.f32.mrb[0].mxu0
        %v7221 = vpop.f32.mrb[0].mxu0
        %v7222 = vadd.f32 0.0, %v7221
        %v7223 = vpop.f32.mrb[0].mxu0
        %7224 = vmatprep.mubr.bf16.mxu0 0
        %7225 = vmatmul.mubr.bf16.gmra.mrb[0].mxu0 %v7076
        %v7226 = vpop.f32.mrb[0].mxu0
        %v7227 = vadd.f32 0.0, %v7226
        %v7228 = vpop.f32.mrb[0].mxu0
        %v7229 = vpop.f32.mrb[0].mxu0
        %v7230 = vadd.f32 0.0, %v7229
        %v7231 = vpop.f32.mrb[0].mxu0
        %7232 = vmatprep.mubr.bf16.mxu0 0
        %7233 = vmatmul.mubr.bf16.gmra.mrb[0].mxu0 %v7077
        %v7234 = vpop.f32.mrb[0].mxu0
        %v7235 = vadd.f32 0.0, %v7234
        %v7236 = vpop.f32.mrb[0].mxu0
        %v7237 = vpop.f32.mrb[0].mxu0
        %v7238 = vadd.f32 0.0, %v7237
        %v7239 = vpop.f32.mrb[0].mxu0
        %7240 = vmatprep.mubr.bf16.mxu0 0
        %7241 = vmatmul.mubr.bf16.gmra.mrb[0].mxu0 %v7078
        %v7242 = vpop.f32.mrb[0].mxu0
        %v7243 = vadd.f32 0.0, %v7242
        %v7244 = vpop.f32.mrb[0].mxu0
        %v7245 = vpop.f32.mrb[0].mxu0
        %v7246 = vadd.f32 0.0, %v7245
        %v7247 = vpop.f32.mrb[0].mxu0
        %7248 = vmatprep.mubr.bf16.mxu0 0
        %7249 = vmatmul.mubr.bf16.gmra.mrb[0].mxu0 %v7079
        %v7250 = vpop.f32.mrb[0].mxu0
        %v7251 = vadd.f32 0.0, %v7250
        %v7252 = vpop.f32.mrb[0].mxu0
        %v7253 = vpop.f32.mrb[0].mxu0
        %v7254 = vadd.f32 0.0, %v7253
        %v7255 = vpop.f32.mrb[0].mxu0
        %7256 = vmatprep.mubr.bf16.mxu0 0
        %7257 = vmatmul.mubr.bf16.gmra.mrb[0].mxu0 %v7080
        %v7258 = vpop.f32.mrb[0].mxu0
        %v7259 = vadd.f32 0.0, %v7258
        %v7260 = vpop.f32.mrb[0].mxu0
        %v7261 = vpop.f32.mrb[0].mxu0
        %v7262 = vadd.f32 0.0, %v7261
        %v7263 = vpop.f32.mrb[0].mxu0
        %7264 = vmatprep.mubr.bf16.mxu0 0
        %7265 = vmatmul.mubr.bf16.gmra.mrb[0].mxu0 %v7081
        %v7266 = vpop.f32.mrb[0].mxu0
        %v7267 = vadd.f32 0.0, %v7266
        %v7268 = vpop.f32.mrb[0].mxu0
        %v7269 = vpop.f32.mrb[0].mxu0
        %v7270 = vadd.f32 0.0, %v7269
        %v7271 = vpop.f32.mrb[0].mxu0
        %7272 = vmatprep.mubr.bf16.mxu0 0
        %7273 = vmatmul.mubr.bf16.gmra.mrb[0].mxu0 %v7082
        %v7274 = vpop.f32.mrb[0].mxu0
        %v7275 = vadd.f32 0.0, %v7274
        %v7276 = vpop.f32.mrb[0].mxu0
        %v7277 = vpop.f32.mrb[0].mxu0
        %v7278 = vadd.f32 0.0, %v7277
        %v7279 = vpop.f32.mrb[0].mxu0
        %7280 = vmatprep.mubr.bf16.mxu0 0
        %7281 = vmatmul.mubr.bf16.gmra.mrb[0].mxu0 %v7083
        %v7282 = vpop.f32.mrb[0].mxu0
        %v7283 = vadd.f32 0.0, %v7282
        %v7284 = vpop.f32.mrb[0].mxu0
        %v7285 = vpop.f32.mrb[0].mxu0
        %v7286 = vadd.f32 0.0, %v7285
        %v7287 = vpop.f32.mrb[0].mxu0
        %7288 = vmatprep.mubr.bf16.mxu0 0
        %7289 = vmatmul.mubr.bf16.gmra.mrb[0].mxu0 %v7084
        %v7290 = vpop.f32.mrb[0].mxu0
        %v7291 = vadd.f32 0.0, %v7290
        %v7292 = vpop.f32.mrb[0].mxu0
        %v7293 = vpop.f32.mrb[0].mxu0
        %v7294 = vadd.f32 0.0, %v7293
        %v7295 = vpop.f32.mrb[0].mxu0
        %7296 = vmatprep.mubr.bf16.mxu0 0
        %7297 = vmatmul.mubr.bf16.gmra.mrb[0].mxu0 %v7085
        %v7298 = vpop.f32.mrb[0].mxu0
        %v7299 = vadd.f32 0.0, %v7298
        %v7300 = vpop.f32.mrb[0].mxu0
        %v7301 = vpop.f32.mrb[0].mxu0
        %v7302 = vadd.f32 0.0, %v7301
        %v7303 = vpop.f32.mrb[0].mxu0
        %7304 = vmatprep.mubr.bf16.mxu0 0
        %7305 = vmatmul.mubr.bf16.gmra.mrb[0].mxu0 %v7086
        %v7306 = vpop.f32.mrb[0].mxu0
        %v7307 = vadd.f32 0.0, %v7306
        %v7308 = vpop.f32.mrb[0].mxu0
        %v7309 = vpop.f32.mrb[0].mxu0
        %v7310 = vadd.f32 0.0, %v7309
        %v7311 = vpop.f32.mrb[0].mxu0
        %7312 = vdwg.mxu0
        %v7313 = vadd.f32 %v7039, %v7187
        %v7314 = vadd.f32 %v7040, %v7190
        %v7315 = vadd.f32 %v7041, %v7195
        %v7316 = vadd.f32 %v7042, %v7198
        %v7317 = vadd.f32 %v7043, %v7203
        %v7318 = vadd.f32 %v7044, %v7206
        %v7319 = vadd.f32 %v7045, %v7211
        %v7320 = vadd.f32 %v7046, %v7214
        %v7321 = vadd.f32 %v7047, %v7219
        %v7322 = vadd.f32 %v7048, %v7222
        %v7323 = vadd.f32 %v7049, %v7227
        %v7324 = vadd.f32 %v7050, %v7230
        %v7325 = vadd.f32 %v7051, %v7235
        %v7326 = vadd.f32 %v7052, %v7238
        %v7327 = vadd.f32 %v7053, %v7243
        %v7328 = vadd.f32 %v7054, %v7246
        %v7329 = vadd.f32 %v7055, %v7251
        %v7330 = vadd.f32 %v7056, %v7254
        %v7331 = vadd.f32 %v7057, %v7259
        %v7332 = vadd.f32 %v7058, %v7262
        %v7333 = vadd.f32 %v7059, %v7267
        %v7334 = vadd.f32 %v7060, %v7270
        %v7335 = vadd.f32 %v7061, %v7275
        %v7336 = vadd.f32 %v7062, %v7278
        %v7337 = vadd.f32 %v7063, %v7283
        %v7338 = vadd.f32 %v7064, %v7286
        %v7339 = vadd.f32 %v7065, %v7291
        %v7340 = vadd.f32 %v7066, %v7294
        %v7341 = vadd.f32 %v7067, %v7299
        %v7342 = vadd.f32 %v7068, %v7302
        %v7343 = vadd.f32 %v7069, %v7307
        %v7344 = vadd.f32 %v7070, %v7310
        %7345 = vst [vmem:[#allocation4] sm:$0xff] %v7313
        %7346 = vst [vmem:[#allocation4 + $0x8] sm:$0xff] %v7314
        %7347 = vst [vmem:[#allocation4 + $0x10] sm:$0xff] %v7315
        %7348 = vst [vmem:[#allocation4 + $0x18] sm:$0xff] %v7316
        %7349 = vst [vmem:[#allocation4 + $0x20] sm:$0xff] %v7317
        %7350 = vst [vmem:[#allocation4 + $0x28] sm:$0xff] %v7318
        %7351 = vst [vmem:[#allocation4 + $0x30] sm:$0xff] %v7319
        %7352 = vst [vmem:[#allocation4 + $0x38] sm:$0xff] %v7320
        %7353 = vst [vmem:[#allocation4 + $0x40] sm:$0xff] %v7321
        %7354 = vst [vmem:[#allocation4 + $0x48] sm:$0xff] %v7322
        %7355 = vst [vmem:[#allocation4 + $0x50] sm:$0xff] %v7323
        %7356 = vst [vmem:[#allocation4 + $0x58] sm:$0xff] %v7324
        %7357 = vst [vmem:[#allocation4 + $0x60] sm:$0xff] %v7325
        %7358 = vst [vmem:[#allocation4 + $0x68] sm:$0xff] %v7326
        %7359 = vst [vmem:[#allocation4 + $0x70] sm:$0xff] %v7327
        %7360 = vst [vmem:[#allocation4 + $0x78] sm:$0xff] %v7328
        %7361 = vst [vmem:[#allocation4 + $0x80] sm:$0xff] %v7329
        %7362 = vst [vmem:[#allocation4 + $0x88] sm:$0xff] %v7330
        %7363 = vst [vmem:[#allocation4 + $0x90] sm:$0xff] %v7331
        %7364 = vst [vmem:[#allocation4 + $0x98] sm:$0xff] %v7332
        %7365 = vst [vmem:[#allocation4 + $0xa0] sm:$0xff] %v7333
        %7366 = vst [vmem:[#allocation4 + $0xa8] sm:$0xff] %v7334
        %7367 = vst [vmem:[#allocation4 + $0xb0] sm:$0xff] %v7335
        %7368 = vst [vmem:[#allocation4 + $0xb8] sm:$0xff] %v7336
        %7369 = vst [vmem:[#allocation4 + $0xc0] sm:$0xff] %v7337
        %7370 = vst [vmem:[#allocation4 + $0xc8] sm:$0xff] %v7338
        %7371 = vst [vmem:[#allocation4 + $0xd0] sm:$0xff] %v7339
        %7372 = vst [vmem:[#allocation4 + $0xd8] sm:$0xff] %v7340
        %7373 = vst [vmem:[#allocation4 + $0xe0] sm:$0xff] %v7341
        %7374 = vst [vmem:[#allocation4 + $0xe8] sm:$0xff] %v7342
        %7375 = vst [vmem:[#allocation4 + $0xf0] sm:$0xff] %v7343
        %7376 = vst [vmem:[#allocation4 + $0xf8] sm:$0xff] %v7344
        %v7377 = vld [vmem:[#allocation4] sm:$0xff]
        %v7378 = vld [vmem:[#allocation4 + $0x8] sm:$0xff]
        %v7379 = vld [vmem:[#allocation4 + $0x10] sm:$0xff]
        %v7380 = vld [vmem:[#allocation4 + $0x18] sm:$0xff]
        %v7381 = vld [vmem:[#allocation4 + $0x20] sm:$0xff]
        %v7382 = vld [vmem:[#allocation4 + $0x28] sm:$0xff]
        %v7383 = vld [vmem:[#allocation4 + $0x30] sm:$0xff]
        %v7384 = vld [vmem:[#allocation4 + $0x38] sm:$0xff]
        %v7385 = vld [vmem:[#allocation4 + $0x40] sm:$0xff]
        %v7386 = vld [vmem:[#allocation4 + $0x48] sm:$0xff]
        %v7387 = vld [vmem:[#allocation4 + $0x50] sm:$0xff]
        %v7388 = vld [vmem:[#allocation4 + $0x58] sm:$0xff]
        %v7389 = vld [vmem:[#allocation4 + $0x60] sm:$0xff]
        %v7390 = vld [vmem:[#allocation4 + $0x68] sm:$0xff]
        %v7391 = vld [vmem:[#allocation4 + $0x70] sm:$0xff]
        %v7392 = vld [vmem:[#allocation4 + $0x78] sm:$0xff]
        %v7393 = vld [vmem:[#allocation4 + $0x80] sm:$0xff]
        %v7394 = vld [vmem:[#allocation4 + $0x88] sm:$0xff]
        %v7395 = vld [vmem:[#allocation4 + $0x90] sm:$0xff]
        %v7396 = vld [vmem:[#allocation4 + $0x98] sm:$0xff]
        %v7397 = vld [vmem:[#allocation4 + $0xa0] sm:$0xff]
        %v7398 = vld [vmem:[#allocation4 + $0xa8] sm:$0xff]
        %v7399 = vld [vmem:[#allocation4 + $0xb0] sm:$0xff]
        %v7400 = vld [vmem:[#allocation4 + $0xb8] sm:$0xff]
        %v7401 = vld [vmem:[#allocation4 + $0xc0] sm:$0xff]
        %v7402 = vld [vmem:[#allocation4 + $0xc8] sm:$0xff]
        %v7403 = vld [vmem:[#allocation4 + $0xd0] sm:$0xff]
        %v7404 = vld [vmem:[#allocation4 + $0xd8] sm:$0xff]
        %v7405 = vld [vmem:[#allocation4 + $0xe0] sm:$0xff]
        %v7406 = vld [vmem:[#allocation4 + $0xe8] sm:$0xff]
        %v7407 = vld [vmem:[#allocation4 + $0xf0] sm:$0xff]
        %v7408 = vld [vmem:[#allocation4 + $0xf8] sm:$0xff]
        %v7409 = vld [vmem:[%s5] sm:$0x1]
        %v7411 = vlaneseq
        %v7412 = vshrl.u32 %v7411, 7
        %v7413 = vsub.s32 0, %v7412
        %v7414 = vrot.slane %v7409, %v7413
        %v7416 = vmul.f32 %v7377, %v7414
        %v7417 = vmul.f32 %v7378, %v7414
        %v7418 = vmul.f32 %v7379, %v7414
        %v7419 = vmul.f32 %v7380, %v7414
        %v7420 = vmul.f32 %v7381, %v7414
        %v7421 = vmul.f32 %v7382, %v7414
        %v7422 = vmul.f32 %v7383, %v7414
        %v7423 = vmul.f32 %v7384, %v7414
        %v7424 = vmul.f32 %v7385, %v7414
        %v7425 = vmul.f32 %v7386, %v7414
        %v7426 = vmul.f32 %v7387, %v7414
        %v7427 = vmul.f32 %v7388, %v7414
        %v7428 = vmul.f32 %v7389, %v7414
        %v7429 = vmul.f32 %v7390, %v7414
        %v7430 = vmul.f32 %v7391, %v7414
        %v7431 = vmul.f32 %v7392, %v7414
        %v7432 = vmul.f32 %v7393, %v7414
        %v7433 = vmul.f32 %v7394, %v7414
        %v7434 = vmul.f32 %v7395, %v7414
        %v7435 = vmul.f32 %v7396, %v7414
        %v7436 = vmul.f32 %v7397, %v7414
        %v7437 = vmul.f32 %v7398, %v7414
        %v7438 = vmul.f32 %v7399, %v7414
        %v7439 = vmul.f32 %v7400, %v7414
        %v7440 = vmul.f32 %v7401, %v7414
        %v7441 = vmul.f32 %v7402, %v7414
        %v7442 = vmul.f32 %v7403, %v7414
        %v7443 = vmul.f32 %v7404, %v7414
        %v7444 = vmul.f32 %v7405, %v7414
        %v7445 = vmul.f32 %v7406, %v7414
        %v7446 = vmul.f32 %v7407, %v7414
        %v7447 = vmul.f32 %v7408, %v7414
        %v7448 = vld [vmem:[%s6] sm:$0x1]
        %v7450 = vlaneseq
        %v7451 = vshrl.u32 %v7450, 7
        %v7452 = vsub.s32 0, %v7451
        %v7453 = vrot.slane %v7448, %v7452
        %v7455 = vadd.f32 %v7416, %v7453
        %v7456 = vadd.f32 %v7417, %v7453
        %v7457 = vadd.f32 %v7418, %v7453
        %v7458 = vadd.f32 %v7419, %v7453
        %v7459 = vadd.f32 %v7420, %v7453
        %v7460 = vadd.f32 %v7421, %v7453
        %v7461 = vadd.f32 %v7422, %v7453
        %v7462 = vadd.f32 %v7423, %v7453
        %v7463 = vadd.f32 %v7424, %v7453
        %v7464 = vadd.f32 %v7425, %v7453
        %v7465 = vadd.f32 %v7426, %v7453
        %v7466 = vadd.f32 %v7427, %v7453
        %v7467 = vadd.f32 %v7428, %v7453
        %v7468 = vadd.f32 %v7429, %v7453
        %v7469 = vadd.f32 %v7430, %v7453
        %v7470 = vadd.f32 %v7431, %v7453
        %v7471 = vadd.f32 %v7432, %v7453
        %v7472 = vadd.f32 %v7433, %v7453
        %v7473 = vadd.f32 %v7434, %v7453
        %v7474 = vadd.f32 %v7435, %v7453
        %v7475 = vadd.f32 %v7436, %v7453
        %v7476 = vadd.f32 %v7437, %v7453
        %v7477 = vadd.f32 %v7438, %v7453
        %v7478 = vadd.f32 %v7439, %v7453
        %v7479 = vadd.f32 %v7440, %v7453
        %v7480 = vadd.f32 %v7441, %v7453
        %v7481 = vadd.f32 %v7442, %v7453
        %v7482 = vadd.f32 %v7443, %v7453
        %v7483 = vadd.f32 %v7444, %v7453
        %v7484 = vadd.f32 %v7445, %v7453
        %v7485 = vadd.f32 %v7446, %v7453
        %v7486 = vadd.f32 %v7447, %v7453
        %v7487 = vadd.f32 %v7455, %v413
        %v7488 = vadd.f32 %v7456, %v414
        %v7489 = vadd.f32 %v7457, %v415
        %v7490 = vadd.f32 %v7458, %v416
        %v7491 = vadd.f32 %v7459, %v417
        %v7492 = vadd.f32 %v7460, %v418
        %v7493 = vadd.f32 %v7461, %v419
        %v7494 = vadd.f32 %v7462, %v420
        %v7495 = vadd.f32 %v7463, %v421
        %v7496 = vadd.f32 %v7464, %v422
        %v7497 = vadd.f32 %v7465, %v423
        %v7498 = vadd.f32 %v7466, %v424
        %v7499 = vadd.f32 %v7467, %v425
        %v7500 = vadd.f32 %v7468, %v426
        %v7501 = vadd.f32 %v7469, %v427
        %v7502 = vadd.f32 %v7470, %v428
        %v7503 = vadd.f32 %v7471, %v429
        %v7504 = vadd.f32 %v7472, %v430
        %v7505 = vadd.f32 %v7473, %v431
        %v7506 = vadd.f32 %v7474, %v432
        %v7507 = vadd.f32 %v7475, %v433
        %v7508 = vadd.f32 %v7476, %v434
        %v7509 = vadd.f32 %v7477, %v435
        %v7510 = vadd.f32 %v7478, %v436
        %v7511 = vadd.f32 %v7479, %v437
        %v7512 = vadd.f32 %v7480, %v438
        %v7513 = vadd.f32 %v7481, %v439
        %v7514 = vadd.f32 %v7482, %v440
        %v7515 = vadd.f32 %v7483, %v441
        %v7516 = vadd.f32 %v7484, %v442
        %v7517 = vadd.f32 %v7485, %v443
        %v7518 = vadd.f32 %v7486, %v444
        %v7519 = vmax.f32 %v7487, 0.0
        %v7520 = vmax.f32 %v7488, 0.0
        %v7521 = vmax.f32 %v7489, 0.0
        %v7522 = vmax.f32 %v7490, 0.0
        %v7523 = vmax.f32 %v7491, 0.0
        %v7524 = vmax.f32 %v7492, 0.0
        %v7525 = vmax.f32 %v7493, 0.0
        %v7526 = vmax.f32 %v7494, 0.0
        %v7527 = vmax.f32 %v7495, 0.0
        %v7528 = vmax.f32 %v7496, 0.0
        %v7529 = vmax.f32 %v7497, 0.0
        %v7530 = vmax.f32 %v7498, 0.0
        %v7531 = vmax.f32 %v7499, 0.0
        %v7532 = vmax.f32 %v7500, 0.0
        %v7533 = vmax.f32 %v7501, 0.0
        %v7534 = vmax.f32 %v7502, 0.0
        %v7535 = vmax.f32 %v7503, 0.0
        %v7536 = vmax.f32 %v7504, 0.0
        %v7537 = vmax.f32 %v7505, 0.0
        %v7538 = vmax.f32 %v7506, 0.0
        %v7539 = vmax.f32 %v7507, 0.0
        %v7540 = vmax.f32 %v7508, 0.0
        %v7541 = vmax.f32 %v7509, 0.0
        %v7542 = vmax.f32 %v7510, 0.0
        %v7543 = vmax.f32 %v7511, 0.0
        %v7544 = vmax.f32 %v7512, 0.0
        %v7545 = vmax.f32 %v7513, 0.0
        %v7546 = vmax.f32 %v7514, 0.0
        %v7547 = vmax.f32 %v7515, 0.0
        %v7548 = vmax.f32 %v7516, 0.0
        %v7549 = vmax.f32 %v7517, 0.0
        %v7550 = vmax.f32 %v7518, 0.0
        %7551 = vst [vmem:[%s325] sm:$0xff] %v7519
        %7552 = vst [vmem:[%s325 + $0x8] sm:$0xff] %v7520
        %7553 = vst [vmem:[%s325 + $0x10] sm:$0xff] %v7521
        %7554 = vst [vmem:[%s325 + $0x18] sm:$0xff] %v7522
        %7555 = vst [vmem:[%s325 + $0x20] sm:$0xff] %v7523
        %7556 = vst [vmem:[%s325 + $0x28] sm:$0xff] %v7524
        %7557 = vst [vmem:[%s325 + $0x30] sm:$0xff] %v7525
        %7558 = vst [vmem:[%s325 + $0x38] sm:$0xff] %v7526
        %7559 = vst [vmem:[%s325 + $0x40] sm:$0xff] %v7527
        %7560 = vst [vmem:[%s325 + $0x48] sm:$0xff] %v7528
        %7561 = vst [vmem:[%s325 + $0x50] sm:$0xff] %v7529
        %7562 = vst [vmem:[%s325 + $0x58] sm:$0xff] %v7530
        %7563 = vst [vmem:[%s325 + $0x60] sm:$0xff] %v7531
        %7564 = vst [vmem:[%s325 + $0x68] sm:$0xff] %v7532
        %7565 = vst [vmem:[%s325 + $0x70] sm:$0xff] %v7533
        %7566 = vst [vmem:[%s325 + $0x78] sm:$0xff] %v7534
        %7567 = vst [vmem:[%s325 + $0x80] sm:$0xff] %v7535
        %7568 = vst [vmem:[%s325 + $0x88] sm:$0xff] %v7536
        %7569 = vst [vmem:[%s325 + $0x90] sm:$0xff] %v7537
        %7570 = vst [vmem:[%s325 + $0x98] sm:$0xff] %v7538
        %7571 = vst [vmem:[%s325 + $0xa0] sm:$0xff] %v7539
        %7572 = vst [vmem:[%s325 + $0xa8] sm:$0xff] %v7540
        %7573 = vst [vmem:[%s325 + $0xb0] sm:$0xff] %v7541
        %7574 = vst [vmem:[%s325 + $0xb8] sm:$0xff] %v7542
        %7575 = vst [vmem:[%s325 + $0xc0] sm:$0xff] %v7543
        %7576 = vst [vmem:[%s325 + $0xc8] sm:$0xff] %v7544
        %7577 = vst [vmem:[%s325 + $0xd0] sm:$0xff] %v7545
        %7578 = vst [vmem:[%s325 + $0xd8] sm:$0xff] %v7546
        %7579 = vst [vmem:[%s325 + $0xe0] sm:$0xff] %v7547
        %7580 = vst [vmem:[%s325 + $0xe8] sm:$0xff] %v7548
        %7581 = vst [vmem:[%s325 + $0xf0] sm:$0xff] %v7549
        %7582 = vst [vmem:[%s325 + $0xf8] sm:$0xff] %v7550
        %s7583 = sand.u32 %s185, 1
        %s7584 = scalar_lea.sflag [#allocation7], %s7583
        %s7585 = sand.u32 %s185, 1
        %s7586 = smul.addr %s7585, 256
        %s7587 = scalar_lea.vmem [#allocation11], %s7586
        // Predicated region
        $region61: #{tpu_custom_call.1} parent=47 // pred_check
          %p7588 = pneg %p195
        $region62: #{tpu_custom_call.1} parent=47 // pred_check_branch
          %7590 = sbr.rel (%p7588) target = $region64
        $region63: #{tpu_custom_call.1} parent=47 // pred_region
          %s7592 = ssub.s32 4096, 4096
          %7593 = vsyncadd %s7584, %s7592
          %s7594 = smul.addr %s25, 32
          %s7595 = smul.addr %s7594, 128
          %s7596 = scalar_lea.hbm %s7, %s7595
          %s7597 = sshll.u32 %s7587, 4
          %s7598 = int_to_ptr.vmem [resolvable:$true] %s7597
          %7603 = dma.vmem_to_hbm [thread:$0]  %s7598, 4096, %s7596, %s7584, 128, 128, 8
        $region64: #{tpu_custom_call.1} parent=47 // pred_fallthru
          _
      $region48: #{tpu_custom_call.1} parent=5 // pred_fallthru
        _
      %p7604 = scmp.le.s32.totalorder 2, %s20
      // Predicated region
      $region65: #{tpu_custom_call.1} parent=5 // pred_check
        %p7605 = pneg %p7604
      $region66: #{tpu_custom_call.1} parent=5 // pred_check_branch
        %7607 = sbr.rel (%p7605) target = $region68
      $region67: #{tpu_custom_call.1} parent=5 // pred_region
        %s7608 = ssub.s32 %s20, 2
        // Predicated region
        $region69: #{tpu_custom_call.1} parent=67 // pred_check
          %p7609 = pneg %p201
        $region70: #{tpu_custom_call.1} parent=67 // pred_check_branch
          %7611 = sbr.rel (%p7609) target = $region72
        $region71: #{tpu_custom_call.1} parent=67 // pred_region
          %s7612 = sand.u32 %s186, 1
          %s7613 = scalar_lea.sflag [#allocation7], %s7612
          %s7614 = sand.u32 %s186, 1
          %s7615 = smul.addr %s7614, 256
          %s7616 = scalar_lea.vmem [#allocation11], %s7615
          %7617 = dma.done %s7613, 4096
        $region72: #{tpu_custom_call.1} parent=67 // pred_fallthru
          _
      $region68: #{tpu_custom_call.1} parent=5 // pred_fallthru
        _
    $region6: #{tpu_custom_call.1} parent=1 // loop_footer
      %s24 = sadd.s32 1, %s20
    $region7: #{tpu_custom_call.1} parent=1 // loop_footer_branch
      %19 = sbr.rel target = $region3
    $region8: #{tpu_custom_call.1} parent=1 // loop_exit
      _
    %7618 = vsyncpa [#allocation6], 1
    %s7619 = scalar_lea.sflag [#allocation6], 1
    %7620 = vsyncpa %s7619, 1
    %7621 = vsyncpa [#allocation9], 1
    %7622 = vsyncpa [#allocation7], 1
    %s7623 = scalar_lea.sflag [#allocation7], 1
    %7624 = vsyncpa %s7623, 1

</llo_original>
